<compile_context>
chip_gen: v5e
topology: v5e:2x2
jax: 0.10.0
libtpu: 0.0.40
codegen_flags: <defaults>
</compile_context>

<pallas_src>
import numpy as np

import jax
import jax.numpy as jnp
from jax.experimental import pallas as pl
from jax.experimental.pallas import tpu as pltpu


# ------------------------------ Pallas kernel ------------------------------ #

def _encoder_kernel(x_ref, m1_ref, b1_ref, m2_ref, b2_ref, gamma_ref, beta_ref,
                    g_ref, gt_ref, m3_ref, b3_ref, wl1_ref, bl1_ref,
                    wh_ref, bh_ref, eps_ref, z_ref, kl_ref):
    f32, bf16 = jnp.float32, jnp.bfloat16

    # conv1 (1->8, k3 s2 p1) + ReLU : (B,784) -> (B,1568)
    y1 = jnp.dot(x_ref[...].astype(bf16), m1_ref[...], preferred_element_type=f32)
    y1 = jnp.maximum(y1 + b1_ref[...], 0.0)

    # conv2 (8->16, k3 s2 p1)       : (B,1568) -> (B,784)
    y2 = jnp.dot(y1.astype(bf16), m2_ref[...], preferred_element_type=f32) + b2_ref[...]

    # BatchNorm2d(16): training-mode whole-batch stats (biased var, eps=1e-5),
    # then ReLU.  Columns are HWC-ordered; per-channel stats are obtained via
    # 0/1 grouping matmuls (g: cols->channels, gt: channels->cols) so no
    # in-kernel reshape is required.
    n_ch = g_ref.shape[1]
    inv_n = 1.0 / float(y2.shape[0] * (y2.shape[1] // n_ch))
    col_sum = jnp.sum(y2, axis=0, keepdims=True)                      # (1, 784)
    col_sq = jnp.sum(y2 * y2, axis=0, keepdims=True)                  # (1, 784)
    ch_mean = jnp.dot(col_sum, g_ref[...], preferred_element_type=f32) * inv_n
    ch_var = jnp.dot(col_sq, g_ref[...], preferred_element_type=f32) * inv_n - ch_mean * ch_mean
    mean_c = jnp.dot(ch_mean, gt_ref[...], preferred_element_type=f32)           # (1, 784)
    rstd_c = jnp.dot(jax.lax.rsqrt(ch_var + 1e-5), gt_ref[...],
                     preferred_element_type=f32)                                  # (1, 784)
    y2 = jnp.maximum((y2 - mean_c) * rstd_c * gamma_ref[...] + beta_ref[...], 0.0)

    # conv3 (16->32, k3 s2 p0) + ReLU : (B,784) -> (B,288)
    y3 = jnp.dot(y2.astype(bf16), m3_ref[...], preferred_element_type=f32)
    y3 = jnp.maximum(y3 + b3_ref[...], 0.0)

    # linear1 + ReLU (PyTorch CHW-flatten order already folded into wl1 rows)
    h = jnp.dot(y3.astype(bf16), wl1_ref[...], preferred_element_type=f32)
    h = jnp.maximum(h + bl1_ref[...], 0.0)

    # head: one matmul produces [mu | log_sigma]
    ms = jnp.dot(h.astype(bf16), wh_ref[...], preferred_element_type=f32) + bh_ref[...]
    ldim = ms.shape[1] // 2
    mu = ms[:, :ldim]
    log_sigma = ms[:, ldim:]            # reused directly as log(sigma) in the KL
    sigma = jnp.exp(log_sigma)

    z_ref[...] = mu + sigma * eps_ref[...]
    kl = sigma * sigma + mu * mu - log_sigma - 0.5
    kl_ref[...] = jnp.sum(kl, axis=(0, 1), keepdims=True)


def _fused_encoder_call(inputs, batch, latent_dims):
    full = lambda a: pl.BlockSpec(a.shape, lambda i, _nd=a.ndim: (0,) * _nd)
    z, kl = pl.pallas_call(
        _encoder_kernel,
        out_shape=(jax.ShapeDtypeStruct((batch, latent_dims), jnp.float32),
                   jax.ShapeDtypeStruct((1, 1), jnp.float32)),
        grid=(1,),
        in_specs=[full(a) for a in inputs],
        out_specs=(pl.BlockSpec((batch, latent_dims), lambda i: (0, 0)),
                   pl.BlockSpec((1, 1), lambda i: (0, 0))),
        compiler_params=pltpu.CompilerParams(
            dimension_semantics=("arbitrary",),
            vmem_limit_bytes=32 * 1024 * 1024),   # safe on v5e (16 MiB default) and v7x (64 MiB phys)
    )(*inputs)
    return z, kl[0, 0]


# ------------------ one-time weight preprocessing (host/XLA) ---------------- #

def _conv_select(H, W, k, stride, pad):
    """0/1 tensor S[(ih*W+iw), (di*k+dj), (oh*Wo+ow)] = 1 if that input pixel is
    that tap of that output pixel (zero-padding handled by absent entries)."""
    Ho = (H + 2 * pad - k) // stride + 1
    Wo = (W + 2 * pad - k) // stride + 1
    S = np.zeros((H * W, k * k, Ho * Wo), np.float32)
    for oh in range(Ho):
        for ow in range(Wo):
            for di in range(k):
                for dj in range(k):
                    ih = oh * stride - pad + di
                    iw = ow * stride - pad + dj
                    if 0 <= ih < H and 0 <= iw < W:
                        S[ih * W + iw, di * k + dj, oh * Wo + ow] = 1.0
    return S, Ho, Wo


def _toeplitz(S, w_im2col, cin, cout):
    """Dense conv-as-matmul matrix: (H_in*W_in*cin, H_out*W_out*cout), HWC order."""
    k2 = S.shape[1]
    wt = w_im2col.reshape(k2, cin, cout)                      # (tap, cin, cout)
    m = jnp.einsum("itp,tcd->icpd", jnp.asarray(S), wt)
    return m.reshape(S.shape[0] * cin, S.shape[2] * cout)


def prepare_params(params, latent_dims):
    """Done once per set of weights (not per forward pass)."""
    S1, H1, W1 = _conv_select(28, 28, 3, 2, 1)    # 28 -> 14
    S2, H2, W2 = _conv_select(H1, W1, 3, 2, 1)    # 14 -> 7
    S3, H3, W3 = _conv_select(H2, W2, 3, 2, 0)    # 7  -> 3

    m1 = _toeplitz(S1, params["w1"], 1, 8)
    m2 = _toeplitz(S2, params["w2"], 8, 16)
    m3 = _toeplitz(S3, params["w3"], 16, 32)

    b1c = jnp.tile(params["b1"], H1 * W1).reshape(1, -1)
    b2c = jnp.tile(params["b2"], H2 * W2).reshape(1, -1)
    b3c = jnp.tile(params["b3"], H3 * W3).reshape(1, -1)
    gc = jnp.tile(params["bn_gamma"], H2 * W2).reshape(1, -1)
    bc = jnp.tile(params["bn_beta"], H2 * W2).reshape(1, -1)

    # channel-grouping matrices for in-kernel BatchNorm statistics
    C2 = 16
    cols2 = H2 * W2 * C2
    G = np.zeros((cols2, C2), np.float32)
    G[np.arange(cols2), np.arange(cols2) % C2] = 1.0

    # fold PyTorch's (C,H,W) flatten order into linear1's rows (kernel consumes
    # the conv3 output directly in HWC order)
    C3 = 32
    perm = np.zeros(H3 * W3 * C3, np.int32)
    for h in range(H3):
        for w in range(W3):
            for c in range(C3):
                perm[(h * W3 + w) * C3 + c] = c * (H3 * W3) + h * W3 + w
    wl1 = params["wl1"][perm, :]

    # merged [mu | log_sigma] head
    wh = jnp.concatenate([params["wl2"], params["wl3"]], axis=1)
    bh = jnp.concatenate([params["bl2"], params["bl3"]]).reshape(1, -1)

    bf16 = jnp.bfloat16
    return {
        "m1": m1.astype(bf16), "b1c": b1c,
        "m2": m2.astype(bf16), "b2c": b2c,
        "gc": gc, "bc": bc,
        "G": jnp.asarray(G), "Gt": jnp.asarray(np.ascontiguousarray(G.T)),
        "m3": m3.astype(bf16), "b3c": b3c,
        "wl1": wl1.astype(bf16), "bl1": params["bl1"].reshape(1, -1),
        "wh": wh.astype(bf16), "bh": bh,
        "latent_dims": latent_dims,
    }


def init_params(key, latent_dims):
    ks = jax.random.split(key, 6)

    def conv_w(k, kh, kw, cin, cout):
        # im2col-friendly layout: rows ordered (kh, kw, cin).
        # TODO(synk): real PyTorch conv weights (cout,cin,kh,kw) must be
        # permuted to this layout before prepare_params().
        fan_in = kh * kw * cin
        return jax.random.normal(k, (kh * kw * cin, cout), jnp.float32) / jnp.sqrt(fan_in)

    def lin_w(k, din, dout):
        return jax.random.normal(k, (din, dout), jnp.float32) / jnp.sqrt(din)

    return {
        "w1": conv_w(ks[0], 3, 3, 1, 8),   "b1": jnp.zeros((8,), jnp.float32),
        "w2": conv_w(ks[1], 3, 3, 8, 16),  "b2": jnp.zeros((16,), jnp.float32),
        "bn_gamma": jnp.ones((16,), jnp.float32),
        "bn_beta": jnp.zeros((16,), jnp.float32),
        "w3": conv_w(ks[2], 3, 3, 16, 32), "b3": jnp.zeros((32,), jnp.float32),
        "wl1": lin_w(ks[3], 3 * 3 * 32, 128), "bl1": jnp.zeros((128,), jnp.float32),
        "wl2": lin_w(ks[4], 128, latent_dims), "bl2": jnp.zeros((latent_dims,), jnp.float32),
        "wl3": lin_w(ks[5], 128, latent_dims), "bl3": jnp.zeros((latent_dims,), jnp.float32),
    }


# --------------------------------- forward --------------------------------- #

def variational_encoder_forward(prepared, x_nchw, eps):
    """x_nchw: (B, 1, 28, 28) float32.  Returns (z, kl) like the PyTorch module."""
    B = x_nchw.shape[0]
    L = prepared["latent_dims"]
    # C=1, so NCHW flatten == HWC flatten: a plain reshape, no transpose.
    x = x_nchw.reshape(B, 28 * 28).astype(jnp.float32)

    inputs = [x,
              prepared["m1"], prepared["b1c"],
              prepared["m2"], prepared["b2c"],
              prepared["gc"], prepared["bc"],
              prepared["G"], prepared["Gt"],
              prepared["m3"], prepared["b3c"],
              prepared["wl1"], prepared["bl1"],
              prepared["wh"], prepared["bh"],
              eps.astype(jnp.float32)]
    return _fused_encoder_call(inputs, B, L)


if __name__ == "__main__":
    latent_dims = 4
    key = jax.random.PRNGKey(0)
    k_param, k_x, k_eps = jax.random.split(key, 3)

    params = init_params(k_param, latent_dims)
    prepared = prepare_params(params, latent_dims)

    x = jax.random.normal(k_x, (2, 1, 28, 28), jnp.float32)      # small batch, MNIST-sized
    # TODO(synk): torch's N(0,1).sample() RNG stream can't be reproduced; the
    # reparameterization noise is drawn with JAX RNG and passed in.
    eps = jax.random.normal(k_eps, (2, latent_dims), jnp.float32)

    z, kl = variational_encoder_forward(prepared, x, eps)
    jax.block_until_ready((z, kl))

    assert z.shape == (2, latent_dims) and kl.shape == ()
    assert bool(jnp.all(jnp.isfinite(z))) and bool(jnp.isfinite(kl))
    print("KERNEL_OK")
</pallas_src>

<mosaic_0001>
module attributes {stable_mosaic.version = 11 : i64} {
  func.func @_encoder_kernel(%arg0: i32, %arg1: memref<2x784xf32, #tpu.memory_space<vmem>>, %arg2: memref<784x1568xbf16, #tpu.memory_space<vmem>>, %arg3: memref<1x1568xf32, #tpu.memory_space<vmem>>, %arg4: memref<1568x784xbf16, #tpu.memory_space<vmem>>, %arg5: memref<1x784xf32, #tpu.memory_space<vmem>>, %arg6: memref<1x784xf32, #tpu.memory_space<vmem>>, %arg7: memref<1x784xf32, #tpu.memory_space<vmem>>, %arg8: memref<784x16xf32, #tpu.memory_space<vmem>>, %arg9: memref<16x784xf32, #tpu.memory_space<vmem>>, %arg10: memref<784x288xbf16, #tpu.memory_space<vmem>>, %arg11: memref<1x288xf32, #tpu.memory_space<vmem>>, %arg12: memref<288x128xbf16, #tpu.memory_space<vmem>>, %arg13: memref<1x128xf32, #tpu.memory_space<vmem>>, %arg14: memref<128x8xbf16, #tpu.memory_space<vmem>>, %arg15: memref<1x8xf32, #tpu.memory_space<vmem>>, %arg16: memref<2x4xf32, #tpu.memory_space<vmem>>, %arg17: memref<2x4xf32, #tpu.memory_space<vmem>>, %arg18: memref<1x1xf32, #tpu.memory_space<vmem>>) attributes {dimension_semantics = [#tpu.dimension_semantics<arbitrary>], iteration_bounds = array<i64: 1>, scalar_prefetch = 0 : i64, scratch_operands = 0 : i64, tpu.core_type = #tpu.core_type<tc>, window_params = [{pipeline_mode = #tpu.pipeline_mode<synchronous>, transform_indices = @transform_0, window_bounds = array<i64: 2, 784>}, {pipeline_mode = #tpu.pipeline_mode<synchronous>, transform_indices = @transform_1, window_bounds = array<i64: 784, 1568>}, {pipeline_mode = #tpu.pipeline_mode<synchronous>, transform_indices = @transform_2, window_bounds = array<i64: 1, 1568>}, {pipeline_mode = #tpu.pipeline_mode<synchronous>, transform_indices = @transform_3, window_bounds = array<i64: 1568, 784>}, {pipeline_mode = #tpu.pipeline_mode<synchronous>, transform_indices = @transform_4, window_bounds = array<i64: 1, 784>}, {pipeline_mode = #tpu.pipeline_mode<synchronous>, transform_indices = @transform_5, window_bounds = array<i64: 1, 784>}, {pipeline_mode = #tpu.pipeline_mode<synchronous>, transform_indices = @transform_6, window_bounds = array<i64: 1, 784>}, {pipeline_mode = #tpu.pipeline_mode<synchronous>, transform_indices = @transform_7, window_bounds = array<i64: 784, 16>}, {pipeline_mode = #tpu.pipeline_mode<synchronous>, transform_indices = @transform_8, window_bounds = array<i64: 16, 784>}, {pipeline_mode = #tpu.pipeline_mode<synchronous>, transform_indices = @transform_9, window_bounds = array<i64: 784, 288>}, {pipeline_mode = #tpu.pipeline_mode<synchronous>, transform_indices = @transform_10, window_bounds = array<i64: 1, 288>}, {pipeline_mode = #tpu.pipeline_mode<synchronous>, transform_indices = @transform_11, window_bounds = array<i64: 288, 128>}, {pipeline_mode = #tpu.pipeline_mode<synchronous>, transform_indices = @transform_12, window_bounds = array<i64: 1, 128>}, {pipeline_mode = #tpu.pipeline_mode<synchronous>, transform_indices = @transform_13, window_bounds = array<i64: 128, 8>}, {pipeline_mode = #tpu.pipeline_mode<synchronous>, transform_indices = @transform_14, window_bounds = array<i64: 1, 8>}, {pipeline_mode = #tpu.pipeline_mode<synchronous>, transform_indices = @transform_15, window_bounds = array<i64: 2, 4>}, {pipeline_mode = #tpu.pipeline_mode<synchronous>, transform_indices = @transform_16, window_bounds = array<i64: 2, 4>}, {pipeline_mode = #tpu.pipeline_mode<synchronous>, transform_indices = @transform_17, window_bounds = array<i64: 1, 1>}]} {
    %c0 = arith.constant 0 : index
    %c0_0 = arith.constant 0 : index
    %0 = vector.load %arg1[%c0, %c0_0] : memref<2x784xf32, #tpu.memory_space<vmem>>, vector<2x784xf32>
    %1 = arith.truncf %0 : vector<2x784xf32> to vector<2x784xbf16>
    %c0_1 = arith.constant 0 : index
    %c0_2 = arith.constant 0 : index
    %2 = vector.load %arg2[%c0_1, %c0_2] : memref<784x1568xbf16, #tpu.memory_space<vmem>>, vector<784x1568xbf16>
    %cst = arith.constant dense<0.000000e+00> : vector<2x1568xf32>
    %3 = tpu.matmul %1, %2, %cst {dimension_numbers = #tpu.dot_dimension_numbers<[1], [0], [0], [1], [0, 0, 1, 1], [], []>} : vector<2x784xbf16>, vector<784x1568xbf16>, vector<2x1568xf32> -> vector<2x1568xf32>
    %c0_3 = arith.constant 0 : index
    %c0_4 = arith.constant 0 : index
    %4 = vector.load %arg3[%c0_3, %c0_4] : memref<1x1568xf32, #tpu.memory_space<vmem>>, vector<1x1568xf32>
    %5 = vector.broadcast %4 : vector<1x1568xf32> to vector<2x1568xf32>
    %6 = arith.addf %3, %5 : vector<2x1568xf32>
    %cst_5 = arith.constant 0.000000e+00 : f32
    %7 = vector.broadcast %cst_5 : f32 to vector<2x1568xf32>
    %8 = arith.maximumf %6, %7 : vector<2x1568xf32>
    %9 = arith.truncf %8 : vector<2x1568xf32> to vector<2x1568xbf16>
    %c0_6 = arith.constant 0 : index
    %c0_7 = arith.constant 0 : index
    %10 = vector.load %arg4[%c0_6, %c0_7] : memref<1568x784xbf16, #tpu.memory_space<vmem>>, vector<1568x784xbf16>
    %cst_8 = arith.constant dense<0.000000e+00> : vector<2x784xf32>
    %11 = tpu.matmul %9, %10, %cst_8 {dimension_numbers = #tpu.dot_dimension_numbers<[1], [0], [0], [1], [0, 0, 1, 1], [], []>} : vector<2x1568xbf16>, vector<1568x784xbf16>, vector<2x784xf32> -> vector<2x784xf32>
    %c0_9 = arith.constant 0 : index
    %c0_10 = arith.constant 0 : index
    %12 = vector.load %arg5[%c0_9, %c0_10] : memref<1x784xf32, #tpu.memory_space<vmem>>, vector<1x784xf32>
    %13 = vector.broadcast %12 : vector<1x784xf32> to vector<2x784xf32>
    %14 = arith.addf %11, %13 : vector<2x784xf32>
    %cst_11 = arith.constant dense<0.000000e+00> : vector<784xf32>
    %15 = vector.multi_reduction <add>, %14, %cst_11 [0] : vector<2x784xf32> to vector<784xf32>
    %16 = vector.shape_cast %15 : vector<784xf32> to vector<1x784xf32>
    %17 = arith.mulf %14, %14 : vector<2x784xf32>
    %cst_12 = arith.constant dense<0.000000e+00> : vector<784xf32>
    %18 = vector.multi_reduction <add>, %17, %cst_12 [0] : vector<2x784xf32> to vector<784xf32>
    %19 = vector.shape_cast %18 : vector<784xf32> to vector<1x784xf32>
    %c0_13 = arith.constant 0 : index
    %c0_14 = arith.constant 0 : index
    %20 = vector.load %arg8[%c0_13, %c0_14] : memref<784x16xf32, #tpu.memory_space<vmem>>, vector<784x16xf32>
    %cst_15 = arith.constant dense<0.000000e+00> : vector<1x16xf32>
    %21 = tpu.matmul %16, %20, %cst_15 {dimension_numbers = #tpu.dot_dimension_numbers<[1], [0], [0], [1], [0, 0, 1, 1], [], []>} : vector<1x784xf32>, vector<784x16xf32>, vector<1x16xf32> -> vector<1x16xf32>
    %cst_16 = arith.constant 0.0102040814 : f32
    %22 = vector.broadcast %cst_16 : f32 to vector<1x16xf32>
    %23 = arith.mulf %21, %22 : vector<1x16xf32>
    %c0_17 = arith.constant 0 : index
    %c0_18 = arith.constant 0 : index
    %24 = vector.load %arg8[%c0_17, %c0_18] : memref<784x16xf32, #tpu.memory_space<vmem>>, vector<784x16xf32>
    %cst_19 = arith.constant dense<0.000000e+00> : vector<1x16xf32>
    %25 = tpu.matmul %19, %24, %cst_19 {dimension_numbers = #tpu.dot_dimension_numbers<[1], [0], [0], [1], [0, 0, 1, 1], [], []>} : vector<1x784xf32>, vector<784x16xf32>, vector<1x16xf32> -> vector<1x16xf32>
    %cst_20 = arith.constant 0.0102040814 : f32
    %26 = vector.broadcast %cst_20 : f32 to vector<1x16xf32>
    %27 = arith.mulf %25, %26 : vector<1x16xf32>
    %28 = arith.mulf %23, %23 : vector<1x16xf32>
    %29 = arith.subf %27, %28 : vector<1x16xf32>
    %c0_21 = arith.constant 0 : index
    %c0_22 = arith.constant 0 : index
    %30 = vector.load %arg9[%c0_21, %c0_22] : memref<16x784xf32, #tpu.memory_space<vmem>>, vector<16x784xf32>
    %cst_23 = arith.constant dense<0.000000e+00> : vector<1x784xf32>
    %31 = tpu.matmul %23, %30, %cst_23 {dimension_numbers = #tpu.dot_dimension_numbers<[1], [0], [0], [1], [0, 0, 1, 1], [], []>} : vector<1x16xf32>, vector<16x784xf32>, vector<1x784xf32> -> vector<1x784xf32>
    %cst_24 = arith.constant 9.99999974E-6 : f32
    %32 = vector.broadcast %cst_24 : f32 to vector<1x16xf32>
    %33 = arith.addf %29, %32 : vector<1x16xf32>
    %34 = math.rsqrt %33 : vector<1x16xf32>
    %c0_25 = arith.constant 0 : index
    %c0_26 = arith.constant 0 : index
    %35 = vector.load %arg9[%c0_25, %c0_26] : memref<16x784xf32, #tpu.memory_space<vmem>>, vector<16x784xf32>
    %cst_27 = arith.constant dense<0.000000e+00> : vector<1x784xf32>
    %36 = tpu.matmul %34, %35, %cst_27 {dimension_numbers = #tpu.dot_dimension_numbers<[1], [0], [0], [1], [0, 0, 1, 1], [], []>} : vector<1x16xf32>, vector<16x784xf32>, vector<1x784xf32> -> vector<1x784xf32>
    %37 = vector.broadcast %31 : vector<1x784xf32> to vector<2x784xf32>
    %38 = arith.subf %14, %37 : vector<2x784xf32>
    %39 = vector.broadcast %36 : vector<1x784xf32> to vector<2x784xf32>
    %40 = arith.mulf %38, %39 : vector<2x784xf32>
    %c0_28 = arith.constant 0 : index
    %c0_29 = arith.constant 0 : index
    %41 = vector.load %arg6[%c0_28, %c0_29] : memref<1x784xf32, #tpu.memory_space<vmem>>, vector<1x784xf32>
    %42 = vector.broadcast %41 : vector<1x784xf32> to vector<2x784xf32>
    %43 = arith.mulf %40, %42 : vector<2x784xf32>
    %c0_30 = arith.constant 0 : index
    %c0_31 = arith.constant 0 : index
    %44 = vector.load %arg7[%c0_30, %c0_31] : memref<1x784xf32, #tpu.memory_space<vmem>>, vector<1x784xf32>
    %45 = vector.broadcast %44 : vector<1x784xf32> to vector<2x784xf32>
    %46 = arith.addf %43, %45 : vector<2x784xf32>
    %cst_32 = arith.constant 0.000000e+00 : f32
    %47 = vector.broadcast %cst_32 : f32 to vector<2x784xf32>
    %48 = arith.maximumf %46, %47 : vector<2x784xf32>
    %49 = arith.truncf %48 : vector<2x784xf32> to vector<2x784xbf16>
    %c0_33 = arith.constant 0 : index
    %c0_34 = arith.constant 0 : index
    %50 = vector.load %arg10[%c0_33, %c0_34] : memref<784x288xbf16, #tpu.memory_space<vmem>>, vector<784x288xbf16>
    %cst_35 = arith.constant dense<0.000000e+00> : vector<2x288xf32>
    %51 = tpu.matmul %49, %50, %cst_35 {dimension_numbers = #tpu.dot_dimension_numbers<[1], [0], [0], [1], [0, 0, 1, 1], [], []>} : vector<2x784xbf16>, vector<784x288xbf16>, vector<2x288xf32> -> vector<2x288xf32>
    %c0_36 = arith.constant 0 : index
    %c0_37 = arith.constant 0 : index
    %52 = vector.load %arg11[%c0_36, %c0_37] : memref<1x288xf32, #tpu.memory_space<vmem>>, vector<1x288xf32>
    %53 = vector.broadcast %52 : vector<1x288xf32> to vector<2x288xf32>
    %54 = arith.addf %51, %53 : vector<2x288xf32>
    %cst_38 = arith.constant 0.000000e+00 : f32
    %55 = vector.broadcast %cst_38 : f32 to vector<2x288xf32>
    %56 = arith.maximumf %54, %55 : vector<2x288xf32>
    %57 = arith.truncf %56 : vector<2x288xf32> to vector<2x288xbf16>
    %c0_39 = arith.constant 0 : index
    %c0_40 = arith.constant 0 : index
    %58 = vector.load %arg12[%c0_39, %c0_40] : memref<288x128xbf16, #tpu.memory_space<vmem>>, vector<288x128xbf16>
    %cst_41 = arith.constant dense<0.000000e+00> : vector<2x128xf32>
    %59 = tpu.matmul %57, %58, %cst_41 {dimension_numbers = #tpu.dot_dimension_numbers<[1], [0], [0], [1], [0, 0, 1, 1], [], []>} : vector<2x288xbf16>, vector<288x128xbf16>, vector<2x128xf32> -> vector<2x128xf32>
    %c0_42 = arith.constant 0 : index
    %c0_43 = arith.constant 0 : index
    %60 = vector.load %arg13[%c0_42, %c0_43] : memref<1x128xf32, #tpu.memory_space<vmem>>, vector<1x128xf32>
    %61 = vector.broadcast %60 : vector<1x128xf32> to vector<2x128xf32>
    %62 = arith.addf %59, %61 : vector<2x128xf32>
    %cst_44 = arith.constant 0.000000e+00 : f32
    %63 = vector.broadcast %cst_44 : f32 to vector<2x128xf32>
    %64 = arith.maximumf %62, %63 : vector<2x128xf32>
    %65 = arith.truncf %64 : vector<2x128xf32> to vector<2x128xbf16>
    %c0_45 = arith.constant 0 : index
    %c0_46 = arith.constant 0 : index
    %66 = vector.load %arg14[%c0_45, %c0_46] : memref<128x8xbf16, #tpu.memory_space<vmem>>, vector<128x8xbf16>
    %cst_47 = arith.constant dense<0.000000e+00> : vector<2x8xf32>
    %67 = tpu.matmul %65, %66, %cst_47 {dimension_numbers = #tpu.dot_dimension_numbers<[1], [0], [0], [1], [0, 0, 1, 1], [], []>} : vector<2x128xbf16>, vector<128x8xbf16>, vector<2x8xf32> -> vector<2x8xf32>
    %c0_48 = arith.constant 0 : index
    %c0_49 = arith.constant 0 : index
    %68 = vector.load %arg15[%c0_48, %c0_49] : memref<1x8xf32, #tpu.memory_space<vmem>>, vector<1x8xf32>
    %69 = vector.broadcast %68 : vector<1x8xf32> to vector<2x8xf32>
    %70 = arith.addf %67, %69 : vector<2x8xf32>
    %71 = vector.extract_strided_slice %70 {offsets = [0, 0], sizes = [2, 4], strides = [1, 1]} : vector<2x8xf32> to vector<2x4xf32>
    %72 = vector.extract_strided_slice %70 {offsets = [0, 4], sizes = [2, 4], strides = [1, 1]} : vector<2x8xf32> to vector<2x4xf32>
    %73 = math.exp %72 : vector<2x4xf32>
    %c0_50 = arith.constant 0 : index
    %c0_51 = arith.constant 0 : index
    %74 = vector.load %arg16[%c0_50, %c0_51] : memref<2x4xf32, #tpu.memory_space<vmem>>, vector<2x4xf32>
    %75 = arith.mulf %73, %74 : vector<2x4xf32>
    %76 = arith.addf %71, %75 : vector<2x4xf32>
    %c0_52 = arith.constant 0 : index
    %c0_53 = arith.constant 0 : index
    %77 = vector.load %arg17[%c0_52, %c0_53] : memref<2x4xf32, #tpu.memory_space<vmem>>, vector<2x4xf32>
    tpu.vector_store %arg17[%c0_52, %c0_53], %76 {strides = array<i32>} : memref<2x4xf32, #tpu.memory_space<vmem>>, vector<2x4xf32>,
    %78 = arith.mulf %73, %73 : vector<2x4xf32>
    %79 = arith.mulf %71, %71 : vector<2x4xf32>
    %80 = arith.addf %78, %79 : vector<2x4xf32>
    %81 = arith.subf %80, %72 : vector<2x4xf32>
    %cst_54 = arith.constant 5.000000e-01 : f32
    %82 = vector.broadcast %cst_54 : f32 to vector<2x4xf32>
    %83 = arith.subf %81, %82 : vector<2x4xf32>
    %84 = vector.shape_cast %83 : vector<2x4xf32> to vector<1x2x4xf32>
    %cst_55 = arith.constant dense<0.000000e+00> : vector<1xf32>
    %85 = vector.multi_reduction <add>, %84, %cst_55 [1, 2] : vector<1x2x4xf32> to vector<1xf32>
    %86 = vector.shape_cast %85 : vector<1xf32> to vector<1x1x1xf32>
    %87 = vector.extract %86[0, 0, 0] : f32 from vector<1x1x1xf32>
    %88 = vector.broadcast %87 : f32 to vector<1x1xf32>
    %c0_56 = arith.constant 0 : index
    %c0_57 = arith.constant 0 : index
    %89 = vector.load %arg18[%c0_56, %c0_57] : memref<1x1xf32, #tpu.memory_space<vmem>>, vector<1x1xf32>
    tpu.vector_store %arg18[%c0_56, %c0_57], %88 {strides = array<i32>} : memref<1x1xf32, #tpu.memory_space<vmem>>, vector<1x1xf32>,
    return
  }
  func.func @transform_0(%arg0: i32) -> (i32, i32) {
    %c0_i32 = arith.constant 0 : i32
    %c0_i32_0 = arith.constant 0 : i32
    %c0_i32_1 = arith.constant 0 : i32
    return %c0_i32, %c0_i32_0 : i32, i32
  }
  func.func @transform_1(%arg0: i32) -> (i32, i32) {
    %c0_i32 = arith.constant 0 : i32
    %c0_i32_0 = arith.constant 0 : i32
    %c0_i32_1 = arith.constant 0 : i32
    return %c0_i32, %c0_i32_0 : i32, i32
  }
  func.func @transform_2(%arg0: i32) -> (i32, i32) {
    %c0_i32 = arith.constant 0 : i32
    %c0_i32_0 = arith.constant 0 : i32
    %c0_i32_1 = arith.constant 0 : i32
    return %c0_i32, %c0_i32_0 : i32, i32
  }
  func.func @transform_3(%arg0: i32) -> (i32, i32) {
    %c0_i32 = arith.constant 0 : i32
    %c0_i32_0 = arith.constant 0 : i32
    %c0_i32_1 = arith.constant 0 : i32
    return %c0_i32, %c0_i32_0 : i32, i32
  }
  func.func @transform_4(%arg0: i32) -> (i32, i32) {
    %c0_i32 = arith.constant 0 : i32
    %c0_i32_0 = arith.constant 0 : i32
    %c0_i32_1 = arith.constant 0 : i32
    return %c0_i32, %c0_i32_0 : i32, i32
  }
  func.func @transform_5(%arg0: i32) -> (i32, i32) {
    %c0_i32 = arith.constant 0 : i32
    %c0_i32_0 = arith.constant 0 : i32
    %c0_i32_1 = arith.constant 0 : i32
    return %c0_i32, %c0_i32_0 : i32, i32
  }
  func.func @transform_6(%arg0: i32) -> (i32, i32) {
    %c0_i32 = arith.constant 0 : i32
    %c0_i32_0 = arith.constant 0 : i32
    %c0_i32_1 = arith.constant 0 : i32
    return %c0_i32, %c0_i32_0 : i32, i32
  }
  func.func @transform_7(%arg0: i32) -> (i32, i32) {
    %c0_i32 = arith.constant 0 : i32
    %c0_i32_0 = arith.constant 0 : i32
    %c0_i32_1 = arith.constant 0 : i32
    return %c0_i32, %c0_i32_0 : i32, i32
  }
  func.func @transform_8(%arg0: i32) -> (i32, i32) {
    %c0_i32 = arith.constant 0 : i32
    %c0_i32_0 = arith.constant 0 : i32
    %c0_i32_1 = arith.constant 0 : i32
    return %c0_i32, %c0_i32_0 : i32, i32
  }
  func.func @transform_9(%arg0: i32) -> (i32, i32) {
    %c0_i32 = arith.constant 0 : i32
    %c0_i32_0 = arith.constant 0 : i32
    %c0_i32_1 = arith.constant 0 : i32
    return %c0_i32, %c0_i32_0 : i32, i32
  }
  func.func @transform_10(%arg0: i32) -> (i32, i32) {
    %c0_i32 = arith.constant 0 : i32
    %c0_i32_0 = arith.constant 0 : i32
    %c0_i32_1 = arith.constant 0 : i32
    return %c0_i32, %c0_i32_0 : i32, i32
  }
  func.func @transform_11(%arg0: i32) -> (i32, i32) {
    %c0_i32 = arith.constant 0 : i32
    %c0_i32_0 = arith.constant 0 : i32
    %c0_i32_1 = arith.constant 0 : i32
    return %c0_i32, %c0_i32_0 : i32, i32
  }
  func.func @transform_12(%arg0: i32) -> (i32, i32) {
    %c0_i32 = arith.constant 0 : i32
    %c0_i32_0 = arith.constant 0 : i32
    %c0_i32_1 = arith.constant 0 : i32
    return %c0_i32, %c0_i32_0 : i32, i32
  }
  func.func @transform_13(%arg0: i32) -> (i32, i32) {
    %c0_i32 = arith.constant 0 : i32
    %c0_i32_0 = arith.constant 0 : i32
    %c0_i32_1 = arith.constant 0 : i32
    return %c0_i32, %c0_i32_0 : i32, i32
  }
  func.func @transform_14(%arg0: i32) -> (i32, i32) {
    %c0_i32 = arith.constant 0 : i32
    %c0_i32_0 = arith.constant 0 : i32
    %c0_i32_1 = arith.constant 0 : i32
    return %c0_i32, %c0_i32_0 : i32, i32
  }
  func.func @transform_15(%arg0: i32) -> (i32, i32) {
    %c0_i32 = arith.constant 0 : i32
    %c0_i32_0 = arith.constant 0 : i32
    %c0_i32_1 = arith.constant 0 : i32
    return %c0_i32, %c0_i32_0 : i32, i32
  }
  func.func @transform_16(%arg0: i32) -> (i32, i32) {
    %c0_i32 = arith.constant 0 : i32
    %c0_i32_0 = arith.constant 0 : i32
    %c0_i32_1 = arith.constant 0 : i32
    return %c0_i32, %c0_i32_0 : i32, i32
  }
  func.func @transform_17(%arg0: i32) -> (i32, i32) {
    %c0_i32 = arith.constant 0 : i32
    %c0_i32_0 = arith.constant 0 : i32
    %c0_i32_1 = arith.constant 0 : i32
    return %c0_i32, %c0_i32_0 : i32, i32
  }
}

</mosaic_0001>

<llo_original>
// kernel: tpu_custom_call.1
$region0: #{tpu_custom_call.1}
  #allocation0 [shape = 'u32[]', space=smem, size = 0x4, offset = 0x4, fixed_abs, tag = 'smem constant byte address 0x4 - core index']
  #allocation1 [shape = 'u32[72,128]{1,0:T(1,128)}', space=vmem, size = 0x9000, scoped, tag = 'internal scratch']
  %s0 = inlined_call_operand.vmem [shape: f32[2,784], index: 0, kind: input, shape index: {}]
  %s1 = inlined_call_operand.vmem [shape: bf16[784,1568], index: 1, kind: input, shape index: {}]
  %s2 = inlined_call_operand.vmem [shape: f32[1,1568], index: 2, kind: input, shape index: {}]
  %s3 = inlined_call_operand.vmem [shape: bf16[1568,784], index: 3, kind: input, shape index: {}]
  %s4 = inlined_call_operand.vmem [shape: f32[1,784], index: 4, kind: input, shape index: {}]
  %s5 = inlined_call_operand.vmem [shape: f32[1,784], index: 5, kind: input, shape index: {}]
  %s6 = inlined_call_operand.vmem [shape: f32[1,784], index: 6, kind: input, shape index: {}]
  %s7 = inlined_call_operand.vmem [shape: f32[784,16], index: 7, kind: input, shape index: {}]
  %s8 = inlined_call_operand.vmem [shape: f32[16,784], index: 8, kind: input, shape index: {}]
  %s9 = inlined_call_operand.vmem [shape: bf16[784,288], index: 9, kind: input, shape index: {}]
  %s10 = inlined_call_operand.vmem [shape: f32[1,288], index: 10, kind: input, shape index: {}]
  %s11 = inlined_call_operand.vmem [shape: bf16[288,128], index: 11, kind: input, shape index: {}]
  %s12 = inlined_call_operand.vmem [shape: f32[1,128], index: 12, kind: input, shape index: {}]
  %s13 = inlined_call_operand.vmem [shape: bf16[128,8], index: 13, kind: input, shape index: {}]
  %s14 = inlined_call_operand.vmem [shape: f32[1,8], index: 14, kind: input, shape index: {}]
  %s15 = inlined_call_operand.vmem [shape: f32[2,4], index: 15, kind: input, shape index: {}]
  %s16 = inlined_call_operand.hbm [shape: f32[2,4], index: 16, kind: output, shape index: {0}]
  %s17 = inlined_call_operand.hbm [shape: f32[1,1], index: 17, kind: output, shape index: {1}]
  %18 = xla_tuple %s16, %s17
  %s19 = sld [smem:[#allocation0]]
  $region82: #{tpu_custom_call.1} parent=0
    _
  %s21 = ssub.s32 1, %s19
  %s22 = scalar_select 0, %s21, %s19
  $region1: #{tpu_custom_call.1} parent=0
    #allocation2 [shape = 'u8[1024]{0}', space=vmem, size = 0x400, scoped, tag = 'output window, operand 0, single buffered']
    #allocation3 [shape = 's32[1]{0}', space=sflag, size = 0x4, scoped, tag = 'scoped memory for tpu_custom_call.1']
    #allocation4 [shape = 'u8[512]{0}', space=vmem, size = 0x400, scoped, tag = 'output window, operand 1, single buffered']
    #allocation5 [shape = 's32[1]{0}', space=sflag, size = 0x4, scoped, tag = 'scoped memory for tpu_custom_call.1']
    %23 = vsyncpa [#allocation3], 0
    %24 = vsyncpa [#allocation5], 0
    // Predicated region
    $region2: #{tpu_custom_call.1} parent=1 // pred_check
      _
    $region3: #{tpu_custom_call.1} parent=1 // pred_check_branch
      %26 = sbr.rel (0) target = $region5
    $region4: #{tpu_custom_call.1} parent=1 // pred_region
      _
    $region5: #{tpu_custom_call.1} parent=1 // pred_fallthru
      _
    // Predicated region
    $region6: #{tpu_custom_call.1} parent=1 // pred_check
      _
    $region7: #{tpu_custom_call.1} parent=1 // pred_check_branch
      %28 = sbr.rel (0) target = $region9
    $region8: #{tpu_custom_call.1} parent=1 // pred_region
      _
    $region9: #{tpu_custom_call.1} parent=1 // pred_fallthru
      _
    // Predicated region
    $region10: #{tpu_custom_call.1} parent=1 // pred_check
      _
    $region11: #{tpu_custom_call.1} parent=1 // pred_check_branch
      %30 = sbr.rel (0) target = $region13
    $region12: #{tpu_custom_call.1} parent=1 // pred_region
      _
    $region13: #{tpu_custom_call.1} parent=1 // pred_fallthru
      _
    // Predicated region
    $region14: #{tpu_custom_call.1} parent=1 // pred_check
      _
    $region15: #{tpu_custom_call.1} parent=1 // pred_check_branch
      %32 = sbr.rel (0) target = $region17
    $region16: #{tpu_custom_call.1} parent=1 // pred_region
      _
    $region17: #{tpu_custom_call.1} parent=1 // pred_fallthru
      _
    // Predicated region
    $region18: #{tpu_custom_call.1} parent=1 // pred_check
      _
    $region19: #{tpu_custom_call.1} parent=1 // pred_check_branch
      %34 = sbr.rel (0) target = $region21
    $region20: #{tpu_custom_call.1} parent=1 // pred_region
      _
    $region21: #{tpu_custom_call.1} parent=1 // pred_fallthru
      _
    // Predicated region
    $region22: #{tpu_custom_call.1} parent=1 // pred_check
      _
    $region23: #{tpu_custom_call.1} parent=1 // pred_check_branch
      %36 = sbr.rel (0) target = $region25
    $region24: #{tpu_custom_call.1} parent=1 // pred_region
      _
    $region25: #{tpu_custom_call.1} parent=1 // pred_fallthru
      _
    // Predicated region
    $region26: #{tpu_custom_call.1} parent=1 // pred_check
      _
    $region27: #{tpu_custom_call.1} parent=1 // pred_check_branch
      %38 = sbr.rel (0) target = $region29
    $region28: #{tpu_custom_call.1} parent=1 // pred_region
      _
    $region29: #{tpu_custom_call.1} parent=1 // pred_fallthru
      _
    // Predicated region
    $region30: #{tpu_custom_call.1} parent=1 // pred_check
      _
    $region31: #{tpu_custom_call.1} parent=1 // pred_check_branch
      %40 = sbr.rel (0) target = $region33
    $region32: #{tpu_custom_call.1} parent=1 // pred_region
      _
    $region33: #{tpu_custom_call.1} parent=1 // pred_fallthru
      _
    // Predicated region
    $region34: #{tpu_custom_call.1} parent=1 // pred_check
      _
    $region35: #{tpu_custom_call.1} parent=1 // pred_check_branch
      %42 = sbr.rel (0) target = $region37
    $region36: #{tpu_custom_call.1} parent=1 // pred_region
      _
    $region37: #{tpu_custom_call.1} parent=1 // pred_fallthru
      _
    // Predicated region
    $region38: #{tpu_custom_call.1} parent=1 // pred_check
      _
    $region39: #{tpu_custom_call.1} parent=1 // pred_check_branch
      %44 = sbr.rel (0) target = $region41
    $region40: #{tpu_custom_call.1} parent=1 // pred_region
      _
    $region41: #{tpu_custom_call.1} parent=1 // pred_fallthru
      _
    // Predicated region
    $region42: #{tpu_custom_call.1} parent=1 // pred_check
      _
    $region43: #{tpu_custom_call.1} parent=1 // pred_check_branch
      %46 = sbr.rel (0) target = $region45
    $region44: #{tpu_custom_call.1} parent=1 // pred_region
      _
    $region45: #{tpu_custom_call.1} parent=1 // pred_fallthru
      _
    // Predicated region
    $region46: #{tpu_custom_call.1} parent=1 // pred_check
      _
    $region47: #{tpu_custom_call.1} parent=1 // pred_check_branch
      %48 = sbr.rel (0) target = $region49
    $region48: #{tpu_custom_call.1} parent=1 // pred_region
      _
    $region49: #{tpu_custom_call.1} parent=1 // pred_fallthru
      _
    // Predicated region
    $region50: #{tpu_custom_call.1} parent=1 // pred_check
      _
    $region51: #{tpu_custom_call.1} parent=1 // pred_check_branch
      %50 = sbr.rel (0) target = $region53
    $region52: #{tpu_custom_call.1} parent=1 // pred_region
      _
    $region53: #{tpu_custom_call.1} parent=1 // pred_fallthru
      _
    // Predicated region
    $region54: #{tpu_custom_call.1} parent=1 // pred_check
      _
    $region55: #{tpu_custom_call.1} parent=1 // pred_check_branch
      %52 = sbr.rel (0) target = $region57
    $region56: #{tpu_custom_call.1} parent=1 // pred_region
      _
    $region57: #{tpu_custom_call.1} parent=1 // pred_fallthru
      _
    // Predicated region
    $region58: #{tpu_custom_call.1} parent=1 // pred_check
      _
    $region59: #{tpu_custom_call.1} parent=1 // pred_check_branch
      %54 = sbr.rel (0) target = $region61
    $region60: #{tpu_custom_call.1} parent=1 // pred_region
      _
    $region61: #{tpu_custom_call.1} parent=1 // pred_fallthru
      _
    // Predicated region
    $region62: #{tpu_custom_call.1} parent=1 // pred_check
      _
    $region63: #{tpu_custom_call.1} parent=1 // pred_check_branch
      %56 = sbr.rel (0) target = $region65
    $region64: #{tpu_custom_call.1} parent=1 // pred_region
      _
    $region65: #{tpu_custom_call.1} parent=1 // pred_fallthru
      _
    %v58 = vld [vmem:[%s0] sm:$0xff]
    %v59 = vld [vmem:[%s0 + $0x8] sm:$0x3f]
    %62 = vst [vmem:[#allocation1] ss:$4 sm:$0xff] %v58
    %s63 = scalar_lea.vmem [#allocation1], 32
    %64 = vst [vmem:[%s63] ss:$4 sm:$0xff] %v59
    %v65 = vld.sshfl [vmem:[#allocation1] sm:$0xff pattern:$0x73625140]
    %v66 = vld.sshfl [vmem:[#allocation1 + $0x8] sm:$0xff pattern:$0x73625140]
    %v67 = vld.sshfl [vmem:[#allocation1 + $0x10] sm:$0xff pattern:$0x73625140]
    %v68 = vld.sshfl [vmem:[#allocation1 + $0x18] sm:$0xff pattern:$0x73625140]
    %v69 = vld.sshfl [vmem:[#allocation1 + $0x20] sm:$0xff pattern:$0x73625140]
    %v70 = vld.sshfl [vmem:[#allocation1 + $0x28] sm:$0xff pattern:$0x73625140]
    %v71 = vld.sshfl [vmem:[#allocation1 + $0x30] sm:$0xff pattern:$0x73625140]
    %v79 = vpack.c.bf16 %v65, %v65
    %v80 = vpack.c.bf16 %v66, %v66
    %v81 = vpack.c.bf16 %v67, %v67
    %v82 = vpack.c.bf16 %v68, %v68
    %v83 = vpack.c.bf16 %v69, %v69
    %v84 = vpack.c.bf16 %v70, %v70
    %v85 = vpack.c.bf16 %v71, %v71
    %v86 = vld [vmem:[%s1] sm:$0xff]
    %v87 = vld [vmem:[%s1 + $0x8] sm:$0xff]
    %v88 = vld [vmem:[%s1 + $0x10] sm:$0xff]
    %v89 = vld [vmem:[%s1 + $0x18] sm:$0xff]
    %v90 = vld [vmem:[%s1 + $0x20] sm:$0xff]
    %v91 = vld [vmem:[%s1 + $0x28] sm:$0xff]
    %v92 = vld [vmem:[%s1 + $0x30] sm:$0xf]
    %v93 = vld [vmem:[%s1 + $0x34] sm:$0xff]
    %v94 = vld [vmem:[%s1 + $0x3c] sm:$0xff]
    %v95 = vld [vmem:[%s1 + $0x44] sm:$0xff]
    %v96 = vld [vmem:[%s1 + $0x4c] sm:$0xff]
    %v97 = vld [vmem:[%s1 + $0x54] sm:$0xff]
    %v98 = vld [vmem:[%s1 + $0x5c] sm:$0xff]
    %v99 = vld [vmem:[%s1 + $0x64] sm:$0xf]
    %v100 = vld [vmem:[%s1 + $0x68] sm:$0xff]
    %v101 = vld [vmem:[%s1 + $0x70] sm:$0xff]
    %v102 = vld [vmem:[%s1 + $0x78] sm:$0xff]
    %v103 = vld [vmem:[%s1 + $0x80] sm:$0xff]
    %v104 = vld [vmem:[%s1 + $0x88] sm:$0xff]
    %v105 = vld [vmem:[%s1 + $0x90] sm:$0xff]
    %v106 = vld [vmem:[%s1 + $0x98] sm:$0xf]
    %v107 = vld [vmem:[%s1 + $0x9c] sm:$0xff]
    %v108 = vld [vmem:[%s1 + $0xa4] sm:$0xff]
    %v109 = vld [vmem:[%s1 + $0xac] sm:$0xff]
    %v110 = vld [vmem:[%s1 + $0xb4] sm:$0xff]
    %v111 = vld [vmem:[%s1 + $0xbc] sm:$0xff]
    %v112 = vld [vmem:[%s1 + $0xc4] sm:$0xff]
    %v113 = vld [vmem:[%s1 + $0xcc] sm:$0xf]
    %v114 = vld [vmem:[%s1 + $0xd0] sm:$0xff]
    %v115 = vld [vmem:[%s1 + $0xd8] sm:$0xff]
    %v116 = vld [vmem:[%s1 + $0xe0] sm:$0xff]
    %v117 = vld [vmem:[%s1 + $0xe8] sm:$0xff]
    %v118 = vld [vmem:[%s1 + $0xf0] sm:$0xff]
    %v119 = vld [vmem:[%s1 + $0xf8] sm:$0xff]
    %v120 = vld [vmem:[%s1 + $0x100] sm:$0xf]
    %v121 = vld [vmem:[%s1 + $0x104] sm:$0xff]
    %v122 = vld [vmem:[%s1 + $0x10c] sm:$0xff]
    %v123 = vld [vmem:[%s1 + $0x114] sm:$0xff]
    %v124 = vld [vmem:[%s1 + $0x11c] sm:$0xff]
    %v125 = vld [vmem:[%s1 + $0x124] sm:$0xff]
    %v126 = vld [vmem:[%s1 + $0x12c] sm:$0xff]
    %v127 = vld [vmem:[%s1 + $0x134] sm:$0xf]
    %v128 = vld [vmem:[%s1 + $0x138] sm:$0xff]
    %v129 = vld [vmem:[%s1 + $0x140] sm:$0xff]
    %v130 = vld [vmem:[%s1 + $0x148] sm:$0xff]
    %v131 = vld [vmem:[%s1 + $0x150] sm:$0xff]
    %v132 = vld [vmem:[%s1 + $0x158] sm:$0xff]
    %v133 = vld [vmem:[%s1 + $0x160] sm:$0xff]
    %v134 = vld [vmem:[%s1 + $0x168] sm:$0xf]
    %v135 = vld [vmem:[%s1 + $0x16c] sm:$0xff]
    %v136 = vld [vmem:[%s1 + $0x174] sm:$0xff]
    %v137 = vld [vmem:[%s1 + $0x17c] sm:$0xff]
    %v138 = vld [vmem:[%s1 + $0x184] sm:$0xff]
    %v139 = vld [vmem:[%s1 + $0x18c] sm:$0xff]
    %v140 = vld [vmem:[%s1 + $0x194] sm:$0xff]
    %v141 = vld [vmem:[%s1 + $0x19c] sm:$0xf]
    %v142 = vld [vmem:[%s1 + $0x1a0] sm:$0xff]
    %v143 = vld [vmem:[%s1 + $0x1a8] sm:$0xff]
    %v144 = vld [vmem:[%s1 + $0x1b0] sm:$0xff]
    %v145 = vld [vmem:[%s1 + $0x1b8] sm:$0xff]
    %v146 = vld [vmem:[%s1 + $0x1c0] sm:$0xff]
    %v147 = vld [vmem:[%s1 + $0x1c8] sm:$0xff]
    %v148 = vld [vmem:[%s1 + $0x1d0] sm:$0xf]
    %v149 = vld [vmem:[%s1 + $0x1d4] sm:$0xff]
    %v150 = vld [vmem:[%s1 + $0x1dc] sm:$0xff]
    %v151 = vld [vmem:[%s1 + $0x1e4] sm:$0xff]
    %v152 = vld [vmem:[%s1 + $0x1ec] sm:$0xff]
    %v153 = vld [vmem:[%s1 + $0x1f4] sm:$0xff]
    %v154 = vld [vmem:[%s1 + $0x1fc] sm:$0xff]
    %v155 = vld [vmem:[%s1 + $0x204] sm:$0xf]
    %v156 = vld [vmem:[%s1 + $0x208] sm:$0xff]
    %v157 = vld [vmem:[%s1 + $0x210] sm:$0xff]
    %v158 = vld [vmem:[%s1 + $0x218] sm:$0xff]
    %v159 = vld [vmem:[%s1 + $0x220] sm:$0xff]
    %v160 = vld [vmem:[%s1 + $0x228] sm:$0xff]
    %v161 = vld [vmem:[%s1 + $0x230] sm:$0xff]
    %v162 = vld [vmem:[%s1 + $0x238] sm:$0xf]
    %v163 = vld [vmem:[%s1 + $0x23c] sm:$0xff]
    %v164 = vld [vmem:[%s1 + $0x244] sm:$0xff]
    %v165 = vld [vmem:[%s1 + $0x24c] sm:$0xff]
    %v166 = vld [vmem:[%s1 + $0x254] sm:$0xff]
    %v167 = vld [vmem:[%s1 + $0x25c] sm:$0xff]
    %v168 = vld [vmem:[%s1 + $0x264] sm:$0xff]
    %v169 = vld [vmem:[%s1 + $0x26c] sm:$0xf]
    %v170 = vld [vmem:[%s1 + $0x270] sm:$0xff]
    %v171 = vld [vmem:[%s1 + $0x278] sm:$0xff]
    %v172 = vld [vmem:[%s1 + $0x280] sm:$0xff]
    %v173 = vld [vmem:[%s1 + $0x288] sm:$0xff]
    %v174 = vld [vmem:[%s1 + $0x290] sm:$0xff]
    %v175 = vld [vmem:[%s1 + $0x298] sm:$0xff]
    %v176 = vld [vmem:[%s1 + $0x2a0] sm:$0xf]
    %v177 = vld [vmem:[%s1 + $0x2a4] sm:$0xff]
    %v178 = vld [vmem:[%s1 + $0x2ac] sm:$0xff]
    %v179 = vld [vmem:[%s1 + $0x2b4] sm:$0xff]
    %v180 = vld [vmem:[%s1 + $0x2bc] sm:$0xff]
    %v181 = vld [vmem:[%s1 + $0x2c4] sm:$0xff]
    %v182 = vld [vmem:[%s1 + $0x2cc] sm:$0xff]
    %v183 = vld [vmem:[%s1 + $0x2d4] sm:$0xf]
    %v184 = vld [vmem:[%s1 + $0x2d8] sm:$0xff]
    %v185 = vld [vmem:[%s1 + $0x2e0] sm:$0xff]
    %v186 = vld [vmem:[%s1 + $0x2e8] sm:$0xff]
    %v187 = vld [vmem:[%s1 + $0x2f0] sm:$0xff]
    %v188 = vld [vmem:[%s1 + $0x2f8] sm:$0xff]
    %v189 = vld [vmem:[%s1 + $0x300] sm:$0xff]
    %v190 = vld [vmem:[%s1 + $0x308] sm:$0xf]
    %v191 = vld [vmem:[%s1 + $0x30c] sm:$0xff]
    %v192 = vld [vmem:[%s1 + $0x314] sm:$0xff]
    %v193 = vld [vmem:[%s1 + $0x31c] sm:$0xff]
    %v194 = vld [vmem:[%s1 + $0x324] sm:$0xff]
    %v195 = vld [vmem:[%s1 + $0x32c] sm:$0xff]
    %v196 = vld [vmem:[%s1 + $0x334] sm:$0xff]
    %v197 = vld [vmem:[%s1 + $0x33c] sm:$0xf]
    %v198 = vld [vmem:[%s1 + $0x340] sm:$0xff]
    %v199 = vld [vmem:[%s1 + $0x348] sm:$0xff]
    %v200 = vld [vmem:[%s1 + $0x350] sm:$0xff]
    %v201 = vld [vmem:[%s1 + $0x358] sm:$0xff]
    %v202 = vld [vmem:[%s1 + $0x360] sm:$0xff]
    %v203 = vld [vmem:[%s1 + $0x368] sm:$0xff]
    %v204 = vld [vmem:[%s1 + $0x370] sm:$0xf]
    %v205 = vld [vmem:[%s1 + $0x374] sm:$0xff]
    %v206 = vld [vmem:[%s1 + $0x37c] sm:$0xff]
    %v207 = vld [vmem:[%s1 + $0x384] sm:$0xff]
    %v208 = vld [vmem:[%s1 + $0x38c] sm:$0xff]
    %v209 = vld [vmem:[%s1 + $0x394] sm:$0xff]
    %v210 = vld [vmem:[%s1 + $0x39c] sm:$0xff]
    %v211 = vld [vmem:[%s1 + $0x3a4] sm:$0xf]
    %v212 = vld [vmem:[%s1 + $0x3a8] sm:$0xff]
    %v213 = vld [vmem:[%s1 + $0x3b0] sm:$0xff]
    %v214 = vld [vmem:[%s1 + $0x3b8] sm:$0xff]
    %v215 = vld [vmem:[%s1 + $0x3c0] sm:$0xff]
    %v216 = vld [vmem:[%s1 + $0x3c8] sm:$0xff]
    %v217 = vld [vmem:[%s1 + $0x3d0] sm:$0xff]
    %v218 = vld [vmem:[%s1 + $0x3d8] sm:$0xf]
    %v219 = vld [vmem:[%s1 + $0x3dc] sm:$0xff]
    %v220 = vld [vmem:[%s1 + $0x3e4] sm:$0xff]
    %v221 = vld [vmem:[%s1 + $0x3ec] sm:$0xff]
    %v222 = vld [vmem:[%s1 + $0x3f4] sm:$0xff]
    %v223 = vld [vmem:[%s1 + $0x3fc] sm:$0xff]
    %v224 = vld [vmem:[%s1 + $0x404] sm:$0xff]
    %v225 = vld [vmem:[%s1 + $0x40c] sm:$0xf]
    %v226 = vld [vmem:[%s1 + $0x410] sm:$0xff]
    %v227 = vld [vmem:[%s1 + $0x418] sm:$0xff]
    %v228 = vld [vmem:[%s1 + $0x420] sm:$0xff]
    %v229 = vld [vmem:[%s1 + $0x428] sm:$0xff]
    %v230 = vld [vmem:[%s1 + $0x430] sm:$0xff]
    %v231 = vld [vmem:[%s1 + $0x438] sm:$0xff]
    %v232 = vld [vmem:[%s1 + $0x440] sm:$0xf]
    %v233 = vld [vmem:[%s1 + $0x444] sm:$0xff]
    %v234 = vld [vmem:[%s1 + $0x44c] sm:$0xff]
    %v235 = vld [vmem:[%s1 + $0x454] sm:$0xff]
    %v236 = vld [vmem:[%s1 + $0x45c] sm:$0xff]
    %v237 = vld [vmem:[%s1 + $0x464] sm:$0xff]
    %v238 = vld [vmem:[%s1 + $0x46c] sm:$0xff]
    %v239 = vld [vmem:[%s1 + $0x474] sm:$0xf]
    %v240 = vld [vmem:[%s1 + $0x478] sm:$0xff]
    %v241 = vld [vmem:[%s1 + $0x480] sm:$0xff]
    %v242 = vld [vmem:[%s1 + $0x488] sm:$0xff]
    %v243 = vld [vmem:[%s1 + $0x490] sm:$0xff]
    %v244 = vld [vmem:[%s1 + $0x498] sm:$0xff]
    %v245 = vld [vmem:[%s1 + $0x4a0] sm:$0xff]
    %v246 = vld [vmem:[%s1 + $0x4a8] sm:$0xf]
    %v247 = vld [vmem:[%s1 + $0x4ac] sm:$0xff]
    %v248 = vld [vmem:[%s1 + $0x4b4] sm:$0xff]
    %v249 = vld [vmem:[%s1 + $0x4bc] sm:$0xff]
    %v250 = vld [vmem:[%s1 + $0x4c4] sm:$0xff]
    %v251 = vld [vmem:[%s1 + $0x4cc] sm:$0xff]
    %v252 = vld [vmem:[%s1 + $0x4d4] sm:$0xff]
    %v253 = vld [vmem:[%s1 + $0x4dc] sm:$0xf]
    %v254 = vld [vmem:[%s1 + $0x4e0] sm:$0xff]
    %v255 = vld [vmem:[%s1 + $0x4e8] sm:$0xff]
    %v256 = vld [vmem:[%s1 + $0x4f0] sm:$0xff]
    %v257 = vld [vmem:[%s1 + $0x4f8] sm:$0xff]
    %v258 = vld [vmem:[%s1 + $0x500] sm:$0xff]
    %v259 = vld [vmem:[%s1 + $0x508] sm:$0xff]
    %v260 = vld [vmem:[%s1 + $0x510] sm:$0xf]
    %v261 = vld [vmem:[%s1 + $0x514] sm:$0xff]
    %v262 = vld [vmem:[%s1 + $0x51c] sm:$0xff]
    %v263 = vld [vmem:[%s1 + $0x524] sm:$0xff]
    %v264 = vld [vmem:[%s1 + $0x52c] sm:$0xff]
    %v265 = vld [vmem:[%s1 + $0x534] sm:$0xff]
    %v266 = vld [vmem:[%s1 + $0x53c] sm:$0xff]
    %v267 = vld [vmem:[%s1 + $0x544] sm:$0xf]
    %v268 = vld [vmem:[%s1 + $0x548] sm:$0xff]
    %v269 = vld [vmem:[%s1 + $0x550] sm:$0xff]
    %v270 = vld [vmem:[%s1 + $0x558] sm:$0xff]
    %v271 = vld [vmem:[%s1 + $0x560] sm:$0xff]
    %v272 = vld [vmem:[%s1 + $0x568] sm:$0xff]
    %v273 = vld [vmem:[%s1 + $0x570] sm:$0xff]
    %v274 = vld [vmem:[%s1 + $0x578] sm:$0xf]
    %v275 = vld [vmem:[%s1 + $0x57c] sm:$0xff]
    %v276 = vld [vmem:[%s1 + $0x584] sm:$0xff]
    %v277 = vld [vmem:[%s1 + $0x58c] sm:$0xff]
    %v278 = vld [vmem:[%s1 + $0x594] sm:$0xff]
    %v279 = vld [vmem:[%s1 + $0x59c] sm:$0xff]
    %v280 = vld [vmem:[%s1 + $0x5a4] sm:$0xff]
    %v281 = vld [vmem:[%s1 + $0x5ac] sm:$0xf]
    %v282 = vld [vmem:[%s1 + $0x5b0] sm:$0xff]
    %v283 = vld [vmem:[%s1 + $0x5b8] sm:$0xff]
    %v284 = vld [vmem:[%s1 + $0x5c0] sm:$0xff]
    %v285 = vld [vmem:[%s1 + $0x5c8] sm:$0xff]
    %v286 = vld [vmem:[%s1 + $0x5d0] sm:$0xff]
    %v287 = vld [vmem:[%s1 + $0x5d8] sm:$0xff]
    %v288 = vld [vmem:[%s1 + $0x5e0] sm:$0xf]
    %v289 = vld [vmem:[%s1 + $0x5e4] sm:$0xff]
    %v290 = vld [vmem:[%s1 + $0x5ec] sm:$0xff]
    %v291 = vld [vmem:[%s1 + $0x5f4] sm:$0xff]
    %v292 = vld [vmem:[%s1 + $0x5fc] sm:$0xff]
    %v293 = vld [vmem:[%s1 + $0x604] sm:$0xff]
    %v294 = vld [vmem:[%s1 + $0x60c] sm:$0xff]
    %v295 = vld [vmem:[%s1 + $0x614] sm:$0xf]
    %v296 = vld [vmem:[%s1 + $0x618] sm:$0xff]
    %v297 = vld [vmem:[%s1 + $0x620] sm:$0xff]
    %v298 = vld [vmem:[%s1 + $0x628] sm:$0xff]
    %v299 = vld [vmem:[%s1 + $0x630] sm:$0xff]
    %v300 = vld [vmem:[%s1 + $0x638] sm:$0xff]
    %v301 = vld [vmem:[%s1 + $0x640] sm:$0xff]
    %v302 = vld [vmem:[%s1 + $0x648] sm:$0xf]
    %v303 = vld [vmem:[%s1 + $0x64c] sm:$0xff]
    %v304 = vld [vmem:[%s1 + $0x654] sm:$0xff]
    %v305 = vld [vmem:[%s1 + $0x65c] sm:$0xff]
    %v306 = vld [vmem:[%s1 + $0x664] sm:$0xff]
    %v307 = vld [vmem:[%s1 + $0x66c] sm:$0xff]
    %v308 = vld [vmem:[%s1 + $0x674] sm:$0xff]
    %v309 = vld [vmem:[%s1 + $0x67c] sm:$0xf]
    %v310 = vld [vmem:[%s1 + $0x680] sm:$0xff]
    %v311 = vld [vmem:[%s1 + $0x688] sm:$0xff]
    %v312 = vld [vmem:[%s1 + $0x690] sm:$0xff]
    %v313 = vld [vmem:[%s1 + $0x698] sm:$0xff]
    %v314 = vld [vmem:[%s1 + $0x6a0] sm:$0xff]
    %v315 = vld [vmem:[%s1 + $0x6a8] sm:$0xff]
    %v316 = vld [vmem:[%s1 + $0x6b0] sm:$0xf]
    %v317 = vld [vmem:[%s1 + $0x6b4] sm:$0xff]
    %v318 = vld [vmem:[%s1 + $0x6bc] sm:$0xff]
    %v319 = vld [vmem:[%s1 + $0x6c4] sm:$0xff]
    %v320 = vld [vmem:[%s1 + $0x6cc] sm:$0xff]
    %v321 = vld [vmem:[%s1 + $0x6d4] sm:$0xff]
    %v322 = vld [vmem:[%s1 + $0x6dc] sm:$0xff]
    %v323 = vld [vmem:[%s1 + $0x6e4] sm:$0xf]
    %v324 = vld [vmem:[%s1 + $0x6e8] sm:$0xff]
    %v325 = vld [vmem:[%s1 + $0x6f0] sm:$0xff]
    %v326 = vld [vmem:[%s1 + $0x6f8] sm:$0xff]
    %v327 = vld [vmem:[%s1 + $0x700] sm:$0xff]
    %v328 = vld [vmem:[%s1 + $0x708] sm:$0xff]
    %v329 = vld [vmem:[%s1 + $0x710] sm:$0xff]
    %v330 = vld [vmem:[%s1 + $0x718] sm:$0xf]
    %v331 = vld [vmem:[%s1 + $0x71c] sm:$0xff]
    %v332 = vld [vmem:[%s1 + $0x724] sm:$0xff]
    %v333 = vld [vmem:[%s1 + $0x72c] sm:$0xff]
    %v334 = vld [vmem:[%s1 + $0x734] sm:$0xff]
    %v335 = vld [vmem:[%s1 + $0x73c] sm:$0xff]
    %v336 = vld [vmem:[%s1 + $0x744] sm:$0xff]
    %v337 = vld [vmem:[%s1 + $0x74c] sm:$0xf]
    %v338 = vld [vmem:[%s1 + $0x750] sm:$0xff]
    %v339 = vld [vmem:[%s1 + $0x758] sm:$0xff]
    %v340 = vld [vmem:[%s1 + $0x760] sm:$0xff]
    %v341 = vld [vmem:[%s1 + $0x768] sm:$0xff]
    %v342 = vld [vmem:[%s1 + $0x770] sm:$0xff]
    %v343 = vld [vmem:[%s1 + $0x778] sm:$0xff]
    %v344 = vld [vmem:[%s1 + $0x780] sm:$0xf]
    %v345 = vld [vmem:[%s1 + $0x784] sm:$0xff]
    %v346 = vld [vmem:[%s1 + $0x78c] sm:$0xff]
    %v347 = vld [vmem:[%s1 + $0x794] sm:$0xff]
    %v348 = vld [vmem:[%s1 + $0x79c] sm:$0xff]
    %v349 = vld [vmem:[%s1 + $0x7a4] sm:$0xff]
    %v350 = vld [vmem:[%s1 + $0x7ac] sm:$0xff]
    %v351 = vld [vmem:[%s1 + $0x7b4] sm:$0xf]
    %v352 = vld [vmem:[%s1 + $0x7b8] sm:$0xff]
    %v353 = vld [vmem:[%s1 + $0x7c0] sm:$0xff]
    %v354 = vld [vmem:[%s1 + $0x7c8] sm:$0xff]
    %v355 = vld [vmem:[%s1 + $0x7d0] sm:$0xff]
    %v356 = vld [vmem:[%s1 + $0x7d8] sm:$0xff]
    %v357 = vld [vmem:[%s1 + $0x7e0] sm:$0xff]
    %v358 = vld [vmem:[%s1 + $0x7e8] sm:$0xf]
    %v359 = vld [vmem:[%s1 + $0x7ec] sm:$0xff]
    %v360 = vld [vmem:[%s1 + $0x7f4] sm:$0xff]
    %v361 = vld [vmem:[%s1 + $0x7fc] sm:$0xff]
    %v362 = vld [vmem:[%s1 + $0x804] sm:$0xff]
    %v363 = vld [vmem:[%s1 + $0x80c] sm:$0xff]
    %v364 = vld [vmem:[%s1 + $0x814] sm:$0xff]
    %v365 = vld [vmem:[%s1 + $0x81c] sm:$0xf]
    %v366 = vld [vmem:[%s1 + $0x820] sm:$0xff]
    %v367 = vld [vmem:[%s1 + $0x828] sm:$0xff]
    %v368 = vld [vmem:[%s1 + $0x830] sm:$0xff]
    %v369 = vld [vmem:[%s1 + $0x838] sm:$0xff]
    %v370 = vld [vmem:[%s1 + $0x840] sm:$0xff]
    %v371 = vld [vmem:[%s1 + $0x848] sm:$0xff]
    %v372 = vld [vmem:[%s1 + $0x850] sm:$0xf]
    %v373 = vld [vmem:[%s1 + $0x854] sm:$0xff]
    %v374 = vld [vmem:[%s1 + $0x85c] sm:$0xff]
    %v375 = vld [vmem:[%s1 + $0x864] sm:$0xff]
    %v376 = vld [vmem:[%s1 + $0x86c] sm:$0xff]
    %v377 = vld [vmem:[%s1 + $0x874] sm:$0xff]
    %v378 = vld [vmem:[%s1 + $0x87c] sm:$0xff]
    %v379 = vld [vmem:[%s1 + $0x884] sm:$0xf]
    %v380 = vld [vmem:[%s1 + $0x888] sm:$0xff]
    %v381 = vld [vmem:[%s1 + $0x890] sm:$0xff]
    %v382 = vld [vmem:[%s1 + $0x898] sm:$0xff]
    %v383 = vld [vmem:[%s1 + $0x8a0] sm:$0xff]
    %v384 = vld [vmem:[%s1 + $0x8a8] sm:$0xff]
    %v385 = vld [vmem:[%s1 + $0x8b0] sm:$0xff]
    %v386 = vld [vmem:[%s1 + $0x8b8] sm:$0xf]
    %v387 = vld [vmem:[%s1 + $0x8bc] sm:$0xff]
    %v388 = vld [vmem:[%s1 + $0x8c4] sm:$0xff]
    %v389 = vld [vmem:[%s1 + $0x8cc] sm:$0xff]
    %v390 = vld [vmem:[%s1 + $0x8d4] sm:$0xff]
    %v391 = vld [vmem:[%s1 + $0x8dc] sm:$0xff]
    %v392 = vld [vmem:[%s1 + $0x8e4] sm:$0xff]
    %v393 = vld [vmem:[%s1 + $0x8ec] sm:$0xf]
    %v394 = vld [vmem:[%s1 + $0x8f0] sm:$0xff]
    %v395 = vld [vmem:[%s1 + $0x8f8] sm:$0xff]
    %v396 = vld [vmem:[%s1 + $0x900] sm:$0xff]
    %v397 = vld [vmem:[%s1 + $0x908] sm:$0xff]
    %v398 = vld [vmem:[%s1 + $0x910] sm:$0xff]
    %v399 = vld [vmem:[%s1 + $0x918] sm:$0xff]
    %v400 = vld [vmem:[%s1 + $0x920] sm:$0xf]
    %v401 = vld [vmem:[%s1 + $0x924] sm:$0xff]
    %v402 = vld [vmem:[%s1 + $0x92c] sm:$0xff]
    %v403 = vld [vmem:[%s1 + $0x934] sm:$0xff]
    %v404 = vld [vmem:[%s1 + $0x93c] sm:$0xff]
    %v405 = vld [vmem:[%s1 + $0x944] sm:$0xff]
    %v406 = vld [vmem:[%s1 + $0x94c] sm:$0xff]
    %v407 = vld [vmem:[%s1 + $0x954] sm:$0xf]
    %v408 = vld [vmem:[%s1 + $0x958] sm:$0xff]
    %v409 = vld [vmem:[%s1 + $0x960] sm:$0xff]
    %v410 = vld [vmem:[%s1 + $0x968] sm:$0xff]
    %v411 = vld [vmem:[%s1 + $0x970] sm:$0xff]
    %v412 = vld [vmem:[%s1 + $0x978] sm:$0xff]
    %v413 = vld [vmem:[%s1 + $0x980] sm:$0xff]
    %v414 = vld [vmem:[%s1 + $0x988] sm:$0xf]
    %v415 = vld [vmem:[%s1 + $0x98c] sm:$0xff]
    %v416 = vld [vmem:[%s1 + $0x994] sm:$0xff]
    %v417 = vld [vmem:[%s1 + $0x99c] sm:$0xff]
    %v418 = vld [vmem:[%s1 + $0x9a4] sm:$0xff]
    %v419 = vld [vmem:[%s1 + $0x9ac] sm:$0xff]
    %v420 = vld [vmem:[%s1 + $0x9b4] sm:$0xff]
    %v421 = vld [vmem:[%s1 + $0x9bc] sm:$0xf]
    %v422 = vld [vmem:[%s1 + $0x9c0] sm:$0xff]
    %v423 = vld [vmem:[%s1 + $0x9c8] sm:$0xff]
    %v424 = vld [vmem:[%s1 + $0x9d0] sm:$0xff]
    %v425 = vld [vmem:[%s1 + $0x9d8] sm:$0xff]
    %v426 = vld [vmem:[%s1 + $0x9e0] sm:$0xff]
    %v427 = vld [vmem:[%s1 + $0x9e8] sm:$0xff]
    %v428 = vld [vmem:[%s1 + $0x9f0] sm:$0xf]
    %v429 = vld [vmem:[%s1 + $0x9f4] sm:$0xff]
    %v430 = vld [vmem:[%s1 + $0x9fc] sm:$0xff]
    %v431 = vld [vmem:[%s1 + $0xa04] sm:$0xff]
    %v432 = vld [vmem:[%s1 + $0xa0c] sm:$0xff]
    %v433 = vld [vmem:[%s1 + $0xa14] sm:$0xff]
    %v434 = vld [vmem:[%s1 + $0xa1c] sm:$0xff]
    %v435 = vld [vmem:[%s1 + $0xa24] sm:$0xf]
    %v436 = vld [vmem:[%s1 + $0xa28] sm:$0xff]
    %v437 = vld [vmem:[%s1 + $0xa30] sm:$0xff]
    %v438 = vld [vmem:[%s1 + $0xa38] sm:$0xff]
    %v439 = vld [vmem:[%s1 + $0xa40] sm:$0xff]
    %v440 = vld [vmem:[%s1 + $0xa48] sm:$0xff]
    %v441 = vld [vmem:[%s1 + $0xa50] sm:$0xff]
    %v442 = vld [vmem:[%s1 + $0xa58] sm:$0xf]
    %v443 = vld [vmem:[%s1 + $0xa5c] sm:$0xff]
    %v444 = vld [vmem:[%s1 + $0xa64] sm:$0xff]
    %v445 = vld [vmem:[%s1 + $0xa6c] sm:$0xff]
    %v446 = vld [vmem:[%s1 + $0xa74] sm:$0xff]
    %v447 = vld [vmem:[%s1 + $0xa7c] sm:$0xff]
    %v448 = vld [vmem:[%s1 + $0xa84] sm:$0xff]
    %v449 = vld [vmem:[%s1 + $0xa8c] sm:$0xf]
    %v450 = vld [vmem:[%s1 + $0xa90] sm:$0xff]
    %v451 = vld [vmem:[%s1 + $0xa98] sm:$0xff]
    %v452 = vld [vmem:[%s1 + $0xaa0] sm:$0xff]
    %v453 = vld [vmem:[%s1 + $0xaa8] sm:$0xff]
    %v454 = vld [vmem:[%s1 + $0xab0] sm:$0xff]
    %v455 = vld [vmem:[%s1 + $0xab8] sm:$0xff]
    %v456 = vld [vmem:[%s1 + $0xac0] sm:$0xf]
    %v457 = vld [vmem:[%s1 + $0xac4] sm:$0xff]
    %v458 = vld [vmem:[%s1 + $0xacc] sm:$0xff]
    %v459 = vld [vmem:[%s1 + $0xad4] sm:$0xff]
    %v460 = vld [vmem:[%s1 + $0xadc] sm:$0xff]
    %v461 = vld [vmem:[%s1 + $0xae4] sm:$0xff]
    %v462 = vld [vmem:[%s1 + $0xaec] sm:$0xff]
    %v463 = vld [vmem:[%s1 + $0xaf4] sm:$0xf]
    %v464 = vld [vmem:[%s1 + $0xaf8] sm:$0xff]
    %v465 = vld [vmem:[%s1 + $0xb00] sm:$0xff]
    %v466 = vld [vmem:[%s1 + $0xb08] sm:$0xff]
    %v467 = vld [vmem:[%s1 + $0xb10] sm:$0xff]
    %v468 = vld [vmem:[%s1 + $0xb18] sm:$0xff]
    %v469 = vld [vmem:[%s1 + $0xb20] sm:$0xff]
    %v470 = vld [vmem:[%s1 + $0xb28] sm:$0xf]
    %v471 = vld [vmem:[%s1 + $0xb2c] sm:$0xff]
    %v472 = vld [vmem:[%s1 + $0xb34] sm:$0xff]
    %v473 = vld [vmem:[%s1 + $0xb3c] sm:$0xff]
    %v474 = vld [vmem:[%s1 + $0xb44] sm:$0xff]
    %v475 = vld [vmem:[%s1 + $0xb4c] sm:$0xff]
    %v476 = vld [vmem:[%s1 + $0xb54] sm:$0xff]
    %v477 = vld [vmem:[%s1 + $0xb5c] sm:$0xf]
    %v478 = vld [vmem:[%s1 + $0xb60] sm:$0xff]
    %v479 = vld [vmem:[%s1 + $0xb68] sm:$0xff]
    %v480 = vld [vmem:[%s1 + $0xb70] sm:$0xff]
    %v481 = vld [vmem:[%s1 + $0xb78] sm:$0xff]
    %v482 = vld [vmem:[%s1 + $0xb80] sm:$0xff]
    %v483 = vld [vmem:[%s1 + $0xb88] sm:$0xff]
    %v484 = vld [vmem:[%s1 + $0xb90] sm:$0xf]
    %v485 = vld [vmem:[%s1 + $0xb94] sm:$0xff]
    %v486 = vld [vmem:[%s1 + $0xb9c] sm:$0xff]
    %v487 = vld [vmem:[%s1 + $0xba4] sm:$0xff]
    %v488 = vld [vmem:[%s1 + $0xbac] sm:$0xff]
    %v489 = vld [vmem:[%s1 + $0xbb4] sm:$0xff]
    %v490 = vld [vmem:[%s1 + $0xbbc] sm:$0xff]
    %v491 = vld [vmem:[%s1 + $0xbc4] sm:$0xf]
    %v492 = vld [vmem:[%s1 + $0xbc8] sm:$0xff]
    %v493 = vld [vmem:[%s1 + $0xbd0] sm:$0xff]
    %v494 = vld [vmem:[%s1 + $0xbd8] sm:$0xff]
    %v495 = vld [vmem:[%s1 + $0xbe0] sm:$0xff]
    %v496 = vld [vmem:[%s1 + $0xbe8] sm:$0xff]
    %v497 = vld [vmem:[%s1 + $0xbf0] sm:$0xff]
    %v498 = vld [vmem:[%s1 + $0xbf8] sm:$0xf]
    %v499 = vld [vmem:[%s1 + $0xbfc] sm:$0xff]
    %v500 = vld [vmem:[%s1 + $0xc04] sm:$0xff]
    %v501 = vld [vmem:[%s1 + $0xc0c] sm:$0xff]
    %v502 = vld [vmem:[%s1 + $0xc14] sm:$0xff]
    %v503 = vld [vmem:[%s1 + $0xc1c] sm:$0xff]
    %v504 = vld [vmem:[%s1 + $0xc24] sm:$0xff]
    %v505 = vld [vmem:[%s1 + $0xc2c] sm:$0xf]
    %v506 = vld [vmem:[%s1 + $0xc30] sm:$0xff]
    %v507 = vld [vmem:[%s1 + $0xc38] sm:$0xff]
    %v508 = vld [vmem:[%s1 + $0xc40] sm:$0xff]
    %v509 = vld [vmem:[%s1 + $0xc48] sm:$0xff]
    %v510 = vld [vmem:[%s1 + $0xc50] sm:$0xff]
    %v511 = vld [vmem:[%s1 + $0xc58] sm:$0xff]
    %v512 = vld [vmem:[%s1 + $0xc60] sm:$0xf]
    %v513 = vld [vmem:[%s1 + $0xc64] sm:$0xff]
    %v514 = vld [vmem:[%s1 + $0xc6c] sm:$0xff]
    %v515 = vld [vmem:[%s1 + $0xc74] sm:$0xff]
    %v516 = vld [vmem:[%s1 + $0xc7c] sm:$0xff]
    %v517 = vld [vmem:[%s1 + $0xc84] sm:$0xff]
    %v518 = vld [vmem:[%s1 + $0xc8c] sm:$0xff]
    %v519 = vld [vmem:[%s1 + $0xc94] sm:$0xf]
    %v520 = vld [vmem:[%s1 + $0xc98] sm:$0xff]
    %v521 = vld [vmem:[%s1 + $0xca0] sm:$0xff]
    %v522 = vld [vmem:[%s1 + $0xca8] sm:$0xff]
    %v523 = vld [vmem:[%s1 + $0xcb0] sm:$0xff]
    %v524 = vld [vmem:[%s1 + $0xcb8] sm:$0xff]
    %v525 = vld [vmem:[%s1 + $0xcc0] sm:$0xff]
    %v526 = vld [vmem:[%s1 + $0xcc8] sm:$0xf]
    %v527 = vld [vmem:[%s1 + $0xccc] sm:$0xff]
    %v528 = vld [vmem:[%s1 + $0xcd4] sm:$0xff]
    %v529 = vld [vmem:[%s1 + $0xcdc] sm:$0xff]
    %v530 = vld [vmem:[%s1 + $0xce4] sm:$0xff]
    %v531 = vld [vmem:[%s1 + $0xcec] sm:$0xff]
    %v532 = vld [vmem:[%s1 + $0xcf4] sm:$0xff]
    %v533 = vld [vmem:[%s1 + $0xcfc] sm:$0xf]
    %v534 = vld [vmem:[%s1 + $0xd00] sm:$0xff]
    %v535 = vld [vmem:[%s1 + $0xd08] sm:$0xff]
    %v536 = vld [vmem:[%s1 + $0xd10] sm:$0xff]
    %v537 = vld [vmem:[%s1 + $0xd18] sm:$0xff]
    %v538 = vld [vmem:[%s1 + $0xd20] sm:$0xff]
    %v539 = vld [vmem:[%s1 + $0xd28] sm:$0xff]
    %v540 = vld [vmem:[%s1 + $0xd30] sm:$0xf]
    %v541 = vld [vmem:[%s1 + $0xd34] sm:$0xff]
    %v542 = vld [vmem:[%s1 + $0xd3c] sm:$0xff]
    %v543 = vld [vmem:[%s1 + $0xd44] sm:$0xff]
    %v544 = vld [vmem:[%s1 + $0xd4c] sm:$0xff]
    %v545 = vld [vmem:[%s1 + $0xd54] sm:$0xff]
    %v546 = vld [vmem:[%s1 + $0xd5c] sm:$0xff]
    %v547 = vld [vmem:[%s1 + $0xd64] sm:$0xf]
    %v548 = vld [vmem:[%s1 + $0xd68] sm:$0xff]
    %v549 = vld [vmem:[%s1 + $0xd70] sm:$0xff]
    %v550 = vld [vmem:[%s1 + $0xd78] sm:$0xff]
    %v551 = vld [vmem:[%s1 + $0xd80] sm:$0xff]
    %v552 = vld [vmem:[%s1 + $0xd88] sm:$0xff]
    %v553 = vld [vmem:[%s1 + $0xd90] sm:$0xff]
    %v554 = vld [vmem:[%s1 + $0xd98] sm:$0xf]
    %v555 = vld [vmem:[%s1 + $0xd9c] sm:$0xff]
    %v556 = vld [vmem:[%s1 + $0xda4] sm:$0xff]
    %v557 = vld [vmem:[%s1 + $0xdac] sm:$0xff]
    %v558 = vld [vmem:[%s1 + $0xdb4] sm:$0xff]
    %v559 = vld [vmem:[%s1 + $0xdbc] sm:$0xff]
    %v560 = vld [vmem:[%s1 + $0xdc4] sm:$0xff]
    %v561 = vld [vmem:[%s1 + $0xdcc] sm:$0xf]
    %v562 = vld [vmem:[%s1 + $0xdd0] sm:$0xff]
    %v563 = vld [vmem:[%s1 + $0xdd8] sm:$0xff]
    %v564 = vld [vmem:[%s1 + $0xde0] sm:$0xff]
    %v565 = vld [vmem:[%s1 + $0xde8] sm:$0xff]
    %v566 = vld [vmem:[%s1 + $0xdf0] sm:$0xff]
    %v567 = vld [vmem:[%s1 + $0xdf8] sm:$0xff]
    %v568 = vld [vmem:[%s1 + $0xe00] sm:$0xf]
    %v569 = vld [vmem:[%s1 + $0xe04] sm:$0xff]
    %v570 = vld [vmem:[%s1 + $0xe0c] sm:$0xff]
    %v571 = vld [vmem:[%s1 + $0xe14] sm:$0xff]
    %v572 = vld [vmem:[%s1 + $0xe1c] sm:$0xff]
    %v573 = vld [vmem:[%s1 + $0xe24] sm:$0xff]
    %v574 = vld [vmem:[%s1 + $0xe2c] sm:$0xff]
    %v575 = vld [vmem:[%s1 + $0xe34] sm:$0xf]
    %v576 = vld [vmem:[%s1 + $0xe38] sm:$0xff]
    %v577 = vld [vmem:[%s1 + $0xe40] sm:$0xff]
    %v578 = vld [vmem:[%s1 + $0xe48] sm:$0xff]
    %v579 = vld [vmem:[%s1 + $0xe50] sm:$0xff]
    %v580 = vld [vmem:[%s1 + $0xe58] sm:$0xff]
    %v581 = vld [vmem:[%s1 + $0xe60] sm:$0xff]
    %v582 = vld [vmem:[%s1 + $0xe68] sm:$0xf]
    %v583 = vld [vmem:[%s1 + $0xe6c] sm:$0xff]
    %v584 = vld [vmem:[%s1 + $0xe74] sm:$0xff]
    %v585 = vld [vmem:[%s1 + $0xe7c] sm:$0xff]
    %v586 = vld [vmem:[%s1 + $0xe84] sm:$0xff]
    %v587 = vld [vmem:[%s1 + $0xe8c] sm:$0xff]
    %v588 = vld [vmem:[%s1 + $0xe94] sm:$0xff]
    %v589 = vld [vmem:[%s1 + $0xe9c] sm:$0xf]
    %v590 = vld [vmem:[%s1 + $0xea0] sm:$0xff]
    %v591 = vld [vmem:[%s1 + $0xea8] sm:$0xff]
    %v592 = vld [vmem:[%s1 + $0xeb0] sm:$0xff]
    %v593 = vld [vmem:[%s1 + $0xeb8] sm:$0xff]
    %v594 = vld [vmem:[%s1 + $0xec0] sm:$0xff]
    %v595 = vld [vmem:[%s1 + $0xec8] sm:$0xff]
    %v596 = vld [vmem:[%s1 + $0xed0] sm:$0xf]
    %v597 = vld [vmem:[%s1 + $0xed4] sm:$0xff]
    %v598 = vld [vmem:[%s1 + $0xedc] sm:$0xff]
    %v599 = vld [vmem:[%s1 + $0xee4] sm:$0xff]
    %v600 = vld [vmem:[%s1 + $0xeec] sm:$0xff]
    %v601 = vld [vmem:[%s1 + $0xef4] sm:$0xff]
    %v602 = vld [vmem:[%s1 + $0xefc] sm:$0xff]
    %v603 = vld [vmem:[%s1 + $0xf04] sm:$0xf]
    %v604 = vld [vmem:[%s1 + $0xf08] sm:$0xff]
    %v605 = vld [vmem:[%s1 + $0xf10] sm:$0xff]
    %v606 = vld [vmem:[%s1 + $0xf18] sm:$0xff]
    %v607 = vld [vmem:[%s1 + $0xf20] sm:$0xff]
    %v608 = vld [vmem:[%s1 + $0xf28] sm:$0xff]
    %v609 = vld [vmem:[%s1 + $0xf30] sm:$0xff]
    %v610 = vld [vmem:[%s1 + $0xf38] sm:$0xf]
    %v611 = vld [vmem:[%s1 + $0xf3c] sm:$0xff]
    %v612 = vld [vmem:[%s1 + $0xf44] sm:$0xff]
    %v613 = vld [vmem:[%s1 + $0xf4c] sm:$0xff]
    %v614 = vld [vmem:[%s1 + $0xf54] sm:$0xff]
    %v615 = vld [vmem:[%s1 + $0xf5c] sm:$0xff]
    %v616 = vld [vmem:[%s1 + $0xf64] sm:$0xff]
    %v617 = vld [vmem:[%s1 + $0xf6c] sm:$0xf]
    %v618 = vld [vmem:[%s1 + $0xf70] sm:$0xff]
    %v619 = vld [vmem:[%s1 + $0xf78] sm:$0xff]
    %v620 = vld [vmem:[%s1 + $0xf80] sm:$0xff]
    %v621 = vld [vmem:[%s1 + $0xf88] sm:$0xff]
    %v622 = vld [vmem:[%s1 + $0xf90] sm:$0xff]
    %v623 = vld [vmem:[%s1 + $0xf98] sm:$0xff]
    %v624 = vld [vmem:[%s1 + $0xfa0] sm:$0xf]
    %v625 = vld [vmem:[%s1 + $0xfa4] sm:$0xff]
    %v626 = vld [vmem:[%s1 + $0xfac] sm:$0xff]
    %v627 = vld [vmem:[%s1 + $0xfb4] sm:$0xff]
    %v628 = vld [vmem:[%s1 + $0xfbc] sm:$0xff]
    %v629 = vld [vmem:[%s1 + $0xfc4] sm:$0xff]
    %v630 = vld [vmem:[%s1 + $0xfcc] sm:$0xff]
    %v631 = vld [vmem:[%s1 + $0xfd4] sm:$0xf]
    %v632 = vld [vmem:[%s1 + $0xfd8] sm:$0xff]
    %v633 = vld [vmem:[%s1 + $0xfe0] sm:$0xff]
    %v634 = vld [vmem:[%s1 + $0xfe8] sm:$0xff]
    %v635 = vld [vmem:[%s1 + $0xff0] sm:$0xff]
    %v636 = vld [vmem:[%s1 + $0xff8] sm:$0xff]
    %v637 = vld [vmem:[%s1 + $0x1000] sm:$0xff]
    %v638 = vld [vmem:[%s1 + $0x1008] sm:$0xf]
    %v639 = vld [vmem:[%s1 + $0x100c] sm:$0xff]
    %v640 = vld [vmem:[%s1 + $0x1014] sm:$0xff]
    %v641 = vld [vmem:[%s1 + $0x101c] sm:$0xff]
    %v642 = vld [vmem:[%s1 + $0x1024] sm:$0xff]
    %v643 = vld [vmem:[%s1 + $0x102c] sm:$0xff]
    %v644 = vld [vmem:[%s1 + $0x1034] sm:$0xff]
    %v645 = vld [vmem:[%s1 + $0x103c] sm:$0xf]
    %v646 = vld [vmem:[%s1 + $0x1040] sm:$0xff]
    %v647 = vld [vmem:[%s1 + $0x1048] sm:$0xff]
    %v648 = vld [vmem:[%s1 + $0x1050] sm:$0xff]
    %v649 = vld [vmem:[%s1 + $0x1058] sm:$0xff]
    %v650 = vld [vmem:[%s1 + $0x1060] sm:$0xff]
    %v651 = vld [vmem:[%s1 + $0x1068] sm:$0xff]
    %v652 = vld [vmem:[%s1 + $0x1070] sm:$0xf]
    %v653 = vld [vmem:[%s1 + $0x1074] sm:$0xff]
    %v654 = vld [vmem:[%s1 + $0x107c] sm:$0xff]
    %v655 = vld [vmem:[%s1 + $0x1084] sm:$0xff]
    %v656 = vld [vmem:[%s1 + $0x108c] sm:$0xff]
    %v657 = vld [vmem:[%s1 + $0x1094] sm:$0xff]
    %v658 = vld [vmem:[%s1 + $0x109c] sm:$0xff]
    %v659 = vld [vmem:[%s1 + $0x10a4] sm:$0xf]
    %v660 = vld [vmem:[%s1 + $0x10a8] sm:$0xff]
    %v661 = vld [vmem:[%s1 + $0x10b0] sm:$0xff]
    %v662 = vld [vmem:[%s1 + $0x10b8] sm:$0xff]
    %v663 = vld [vmem:[%s1 + $0x10c0] sm:$0xff]
    %v664 = vld [vmem:[%s1 + $0x10c8] sm:$0xff]
    %v665 = vld [vmem:[%s1 + $0x10d0] sm:$0xff]
    %v666 = vld [vmem:[%s1 + $0x10d8] sm:$0xf]
    %v667 = vld [vmem:[%s1 + $0x10dc] sm:$0xff]
    %v668 = vld [vmem:[%s1 + $0x10e4] sm:$0xff]
    %v669 = vld [vmem:[%s1 + $0x10ec] sm:$0xff]
    %v670 = vld [vmem:[%s1 + $0x10f4] sm:$0xff]
    %v671 = vld [vmem:[%s1 + $0x10fc] sm:$0xff]
    %v672 = vld [vmem:[%s1 + $0x1104] sm:$0xff]
    %v673 = vld [vmem:[%s1 + $0x110c] sm:$0xf]
    %v674 = vld [vmem:[%s1 + $0x1110] sm:$0xff]
    %v675 = vld [vmem:[%s1 + $0x1118] sm:$0xff]
    %v676 = vld [vmem:[%s1 + $0x1120] sm:$0xff]
    %v677 = vld [vmem:[%s1 + $0x1128] sm:$0xff]
    %v678 = vld [vmem:[%s1 + $0x1130] sm:$0xff]
    %v679 = vld [vmem:[%s1 + $0x1138] sm:$0xff]
    %v680 = vld [vmem:[%s1 + $0x1140] sm:$0xf]
    %v681 = vld [vmem:[%s1 + $0x1144] sm:$0xff]
    %v682 = vld [vmem:[%s1 + $0x114c] sm:$0xff]
    %v683 = vld [vmem:[%s1 + $0x1154] sm:$0xff]
    %v684 = vld [vmem:[%s1 + $0x115c] sm:$0xff]
    %v685 = vld [vmem:[%s1 + $0x1164] sm:$0xff]
    %v686 = vld [vmem:[%s1 + $0x116c] sm:$0xff]
    %v687 = vld [vmem:[%s1 + $0x1174] sm:$0xf]
    %v688 = vld [vmem:[%s1 + $0x1178] sm:$0xff]
    %v689 = vld [vmem:[%s1 + $0x1180] sm:$0xff]
    %v690 = vld [vmem:[%s1 + $0x1188] sm:$0xff]
    %v691 = vld [vmem:[%s1 + $0x1190] sm:$0xff]
    %v692 = vld [vmem:[%s1 + $0x1198] sm:$0xff]
    %v693 = vld [vmem:[%s1 + $0x11a0] sm:$0xff]
    %v694 = vld [vmem:[%s1 + $0x11a8] sm:$0xf]
    %v695 = vld [vmem:[%s1 + $0x11ac] sm:$0xff]
    %v696 = vld [vmem:[%s1 + $0x11b4] sm:$0xff]
    %v697 = vld [vmem:[%s1 + $0x11bc] sm:$0xff]
    %v698 = vld [vmem:[%s1 + $0x11c4] sm:$0xff]
    %v699 = vld [vmem:[%s1 + $0x11cc] sm:$0xff]
    %v700 = vld [vmem:[%s1 + $0x11d4] sm:$0xff]
    %v701 = vld [vmem:[%s1 + $0x11dc] sm:$0xf]
    %v702 = vld [vmem:[%s1 + $0x11e0] sm:$0xff]
    %v703 = vld [vmem:[%s1 + $0x11e8] sm:$0xff]
    %v704 = vld [vmem:[%s1 + $0x11f0] sm:$0xff]
    %v705 = vld [vmem:[%s1 + $0x11f8] sm:$0xff]
    %v706 = vld [vmem:[%s1 + $0x1200] sm:$0xff]
    %v707 = vld [vmem:[%s1 + $0x1208] sm:$0xff]
    %v708 = vld [vmem:[%s1 + $0x1210] sm:$0xf]
    %v709 = vld [vmem:[%s1 + $0x1214] sm:$0xff]
    %v710 = vld [vmem:[%s1 + $0x121c] sm:$0xff]
    %v711 = vld [vmem:[%s1 + $0x1224] sm:$0xff]
    %v712 = vld [vmem:[%s1 + $0x122c] sm:$0xff]
    %v713 = vld [vmem:[%s1 + $0x1234] sm:$0xff]
    %v714 = vld [vmem:[%s1 + $0x123c] sm:$0xff]
    %v715 = vld [vmem:[%s1 + $0x1244] sm:$0xf]
    %v716 = vld [vmem:[%s1 + $0x1248] sm:$0xff]
    %v717 = vld [vmem:[%s1 + $0x1250] sm:$0xff]
    %v718 = vld [vmem:[%s1 + $0x1258] sm:$0xff]
    %v719 = vld [vmem:[%s1 + $0x1260] sm:$0xff]
    %v720 = vld [vmem:[%s1 + $0x1268] sm:$0xff]
    %v721 = vld [vmem:[%s1 + $0x1270] sm:$0xff]
    %v722 = vld [vmem:[%s1 + $0x1278] sm:$0xf]
    %v723 = vld [vmem:[%s1 + $0x127c] sm:$0xff]
    %v724 = vld [vmem:[%s1 + $0x1284] sm:$0xff]
    %v725 = vld [vmem:[%s1 + $0x128c] sm:$0xff]
    %v726 = vld [vmem:[%s1 + $0x1294] sm:$0xff]
    %v727 = vld [vmem:[%s1 + $0x129c] sm:$0xff]
    %v728 = vld [vmem:[%s1 + $0x12a4] sm:$0xff]
    %v729 = vld [vmem:[%s1 + $0x12ac] sm:$0xf]
    %v730 = vld [vmem:[%s1 + $0x12b0] sm:$0xff]
    %v731 = vld [vmem:[%s1 + $0x12b8] sm:$0xff]
    %v732 = vld [vmem:[%s1 + $0x12c0] sm:$0xff]
    %v733 = vld [vmem:[%s1 + $0x12c8] sm:$0xff]
    %v734 = vld [vmem:[%s1 + $0x12d0] sm:$0xff]
    %v735 = vld [vmem:[%s1 + $0x12d8] sm:$0xff]
    %v736 = vld [vmem:[%s1 + $0x12e0] sm:$0xf]
    %v737 = vld [vmem:[%s1 + $0x12e4] sm:$0xff]
    %v738 = vld [vmem:[%s1 + $0x12ec] sm:$0xff]
    %v739 = vld [vmem:[%s1 + $0x12f4] sm:$0xff]
    %v740 = vld [vmem:[%s1 + $0x12fc] sm:$0xff]
    %v741 = vld [vmem:[%s1 + $0x1304] sm:$0xff]
    %v742 = vld [vmem:[%s1 + $0x130c] sm:$0xff]
    %v743 = vld [vmem:[%s1 + $0x1314] sm:$0xf]
    %v744 = vld [vmem:[%s1 + $0x1318] sm:$0xff]
    %v745 = vld [vmem:[%s1 + $0x1320] sm:$0xff]
    %v746 = vld [vmem:[%s1 + $0x1328] sm:$0xff]
    %v747 = vld [vmem:[%s1 + $0x1330] sm:$0xff]
    %v748 = vld [vmem:[%s1 + $0x1338] sm:$0xff]
    %v749 = vld [vmem:[%s1 + $0x1340] sm:$0xff]
    %v750 = vld [vmem:[%s1 + $0x1348] sm:$0xf]
    %v751 = vld [vmem:[%s1 + $0x134c] sm:$0xff]
    %v752 = vld [vmem:[%s1 + $0x1354] sm:$0xff]
    %v753 = vld [vmem:[%s1 + $0x135c] sm:$0xff]
    %v754 = vld [vmem:[%s1 + $0x1364] sm:$0xff]
    %v755 = vld [vmem:[%s1 + $0x136c] sm:$0xff]
    %v756 = vld [vmem:[%s1 + $0x1374] sm:$0xff]
    %v757 = vld [vmem:[%s1 + $0x137c] sm:$0xf]
    %v758 = vld [vmem:[%s1 + $0x1380] sm:$0xff]
    %v759 = vld [vmem:[%s1 + $0x1388] sm:$0xff]
    %v760 = vld [vmem:[%s1 + $0x1390] sm:$0xff]
    %v761 = vld [vmem:[%s1 + $0x1398] sm:$0xff]
    %v762 = vld [vmem:[%s1 + $0x13a0] sm:$0xff]
    %v763 = vld [vmem:[%s1 + $0x13a8] sm:$0xff]
    %v764 = vld [vmem:[%s1 + $0x13b0] sm:$0xf]
    %v765 = vld [vmem:[%s1 + $0x13b4] sm:$0xff]
    %v766 = vld [vmem:[%s1 + $0x13bc] sm:$0xff]
    %v767 = vld [vmem:[%s1 + $0x13c4] sm:$0xff]
    %v768 = vld [vmem:[%s1 + $0x13cc] sm:$0xff]
    %v769 = vld [vmem:[%s1 + $0x13d4] sm:$0xff]
    %v770 = vld [vmem:[%s1 + $0x13dc] sm:$0xff]
    %v771 = vld [vmem:[%s1 + $0x13e4] sm:$0xf]
    %v772 = vld [vmem:[%s2] sm:$0xff]
    %v773 = vld [vmem:[%s2 + $0x8] sm:$0x1f]
    %v776 = vperm.slane %v772, 0
    %v777 = vperm.slane %v772, 1
    %v778 = vperm.slane %v772, 2
    %v779 = vperm.slane %v772, 3
    %v780 = vperm.slane %v772, 4
    %v781 = vperm.slane %v772, 5
    %v782 = vperm.slane %v772, 6
    %v783 = vperm.slane %v772, 7
    %v784 = vperm.slane %v773, 0
    %v785 = vperm.slane %v773, 1
    %v786 = vperm.slane %v773, 2
    %v787 = vperm.slane %v773, 3
    %v788 = vperm.slane %v773, 4
    %v1488 = vunpack.c.l.b16 %v86
    %v1489 = vunpack.c.h.b16 %v86
    %v1490 = vunpack.c.l.b16 %v87
    %v1491 = vunpack.c.h.b16 %v87
    %v1492 = vunpack.c.l.b16 %v88
    %v1493 = vunpack.c.h.b16 %v88
    %v1494 = vunpack.c.l.b16 %v89
    %v1495 = vunpack.c.h.b16 %v89
    %v1496 = vunpack.c.l.b16 %v90
    %v1497 = vunpack.c.h.b16 %v90
    %v1498 = vunpack.c.l.b16 %v91
    %v1499 = vunpack.c.h.b16 %v91
    %v1500 = vunpack.c.l.b16 %v92
    %v1501 = vunpack.c.l.b16 %v93
    %v1502 = vunpack.c.h.b16 %v93
    %v1503 = vunpack.c.l.b16 %v94
    %v1504 = vunpack.c.h.b16 %v94
    %v1505 = vunpack.c.l.b16 %v95
    %v1506 = vunpack.c.h.b16 %v95
    %v1507 = vunpack.c.l.b16 %v96
    %v1508 = vunpack.c.h.b16 %v96
    %v1509 = vunpack.c.l.b16 %v97
    %v1510 = vunpack.c.h.b16 %v97
    %v1511 = vunpack.c.l.b16 %v98
    %v1512 = vunpack.c.h.b16 %v98
    %v1513 = vunpack.c.l.b16 %v99
    %v1514 = vunpack.c.l.b16 %v100
    %v1515 = vunpack.c.h.b16 %v100
    %v1516 = vunpack.c.l.b16 %v101
    %v1517 = vunpack.c.h.b16 %v101
    %v1518 = vunpack.c.l.b16 %v102
    %v1519 = vunpack.c.h.b16 %v102
    %v1520 = vunpack.c.l.b16 %v103
    %v1521 = vunpack.c.h.b16 %v103
    %v1522 = vunpack.c.l.b16 %v104
    %v1523 = vunpack.c.h.b16 %v104
    %v1524 = vunpack.c.l.b16 %v105
    %v1525 = vunpack.c.h.b16 %v105
    %v1526 = vunpack.c.l.b16 %v106
    %v1527 = vunpack.c.l.b16 %v107
    %v1528 = vunpack.c.h.b16 %v107
    %v1529 = vunpack.c.l.b16 %v108
    %v1530 = vunpack.c.h.b16 %v108
    %v1531 = vunpack.c.l.b16 %v109
    %v1532 = vunpack.c.h.b16 %v109
    %v1533 = vunpack.c.l.b16 %v110
    %v1534 = vunpack.c.h.b16 %v110
    %v1535 = vunpack.c.l.b16 %v111
    %v1536 = vunpack.c.h.b16 %v111
    %v1537 = vunpack.c.l.b16 %v112
    %v1538 = vunpack.c.h.b16 %v112
    %v1539 = vunpack.c.l.b16 %v113
    %v1540 = vunpack.c.l.b16 %v114
    %v1541 = vunpack.c.h.b16 %v114
    %v1542 = vunpack.c.l.b16 %v115
    %v1543 = vunpack.c.h.b16 %v115
    %v1544 = vunpack.c.l.b16 %v116
    %v1545 = vunpack.c.h.b16 %v116
    %v1546 = vunpack.c.l.b16 %v117
    %v1547 = vunpack.c.h.b16 %v117
    %v1548 = vunpack.c.l.b16 %v118
    %v1549 = vunpack.c.h.b16 %v118
    %v1550 = vunpack.c.l.b16 %v119
    %v1551 = vunpack.c.h.b16 %v119
    %v1552 = vunpack.c.l.b16 %v120
    %v1553 = vunpack.c.l.b16 %v121
    %v1554 = vunpack.c.h.b16 %v121
    %v1555 = vunpack.c.l.b16 %v122
    %v1556 = vunpack.c.h.b16 %v122
    %v1557 = vunpack.c.l.b16 %v123
    %v1558 = vunpack.c.h.b16 %v123
    %v1559 = vunpack.c.l.b16 %v124
    %v1560 = vunpack.c.h.b16 %v124
    %v1561 = vunpack.c.l.b16 %v125
    %v1562 = vunpack.c.h.b16 %v125
    %v1563 = vunpack.c.l.b16 %v126
    %v1564 = vunpack.c.h.b16 %v126
    %v1565 = vunpack.c.l.b16 %v127
    %v1566 = vunpack.c.l.b16 %v128
    %v1567 = vunpack.c.h.b16 %v128
    %v1568 = vunpack.c.l.b16 %v129
    %v1569 = vunpack.c.h.b16 %v129
    %v1570 = vunpack.c.l.b16 %v130
    %v1571 = vunpack.c.h.b16 %v130
    %v1572 = vunpack.c.l.b16 %v131
    %v1573 = vunpack.c.h.b16 %v131
    %v1574 = vunpack.c.l.b16 %v132
    %v1575 = vunpack.c.h.b16 %v132
    %v1576 = vunpack.c.l.b16 %v133
    %v1577 = vunpack.c.h.b16 %v133
    %v1578 = vunpack.c.l.b16 %v134
    %v1579 = vunpack.c.l.b16 %v135
    %v1580 = vunpack.c.h.b16 %v135
    %v1581 = vunpack.c.l.b16 %v136
    %v1582 = vunpack.c.h.b16 %v136
    %v1583 = vunpack.c.l.b16 %v137
    %v1584 = vunpack.c.h.b16 %v137
    %v1585 = vunpack.c.l.b16 %v138
    %v1586 = vunpack.c.h.b16 %v138
    %v1587 = vunpack.c.l.b16 %v139
    %v1588 = vunpack.c.h.b16 %v139
    %v1589 = vunpack.c.l.b16 %v140
    %v1590 = vunpack.c.h.b16 %v140
    %v1591 = vunpack.c.l.b16 %v141
    %v1592 = vunpack.c.l.b16 %v142
    %v1593 = vunpack.c.h.b16 %v142
    %v1594 = vunpack.c.l.b16 %v143
    %v1595 = vunpack.c.h.b16 %v143
    %v1596 = vunpack.c.l.b16 %v144
    %v1597 = vunpack.c.h.b16 %v144
    %v1598 = vunpack.c.l.b16 %v145
    %v1599 = vunpack.c.h.b16 %v145
    %v1600 = vunpack.c.l.b16 %v146
    %v1601 = vunpack.c.h.b16 %v146
    %v1602 = vunpack.c.l.b16 %v147
    %v1603 = vunpack.c.h.b16 %v147
    %v1604 = vunpack.c.l.b16 %v148
    %v1605 = vunpack.c.l.b16 %v149
    %v1606 = vunpack.c.h.b16 %v149
    %v1607 = vunpack.c.l.b16 %v150
    %v1608 = vunpack.c.h.b16 %v150
    %v1609 = vunpack.c.l.b16 %v151
    %v1610 = vunpack.c.h.b16 %v151
    %v1611 = vunpack.c.l.b16 %v152
    %v1612 = vunpack.c.h.b16 %v152
    %v1613 = vunpack.c.l.b16 %v153
    %v1614 = vunpack.c.h.b16 %v153
    %v1615 = vunpack.c.l.b16 %v154
    %v1616 = vunpack.c.h.b16 %v154
    %v1617 = vunpack.c.l.b16 %v155
    %v1618 = vunpack.c.l.b16 %v156
    %v1619 = vunpack.c.h.b16 %v156
    %v1620 = vunpack.c.l.b16 %v157
    %v1621 = vunpack.c.h.b16 %v157
    %v1622 = vunpack.c.l.b16 %v158
    %v1623 = vunpack.c.h.b16 %v158
    %v1624 = vunpack.c.l.b16 %v159
    %v1625 = vunpack.c.h.b16 %v159
    %v1626 = vunpack.c.l.b16 %v160
    %v1627 = vunpack.c.h.b16 %v160
    %v1628 = vunpack.c.l.b16 %v161
    %v1629 = vunpack.c.h.b16 %v161
    %v1630 = vunpack.c.l.b16 %v162
    %v1631 = vunpack.c.l.b16 %v163
    %v1632 = vunpack.c.h.b16 %v163
    %v1633 = vunpack.c.l.b16 %v164
    %v1634 = vunpack.c.h.b16 %v164
    %v1635 = vunpack.c.l.b16 %v165
    %v1636 = vunpack.c.h.b16 %v165
    %v1637 = vunpack.c.l.b16 %v166
    %v1638 = vunpack.c.h.b16 %v166
    %v1639 = vunpack.c.l.b16 %v167
    %v1640 = vunpack.c.h.b16 %v167
    %v1641 = vunpack.c.l.b16 %v168
    %v1642 = vunpack.c.h.b16 %v168
    %v1643 = vunpack.c.l.b16 %v169
    %v1644 = vunpack.c.l.b16 %v170
    %v1645 = vunpack.c.h.b16 %v170
    %v1646 = vunpack.c.l.b16 %v171
    %v1647 = vunpack.c.h.b16 %v171
    %v1648 = vunpack.c.l.b16 %v172
    %v1649 = vunpack.c.h.b16 %v172
    %v1650 = vunpack.c.l.b16 %v173
    %v1651 = vunpack.c.h.b16 %v173
    %v1652 = vunpack.c.l.b16 %v174
    %v1653 = vunpack.c.h.b16 %v174
    %v1654 = vunpack.c.l.b16 %v175
    %v1655 = vunpack.c.h.b16 %v175
    %v1656 = vunpack.c.l.b16 %v176
    %v1657 = vunpack.c.l.b16 %v177
    %v1658 = vunpack.c.h.b16 %v177
    %v1659 = vunpack.c.l.b16 %v178
    %v1660 = vunpack.c.h.b16 %v178
    %v1661 = vunpack.c.l.b16 %v179
    %v1662 = vunpack.c.h.b16 %v179
    %v1663 = vunpack.c.l.b16 %v180
    %v1664 = vunpack.c.h.b16 %v180
    %v1665 = vunpack.c.l.b16 %v181
    %v1666 = vunpack.c.h.b16 %v181
    %v1667 = vunpack.c.l.b16 %v182
    %v1668 = vunpack.c.h.b16 %v182
    %v1669 = vunpack.c.l.b16 %v183
    %v1670 = vunpack.c.l.b16 %v184
    %v1671 = vunpack.c.h.b16 %v184
    %v1672 = vunpack.c.l.b16 %v185
    %v1673 = vunpack.c.h.b16 %v185
    %v1674 = vunpack.c.l.b16 %v186
    %v1675 = vunpack.c.h.b16 %v186
    %v1676 = vunpack.c.l.b16 %v187
    %v1677 = vunpack.c.h.b16 %v187
    %v1678 = vunpack.c.l.b16 %v188
    %v1679 = vunpack.c.h.b16 %v188
    %v1680 = vunpack.c.l.b16 %v189
    %v1681 = vunpack.c.h.b16 %v189
    %v1682 = vunpack.c.l.b16 %v190
    %v1683 = vunpack.c.l.b16 %v191
    %v1684 = vunpack.c.h.b16 %v191
    %v1685 = vunpack.c.l.b16 %v192
    %v1686 = vunpack.c.h.b16 %v192
    %v1687 = vunpack.c.l.b16 %v193
    %v1688 = vunpack.c.h.b16 %v193
    %v1689 = vunpack.c.l.b16 %v194
    %v1690 = vunpack.c.h.b16 %v194
    %v1691 = vunpack.c.l.b16 %v195
    %v1692 = vunpack.c.h.b16 %v195
    %v1693 = vunpack.c.l.b16 %v196
    %v1694 = vunpack.c.h.b16 %v196
    %v1695 = vunpack.c.l.b16 %v197
    %v1696 = vunpack.c.l.b16 %v198
    %v1697 = vunpack.c.h.b16 %v198
    %v1698 = vunpack.c.l.b16 %v199
    %v1699 = vunpack.c.h.b16 %v199
    %v1700 = vunpack.c.l.b16 %v200
    %v1701 = vunpack.c.h.b16 %v200
    %v1702 = vunpack.c.l.b16 %v201
    %v1703 = vunpack.c.h.b16 %v201
    %v1704 = vunpack.c.l.b16 %v202
    %v1705 = vunpack.c.h.b16 %v202
    %v1706 = vunpack.c.l.b16 %v203
    %v1707 = vunpack.c.h.b16 %v203
    %v1708 = vunpack.c.l.b16 %v204
    %v1709 = vunpack.c.l.b16 %v205
    %v1710 = vunpack.c.h.b16 %v205
    %v1711 = vunpack.c.l.b16 %v206
    %v1712 = vunpack.c.h.b16 %v206
    %v1713 = vunpack.c.l.b16 %v207
    %v1714 = vunpack.c.h.b16 %v207
    %v1715 = vunpack.c.l.b16 %v208
    %v1716 = vunpack.c.h.b16 %v208
    %v1717 = vunpack.c.l.b16 %v209
    %v1718 = vunpack.c.h.b16 %v209
    %v1719 = vunpack.c.l.b16 %v210
    %v1720 = vunpack.c.h.b16 %v210
    %v1721 = vunpack.c.l.b16 %v211
    %v1722 = vunpack.c.l.b16 %v212
    %v1723 = vunpack.c.h.b16 %v212
    %v1724 = vunpack.c.l.b16 %v213
    %v1725 = vunpack.c.h.b16 %v213
    %v1726 = vunpack.c.l.b16 %v214
    %v1727 = vunpack.c.h.b16 %v214
    %v1728 = vunpack.c.l.b16 %v215
    %v1729 = vunpack.c.h.b16 %v215
    %v1730 = vunpack.c.l.b16 %v216
    %v1731 = vunpack.c.h.b16 %v216
    %v1732 = vunpack.c.l.b16 %v217
    %v1733 = vunpack.c.h.b16 %v217
    %v1734 = vunpack.c.l.b16 %v218
    %v1735 = vunpack.c.l.b16 %v219
    %v1736 = vunpack.c.h.b16 %v219
    %v1737 = vunpack.c.l.b16 %v220
    %v1738 = vunpack.c.h.b16 %v220
    %v1739 = vunpack.c.l.b16 %v221
    %v1740 = vunpack.c.h.b16 %v221
    %v1741 = vunpack.c.l.b16 %v222
    %v1742 = vunpack.c.h.b16 %v222
    %v1743 = vunpack.c.l.b16 %v223
    %v1744 = vunpack.c.h.b16 %v223
    %v1745 = vunpack.c.l.b16 %v224
    %v1746 = vunpack.c.h.b16 %v224
    %v1747 = vunpack.c.l.b16 %v225
    %v1748 = vunpack.c.l.b16 %v226
    %v1749 = vunpack.c.h.b16 %v226
    %v1750 = vunpack.c.l.b16 %v227
    %v1751 = vunpack.c.h.b16 %v227
    %v1752 = vunpack.c.l.b16 %v228
    %v1753 = vunpack.c.h.b16 %v228
    %v1754 = vunpack.c.l.b16 %v229
    %v1755 = vunpack.c.h.b16 %v229
    %v1756 = vunpack.c.l.b16 %v230
    %v1757 = vunpack.c.h.b16 %v230
    %v1758 = vunpack.c.l.b16 %v231
    %v1759 = vunpack.c.h.b16 %v231
    %v1760 = vunpack.c.l.b16 %v232
    %v1761 = vunpack.c.l.b16 %v233
    %v1762 = vunpack.c.h.b16 %v233
    %v1763 = vunpack.c.l.b16 %v234
    %v1764 = vunpack.c.h.b16 %v234
    %v1765 = vunpack.c.l.b16 %v235
    %v1766 = vunpack.c.h.b16 %v235
    %v1767 = vunpack.c.l.b16 %v236
    %v1768 = vunpack.c.h.b16 %v236
    %v1769 = vunpack.c.l.b16 %v237
    %v1770 = vunpack.c.h.b16 %v237
    %v1771 = vunpack.c.l.b16 %v238
    %v1772 = vunpack.c.h.b16 %v238
    %v1773 = vunpack.c.l.b16 %v239
    %v1774 = vunpack.c.l.b16 %v240
    %v1775 = vunpack.c.h.b16 %v240
    %v1776 = vunpack.c.l.b16 %v241
    %v1777 = vunpack.c.h.b16 %v241
    %v1778 = vunpack.c.l.b16 %v242
    %v1779 = vunpack.c.h.b16 %v242
    %v1780 = vunpack.c.l.b16 %v243
    %v1781 = vunpack.c.h.b16 %v243
    %v1782 = vunpack.c.l.b16 %v244
    %v1783 = vunpack.c.h.b16 %v244
    %v1784 = vunpack.c.l.b16 %v245
    %v1785 = vunpack.c.h.b16 %v245
    %v1786 = vunpack.c.l.b16 %v246
    %v1787 = vunpack.c.l.b16 %v247
    %v1788 = vunpack.c.h.b16 %v247
    %v1789 = vunpack.c.l.b16 %v248
    %v1790 = vunpack.c.h.b16 %v248
    %v1791 = vunpack.c.l.b16 %v249
    %v1792 = vunpack.c.h.b16 %v249
    %v1793 = vunpack.c.l.b16 %v250
    %v1794 = vunpack.c.h.b16 %v250
    %v1795 = vunpack.c.l.b16 %v251
    %v1796 = vunpack.c.h.b16 %v251
    %v1797 = vunpack.c.l.b16 %v252
    %v1798 = vunpack.c.h.b16 %v252
    %v1799 = vunpack.c.l.b16 %v253
    %v1800 = vunpack.c.l.b16 %v254
    %v1801 = vunpack.c.h.b16 %v254
    %v1802 = vunpack.c.l.b16 %v255
    %v1803 = vunpack.c.h.b16 %v255
    %v1804 = vunpack.c.l.b16 %v256
    %v1805 = vunpack.c.h.b16 %v256
    %v1806 = vunpack.c.l.b16 %v257
    %v1807 = vunpack.c.h.b16 %v257
    %v1808 = vunpack.c.l.b16 %v258
    %v1809 = vunpack.c.h.b16 %v258
    %v1810 = vunpack.c.l.b16 %v259
    %v1811 = vunpack.c.h.b16 %v259
    %v1812 = vunpack.c.l.b16 %v260
    %v1813 = vunpack.c.l.b16 %v261
    %v1814 = vunpack.c.h.b16 %v261
    %v1815 = vunpack.c.l.b16 %v262
    %v1816 = vunpack.c.h.b16 %v262
    %v1817 = vunpack.c.l.b16 %v263
    %v1818 = vunpack.c.h.b16 %v263
    %v1819 = vunpack.c.l.b16 %v264
    %v1820 = vunpack.c.h.b16 %v264
    %v1821 = vunpack.c.l.b16 %v265
    %v1822 = vunpack.c.h.b16 %v265
    %v1823 = vunpack.c.l.b16 %v266
    %v1824 = vunpack.c.h.b16 %v266
    %v1825 = vunpack.c.l.b16 %v267
    %v1826 = vunpack.c.l.b16 %v268
    %v1827 = vunpack.c.h.b16 %v268
    %v1828 = vunpack.c.l.b16 %v269
    %v1829 = vunpack.c.h.b16 %v269
    %v1830 = vunpack.c.l.b16 %v270
    %v1831 = vunpack.c.h.b16 %v270
    %v1832 = vunpack.c.l.b16 %v271
    %v1833 = vunpack.c.h.b16 %v271
    %v1834 = vunpack.c.l.b16 %v272
    %v1835 = vunpack.c.h.b16 %v272
    %v1836 = vunpack.c.l.b16 %v273
    %v1837 = vunpack.c.h.b16 %v273
    %v1838 = vunpack.c.l.b16 %v274
    %v1839 = vunpack.c.l.b16 %v275
    %v1840 = vunpack.c.h.b16 %v275
    %v1841 = vunpack.c.l.b16 %v276
    %v1842 = vunpack.c.h.b16 %v276
    %v1843 = vunpack.c.l.b16 %v277
    %v1844 = vunpack.c.h.b16 %v277
    %v1845 = vunpack.c.l.b16 %v278
    %v1846 = vunpack.c.h.b16 %v278
    %v1847 = vunpack.c.l.b16 %v279
    %v1848 = vunpack.c.h.b16 %v279
    %v1849 = vunpack.c.l.b16 %v280
    %v1850 = vunpack.c.h.b16 %v280
    %v1851 = vunpack.c.l.b16 %v281
    %v1852 = vunpack.c.l.b16 %v282
    %v1853 = vunpack.c.h.b16 %v282
    %v1854 = vunpack.c.l.b16 %v283
    %v1855 = vunpack.c.h.b16 %v283
    %v1856 = vunpack.c.l.b16 %v284
    %v1857 = vunpack.c.h.b16 %v284
    %v1858 = vunpack.c.l.b16 %v285
    %v1859 = vunpack.c.h.b16 %v285
    %v1860 = vunpack.c.l.b16 %v286
    %v1861 = vunpack.c.h.b16 %v286
    %v1862 = vunpack.c.l.b16 %v287
    %v1863 = vunpack.c.h.b16 %v287
    %v1864 = vunpack.c.l.b16 %v288
    %v1865 = vunpack.c.l.b16 %v289
    %v1866 = vunpack.c.h.b16 %v289
    %v1867 = vunpack.c.l.b16 %v290
    %v1868 = vunpack.c.h.b16 %v290
    %v1869 = vunpack.c.l.b16 %v291
    %v1870 = vunpack.c.h.b16 %v291
    %v1871 = vunpack.c.l.b16 %v292
    %v1872 = vunpack.c.h.b16 %v292
    %v1873 = vunpack.c.l.b16 %v293
    %v1874 = vunpack.c.h.b16 %v293
    %v1875 = vunpack.c.l.b16 %v294
    %v1876 = vunpack.c.h.b16 %v294
    %v1877 = vunpack.c.l.b16 %v295
    %v1878 = vunpack.c.l.b16 %v296
    %v1879 = vunpack.c.h.b16 %v296
    %v1880 = vunpack.c.l.b16 %v297
    %v1881 = vunpack.c.h.b16 %v297
    %v1882 = vunpack.c.l.b16 %v298
    %v1883 = vunpack.c.h.b16 %v298
    %v1884 = vunpack.c.l.b16 %v299
    %v1885 = vunpack.c.h.b16 %v299
    %v1886 = vunpack.c.l.b16 %v300
    %v1887 = vunpack.c.h.b16 %v300
    %v1888 = vunpack.c.l.b16 %v301
    %v1889 = vunpack.c.h.b16 %v301
    %v1890 = vunpack.c.l.b16 %v302
    %v1891 = vunpack.c.l.b16 %v303
    %v1892 = vunpack.c.h.b16 %v303
    %v1893 = vunpack.c.l.b16 %v304
    %v1894 = vunpack.c.h.b16 %v304
    %v1895 = vunpack.c.l.b16 %v305
    %v1896 = vunpack.c.h.b16 %v305
    %v1897 = vunpack.c.l.b16 %v306
    %v1898 = vunpack.c.h.b16 %v306
    %v1899 = vunpack.c.l.b16 %v307
    %v1900 = vunpack.c.h.b16 %v307
    %v1901 = vunpack.c.l.b16 %v308
    %v1902 = vunpack.c.h.b16 %v308
    %v1903 = vunpack.c.l.b16 %v309
    %v1904 = vunpack.c.l.b16 %v310
    %v1905 = vunpack.c.h.b16 %v310
    %v1906 = vunpack.c.l.b16 %v311
    %v1907 = vunpack.c.h.b16 %v311
    %v1908 = vunpack.c.l.b16 %v312
    %v1909 = vunpack.c.h.b16 %v312
    %v1910 = vunpack.c.l.b16 %v313
    %v1911 = vunpack.c.h.b16 %v313
    %v1912 = vunpack.c.l.b16 %v314
    %v1913 = vunpack.c.h.b16 %v314
    %v1914 = vunpack.c.l.b16 %v315
    %v1915 = vunpack.c.h.b16 %v315
    %v1916 = vunpack.c.l.b16 %v316
    %v1917 = vunpack.c.l.b16 %v317
    %v1918 = vunpack.c.h.b16 %v317
    %v1919 = vunpack.c.l.b16 %v318
    %v1920 = vunpack.c.h.b16 %v318
    %v1921 = vunpack.c.l.b16 %v319
    %v1922 = vunpack.c.h.b16 %v319
    %v1923 = vunpack.c.l.b16 %v320
    %v1924 = vunpack.c.h.b16 %v320
    %v1925 = vunpack.c.l.b16 %v321
    %v1926 = vunpack.c.h.b16 %v321
    %v1927 = vunpack.c.l.b16 %v322
    %v1928 = vunpack.c.h.b16 %v322
    %v1929 = vunpack.c.l.b16 %v323
    %v1930 = vunpack.c.l.b16 %v324
    %v1931 = vunpack.c.h.b16 %v324
    %v1932 = vunpack.c.l.b16 %v325
    %v1933 = vunpack.c.h.b16 %v325
    %v1934 = vunpack.c.l.b16 %v326
    %v1935 = vunpack.c.h.b16 %v326
    %v1936 = vunpack.c.l.b16 %v327
    %v1937 = vunpack.c.h.b16 %v327
    %v1938 = vunpack.c.l.b16 %v328
    %v1939 = vunpack.c.h.b16 %v328
    %v1940 = vunpack.c.l.b16 %v329
    %v1941 = vunpack.c.h.b16 %v329
    %v1942 = vunpack.c.l.b16 %v330
    %v1943 = vunpack.c.l.b16 %v331
    %v1944 = vunpack.c.h.b16 %v331
    %v1945 = vunpack.c.l.b16 %v332
    %v1946 = vunpack.c.h.b16 %v332
    %v1947 = vunpack.c.l.b16 %v333
    %v1948 = vunpack.c.h.b16 %v333
    %v1949 = vunpack.c.l.b16 %v334
    %v1950 = vunpack.c.h.b16 %v334
    %v1951 = vunpack.c.l.b16 %v335
    %v1952 = vunpack.c.h.b16 %v335
    %v1953 = vunpack.c.l.b16 %v336
    %v1954 = vunpack.c.h.b16 %v336
    %v1955 = vunpack.c.l.b16 %v337
    %v1956 = vunpack.c.l.b16 %v338
    %v1957 = vunpack.c.h.b16 %v338
    %v1958 = vunpack.c.l.b16 %v339
    %v1959 = vunpack.c.h.b16 %v339
    %v1960 = vunpack.c.l.b16 %v340
    %v1961 = vunpack.c.h.b16 %v340
    %v1962 = vunpack.c.l.b16 %v341
    %v1963 = vunpack.c.h.b16 %v341
    %v1964 = vunpack.c.l.b16 %v342
    %v1965 = vunpack.c.h.b16 %v342
    %v1966 = vunpack.c.l.b16 %v343
    %v1967 = vunpack.c.h.b16 %v343
    %v1968 = vunpack.c.l.b16 %v344
    %v1969 = vunpack.c.l.b16 %v345
    %v1970 = vunpack.c.h.b16 %v345
    %v1971 = vunpack.c.l.b16 %v346
    %v1972 = vunpack.c.h.b16 %v346
    %v1973 = vunpack.c.l.b16 %v347
    %v1974 = vunpack.c.h.b16 %v347
    %v1975 = vunpack.c.l.b16 %v348
    %v1976 = vunpack.c.h.b16 %v348
    %v1977 = vunpack.c.l.b16 %v349
    %v1978 = vunpack.c.h.b16 %v349
    %v1979 = vunpack.c.l.b16 %v350
    %v1980 = vunpack.c.h.b16 %v350
    %v1981 = vunpack.c.l.b16 %v351
    %v1982 = vunpack.c.l.b16 %v352
    %v1983 = vunpack.c.h.b16 %v352
    %v1984 = vunpack.c.l.b16 %v353
    %v1985 = vunpack.c.h.b16 %v353
    %v1986 = vunpack.c.l.b16 %v354
    %v1987 = vunpack.c.h.b16 %v354
    %v1988 = vunpack.c.l.b16 %v355
    %v1989 = vunpack.c.h.b16 %v355
    %v1990 = vunpack.c.l.b16 %v356
    %v1991 = vunpack.c.h.b16 %v356
    %v1992 = vunpack.c.l.b16 %v357
    %v1993 = vunpack.c.h.b16 %v357
    %v1994 = vunpack.c.l.b16 %v358
    %v1995 = vunpack.c.l.b16 %v359
    %v1996 = vunpack.c.h.b16 %v359
    %v1997 = vunpack.c.l.b16 %v360
    %v1998 = vunpack.c.h.b16 %v360
    %v1999 = vunpack.c.l.b16 %v361
    %v2000 = vunpack.c.h.b16 %v361
    %v2001 = vunpack.c.l.b16 %v362
    %v2002 = vunpack.c.h.b16 %v362
    %v2003 = vunpack.c.l.b16 %v363
    %v2004 = vunpack.c.h.b16 %v363
    %v2005 = vunpack.c.l.b16 %v364
    %v2006 = vunpack.c.h.b16 %v364
    %v2007 = vunpack.c.l.b16 %v365
    %v2008 = vunpack.c.l.b16 %v366
    %v2009 = vunpack.c.h.b16 %v366
    %v2010 = vunpack.c.l.b16 %v367
    %v2011 = vunpack.c.h.b16 %v367
    %v2012 = vunpack.c.l.b16 %v368
    %v2013 = vunpack.c.h.b16 %v368
    %v2014 = vunpack.c.l.b16 %v369
    %v2015 = vunpack.c.h.b16 %v369
    %v2016 = vunpack.c.l.b16 %v370
    %v2017 = vunpack.c.h.b16 %v370
    %v2018 = vunpack.c.l.b16 %v371
    %v2019 = vunpack.c.h.b16 %v371
    %v2020 = vunpack.c.l.b16 %v372
    %v2021 = vunpack.c.l.b16 %v373
    %v2022 = vunpack.c.h.b16 %v373
    %v2023 = vunpack.c.l.b16 %v374
    %v2024 = vunpack.c.h.b16 %v374
    %v2025 = vunpack.c.l.b16 %v375
    %v2026 = vunpack.c.h.b16 %v375
    %v2027 = vunpack.c.l.b16 %v376
    %v2028 = vunpack.c.h.b16 %v376
    %v2029 = vunpack.c.l.b16 %v377
    %v2030 = vunpack.c.h.b16 %v377
    %v2031 = vunpack.c.l.b16 %v378
    %v2032 = vunpack.c.h.b16 %v378
    %v2033 = vunpack.c.l.b16 %v379
    %v2034 = vunpack.c.l.b16 %v380
    %v2035 = vunpack.c.h.b16 %v380
    %v2036 = vunpack.c.l.b16 %v381
    %v2037 = vunpack.c.h.b16 %v381
    %v2038 = vunpack.c.l.b16 %v382
    %v2039 = vunpack.c.h.b16 %v382
    %v2040 = vunpack.c.l.b16 %v383
    %v2041 = vunpack.c.h.b16 %v383
    %v2042 = vunpack.c.l.b16 %v384
    %v2043 = vunpack.c.h.b16 %v384
    %v2044 = vunpack.c.l.b16 %v385
    %v2045 = vunpack.c.h.b16 %v385
    %v2046 = vunpack.c.l.b16 %v386
    %v2047 = vunpack.c.l.b16 %v387
    %v2048 = vunpack.c.h.b16 %v387
    %v2049 = vunpack.c.l.b16 %v388
    %v2050 = vunpack.c.h.b16 %v388
    %v2051 = vunpack.c.l.b16 %v389
    %v2052 = vunpack.c.h.b16 %v389
    %v2053 = vunpack.c.l.b16 %v390
    %v2054 = vunpack.c.h.b16 %v390
    %v2055 = vunpack.c.l.b16 %v391
    %v2056 = vunpack.c.h.b16 %v391
    %v2057 = vunpack.c.l.b16 %v392
    %v2058 = vunpack.c.h.b16 %v392
    %v2059 = vunpack.c.l.b16 %v393
    %v2060 = vunpack.c.l.b16 %v394
    %v2061 = vunpack.c.h.b16 %v394
    %v2062 = vunpack.c.l.b16 %v395
    %v2063 = vunpack.c.h.b16 %v395
    %v2064 = vunpack.c.l.b16 %v396
    %v2065 = vunpack.c.h.b16 %v396
    %v2066 = vunpack.c.l.b16 %v397
    %v2067 = vunpack.c.h.b16 %v397
    %v2068 = vunpack.c.l.b16 %v398
    %v2069 = vunpack.c.h.b16 %v398
    %v2070 = vunpack.c.l.b16 %v399
    %v2071 = vunpack.c.h.b16 %v399
    %v2072 = vunpack.c.l.b16 %v400
    %v2073 = vunpack.c.l.b16 %v401
    %v2074 = vunpack.c.h.b16 %v401
    %v2075 = vunpack.c.l.b16 %v402
    %v2076 = vunpack.c.h.b16 %v402
    %v2077 = vunpack.c.l.b16 %v403
    %v2078 = vunpack.c.h.b16 %v403
    %v2079 = vunpack.c.l.b16 %v404
    %v2080 = vunpack.c.h.b16 %v404
    %v2081 = vunpack.c.l.b16 %v405
    %v2082 = vunpack.c.h.b16 %v405
    %v2083 = vunpack.c.l.b16 %v406
    %v2084 = vunpack.c.h.b16 %v406
    %v2085 = vunpack.c.l.b16 %v407
    %v2086 = vunpack.c.l.b16 %v408
    %v2087 = vunpack.c.h.b16 %v408
    %v2088 = vunpack.c.l.b16 %v409
    %v2089 = vunpack.c.h.b16 %v409
    %v2090 = vunpack.c.l.b16 %v410
    %v2091 = vunpack.c.h.b16 %v410
    %v2092 = vunpack.c.l.b16 %v411
    %v2093 = vunpack.c.h.b16 %v411
    %v2094 = vunpack.c.l.b16 %v412
    %v2095 = vunpack.c.h.b16 %v412
    %v2096 = vunpack.c.l.b16 %v413
    %v2097 = vunpack.c.h.b16 %v413
    %v2098 = vunpack.c.l.b16 %v414
    %v2099 = vunpack.c.l.b16 %v415
    %v2100 = vunpack.c.h.b16 %v415
    %v2101 = vunpack.c.l.b16 %v416
    %v2102 = vunpack.c.h.b16 %v416
    %v2103 = vunpack.c.l.b16 %v417
    %v2104 = vunpack.c.h.b16 %v417
    %v2105 = vunpack.c.l.b16 %v418
    %v2106 = vunpack.c.h.b16 %v418
    %v2107 = vunpack.c.l.b16 %v419
    %v2108 = vunpack.c.h.b16 %v419
    %v2109 = vunpack.c.l.b16 %v420
    %v2110 = vunpack.c.h.b16 %v420
    %v2111 = vunpack.c.l.b16 %v421
    %v2112 = vunpack.c.l.b16 %v422
    %v2113 = vunpack.c.h.b16 %v422
    %v2114 = vunpack.c.l.b16 %v423
    %v2115 = vunpack.c.h.b16 %v423
    %v2116 = vunpack.c.l.b16 %v424
    %v2117 = vunpack.c.h.b16 %v424
    %v2118 = vunpack.c.l.b16 %v425
    %v2119 = vunpack.c.h.b16 %v425
    %v2120 = vunpack.c.l.b16 %v426
    %v2121 = vunpack.c.h.b16 %v426
    %v2122 = vunpack.c.l.b16 %v427
    %v2123 = vunpack.c.h.b16 %v427
    %v2124 = vunpack.c.l.b16 %v428
    %v2125 = vunpack.c.l.b16 %v429
    %v2126 = vunpack.c.h.b16 %v429
    %v2127 = vunpack.c.l.b16 %v430
    %v2128 = vunpack.c.h.b16 %v430
    %v2129 = vunpack.c.l.b16 %v431
    %v2130 = vunpack.c.h.b16 %v431
    %v2131 = vunpack.c.l.b16 %v432
    %v2132 = vunpack.c.h.b16 %v432
    %v2133 = vunpack.c.l.b16 %v433
    %v2134 = vunpack.c.h.b16 %v433
    %v2135 = vunpack.c.l.b16 %v434
    %v2136 = vunpack.c.h.b16 %v434
    %v2137 = vunpack.c.l.b16 %v435
    %v2138 = vunpack.c.l.b16 %v436
    %v2139 = vunpack.c.h.b16 %v436
    %v2140 = vunpack.c.l.b16 %v437
    %v2141 = vunpack.c.h.b16 %v437
    %v2142 = vunpack.c.l.b16 %v438
    %v2143 = vunpack.c.h.b16 %v438
    %v2144 = vunpack.c.l.b16 %v439
    %v2145 = vunpack.c.h.b16 %v439
    %v2146 = vunpack.c.l.b16 %v440
    %v2147 = vunpack.c.h.b16 %v440
    %v2148 = vunpack.c.l.b16 %v441
    %v2149 = vunpack.c.h.b16 %v441
    %v2150 = vunpack.c.l.b16 %v442
    %v2151 = vunpack.c.l.b16 %v443
    %v2152 = vunpack.c.h.b16 %v443
    %v2153 = vunpack.c.l.b16 %v444
    %v2154 = vunpack.c.h.b16 %v444
    %v2155 = vunpack.c.l.b16 %v445
    %v2156 = vunpack.c.h.b16 %v445
    %v2157 = vunpack.c.l.b16 %v446
    %v2158 = vunpack.c.h.b16 %v446
    %v2159 = vunpack.c.l.b16 %v447
    %v2160 = vunpack.c.h.b16 %v447
    %v2161 = vunpack.c.l.b16 %v448
    %v2162 = vunpack.c.h.b16 %v448
    %v2163 = vunpack.c.l.b16 %v449
    %v2164 = vunpack.c.l.b16 %v450
    %v2165 = vunpack.c.h.b16 %v450
    %v2166 = vunpack.c.l.b16 %v451
    %v2167 = vunpack.c.h.b16 %v451
    %v2168 = vunpack.c.l.b16 %v452
    %v2169 = vunpack.c.h.b16 %v452
    %v2170 = vunpack.c.l.b16 %v453
    %v2171 = vunpack.c.h.b16 %v453
    %v2172 = vunpack.c.l.b16 %v454
    %v2173 = vunpack.c.h.b16 %v454
    %v2174 = vunpack.c.l.b16 %v455
    %v2175 = vunpack.c.h.b16 %v455
    %v2176 = vunpack.c.l.b16 %v456
    %v2177 = vunpack.c.l.b16 %v457
    %v2178 = vunpack.c.h.b16 %v457
    %v2179 = vunpack.c.l.b16 %v458
    %v2180 = vunpack.c.h.b16 %v458
    %v2181 = vunpack.c.l.b16 %v459
    %v2182 = vunpack.c.h.b16 %v459
    %v2183 = vunpack.c.l.b16 %v460
    %v2184 = vunpack.c.h.b16 %v460
    %v2185 = vunpack.c.l.b16 %v461
    %v2186 = vunpack.c.h.b16 %v461
    %v2187 = vunpack.c.l.b16 %v462
    %v2188 = vunpack.c.h.b16 %v462
    %v2189 = vunpack.c.l.b16 %v463
    %v2190 = vunpack.c.l.b16 %v464
    %v2191 = vunpack.c.h.b16 %v464
    %v2192 = vunpack.c.l.b16 %v465
    %v2193 = vunpack.c.h.b16 %v465
    %v2194 = vunpack.c.l.b16 %v466
    %v2195 = vunpack.c.h.b16 %v466
    %v2196 = vunpack.c.l.b16 %v467
    %v2197 = vunpack.c.h.b16 %v467
    %v2198 = vunpack.c.l.b16 %v468
    %v2199 = vunpack.c.h.b16 %v468
    %v2200 = vunpack.c.l.b16 %v469
    %v2201 = vunpack.c.h.b16 %v469
    %v2202 = vunpack.c.l.b16 %v470
    %v2203 = vunpack.c.l.b16 %v471
    %v2204 = vunpack.c.h.b16 %v471
    %v2205 = vunpack.c.l.b16 %v472
    %v2206 = vunpack.c.h.b16 %v472
    %v2207 = vunpack.c.l.b16 %v473
    %v2208 = vunpack.c.h.b16 %v473
    %v2209 = vunpack.c.l.b16 %v474
    %v2210 = vunpack.c.h.b16 %v474
    %v2211 = vunpack.c.l.b16 %v475
    %v2212 = vunpack.c.h.b16 %v475
    %v2213 = vunpack.c.l.b16 %v476
    %v2214 = vunpack.c.h.b16 %v476
    %v2215 = vunpack.c.l.b16 %v477
    %v2216 = vunpack.c.l.b16 %v478
    %v2217 = vunpack.c.h.b16 %v478
    %v2218 = vunpack.c.l.b16 %v479
    %v2219 = vunpack.c.h.b16 %v479
    %v2220 = vunpack.c.l.b16 %v480
    %v2221 = vunpack.c.h.b16 %v480
    %v2222 = vunpack.c.l.b16 %v481
    %v2223 = vunpack.c.h.b16 %v481
    %v2224 = vunpack.c.l.b16 %v482
    %v2225 = vunpack.c.h.b16 %v482
    %v2226 = vunpack.c.l.b16 %v483
    %v2227 = vunpack.c.h.b16 %v483
    %v2228 = vunpack.c.l.b16 %v484
    %v2229 = vunpack.c.l.b16 %v485
    %v2230 = vunpack.c.h.b16 %v485
    %v2231 = vunpack.c.l.b16 %v486
    %v2232 = vunpack.c.h.b16 %v486
    %v2233 = vunpack.c.l.b16 %v487
    %v2234 = vunpack.c.h.b16 %v487
    %v2235 = vunpack.c.l.b16 %v488
    %v2236 = vunpack.c.h.b16 %v488
    %v2237 = vunpack.c.l.b16 %v489
    %v2238 = vunpack.c.h.b16 %v489
    %v2239 = vunpack.c.l.b16 %v490
    %v2240 = vunpack.c.h.b16 %v490
    %v2241 = vunpack.c.l.b16 %v491
    %v2242 = vunpack.c.l.b16 %v492
    %v2243 = vunpack.c.h.b16 %v492
    %v2244 = vunpack.c.l.b16 %v493
    %v2245 = vunpack.c.h.b16 %v493
    %v2246 = vunpack.c.l.b16 %v494
    %v2247 = vunpack.c.h.b16 %v494
    %v2248 = vunpack.c.l.b16 %v495
    %v2249 = vunpack.c.h.b16 %v495
    %v2250 = vunpack.c.l.b16 %v496
    %v2251 = vunpack.c.h.b16 %v496
    %v2252 = vunpack.c.l.b16 %v497
    %v2253 = vunpack.c.h.b16 %v497
    %v2254 = vunpack.c.l.b16 %v498
    %v2255 = vunpack.c.l.b16 %v499
    %v2256 = vunpack.c.h.b16 %v499
    %v2257 = vunpack.c.l.b16 %v500
    %v2258 = vunpack.c.h.b16 %v500
    %v2259 = vunpack.c.l.b16 %v501
    %v2260 = vunpack.c.h.b16 %v501
    %v2261 = vunpack.c.l.b16 %v502
    %v2262 = vunpack.c.h.b16 %v502
    %v2263 = vunpack.c.l.b16 %v503
    %v2264 = vunpack.c.h.b16 %v503
    %v2265 = vunpack.c.l.b16 %v504
    %v2266 = vunpack.c.h.b16 %v504
    %v2267 = vunpack.c.l.b16 %v505
    %v2268 = vunpack.c.l.b16 %v506
    %v2269 = vunpack.c.h.b16 %v506
    %v2270 = vunpack.c.l.b16 %v507
    %v2271 = vunpack.c.h.b16 %v507
    %v2272 = vunpack.c.l.b16 %v508
    %v2273 = vunpack.c.h.b16 %v508
    %v2274 = vunpack.c.l.b16 %v509
    %v2275 = vunpack.c.h.b16 %v509
    %v2276 = vunpack.c.l.b16 %v510
    %v2277 = vunpack.c.h.b16 %v510
    %v2278 = vunpack.c.l.b16 %v511
    %v2279 = vunpack.c.h.b16 %v511
    %v2280 = vunpack.c.l.b16 %v512
    %v2281 = vunpack.c.l.b16 %v513
    %v2282 = vunpack.c.h.b16 %v513
    %v2283 = vunpack.c.l.b16 %v514
    %v2284 = vunpack.c.h.b16 %v514
    %v2285 = vunpack.c.l.b16 %v515
    %v2286 = vunpack.c.h.b16 %v515
    %v2287 = vunpack.c.l.b16 %v516
    %v2288 = vunpack.c.h.b16 %v516
    %v2289 = vunpack.c.l.b16 %v517
    %v2290 = vunpack.c.h.b16 %v517
    %v2291 = vunpack.c.l.b16 %v518
    %v2292 = vunpack.c.h.b16 %v518
    %v2293 = vunpack.c.l.b16 %v519
    %v2294 = vunpack.c.l.b16 %v520
    %v2295 = vunpack.c.h.b16 %v520
    %v2296 = vunpack.c.l.b16 %v521
    %v2297 = vunpack.c.h.b16 %v521
    %v2298 = vunpack.c.l.b16 %v522
    %v2299 = vunpack.c.h.b16 %v522
    %v2300 = vunpack.c.l.b16 %v523
    %v2301 = vunpack.c.h.b16 %v523
    %v2302 = vunpack.c.l.b16 %v524
    %v2303 = vunpack.c.h.b16 %v524
    %v2304 = vunpack.c.l.b16 %v525
    %v2305 = vunpack.c.h.b16 %v525
    %v2306 = vunpack.c.l.b16 %v526
    %v2307 = vunpack.c.l.b16 %v527
    %v2308 = vunpack.c.h.b16 %v527
    %v2309 = vunpack.c.l.b16 %v528
    %v2310 = vunpack.c.h.b16 %v528
    %v2311 = vunpack.c.l.b16 %v529
    %v2312 = vunpack.c.h.b16 %v529
    %v2313 = vunpack.c.l.b16 %v530
    %v2314 = vunpack.c.h.b16 %v530
    %v2315 = vunpack.c.l.b16 %v531
    %v2316 = vunpack.c.h.b16 %v531
    %v2317 = vunpack.c.l.b16 %v532
    %v2318 = vunpack.c.h.b16 %v532
    %v2319 = vunpack.c.l.b16 %v533
    %v2320 = vunpack.c.l.b16 %v534
    %v2321 = vunpack.c.h.b16 %v534
    %v2322 = vunpack.c.l.b16 %v535
    %v2323 = vunpack.c.h.b16 %v535
    %v2324 = vunpack.c.l.b16 %v536
    %v2325 = vunpack.c.h.b16 %v536
    %v2326 = vunpack.c.l.b16 %v537
    %v2327 = vunpack.c.h.b16 %v537
    %v2328 = vunpack.c.l.b16 %v538
    %v2329 = vunpack.c.h.b16 %v538
    %v2330 = vunpack.c.l.b16 %v539
    %v2331 = vunpack.c.h.b16 %v539
    %v2332 = vunpack.c.l.b16 %v540
    %v2333 = vunpack.c.l.b16 %v541
    %v2334 = vunpack.c.h.b16 %v541
    %v2335 = vunpack.c.l.b16 %v542
    %v2336 = vunpack.c.h.b16 %v542
    %v2337 = vunpack.c.l.b16 %v543
    %v2338 = vunpack.c.h.b16 %v543
    %v2339 = vunpack.c.l.b16 %v544
    %v2340 = vunpack.c.h.b16 %v544
    %v2341 = vunpack.c.l.b16 %v545
    %v2342 = vunpack.c.h.b16 %v545
    %v2343 = vunpack.c.l.b16 %v546
    %v2344 = vunpack.c.h.b16 %v546
    %v2345 = vunpack.c.l.b16 %v547
    %v2346 = vunpack.c.l.b16 %v548
    %v2347 = vunpack.c.h.b16 %v548
    %v2348 = vunpack.c.l.b16 %v549
    %v2349 = vunpack.c.h.b16 %v549
    %v2350 = vunpack.c.l.b16 %v550
    %v2351 = vunpack.c.h.b16 %v550
    %v2352 = vunpack.c.l.b16 %v551
    %v2353 = vunpack.c.h.b16 %v551
    %v2354 = vunpack.c.l.b16 %v552
    %v2355 = vunpack.c.h.b16 %v552
    %v2356 = vunpack.c.l.b16 %v553
    %v2357 = vunpack.c.h.b16 %v553
    %v2358 = vunpack.c.l.b16 %v554
    %v2359 = vunpack.c.l.b16 %v555
    %v2360 = vunpack.c.h.b16 %v555
    %v2361 = vunpack.c.l.b16 %v556
    %v2362 = vunpack.c.h.b16 %v556
    %v2363 = vunpack.c.l.b16 %v557
    %v2364 = vunpack.c.h.b16 %v557
    %v2365 = vunpack.c.l.b16 %v558
    %v2366 = vunpack.c.h.b16 %v558
    %v2367 = vunpack.c.l.b16 %v559
    %v2368 = vunpack.c.h.b16 %v559
    %v2369 = vunpack.c.l.b16 %v560
    %v2370 = vunpack.c.h.b16 %v560
    %v2371 = vunpack.c.l.b16 %v561
    %v2372 = vunpack.c.l.b16 %v562
    %v2373 = vunpack.c.h.b16 %v562
    %v2374 = vunpack.c.l.b16 %v563
    %v2375 = vunpack.c.h.b16 %v563
    %v2376 = vunpack.c.l.b16 %v564
    %v2377 = vunpack.c.h.b16 %v564
    %v2378 = vunpack.c.l.b16 %v565
    %v2379 = vunpack.c.h.b16 %v565
    %v2380 = vunpack.c.l.b16 %v566
    %v2381 = vunpack.c.h.b16 %v566
    %v2382 = vunpack.c.l.b16 %v567
    %v2383 = vunpack.c.h.b16 %v567
    %v2384 = vunpack.c.l.b16 %v568
    %v2385 = vunpack.c.l.b16 %v569
    %v2386 = vunpack.c.h.b16 %v569
    %v2387 = vunpack.c.l.b16 %v570
    %v2388 = vunpack.c.h.b16 %v570
    %v2389 = vunpack.c.l.b16 %v571
    %v2390 = vunpack.c.h.b16 %v571
    %v2391 = vunpack.c.l.b16 %v572
    %v2392 = vunpack.c.h.b16 %v572
    %v2393 = vunpack.c.l.b16 %v573
    %v2394 = vunpack.c.h.b16 %v573
    %v2395 = vunpack.c.l.b16 %v574
    %v2396 = vunpack.c.h.b16 %v574
    %v2397 = vunpack.c.l.b16 %v575
    %v2398 = vunpack.c.l.b16 %v576
    %v2399 = vunpack.c.h.b16 %v576
    %v2400 = vunpack.c.l.b16 %v577
    %v2401 = vunpack.c.h.b16 %v577
    %v2402 = vunpack.c.l.b16 %v578
    %v2403 = vunpack.c.h.b16 %v578
    %v2404 = vunpack.c.l.b16 %v579
    %v2405 = vunpack.c.h.b16 %v579
    %v2406 = vunpack.c.l.b16 %v580
    %v2407 = vunpack.c.h.b16 %v580
    %v2408 = vunpack.c.l.b16 %v581
    %v2409 = vunpack.c.h.b16 %v581
    %v2410 = vunpack.c.l.b16 %v582
    %v2411 = vunpack.c.l.b16 %v583
    %v2412 = vunpack.c.h.b16 %v583
    %v2413 = vunpack.c.l.b16 %v584
    %v2414 = vunpack.c.h.b16 %v584
    %v2415 = vunpack.c.l.b16 %v585
    %v2416 = vunpack.c.h.b16 %v585
    %v2417 = vunpack.c.l.b16 %v586
    %v2418 = vunpack.c.h.b16 %v586
    %v2419 = vunpack.c.l.b16 %v587
    %v2420 = vunpack.c.h.b16 %v587
    %v2421 = vunpack.c.l.b16 %v588
    %v2422 = vunpack.c.h.b16 %v588
    %v2423 = vunpack.c.l.b16 %v589
    %v2424 = vunpack.c.l.b16 %v590
    %v2425 = vunpack.c.h.b16 %v590
    %v2426 = vunpack.c.l.b16 %v591
    %v2427 = vunpack.c.h.b16 %v591
    %v2428 = vunpack.c.l.b16 %v592
    %v2429 = vunpack.c.h.b16 %v592
    %v2430 = vunpack.c.l.b16 %v593
    %v2431 = vunpack.c.h.b16 %v593
    %v2432 = vunpack.c.l.b16 %v594
    %v2433 = vunpack.c.h.b16 %v594
    %v2434 = vunpack.c.l.b16 %v595
    %v2435 = vunpack.c.h.b16 %v595
    %v2436 = vunpack.c.l.b16 %v596
    %v2437 = vunpack.c.l.b16 %v597
    %v2438 = vunpack.c.h.b16 %v597
    %v2439 = vunpack.c.l.b16 %v598
    %v2440 = vunpack.c.h.b16 %v598
    %v2441 = vunpack.c.l.b16 %v599
    %v2442 = vunpack.c.h.b16 %v599
    %v2443 = vunpack.c.l.b16 %v600
    %v2444 = vunpack.c.h.b16 %v600
    %v2445 = vunpack.c.l.b16 %v601
    %v2446 = vunpack.c.h.b16 %v601
    %v2447 = vunpack.c.l.b16 %v602
    %v2448 = vunpack.c.h.b16 %v602
    %v2449 = vunpack.c.l.b16 %v603
    %v2450 = vunpack.c.l.b16 %v604
    %v2451 = vunpack.c.h.b16 %v604
    %v2452 = vunpack.c.l.b16 %v605
    %v2453 = vunpack.c.h.b16 %v605
    %v2454 = vunpack.c.l.b16 %v606
    %v2455 = vunpack.c.h.b16 %v606
    %v2456 = vunpack.c.l.b16 %v607
    %v2457 = vunpack.c.h.b16 %v607
    %v2458 = vunpack.c.l.b16 %v608
    %v2459 = vunpack.c.h.b16 %v608
    %v2460 = vunpack.c.l.b16 %v609
    %v2461 = vunpack.c.h.b16 %v609
    %v2462 = vunpack.c.l.b16 %v610
    %v2463 = vunpack.c.l.b16 %v611
    %v2464 = vunpack.c.h.b16 %v611
    %v2465 = vunpack.c.l.b16 %v612
    %v2466 = vunpack.c.h.b16 %v612
    %v2467 = vunpack.c.l.b16 %v613
    %v2468 = vunpack.c.h.b16 %v613
    %v2469 = vunpack.c.l.b16 %v614
    %v2470 = vunpack.c.h.b16 %v614
    %v2471 = vunpack.c.l.b16 %v615
    %v2472 = vunpack.c.h.b16 %v615
    %v2473 = vunpack.c.l.b16 %v616
    %v2474 = vunpack.c.h.b16 %v616
    %v2475 = vunpack.c.l.b16 %v617
    %v2476 = vunpack.c.l.b16 %v618
    %v2477 = vunpack.c.h.b16 %v618
    %v2478 = vunpack.c.l.b16 %v619
    %v2479 = vunpack.c.h.b16 %v619
    %v2480 = vunpack.c.l.b16 %v620
    %v2481 = vunpack.c.h.b16 %v620
    %v2482 = vunpack.c.l.b16 %v621
    %v2483 = vunpack.c.h.b16 %v621
    %v2484 = vunpack.c.l.b16 %v622
    %v2485 = vunpack.c.h.b16 %v622
    %v2486 = vunpack.c.l.b16 %v623
    %v2487 = vunpack.c.h.b16 %v623
    %v2488 = vunpack.c.l.b16 %v624
    %v2489 = vunpack.c.l.b16 %v625
    %v2490 = vunpack.c.h.b16 %v625
    %v2491 = vunpack.c.l.b16 %v626
    %v2492 = vunpack.c.h.b16 %v626
    %v2493 = vunpack.c.l.b16 %v627
    %v2494 = vunpack.c.h.b16 %v627
    %v2495 = vunpack.c.l.b16 %v628
    %v2496 = vunpack.c.h.b16 %v628
    %v2497 = vunpack.c.l.b16 %v629
    %v2498 = vunpack.c.h.b16 %v629
    %v2499 = vunpack.c.l.b16 %v630
    %v2500 = vunpack.c.h.b16 %v630
    %v2501 = vunpack.c.l.b16 %v631
    %v2502 = vunpack.c.l.b16 %v632
    %v2503 = vunpack.c.h.b16 %v632
    %v2504 = vunpack.c.l.b16 %v633
    %v2505 = vunpack.c.h.b16 %v633
    %v2506 = vunpack.c.l.b16 %v634
    %v2507 = vunpack.c.h.b16 %v634
    %v2508 = vunpack.c.l.b16 %v635
    %v2509 = vunpack.c.h.b16 %v635
    %v2510 = vunpack.c.l.b16 %v636
    %v2511 = vunpack.c.h.b16 %v636
    %v2512 = vunpack.c.l.b16 %v637
    %v2513 = vunpack.c.h.b16 %v637
    %v2514 = vunpack.c.l.b16 %v638
    %v2515 = vunpack.c.l.b16 %v639
    %v2516 = vunpack.c.h.b16 %v639
    %v2517 = vunpack.c.l.b16 %v640
    %v2518 = vunpack.c.h.b16 %v640
    %v2519 = vunpack.c.l.b16 %v641
    %v2520 = vunpack.c.h.b16 %v641
    %v2521 = vunpack.c.l.b16 %v642
    %v2522 = vunpack.c.h.b16 %v642
    %v2523 = vunpack.c.l.b16 %v643
    %v2524 = vunpack.c.h.b16 %v643
    %v2525 = vunpack.c.l.b16 %v644
    %v2526 = vunpack.c.h.b16 %v644
    %v2527 = vunpack.c.l.b16 %v645
    %v2528 = vunpack.c.l.b16 %v646
    %v2529 = vunpack.c.h.b16 %v646
    %v2530 = vunpack.c.l.b16 %v647
    %v2531 = vunpack.c.h.b16 %v647
    %v2532 = vunpack.c.l.b16 %v648
    %v2533 = vunpack.c.h.b16 %v648
    %v2534 = vunpack.c.l.b16 %v649
    %v2535 = vunpack.c.h.b16 %v649
    %v2536 = vunpack.c.l.b16 %v650
    %v2537 = vunpack.c.h.b16 %v650
    %v2538 = vunpack.c.l.b16 %v651
    %v2539 = vunpack.c.h.b16 %v651
    %v2540 = vunpack.c.l.b16 %v652
    %v2541 = vunpack.c.l.b16 %v653
    %v2542 = vunpack.c.h.b16 %v653
    %v2543 = vunpack.c.l.b16 %v654
    %v2544 = vunpack.c.h.b16 %v654
    %v2545 = vunpack.c.l.b16 %v655
    %v2546 = vunpack.c.h.b16 %v655
    %v2547 = vunpack.c.l.b16 %v656
    %v2548 = vunpack.c.h.b16 %v656
    %v2549 = vunpack.c.l.b16 %v657
    %v2550 = vunpack.c.h.b16 %v657
    %v2551 = vunpack.c.l.b16 %v658
    %v2552 = vunpack.c.h.b16 %v658
    %v2553 = vunpack.c.l.b16 %v659
    %v2554 = vunpack.c.l.b16 %v660
    %v2555 = vunpack.c.h.b16 %v660
    %v2556 = vunpack.c.l.b16 %v661
    %v2557 = vunpack.c.h.b16 %v661
    %v2558 = vunpack.c.l.b16 %v662
    %v2559 = vunpack.c.h.b16 %v662
    %v2560 = vunpack.c.l.b16 %v663
    %v2561 = vunpack.c.h.b16 %v663
    %v2562 = vunpack.c.l.b16 %v664
    %v2563 = vunpack.c.h.b16 %v664
    %v2564 = vunpack.c.l.b16 %v665
    %v2565 = vunpack.c.h.b16 %v665
    %v2566 = vunpack.c.l.b16 %v666
    %v2567 = vunpack.c.l.b16 %v667
    %v2568 = vunpack.c.h.b16 %v667
    %v2569 = vunpack.c.l.b16 %v668
    %v2570 = vunpack.c.h.b16 %v668
    %v2571 = vunpack.c.l.b16 %v669
    %v2572 = vunpack.c.h.b16 %v669
    %v2573 = vunpack.c.l.b16 %v670
    %v2574 = vunpack.c.h.b16 %v670
    %v2575 = vunpack.c.l.b16 %v671
    %v2576 = vunpack.c.h.b16 %v671
    %v2577 = vunpack.c.l.b16 %v672
    %v2578 = vunpack.c.h.b16 %v672
    %v2579 = vunpack.c.l.b16 %v673
    %v2580 = vunpack.c.l.b16 %v674
    %v2581 = vunpack.c.h.b16 %v674
    %v2582 = vunpack.c.l.b16 %v675
    %v2583 = vunpack.c.h.b16 %v675
    %v2584 = vunpack.c.l.b16 %v676
    %v2585 = vunpack.c.h.b16 %v676
    %v2586 = vunpack.c.l.b16 %v677
    %v2587 = vunpack.c.h.b16 %v677
    %v2588 = vunpack.c.l.b16 %v678
    %v2589 = vunpack.c.h.b16 %v678
    %v2590 = vunpack.c.l.b16 %v679
    %v2591 = vunpack.c.h.b16 %v679
    %v2592 = vunpack.c.l.b16 %v680
    %v2593 = vunpack.c.l.b16 %v681
    %v2594 = vunpack.c.h.b16 %v681
    %v2595 = vunpack.c.l.b16 %v682
    %v2596 = vunpack.c.h.b16 %v682
    %v2597 = vunpack.c.l.b16 %v683
    %v2598 = vunpack.c.h.b16 %v683
    %v2599 = vunpack.c.l.b16 %v684
    %v2600 = vunpack.c.h.b16 %v684
    %v2601 = vunpack.c.l.b16 %v685
    %v2602 = vunpack.c.h.b16 %v685
    %v2603 = vunpack.c.l.b16 %v686
    %v2604 = vunpack.c.h.b16 %v686
    %v2605 = vunpack.c.l.b16 %v687
    %v2606 = vunpack.c.l.b16 %v688
    %v2607 = vunpack.c.h.b16 %v688
    %v2608 = vunpack.c.l.b16 %v689
    %v2609 = vunpack.c.h.b16 %v689
    %v2610 = vunpack.c.l.b16 %v690
    %v2611 = vunpack.c.h.b16 %v690
    %v2612 = vunpack.c.l.b16 %v691
    %v2613 = vunpack.c.h.b16 %v691
    %v2614 = vunpack.c.l.b16 %v692
    %v2615 = vunpack.c.h.b16 %v692
    %v2616 = vunpack.c.l.b16 %v693
    %v2617 = vunpack.c.h.b16 %v693
    %v2618 = vunpack.c.l.b16 %v694
    %v2619 = vunpack.c.l.b16 %v695
    %v2620 = vunpack.c.h.b16 %v695
    %v2621 = vunpack.c.l.b16 %v696
    %v2622 = vunpack.c.h.b16 %v696
    %v2623 = vunpack.c.l.b16 %v697
    %v2624 = vunpack.c.h.b16 %v697
    %v2625 = vunpack.c.l.b16 %v698
    %v2626 = vunpack.c.h.b16 %v698
    %v2627 = vunpack.c.l.b16 %v699
    %v2628 = vunpack.c.h.b16 %v699
    %v2629 = vunpack.c.l.b16 %v700
    %v2630 = vunpack.c.h.b16 %v700
    %v2631 = vunpack.c.l.b16 %v701
    %v2632 = vunpack.c.l.b16 %v702
    %v2633 = vunpack.c.h.b16 %v702
    %v2634 = vunpack.c.l.b16 %v703
    %v2635 = vunpack.c.h.b16 %v703
    %v2636 = vunpack.c.l.b16 %v704
    %v2637 = vunpack.c.h.b16 %v704
    %v2638 = vunpack.c.l.b16 %v705
    %v2639 = vunpack.c.h.b16 %v705
    %v2640 = vunpack.c.l.b16 %v706
    %v2641 = vunpack.c.h.b16 %v706
    %v2642 = vunpack.c.l.b16 %v707
    %v2643 = vunpack.c.h.b16 %v707
    %v2644 = vunpack.c.l.b16 %v708
    %v2645 = vunpack.c.l.b16 %v709
    %v2646 = vunpack.c.h.b16 %v709
    %v2647 = vunpack.c.l.b16 %v710
    %v2648 = vunpack.c.h.b16 %v710
    %v2649 = vunpack.c.l.b16 %v711
    %v2650 = vunpack.c.h.b16 %v711
    %v2651 = vunpack.c.l.b16 %v712
    %v2652 = vunpack.c.h.b16 %v712
    %v2653 = vunpack.c.l.b16 %v713
    %v2654 = vunpack.c.h.b16 %v713
    %v2655 = vunpack.c.l.b16 %v714
    %v2656 = vunpack.c.h.b16 %v714
    %v2657 = vunpack.c.l.b16 %v715
    %v2658 = vunpack.c.l.b16 %v716
    %v2659 = vunpack.c.h.b16 %v716
    %v2660 = vunpack.c.l.b16 %v717
    %v2661 = vunpack.c.h.b16 %v717
    %v2662 = vunpack.c.l.b16 %v718
    %v2663 = vunpack.c.h.b16 %v718
    %v2664 = vunpack.c.l.b16 %v719
    %v2665 = vunpack.c.h.b16 %v719
    %v2666 = vunpack.c.l.b16 %v720
    %v2667 = vunpack.c.h.b16 %v720
    %v2668 = vunpack.c.l.b16 %v721
    %v2669 = vunpack.c.h.b16 %v721
    %v2670 = vunpack.c.l.b16 %v722
    %v2671 = vunpack.c.l.b16 %v723
    %v2672 = vunpack.c.h.b16 %v723
    %v2673 = vunpack.c.l.b16 %v724
    %v2674 = vunpack.c.h.b16 %v724
    %v2675 = vunpack.c.l.b16 %v725
    %v2676 = vunpack.c.h.b16 %v725
    %v2677 = vunpack.c.l.b16 %v726
    %v2678 = vunpack.c.h.b16 %v726
    %v2679 = vunpack.c.l.b16 %v727
    %v2680 = vunpack.c.h.b16 %v727
    %v2681 = vunpack.c.l.b16 %v728
    %v2682 = vunpack.c.h.b16 %v728
    %v2683 = vunpack.c.l.b16 %v729
    %v2684 = vunpack.c.l.b16 %v730
    %v2685 = vunpack.c.h.b16 %v730
    %v2686 = vunpack.c.l.b16 %v731
    %v2687 = vunpack.c.h.b16 %v731
    %v2688 = vunpack.c.l.b16 %v732
    %v2689 = vunpack.c.h.b16 %v732
    %v2690 = vunpack.c.l.b16 %v733
    %v2691 = vunpack.c.h.b16 %v733
    %v2692 = vunpack.c.l.b16 %v734
    %v2693 = vunpack.c.h.b16 %v734
    %v2694 = vunpack.c.l.b16 %v735
    %v2695 = vunpack.c.h.b16 %v735
    %v2696 = vunpack.c.l.b16 %v736
    %v2697 = vunpack.c.l.b16 %v737
    %v2698 = vunpack.c.h.b16 %v737
    %v2699 = vunpack.c.l.b16 %v738
    %v2700 = vunpack.c.h.b16 %v738
    %v2701 = vunpack.c.l.b16 %v739
    %v2702 = vunpack.c.h.b16 %v739
    %v2703 = vunpack.c.l.b16 %v740
    %v2704 = vunpack.c.h.b16 %v740
    %v2705 = vunpack.c.l.b16 %v741
    %v2706 = vunpack.c.h.b16 %v741
    %v2707 = vunpack.c.l.b16 %v742
    %v2708 = vunpack.c.h.b16 %v742
    %v2709 = vunpack.c.l.b16 %v743
    %v2710 = vunpack.c.l.b16 %v744
    %v2711 = vunpack.c.h.b16 %v744
    %v2712 = vunpack.c.l.b16 %v745
    %v2713 = vunpack.c.h.b16 %v745
    %v2714 = vunpack.c.l.b16 %v746
    %v2715 = vunpack.c.h.b16 %v746
    %v2716 = vunpack.c.l.b16 %v747
    %v2717 = vunpack.c.h.b16 %v747
    %v2718 = vunpack.c.l.b16 %v748
    %v2719 = vunpack.c.h.b16 %v748
    %v2720 = vunpack.c.l.b16 %v749
    %v2721 = vunpack.c.h.b16 %v749
    %v2722 = vunpack.c.l.b16 %v750
    %v2723 = vunpack.c.l.b16 %v751
    %v2724 = vunpack.c.h.b16 %v751
    %v2725 = vunpack.c.l.b16 %v752
    %v2726 = vunpack.c.h.b16 %v752
    %v2727 = vunpack.c.l.b16 %v753
    %v2728 = vunpack.c.h.b16 %v753
    %v2729 = vunpack.c.l.b16 %v754
    %v2730 = vunpack.c.h.b16 %v754
    %v2731 = vunpack.c.l.b16 %v755
    %v2732 = vunpack.c.h.b16 %v755
    %v2733 = vunpack.c.l.b16 %v756
    %v2734 = vunpack.c.h.b16 %v756
    %v2735 = vunpack.c.l.b16 %v757
    %v2736 = vunpack.c.l.b16 %v758
    %v2737 = vunpack.c.h.b16 %v758
    %v2738 = vunpack.c.l.b16 %v759
    %v2739 = vunpack.c.h.b16 %v759
    %v2740 = vunpack.c.l.b16 %v760
    %v2741 = vunpack.c.h.b16 %v760
    %v2742 = vunpack.c.l.b16 %v761
    %v2743 = vunpack.c.h.b16 %v761
    %v2744 = vunpack.c.l.b16 %v762
    %v2745 = vunpack.c.h.b16 %v762
    %v2746 = vunpack.c.l.b16 %v763
    %v2747 = vunpack.c.h.b16 %v763
    %v2748 = vunpack.c.l.b16 %v764
    %v2749 = vunpack.c.l.b16 %v765
    %v2750 = vunpack.c.h.b16 %v765
    %v2751 = vunpack.c.l.b16 %v766
    %v2752 = vunpack.c.h.b16 %v766
    %v2753 = vunpack.c.l.b16 %v767
    %v2754 = vunpack.c.h.b16 %v767
    %v2755 = vunpack.c.l.b16 %v768
    %v2756 = vunpack.c.h.b16 %v768
    %v2757 = vunpack.c.l.b16 %v769
    %v2758 = vunpack.c.h.b16 %v769
    %v2759 = vunpack.c.l.b16 %v770
    %v2760 = vunpack.c.h.b16 %v770
    %v2761 = vunpack.c.l.b16 %v771
    %v2762 = vpack.c.b16 %v1501, %v1488
    %v2763 = vpack.c.b16 %v1502, %v1489
    %v2764 = vpack.c.b16 %v1503, %v1490
    %v2765 = vpack.c.b16 %v1504, %v1491
    %v2766 = vpack.c.b16 %v1505, %v1492
    %v2767 = vpack.c.b16 %v1506, %v1493
    %v2768 = vpack.c.b16 %v1507, %v1494
    %v2769 = vpack.c.b16 %v1508, %v1495
    %v2770 = vpack.c.b16 %v1509, %v1496
    %v2771 = vpack.c.b16 %v1510, %v1497
    %v2772 = vpack.c.b16 %v1511, %v1498
    %v2773 = vpack.c.b16 %v1512, %v1499
    %v2774 = vpack.c.b16 %v1513, %v1500
    %v2775 = vpack.c.b16 %v1527, %v1514
    %v2776 = vpack.c.b16 %v1528, %v1515
    %v2777 = vpack.c.b16 %v1529, %v1516
    %v2778 = vpack.c.b16 %v1530, %v1517
    %v2779 = vpack.c.b16 %v1531, %v1518
    %v2780 = vpack.c.b16 %v1532, %v1519
    %v2781 = vpack.c.b16 %v1533, %v1520
    %v2782 = vpack.c.b16 %v1534, %v1521
    %v2783 = vpack.c.b16 %v1535, %v1522
    %v2784 = vpack.c.b16 %v1536, %v1523
    %v2785 = vpack.c.b16 %v1537, %v1524
    %v2786 = vpack.c.b16 %v1538, %v1525
    %v2787 = vpack.c.b16 %v1539, %v1526
    %v2788 = vpack.c.b16 %v1553, %v1540
    %v2789 = vpack.c.b16 %v1554, %v1541
    %v2790 = vpack.c.b16 %v1555, %v1542
    %v2791 = vpack.c.b16 %v1556, %v1543
    %v2792 = vpack.c.b16 %v1557, %v1544
    %v2793 = vpack.c.b16 %v1558, %v1545
    %v2794 = vpack.c.b16 %v1559, %v1546
    %v2795 = vpack.c.b16 %v1560, %v1547
    %v2796 = vpack.c.b16 %v1561, %v1548
    %v2797 = vpack.c.b16 %v1562, %v1549
    %v2798 = vpack.c.b16 %v1563, %v1550
    %v2799 = vpack.c.b16 %v1564, %v1551
    %v2800 = vpack.c.b16 %v1565, %v1552
    %v2801 = vpack.c.b16 %v1579, %v1566
    %v2802 = vpack.c.b16 %v1580, %v1567
    %v2803 = vpack.c.b16 %v1581, %v1568
    %v2804 = vpack.c.b16 %v1582, %v1569
    %v2805 = vpack.c.b16 %v1583, %v1570
    %v2806 = vpack.c.b16 %v1584, %v1571
    %v2807 = vpack.c.b16 %v1585, %v1572
    %v2808 = vpack.c.b16 %v1586, %v1573
    %v2809 = vpack.c.b16 %v1587, %v1574
    %v2810 = vpack.c.b16 %v1588, %v1575
    %v2811 = vpack.c.b16 %v1589, %v1576
    %v2812 = vpack.c.b16 %v1590, %v1577
    %v2813 = vpack.c.b16 %v1591, %v1578
    %v2814 = vpack.c.b16 %v1605, %v1592
    %v2815 = vpack.c.b16 %v1606, %v1593
    %v2816 = vpack.c.b16 %v1607, %v1594
    %v2817 = vpack.c.b16 %v1608, %v1595
    %v2818 = vpack.c.b16 %v1609, %v1596
    %v2819 = vpack.c.b16 %v1610, %v1597
    %v2820 = vpack.c.b16 %v1611, %v1598
    %v2821 = vpack.c.b16 %v1612, %v1599
    %v2822 = vpack.c.b16 %v1613, %v1600
    %v2823 = vpack.c.b16 %v1614, %v1601
    %v2824 = vpack.c.b16 %v1615, %v1602
    %v2825 = vpack.c.b16 %v1616, %v1603
    %v2826 = vpack.c.b16 %v1617, %v1604
    %v2827 = vpack.c.b16 %v1631, %v1618
    %v2828 = vpack.c.b16 %v1632, %v1619
    %v2829 = vpack.c.b16 %v1633, %v1620
    %v2830 = vpack.c.b16 %v1634, %v1621
    %v2831 = vpack.c.b16 %v1635, %v1622
    %v2832 = vpack.c.b16 %v1636, %v1623
    %v2833 = vpack.c.b16 %v1637, %v1624
    %v2834 = vpack.c.b16 %v1638, %v1625
    %v2835 = vpack.c.b16 %v1639, %v1626
    %v2836 = vpack.c.b16 %v1640, %v1627
    %v2837 = vpack.c.b16 %v1641, %v1628
    %v2838 = vpack.c.b16 %v1642, %v1629
    %v2839 = vpack.c.b16 %v1643, %v1630
    %v2840 = vpack.c.b16 %v1657, %v1644
    %v2841 = vpack.c.b16 %v1658, %v1645
    %v2842 = vpack.c.b16 %v1659, %v1646
    %v2843 = vpack.c.b16 %v1660, %v1647
    %v2844 = vpack.c.b16 %v1661, %v1648
    %v2845 = vpack.c.b16 %v1662, %v1649
    %v2846 = vpack.c.b16 %v1663, %v1650
    %v2847 = vpack.c.b16 %v1664, %v1651
    %v2848 = vpack.c.b16 %v1665, %v1652
    %v2849 = vpack.c.b16 %v1666, %v1653
    %v2850 = vpack.c.b16 %v1667, %v1654
    %v2851 = vpack.c.b16 %v1668, %v1655
    %v2852 = vpack.c.b16 %v1669, %v1656
    %v2853 = vpack.c.b16 %v1683, %v1670
    %v2854 = vpack.c.b16 %v1684, %v1671
    %v2855 = vpack.c.b16 %v1685, %v1672
    %v2856 = vpack.c.b16 %v1686, %v1673
    %v2857 = vpack.c.b16 %v1687, %v1674
    %v2858 = vpack.c.b16 %v1688, %v1675
    %v2859 = vpack.c.b16 %v1689, %v1676
    %v2860 = vpack.c.b16 %v1690, %v1677
    %v2861 = vpack.c.b16 %v1691, %v1678
    %v2862 = vpack.c.b16 %v1692, %v1679
    %v2863 = vpack.c.b16 %v1693, %v1680
    %v2864 = vpack.c.b16 %v1694, %v1681
    %v2865 = vpack.c.b16 %v1695, %v1682
    %v2866 = vpack.c.b16 %v1709, %v1696
    %v2867 = vpack.c.b16 %v1710, %v1697
    %v2868 = vpack.c.b16 %v1711, %v1698
    %v2869 = vpack.c.b16 %v1712, %v1699
    %v2870 = vpack.c.b16 %v1713, %v1700
    %v2871 = vpack.c.b16 %v1714, %v1701
    %v2872 = vpack.c.b16 %v1715, %v1702
    %v2873 = vpack.c.b16 %v1716, %v1703
    %v2874 = vpack.c.b16 %v1717, %v1704
    %v2875 = vpack.c.b16 %v1718, %v1705
    %v2876 = vpack.c.b16 %v1719, %v1706
    %v2877 = vpack.c.b16 %v1720, %v1707
    %v2878 = vpack.c.b16 %v1721, %v1708
    %v2879 = vpack.c.b16 %v1735, %v1722
    %v2880 = vpack.c.b16 %v1736, %v1723
    %v2881 = vpack.c.b16 %v1737, %v1724
    %v2882 = vpack.c.b16 %v1738, %v1725
    %v2883 = vpack.c.b16 %v1739, %v1726
    %v2884 = vpack.c.b16 %v1740, %v1727
    %v2885 = vpack.c.b16 %v1741, %v1728
    %v2886 = vpack.c.b16 %v1742, %v1729
    %v2887 = vpack.c.b16 %v1743, %v1730
    %v2888 = vpack.c.b16 %v1744, %v1731
    %v2889 = vpack.c.b16 %v1745, %v1732
    %v2890 = vpack.c.b16 %v1746, %v1733
    %v2891 = vpack.c.b16 %v1747, %v1734
    %v2892 = vpack.c.b16 %v1761, %v1748
    %v2893 = vpack.c.b16 %v1762, %v1749
    %v2894 = vpack.c.b16 %v1763, %v1750
    %v2895 = vpack.c.b16 %v1764, %v1751
    %v2896 = vpack.c.b16 %v1765, %v1752
    %v2897 = vpack.c.b16 %v1766, %v1753
    %v2898 = vpack.c.b16 %v1767, %v1754
    %v2899 = vpack.c.b16 %v1768, %v1755
    %v2900 = vpack.c.b16 %v1769, %v1756
    %v2901 = vpack.c.b16 %v1770, %v1757
    %v2902 = vpack.c.b16 %v1771, %v1758
    %v2903 = vpack.c.b16 %v1772, %v1759
    %v2904 = vpack.c.b16 %v1773, %v1760
    %v2905 = vpack.c.b16 %v1787, %v1774
    %v2906 = vpack.c.b16 %v1788, %v1775
    %v2907 = vpack.c.b16 %v1789, %v1776
    %v2908 = vpack.c.b16 %v1790, %v1777
    %v2909 = vpack.c.b16 %v1791, %v1778
    %v2910 = vpack.c.b16 %v1792, %v1779
    %v2911 = vpack.c.b16 %v1793, %v1780
    %v2912 = vpack.c.b16 %v1794, %v1781
    %v2913 = vpack.c.b16 %v1795, %v1782
    %v2914 = vpack.c.b16 %v1796, %v1783
    %v2915 = vpack.c.b16 %v1797, %v1784
    %v2916 = vpack.c.b16 %v1798, %v1785
    %v2917 = vpack.c.b16 %v1799, %v1786
    %v2918 = vpack.c.b16 %v1813, %v1800
    %v2919 = vpack.c.b16 %v1814, %v1801
    %v2920 = vpack.c.b16 %v1815, %v1802
    %v2921 = vpack.c.b16 %v1816, %v1803
    %v2922 = vpack.c.b16 %v1817, %v1804
    %v2923 = vpack.c.b16 %v1818, %v1805
    %v2924 = vpack.c.b16 %v1819, %v1806
    %v2925 = vpack.c.b16 %v1820, %v1807
    %v2926 = vpack.c.b16 %v1821, %v1808
    %v2927 = vpack.c.b16 %v1822, %v1809
    %v2928 = vpack.c.b16 %v1823, %v1810
    %v2929 = vpack.c.b16 %v1824, %v1811
    %v2930 = vpack.c.b16 %v1825, %v1812
    %v2931 = vpack.c.b16 %v1839, %v1826
    %v2932 = vpack.c.b16 %v1840, %v1827
    %v2933 = vpack.c.b16 %v1841, %v1828
    %v2934 = vpack.c.b16 %v1842, %v1829
    %v2935 = vpack.c.b16 %v1843, %v1830
    %v2936 = vpack.c.b16 %v1844, %v1831
    %v2937 = vpack.c.b16 %v1845, %v1832
    %v2938 = vpack.c.b16 %v1846, %v1833
    %v2939 = vpack.c.b16 %v1847, %v1834
    %v2940 = vpack.c.b16 %v1848, %v1835
    %v2941 = vpack.c.b16 %v1849, %v1836
    %v2942 = vpack.c.b16 %v1850, %v1837
    %v2943 = vpack.c.b16 %v1851, %v1838
    %v2944 = vpack.c.b16 %v1865, %v1852
    %v2945 = vpack.c.b16 %v1866, %v1853
    %v2946 = vpack.c.b16 %v1867, %v1854
    %v2947 = vpack.c.b16 %v1868, %v1855
    %v2948 = vpack.c.b16 %v1869, %v1856
    %v2949 = vpack.c.b16 %v1870, %v1857
    %v2950 = vpack.c.b16 %v1871, %v1858
    %v2951 = vpack.c.b16 %v1872, %v1859
    %v2952 = vpack.c.b16 %v1873, %v1860
    %v2953 = vpack.c.b16 %v1874, %v1861
    %v2954 = vpack.c.b16 %v1875, %v1862
    %v2955 = vpack.c.b16 %v1876, %v1863
    %v2956 = vpack.c.b16 %v1877, %v1864
    %v2957 = vpack.c.b16 %v1891, %v1878
    %v2958 = vpack.c.b16 %v1892, %v1879
    %v2959 = vpack.c.b16 %v1893, %v1880
    %v2960 = vpack.c.b16 %v1894, %v1881
    %v2961 = vpack.c.b16 %v1895, %v1882
    %v2962 = vpack.c.b16 %v1896, %v1883
    %v2963 = vpack.c.b16 %v1897, %v1884
    %v2964 = vpack.c.b16 %v1898, %v1885
    %v2965 = vpack.c.b16 %v1899, %v1886
    %v2966 = vpack.c.b16 %v1900, %v1887
    %v2967 = vpack.c.b16 %v1901, %v1888
    %v2968 = vpack.c.b16 %v1902, %v1889
    %v2969 = vpack.c.b16 %v1903, %v1890
    %v2970 = vpack.c.b16 %v1917, %v1904
    %v2971 = vpack.c.b16 %v1918, %v1905
    %v2972 = vpack.c.b16 %v1919, %v1906
    %v2973 = vpack.c.b16 %v1920, %v1907
    %v2974 = vpack.c.b16 %v1921, %v1908
    %v2975 = vpack.c.b16 %v1922, %v1909
    %v2976 = vpack.c.b16 %v1923, %v1910
    %v2977 = vpack.c.b16 %v1924, %v1911
    %v2978 = vpack.c.b16 %v1925, %v1912
    %v2979 = vpack.c.b16 %v1926, %v1913
    %v2980 = vpack.c.b16 %v1927, %v1914
    %v2981 = vpack.c.b16 %v1928, %v1915
    %v2982 = vpack.c.b16 %v1929, %v1916
    %v2983 = vpack.c.b16 %v1943, %v1930
    %v2984 = vpack.c.b16 %v1944, %v1931
    %v2985 = vpack.c.b16 %v1945, %v1932
    %v2986 = vpack.c.b16 %v1946, %v1933
    %v2987 = vpack.c.b16 %v1947, %v1934
    %v2988 = vpack.c.b16 %v1948, %v1935
    %v2989 = vpack.c.b16 %v1949, %v1936
    %v2990 = vpack.c.b16 %v1950, %v1937
    %v2991 = vpack.c.b16 %v1951, %v1938
    %v2992 = vpack.c.b16 %v1952, %v1939
    %v2993 = vpack.c.b16 %v1953, %v1940
    %v2994 = vpack.c.b16 %v1954, %v1941
    %v2995 = vpack.c.b16 %v1955, %v1942
    %v2996 = vpack.c.b16 %v1969, %v1956
    %v2997 = vpack.c.b16 %v1970, %v1957
    %v2998 = vpack.c.b16 %v1971, %v1958
    %v2999 = vpack.c.b16 %v1972, %v1959
    %v3000 = vpack.c.b16 %v1973, %v1960
    %v3001 = vpack.c.b16 %v1974, %v1961
    %v3002 = vpack.c.b16 %v1975, %v1962
    %v3003 = vpack.c.b16 %v1976, %v1963
    %v3004 = vpack.c.b16 %v1977, %v1964
    %v3005 = vpack.c.b16 %v1978, %v1965
    %v3006 = vpack.c.b16 %v1979, %v1966
    %v3007 = vpack.c.b16 %v1980, %v1967
    %v3008 = vpack.c.b16 %v1981, %v1968
    %v3009 = vpack.c.b16 %v1995, %v1982
    %v3010 = vpack.c.b16 %v1996, %v1983
    %v3011 = vpack.c.b16 %v1997, %v1984
    %v3012 = vpack.c.b16 %v1998, %v1985
    %v3013 = vpack.c.b16 %v1999, %v1986
    %v3014 = vpack.c.b16 %v2000, %v1987
    %v3015 = vpack.c.b16 %v2001, %v1988
    %v3016 = vpack.c.b16 %v2002, %v1989
    %v3017 = vpack.c.b16 %v2003, %v1990
    %v3018 = vpack.c.b16 %v2004, %v1991
    %v3019 = vpack.c.b16 %v2005, %v1992
    %v3020 = vpack.c.b16 %v2006, %v1993
    %v3021 = vpack.c.b16 %v2007, %v1994
    %v3022 = vpack.c.b16 %v2021, %v2008
    %v3023 = vpack.c.b16 %v2022, %v2009
    %v3024 = vpack.c.b16 %v2023, %v2010
    %v3025 = vpack.c.b16 %v2024, %v2011
    %v3026 = vpack.c.b16 %v2025, %v2012
    %v3027 = vpack.c.b16 %v2026, %v2013
    %v3028 = vpack.c.b16 %v2027, %v2014
    %v3029 = vpack.c.b16 %v2028, %v2015
    %v3030 = vpack.c.b16 %v2029, %v2016
    %v3031 = vpack.c.b16 %v2030, %v2017
    %v3032 = vpack.c.b16 %v2031, %v2018
    %v3033 = vpack.c.b16 %v2032, %v2019
    %v3034 = vpack.c.b16 %v2033, %v2020
    %v3035 = vpack.c.b16 %v2047, %v2034
    %v3036 = vpack.c.b16 %v2048, %v2035
    %v3037 = vpack.c.b16 %v2049, %v2036
    %v3038 = vpack.c.b16 %v2050, %v2037
    %v3039 = vpack.c.b16 %v2051, %v2038
    %v3040 = vpack.c.b16 %v2052, %v2039
    %v3041 = vpack.c.b16 %v2053, %v2040
    %v3042 = vpack.c.b16 %v2054, %v2041
    %v3043 = vpack.c.b16 %v2055, %v2042
    %v3044 = vpack.c.b16 %v2056, %v2043
    %v3045 = vpack.c.b16 %v2057, %v2044
    %v3046 = vpack.c.b16 %v2058, %v2045
    %v3047 = vpack.c.b16 %v2059, %v2046
    %v3048 = vpack.c.b16 %v2073, %v2060
    %v3049 = vpack.c.b16 %v2074, %v2061
    %v3050 = vpack.c.b16 %v2075, %v2062
    %v3051 = vpack.c.b16 %v2076, %v2063
    %v3052 = vpack.c.b16 %v2077, %v2064
    %v3053 = vpack.c.b16 %v2078, %v2065
    %v3054 = vpack.c.b16 %v2079, %v2066
    %v3055 = vpack.c.b16 %v2080, %v2067
    %v3056 = vpack.c.b16 %v2081, %v2068
    %v3057 = vpack.c.b16 %v2082, %v2069
    %v3058 = vpack.c.b16 %v2083, %v2070
    %v3059 = vpack.c.b16 %v2084, %v2071
    %v3060 = vpack.c.b16 %v2085, %v2072
    %v3061 = vpack.c.b16 %v2099, %v2086
    %v3062 = vpack.c.b16 %v2100, %v2087
    %v3063 = vpack.c.b16 %v2101, %v2088
    %v3064 = vpack.c.b16 %v2102, %v2089
    %v3065 = vpack.c.b16 %v2103, %v2090
    %v3066 = vpack.c.b16 %v2104, %v2091
    %v3067 = vpack.c.b16 %v2105, %v2092
    %v3068 = vpack.c.b16 %v2106, %v2093
    %v3069 = vpack.c.b16 %v2107, %v2094
    %v3070 = vpack.c.b16 %v2108, %v2095
    %v3071 = vpack.c.b16 %v2109, %v2096
    %v3072 = vpack.c.b16 %v2110, %v2097
    %v3073 = vpack.c.b16 %v2111, %v2098
    %v3074 = vpack.c.b16 %v2125, %v2112
    %v3075 = vpack.c.b16 %v2126, %v2113
    %v3076 = vpack.c.b16 %v2127, %v2114
    %v3077 = vpack.c.b16 %v2128, %v2115
    %v3078 = vpack.c.b16 %v2129, %v2116
    %v3079 = vpack.c.b16 %v2130, %v2117
    %v3080 = vpack.c.b16 %v2131, %v2118
    %v3081 = vpack.c.b16 %v2132, %v2119
    %v3082 = vpack.c.b16 %v2133, %v2120
    %v3083 = vpack.c.b16 %v2134, %v2121
    %v3084 = vpack.c.b16 %v2135, %v2122
    %v3085 = vpack.c.b16 %v2136, %v2123
    %v3086 = vpack.c.b16 %v2137, %v2124
    %v3087 = vpack.c.b16 %v2151, %v2138
    %v3088 = vpack.c.b16 %v2152, %v2139
    %v3089 = vpack.c.b16 %v2153, %v2140
    %v3090 = vpack.c.b16 %v2154, %v2141
    %v3091 = vpack.c.b16 %v2155, %v2142
    %v3092 = vpack.c.b16 %v2156, %v2143
    %v3093 = vpack.c.b16 %v2157, %v2144
    %v3094 = vpack.c.b16 %v2158, %v2145
    %v3095 = vpack.c.b16 %v2159, %v2146
    %v3096 = vpack.c.b16 %v2160, %v2147
    %v3097 = vpack.c.b16 %v2161, %v2148
    %v3098 = vpack.c.b16 %v2162, %v2149
    %v3099 = vpack.c.b16 %v2163, %v2150
    %v3100 = vpack.c.b16 %v2177, %v2164
    %v3101 = vpack.c.b16 %v2178, %v2165
    %v3102 = vpack.c.b16 %v2179, %v2166
    %v3103 = vpack.c.b16 %v2180, %v2167
    %v3104 = vpack.c.b16 %v2181, %v2168
    %v3105 = vpack.c.b16 %v2182, %v2169
    %v3106 = vpack.c.b16 %v2183, %v2170
    %v3107 = vpack.c.b16 %v2184, %v2171
    %v3108 = vpack.c.b16 %v2185, %v2172
    %v3109 = vpack.c.b16 %v2186, %v2173
    %v3110 = vpack.c.b16 %v2187, %v2174
    %v3111 = vpack.c.b16 %v2188, %v2175
    %v3112 = vpack.c.b16 %v2189, %v2176
    %v3113 = vpack.c.b16 %v2203, %v2190
    %v3114 = vpack.c.b16 %v2204, %v2191
    %v3115 = vpack.c.b16 %v2205, %v2192
    %v3116 = vpack.c.b16 %v2206, %v2193
    %v3117 = vpack.c.b16 %v2207, %v2194
    %v3118 = vpack.c.b16 %v2208, %v2195
    %v3119 = vpack.c.b16 %v2209, %v2196
    %v3120 = vpack.c.b16 %v2210, %v2197
    %v3121 = vpack.c.b16 %v2211, %v2198
    %v3122 = vpack.c.b16 %v2212, %v2199
    %v3123 = vpack.c.b16 %v2213, %v2200
    %v3124 = vpack.c.b16 %v2214, %v2201
    %v3125 = vpack.c.b16 %v2215, %v2202
    %v3126 = vpack.c.b16 %v2229, %v2216
    %v3127 = vpack.c.b16 %v2230, %v2217
    %v3128 = vpack.c.b16 %v2231, %v2218
    %v3129 = vpack.c.b16 %v2232, %v2219
    %v3130 = vpack.c.b16 %v2233, %v2220
    %v3131 = vpack.c.b16 %v2234, %v2221
    %v3132 = vpack.c.b16 %v2235, %v2222
    %v3133 = vpack.c.b16 %v2236, %v2223
    %v3134 = vpack.c.b16 %v2237, %v2224
    %v3135 = vpack.c.b16 %v2238, %v2225
    %v3136 = vpack.c.b16 %v2239, %v2226
    %v3137 = vpack.c.b16 %v2240, %v2227
    %v3138 = vpack.c.b16 %v2241, %v2228
    %v3139 = vpack.c.b16 %v2255, %v2242
    %v3140 = vpack.c.b16 %v2256, %v2243
    %v3141 = vpack.c.b16 %v2257, %v2244
    %v3142 = vpack.c.b16 %v2258, %v2245
    %v3143 = vpack.c.b16 %v2259, %v2246
    %v3144 = vpack.c.b16 %v2260, %v2247
    %v3145 = vpack.c.b16 %v2261, %v2248
    %v3146 = vpack.c.b16 %v2262, %v2249
    %v3147 = vpack.c.b16 %v2263, %v2250
    %v3148 = vpack.c.b16 %v2264, %v2251
    %v3149 = vpack.c.b16 %v2265, %v2252
    %v3150 = vpack.c.b16 %v2266, %v2253
    %v3151 = vpack.c.b16 %v2267, %v2254
    %v3152 = vpack.c.b16 %v2281, %v2268
    %v3153 = vpack.c.b16 %v2282, %v2269
    %v3154 = vpack.c.b16 %v2283, %v2270
    %v3155 = vpack.c.b16 %v2284, %v2271
    %v3156 = vpack.c.b16 %v2285, %v2272
    %v3157 = vpack.c.b16 %v2286, %v2273
    %v3158 = vpack.c.b16 %v2287, %v2274
    %v3159 = vpack.c.b16 %v2288, %v2275
    %v3160 = vpack.c.b16 %v2289, %v2276
    %v3161 = vpack.c.b16 %v2290, %v2277
    %v3162 = vpack.c.b16 %v2291, %v2278
    %v3163 = vpack.c.b16 %v2292, %v2279
    %v3164 = vpack.c.b16 %v2293, %v2280
    %v3165 = vpack.c.b16 %v2307, %v2294
    %v3166 = vpack.c.b16 %v2308, %v2295
    %v3167 = vpack.c.b16 %v2309, %v2296
    %v3168 = vpack.c.b16 %v2310, %v2297
    %v3169 = vpack.c.b16 %v2311, %v2298
    %v3170 = vpack.c.b16 %v2312, %v2299
    %v3171 = vpack.c.b16 %v2313, %v2300
    %v3172 = vpack.c.b16 %v2314, %v2301
    %v3173 = vpack.c.b16 %v2315, %v2302
    %v3174 = vpack.c.b16 %v2316, %v2303
    %v3175 = vpack.c.b16 %v2317, %v2304
    %v3176 = vpack.c.b16 %v2318, %v2305
    %v3177 = vpack.c.b16 %v2319, %v2306
    %v3178 = vpack.c.b16 %v2333, %v2320
    %v3179 = vpack.c.b16 %v2334, %v2321
    %v3180 = vpack.c.b16 %v2335, %v2322
    %v3181 = vpack.c.b16 %v2336, %v2323
    %v3182 = vpack.c.b16 %v2337, %v2324
    %v3183 = vpack.c.b16 %v2338, %v2325
    %v3184 = vpack.c.b16 %v2339, %v2326
    %v3185 = vpack.c.b16 %v2340, %v2327
    %v3186 = vpack.c.b16 %v2341, %v2328
    %v3187 = vpack.c.b16 %v2342, %v2329
    %v3188 = vpack.c.b16 %v2343, %v2330
    %v3189 = vpack.c.b16 %v2344, %v2331
    %v3190 = vpack.c.b16 %v2345, %v2332
    %v3191 = vpack.c.b16 %v2359, %v2346
    %v3192 = vpack.c.b16 %v2360, %v2347
    %v3193 = vpack.c.b16 %v2361, %v2348
    %v3194 = vpack.c.b16 %v2362, %v2349
    %v3195 = vpack.c.b16 %v2363, %v2350
    %v3196 = vpack.c.b16 %v2364, %v2351
    %v3197 = vpack.c.b16 %v2365, %v2352
    %v3198 = vpack.c.b16 %v2366, %v2353
    %v3199 = vpack.c.b16 %v2367, %v2354
    %v3200 = vpack.c.b16 %v2368, %v2355
    %v3201 = vpack.c.b16 %v2369, %v2356
    %v3202 = vpack.c.b16 %v2370, %v2357
    %v3203 = vpack.c.b16 %v2371, %v2358
    %v3204 = vpack.c.b16 %v2385, %v2372
    %v3205 = vpack.c.b16 %v2386, %v2373
    %v3206 = vpack.c.b16 %v2387, %v2374
    %v3207 = vpack.c.b16 %v2388, %v2375
    %v3208 = vpack.c.b16 %v2389, %v2376
    %v3209 = vpack.c.b16 %v2390, %v2377
    %v3210 = vpack.c.b16 %v2391, %v2378
    %v3211 = vpack.c.b16 %v2392, %v2379
    %v3212 = vpack.c.b16 %v2393, %v2380
    %v3213 = vpack.c.b16 %v2394, %v2381
    %v3214 = vpack.c.b16 %v2395, %v2382
    %v3215 = vpack.c.b16 %v2396, %v2383
    %v3216 = vpack.c.b16 %v2397, %v2384
    %v3217 = vpack.c.b16 %v2411, %v2398
    %v3218 = vpack.c.b16 %v2412, %v2399
    %v3219 = vpack.c.b16 %v2413, %v2400
    %v3220 = vpack.c.b16 %v2414, %v2401
    %v3221 = vpack.c.b16 %v2415, %v2402
    %v3222 = vpack.c.b16 %v2416, %v2403
    %v3223 = vpack.c.b16 %v2417, %v2404
    %v3224 = vpack.c.b16 %v2418, %v2405
    %v3225 = vpack.c.b16 %v2419, %v2406
    %v3226 = vpack.c.b16 %v2420, %v2407
    %v3227 = vpack.c.b16 %v2421, %v2408
    %v3228 = vpack.c.b16 %v2422, %v2409
    %v3229 = vpack.c.b16 %v2423, %v2410
    %v3230 = vpack.c.b16 %v2437, %v2424
    %v3231 = vpack.c.b16 %v2438, %v2425
    %v3232 = vpack.c.b16 %v2439, %v2426
    %v3233 = vpack.c.b16 %v2440, %v2427
    %v3234 = vpack.c.b16 %v2441, %v2428
    %v3235 = vpack.c.b16 %v2442, %v2429
    %v3236 = vpack.c.b16 %v2443, %v2430
    %v3237 = vpack.c.b16 %v2444, %v2431
    %v3238 = vpack.c.b16 %v2445, %v2432
    %v3239 = vpack.c.b16 %v2446, %v2433
    %v3240 = vpack.c.b16 %v2447, %v2434
    %v3241 = vpack.c.b16 %v2448, %v2435
    %v3242 = vpack.c.b16 %v2449, %v2436
    %v3243 = vpack.c.b16 %v2463, %v2450
    %v3244 = vpack.c.b16 %v2464, %v2451
    %v3245 = vpack.c.b16 %v2465, %v2452
    %v3246 = vpack.c.b16 %v2466, %v2453
    %v3247 = vpack.c.b16 %v2467, %v2454
    %v3248 = vpack.c.b16 %v2468, %v2455
    %v3249 = vpack.c.b16 %v2469, %v2456
    %v3250 = vpack.c.b16 %v2470, %v2457
    %v3251 = vpack.c.b16 %v2471, %v2458
    %v3252 = vpack.c.b16 %v2472, %v2459
    %v3253 = vpack.c.b16 %v2473, %v2460
    %v3254 = vpack.c.b16 %v2474, %v2461
    %v3255 = vpack.c.b16 %v2475, %v2462
    %v3256 = vpack.c.b16 %v2489, %v2476
    %v3257 = vpack.c.b16 %v2490, %v2477
    %v3258 = vpack.c.b16 %v2491, %v2478
    %v3259 = vpack.c.b16 %v2492, %v2479
    %v3260 = vpack.c.b16 %v2493, %v2480
    %v3261 = vpack.c.b16 %v2494, %v2481
    %v3262 = vpack.c.b16 %v2495, %v2482
    %v3263 = vpack.c.b16 %v2496, %v2483
    %v3264 = vpack.c.b16 %v2497, %v2484
    %v3265 = vpack.c.b16 %v2498, %v2485
    %v3266 = vpack.c.b16 %v2499, %v2486
    %v3267 = vpack.c.b16 %v2500, %v2487
    %v3268 = vpack.c.b16 %v2501, %v2488
    %v3269 = vpack.c.b16 %v2515, %v2502
    %v3270 = vpack.c.b16 %v2516, %v2503
    %v3271 = vpack.c.b16 %v2517, %v2504
    %v3272 = vpack.c.b16 %v2518, %v2505
    %v3273 = vpack.c.b16 %v2519, %v2506
    %v3274 = vpack.c.b16 %v2520, %v2507
    %v3275 = vpack.c.b16 %v2521, %v2508
    %v3276 = vpack.c.b16 %v2522, %v2509
    %v3277 = vpack.c.b16 %v2523, %v2510
    %v3278 = vpack.c.b16 %v2524, %v2511
    %v3279 = vpack.c.b16 %v2525, %v2512
    %v3280 = vpack.c.b16 %v2526, %v2513
    %v3281 = vpack.c.b16 %v2527, %v2514
    %v3282 = vpack.c.b16 %v2541, %v2528
    %v3283 = vpack.c.b16 %v2542, %v2529
    %v3284 = vpack.c.b16 %v2543, %v2530
    %v3285 = vpack.c.b16 %v2544, %v2531
    %v3286 = vpack.c.b16 %v2545, %v2532
    %v3287 = vpack.c.b16 %v2546, %v2533
    %v3288 = vpack.c.b16 %v2547, %v2534
    %v3289 = vpack.c.b16 %v2548, %v2535
    %v3290 = vpack.c.b16 %v2549, %v2536
    %v3291 = vpack.c.b16 %v2550, %v2537
    %v3292 = vpack.c.b16 %v2551, %v2538
    %v3293 = vpack.c.b16 %v2552, %v2539
    %v3294 = vpack.c.b16 %v2553, %v2540
    %v3295 = vpack.c.b16 %v2567, %v2554
    %v3296 = vpack.c.b16 %v2568, %v2555
    %v3297 = vpack.c.b16 %v2569, %v2556
    %v3298 = vpack.c.b16 %v2570, %v2557
    %v3299 = vpack.c.b16 %v2571, %v2558
    %v3300 = vpack.c.b16 %v2572, %v2559
    %v3301 = vpack.c.b16 %v2573, %v2560
    %v3302 = vpack.c.b16 %v2574, %v2561
    %v3303 = vpack.c.b16 %v2575, %v2562
    %v3304 = vpack.c.b16 %v2576, %v2563
    %v3305 = vpack.c.b16 %v2577, %v2564
    %v3306 = vpack.c.b16 %v2578, %v2565
    %v3307 = vpack.c.b16 %v2579, %v2566
    %v3308 = vpack.c.b16 %v2593, %v2580
    %v3309 = vpack.c.b16 %v2594, %v2581
    %v3310 = vpack.c.b16 %v2595, %v2582
    %v3311 = vpack.c.b16 %v2596, %v2583
    %v3312 = vpack.c.b16 %v2597, %v2584
    %v3313 = vpack.c.b16 %v2598, %v2585
    %v3314 = vpack.c.b16 %v2599, %v2586
    %v3315 = vpack.c.b16 %v2600, %v2587
    %v3316 = vpack.c.b16 %v2601, %v2588
    %v3317 = vpack.c.b16 %v2602, %v2589
    %v3318 = vpack.c.b16 %v2603, %v2590
    %v3319 = vpack.c.b16 %v2604, %v2591
    %v3320 = vpack.c.b16 %v2605, %v2592
    %v3321 = vpack.c.b16 %v2619, %v2606
    %v3322 = vpack.c.b16 %v2620, %v2607
    %v3323 = vpack.c.b16 %v2621, %v2608
    %v3324 = vpack.c.b16 %v2622, %v2609
    %v3325 = vpack.c.b16 %v2623, %v2610
    %v3326 = vpack.c.b16 %v2624, %v2611
    %v3327 = vpack.c.b16 %v2625, %v2612
    %v3328 = vpack.c.b16 %v2626, %v2613
    %v3329 = vpack.c.b16 %v2627, %v2614
    %v3330 = vpack.c.b16 %v2628, %v2615
    %v3331 = vpack.c.b16 %v2629, %v2616
    %v3332 = vpack.c.b16 %v2630, %v2617
    %v3333 = vpack.c.b16 %v2631, %v2618
    %v3334 = vpack.c.b16 %v2645, %v2632
    %v3335 = vpack.c.b16 %v2646, %v2633
    %v3336 = vpack.c.b16 %v2647, %v2634
    %v3337 = vpack.c.b16 %v2648, %v2635
    %v3338 = vpack.c.b16 %v2649, %v2636
    %v3339 = vpack.c.b16 %v2650, %v2637
    %v3340 = vpack.c.b16 %v2651, %v2638
    %v3341 = vpack.c.b16 %v2652, %v2639
    %v3342 = vpack.c.b16 %v2653, %v2640
    %v3343 = vpack.c.b16 %v2654, %v2641
    %v3344 = vpack.c.b16 %v2655, %v2642
    %v3345 = vpack.c.b16 %v2656, %v2643
    %v3346 = vpack.c.b16 %v2657, %v2644
    %v3347 = vpack.c.b16 %v2671, %v2658
    %v3348 = vpack.c.b16 %v2672, %v2659
    %v3349 = vpack.c.b16 %v2673, %v2660
    %v3350 = vpack.c.b16 %v2674, %v2661
    %v3351 = vpack.c.b16 %v2675, %v2662
    %v3352 = vpack.c.b16 %v2676, %v2663
    %v3353 = vpack.c.b16 %v2677, %v2664
    %v3354 = vpack.c.b16 %v2678, %v2665
    %v3355 = vpack.c.b16 %v2679, %v2666
    %v3356 = vpack.c.b16 %v2680, %v2667
    %v3357 = vpack.c.b16 %v2681, %v2668
    %v3358 = vpack.c.b16 %v2682, %v2669
    %v3359 = vpack.c.b16 %v2683, %v2670
    %v3360 = vpack.c.b16 %v2697, %v2684
    %v3361 = vpack.c.b16 %v2698, %v2685
    %v3362 = vpack.c.b16 %v2699, %v2686
    %v3363 = vpack.c.b16 %v2700, %v2687
    %v3364 = vpack.c.b16 %v2701, %v2688
    %v3365 = vpack.c.b16 %v2702, %v2689
    %v3366 = vpack.c.b16 %v2703, %v2690
    %v3367 = vpack.c.b16 %v2704, %v2691
    %v3368 = vpack.c.b16 %v2705, %v2692
    %v3369 = vpack.c.b16 %v2706, %v2693
    %v3370 = vpack.c.b16 %v2707, %v2694
    %v3371 = vpack.c.b16 %v2708, %v2695
    %v3372 = vpack.c.b16 %v2709, %v2696
    %v3373 = vpack.c.b16 %v2723, %v2710
    %v3374 = vpack.c.b16 %v2724, %v2711
    %v3375 = vpack.c.b16 %v2725, %v2712
    %v3376 = vpack.c.b16 %v2726, %v2713
    %v3377 = vpack.c.b16 %v2727, %v2714
    %v3378 = vpack.c.b16 %v2728, %v2715
    %v3379 = vpack.c.b16 %v2729, %v2716
    %v3380 = vpack.c.b16 %v2730, %v2717
    %v3381 = vpack.c.b16 %v2731, %v2718
    %v3382 = vpack.c.b16 %v2732, %v2719
    %v3383 = vpack.c.b16 %v2733, %v2720
    %v3384 = vpack.c.b16 %v2734, %v2721
    %v3385 = vpack.c.b16 %v2735, %v2722
    %v3386 = vpack.c.b16 %v2749, %v2736
    %v3387 = vpack.c.b16 %v2750, %v2737
    %v3388 = vpack.c.b16 %v2751, %v2738
    %v3389 = vpack.c.b16 %v2752, %v2739
    %v3390 = vpack.c.b16 %v2753, %v2740
    %v3391 = vpack.c.b16 %v2754, %v2741
    %v3392 = vpack.c.b16 %v2755, %v2742
    %v3393 = vpack.c.b16 %v2756, %v2743
    %v3394 = vpack.c.b16 %v2757, %v2744
    %v3395 = vpack.c.b16 %v2758, %v2745
    %v3396 = vpack.c.b16 %v2759, %v2746
    %v3397 = vpack.c.b16 %v2760, %v2747
    %v3398 = vpack.c.b16 %v2761, %v2748
    %vm4036 = vcmask 130048
    %v4038 = vsel %vm4036, %v85, 0
    %4040 = vmatpush.bf16.msra.mxu0 %v2853
    %4041 = vmatpush.bf16.msra.mxu0 %v2840
    %4042 = vmatpush.bf16.msra.mxu0 %v2827
    %4043 = vmatpush.bf16.msra.mxu0 %v2814
    %4044 = vmatpush.bf16.msra.mxu0 %v2801
    %4045 = vmatpush.bf16.msra.mxu0 %v2788
    %4046 = vmatpush.bf16.msra.mxu0 %v2775
    %4047 = vmatpush.bf16.msra.mxu0 %v2762
    %4048 = vmatmul.bf16.gmra.mxu0 %v79
    %v4049 = vpop.f32.mrf.mxu0
    %v4050 = vadd.f32 %v776, %v4049
    %v4051 = vpop.f32.mrf.mxu0
    %4052 = vdwg.mxu0
    %4053 = vmatpush.bf16.msra.mxu0 %v2957
    %4054 = vmatpush.bf16.msra.mxu0 %v2944
    %4055 = vmatpush.bf16.msra.mxu0 %v2931
    %4056 = vmatpush.bf16.msra.mxu0 %v2918
    %4057 = vmatpush.bf16.msra.mxu0 %v2905
    %4058 = vmatpush.bf16.msra.mxu0 %v2892
    %4059 = vmatpush.bf16.msra.mxu0 %v2879
    %4060 = vmatpush.bf16.msra.mxu0 %v2866
    %4061 = vmatmul.bf16.gmra.mxu0 %v80
    %v4062 = vpop.f32.mrf.mxu0
    %v4063 = vadd.f32 %v4050, %v4062
    %v4064 = vpop.f32.mrf.mxu0
    %4065 = vdwg.mxu0
    %4066 = vmatpush.bf16.msra.mxu0 %v3061
    %4067 = vmatpush.bf16.msra.mxu0 %v3048
    %4068 = vmatpush.bf16.msra.mxu0 %v3035
    %4069 = vmatpush.bf16.msra.mxu0 %v3022
    %4070 = vmatpush.bf16.msra.mxu0 %v3009
    %4071 = vmatpush.bf16.msra.mxu0 %v2996
    %4072 = vmatpush.bf16.msra.mxu0 %v2983
    %4073 = vmatpush.bf16.msra.mxu0 %v2970
    %4074 = vmatmul.bf16.gmra.mxu0 %v81
    %v4075 = vpop.f32.mrf.mxu0
    %v4076 = vadd.f32 %v4063, %v4075
    %v4077 = vpop.f32.mrf.mxu0
    %4078 = vdwg.mxu0
    %4079 = vmatpush.bf16.msra.mxu0 %v3165
    %4080 = vmatpush.bf16.msra.mxu0 %v3152
    %4081 = vmatpush.bf16.msra.mxu0 %v3139
    %4082 = vmatpush.bf16.msra.mxu0 %v3126
    %4083 = vmatpush.bf16.msra.mxu0 %v3113
    %4084 = vmatpush.bf16.msra.mxu0 %v3100
    %4085 = vmatpush.bf16.msra.mxu0 %v3087
    %4086 = vmatpush.bf16.msra.mxu0 %v3074
    %4087 = vmatmul.bf16.gmra.mxu0 %v82
    %v4088 = vpop.f32.mrf.mxu0
    %v4089 = vadd.f32 %v4076, %v4088
    %v4090 = vpop.f32.mrf.mxu0
    %4091 = vdwg.mxu0
    %4092 = vmatpush.bf16.msra.mxu0 %v3269
    %4093 = vmatpush.bf16.msra.mxu0 %v3256
    %4094 = vmatpush.bf16.msra.mxu0 %v3243
    %4095 = vmatpush.bf16.msra.mxu0 %v3230
    %4096 = vmatpush.bf16.msra.mxu0 %v3217
    %4097 = vmatpush.bf16.msra.mxu0 %v3204
    %4098 = vmatpush.bf16.msra.mxu0 %v3191
    %4099 = vmatpush.bf16.msra.mxu0 %v3178
    %4100 = vmatmul.bf16.gmra.mxu0 %v83
    %v4101 = vpop.f32.mrf.mxu0
    %v4102 = vadd.f32 %v4089, %v4101
    %v4103 = vpop.f32.mrf.mxu0
    %4104 = vdwg.mxu0
    %4105 = vmatpush.bf16.msra.mxu0 %v3373
    %4106 = vmatpush.bf16.msra.mxu0 %v3360
    %4107 = vmatpush.bf16.msra.mxu0 %v3347
    %4108 = vmatpush.bf16.msra.mxu0 %v3334
    %4109 = vmatpush.bf16.msra.mxu0 %v3321
    %4110 = vmatpush.bf16.msra.mxu0 %v3308
    %4111 = vmatpush.bf16.msra.mxu0 %v3295
    %4112 = vmatpush.bf16.msra.mxu0 %v3282
    %4113 = vmatmul.bf16.gmra.mxu0 %v84
    %v4114 = vpop.f32.mrf.mxu0
    %v4115 = vadd.f32 %v4102, %v4114
    %v4116 = vpop.f32.mrf.mxu0
    %4117 = vdwg.mxu0
    %4118 = vmatpush.bf16.msra.mxu0 0
    %4119 = vmatpush.bf16.msra.mxu0 0
    %4120 = vmatpush.bf16.msra.mxu0 0
    %4121 = vmatpush.bf16.msra.mxu0 0
    %4122 = vmatpush.bf16.msra.mxu0 0
    %4123 = vmatpush.bf16.msra.mxu0 0
    %4124 = vmatpush.bf16.msra.mxu0 0
    %4125 = vmatpush.bf16.msra.mxu0 %v3386
    %4126 = vmatmul.bf16.gmra.mxu0 %v4038
    %v4127 = vpop.f32.mrf.mxu0
    %v4128 = vadd.f32 %v4115, %v4127
    %v4129 = vpop.f32.mrf.mxu0
    %4130 = vdwg.mxu0
    %4131 = vmatpush.bf16.msra.mxu0 %v2854
    %4132 = vmatpush.bf16.msra.mxu0 %v2841
    %4133 = vmatpush.bf16.msra.mxu0 %v2828
    %4134 = vmatpush.bf16.msra.mxu0 %v2815
    %4135 = vmatpush.bf16.msra.mxu0 %v2802
    %4136 = vmatpush.bf16.msra.mxu0 %v2789
    %4137 = vmatpush.bf16.msra.mxu0 %v2776
    %4138 = vmatpush.bf16.msra.mxu0 %v2763
    %4139 = vmatmul.bf16.gmra.mxu0 %v79
    %v4140 = vpop.f32.mrf.mxu0
    %v4141 = vadd.f32 %v777, %v4140
    %v4142 = vpop.f32.mrf.mxu0
    %4143 = vdwg.mxu0
    %4144 = vmatpush.bf16.msra.mxu0 %v2958
    %4145 = vmatpush.bf16.msra.mxu0 %v2945
    %4146 = vmatpush.bf16.msra.mxu0 %v2932
    %4147 = vmatpush.bf16.msra.mxu0 %v2919
    %4148 = vmatpush.bf16.msra.mxu0 %v2906
    %4149 = vmatpush.bf16.msra.mxu0 %v2893
    %4150 = vmatpush.bf16.msra.mxu0 %v2880
    %4151 = vmatpush.bf16.msra.mxu0 %v2867
    %4152 = vmatmul.bf16.gmra.mxu0 %v80
    %v4153 = vpop.f32.mrf.mxu0
    %v4154 = vadd.f32 %v4141, %v4153
    %v4155 = vpop.f32.mrf.mxu0
    %4156 = vdwg.mxu0
    %4157 = vmatpush.bf16.msra.mxu0 %v3062
    %4158 = vmatpush.bf16.msra.mxu0 %v3049
    %4159 = vmatpush.bf16.msra.mxu0 %v3036
    %4160 = vmatpush.bf16.msra.mxu0 %v3023
    %4161 = vmatpush.bf16.msra.mxu0 %v3010
    %4162 = vmatpush.bf16.msra.mxu0 %v2997
    %4163 = vmatpush.bf16.msra.mxu0 %v2984
    %4164 = vmatpush.bf16.msra.mxu0 %v2971
    %4165 = vmatmul.bf16.gmra.mxu0 %v81
    %v4166 = vpop.f32.mrf.mxu0
    %v4167 = vadd.f32 %v4154, %v4166
    %v4168 = vpop.f32.mrf.mxu0
    %4169 = vdwg.mxu0
    %4170 = vmatpush.bf16.msra.mxu0 %v3166
    %4171 = vmatpush.bf16.msra.mxu0 %v3153
    %4172 = vmatpush.bf16.msra.mxu0 %v3140
    %4173 = vmatpush.bf16.msra.mxu0 %v3127
    %4174 = vmatpush.bf16.msra.mxu0 %v3114
    %4175 = vmatpush.bf16.msra.mxu0 %v3101
    %4176 = vmatpush.bf16.msra.mxu0 %v3088
    %4177 = vmatpush.bf16.msra.mxu0 %v3075
    %4178 = vmatmul.bf16.gmra.mxu0 %v82
    %v4179 = vpop.f32.mrf.mxu0
    %v4180 = vadd.f32 %v4167, %v4179
    %v4181 = vpop.f32.mrf.mxu0
    %4182 = vdwg.mxu0
    %4183 = vmatpush.bf16.msra.mxu0 %v3270
    %4184 = vmatpush.bf16.msra.mxu0 %v3257
    %4185 = vmatpush.bf16.msra.mxu0 %v3244
    %4186 = vmatpush.bf16.msra.mxu0 %v3231
    %4187 = vmatpush.bf16.msra.mxu0 %v3218
    %4188 = vmatpush.bf16.msra.mxu0 %v3205
    %4189 = vmatpush.bf16.msra.mxu0 %v3192
    %4190 = vmatpush.bf16.msra.mxu0 %v3179
    %4191 = vmatmul.bf16.gmra.mxu0 %v83
    %v4192 = vpop.f32.mrf.mxu0
    %v4193 = vadd.f32 %v4180, %v4192
    %v4194 = vpop.f32.mrf.mxu0
    %4195 = vdwg.mxu0
    %4196 = vmatpush.bf16.msra.mxu0 %v3374
    %4197 = vmatpush.bf16.msra.mxu0 %v3361
    %4198 = vmatpush.bf16.msra.mxu0 %v3348
    %4199 = vmatpush.bf16.msra.mxu0 %v3335
    %4200 = vmatpush.bf16.msra.mxu0 %v3322
    %4201 = vmatpush.bf16.msra.mxu0 %v3309
    %4202 = vmatpush.bf16.msra.mxu0 %v3296
    %4203 = vmatpush.bf16.msra.mxu0 %v3283
    %4204 = vmatmul.bf16.gmra.mxu0 %v84
    %v4205 = vpop.f32.mrf.mxu0
    %v4206 = vadd.f32 %v4193, %v4205
    %v4207 = vpop.f32.mrf.mxu0
    %4208 = vdwg.mxu0
    %4209 = vmatpush.bf16.msra.mxu0 0
    %4210 = vmatpush.bf16.msra.mxu0 0
    %4211 = vmatpush.bf16.msra.mxu0 0
    %4212 = vmatpush.bf16.msra.mxu0 0
    %4213 = vmatpush.bf16.msra.mxu0 0
    %4214 = vmatpush.bf16.msra.mxu0 0
    %4215 = vmatpush.bf16.msra.mxu0 0
    %4216 = vmatpush.bf16.msra.mxu0 %v3387
    %4217 = vmatmul.bf16.gmra.mxu0 %v4038
    %v4218 = vpop.f32.mrf.mxu0
    %v4219 = vadd.f32 %v4206, %v4218
    %v4220 = vpop.f32.mrf.mxu0
    %4221 = vdwg.mxu0
    %4222 = vmatpush.bf16.msra.mxu0 %v2855
    %4223 = vmatpush.bf16.msra.mxu0 %v2842
    %4224 = vmatpush.bf16.msra.mxu0 %v2829
    %4225 = vmatpush.bf16.msra.mxu0 %v2816
    %4226 = vmatpush.bf16.msra.mxu0 %v2803
    %4227 = vmatpush.bf16.msra.mxu0 %v2790
    %4228 = vmatpush.bf16.msra.mxu0 %v2777
    %4229 = vmatpush.bf16.msra.mxu0 %v2764
    %4230 = vmatmul.bf16.gmra.mxu0 %v79
    %v4231 = vpop.f32.mrf.mxu0
    %v4232 = vadd.f32 %v778, %v4231
    %v4233 = vpop.f32.mrf.mxu0
    %4234 = vdwg.mxu0
    %4235 = vmatpush.bf16.msra.mxu0 %v2959
    %4236 = vmatpush.bf16.msra.mxu0 %v2946
    %4237 = vmatpush.bf16.msra.mxu0 %v2933
    %4238 = vmatpush.bf16.msra.mxu0 %v2920
    %4239 = vmatpush.bf16.msra.mxu0 %v2907
    %4240 = vmatpush.bf16.msra.mxu0 %v2894
    %4241 = vmatpush.bf16.msra.mxu0 %v2881
    %4242 = vmatpush.bf16.msra.mxu0 %v2868
    %4243 = vmatmul.bf16.gmra.mxu0 %v80
    %v4244 = vpop.f32.mrf.mxu0
    %v4245 = vadd.f32 %v4232, %v4244
    %v4246 = vpop.f32.mrf.mxu0
    %4247 = vdwg.mxu0
    %4248 = vmatpush.bf16.msra.mxu0 %v3063
    %4249 = vmatpush.bf16.msra.mxu0 %v3050
    %4250 = vmatpush.bf16.msra.mxu0 %v3037
    %4251 = vmatpush.bf16.msra.mxu0 %v3024
    %4252 = vmatpush.bf16.msra.mxu0 %v3011
    %4253 = vmatpush.bf16.msra.mxu0 %v2998
    %4254 = vmatpush.bf16.msra.mxu0 %v2985
    %4255 = vmatpush.bf16.msra.mxu0 %v2972
    %4256 = vmatmul.bf16.gmra.mxu0 %v81
    %v4257 = vpop.f32.mrf.mxu0
    %v4258 = vadd.f32 %v4245, %v4257
    %v4259 = vpop.f32.mrf.mxu0
    %4260 = vdwg.mxu0
    %4261 = vmatpush.bf16.msra.mxu0 %v3167
    %4262 = vmatpush.bf16.msra.mxu0 %v3154
    %4263 = vmatpush.bf16.msra.mxu0 %v3141
    %4264 = vmatpush.bf16.msra.mxu0 %v3128
    %4265 = vmatpush.bf16.msra.mxu0 %v3115
    %4266 = vmatpush.bf16.msra.mxu0 %v3102
    %4267 = vmatpush.bf16.msra.mxu0 %v3089
    %4268 = vmatpush.bf16.msra.mxu0 %v3076
    %4269 = vmatmul.bf16.gmra.mxu0 %v82
    %v4270 = vpop.f32.mrf.mxu0
    %v4271 = vadd.f32 %v4258, %v4270
    %v4272 = vpop.f32.mrf.mxu0
    %4273 = vdwg.mxu0
    %4274 = vmatpush.bf16.msra.mxu0 %v3271
    %4275 = vmatpush.bf16.msra.mxu0 %v3258
    %4276 = vmatpush.bf16.msra.mxu0 %v3245
    %4277 = vmatpush.bf16.msra.mxu0 %v3232
    %4278 = vmatpush.bf16.msra.mxu0 %v3219
    %4279 = vmatpush.bf16.msra.mxu0 %v3206
    %4280 = vmatpush.bf16.msra.mxu0 %v3193
    %4281 = vmatpush.bf16.msra.mxu0 %v3180
    %4282 = vmatmul.bf16.gmra.mxu0 %v83
    %v4283 = vpop.f32.mrf.mxu0
    %v4284 = vadd.f32 %v4271, %v4283
    %v4285 = vpop.f32.mrf.mxu0
    %4286 = vdwg.mxu0
    %4287 = vmatpush.bf16.msra.mxu0 %v3375
    %4288 = vmatpush.bf16.msra.mxu0 %v3362
    %4289 = vmatpush.bf16.msra.mxu0 %v3349
    %4290 = vmatpush.bf16.msra.mxu0 %v3336
    %4291 = vmatpush.bf16.msra.mxu0 %v3323
    %4292 = vmatpush.bf16.msra.mxu0 %v3310
    %4293 = vmatpush.bf16.msra.mxu0 %v3297
    %4294 = vmatpush.bf16.msra.mxu0 %v3284
    %4295 = vmatmul.bf16.gmra.mxu0 %v84
    %v4296 = vpop.f32.mrf.mxu0
    %v4297 = vadd.f32 %v4284, %v4296
    %v4298 = vpop.f32.mrf.mxu0
    %4299 = vdwg.mxu0
    %4300 = vmatpush.bf16.msra.mxu0 0
    %4301 = vmatpush.bf16.msra.mxu0 0
    %4302 = vmatpush.bf16.msra.mxu0 0
    %4303 = vmatpush.bf16.msra.mxu0 0
    %4304 = vmatpush.bf16.msra.mxu0 0
    %4305 = vmatpush.bf16.msra.mxu0 0
    %4306 = vmatpush.bf16.msra.mxu0 0
    %4307 = vmatpush.bf16.msra.mxu0 %v3388
    %4308 = vmatmul.bf16.gmra.mxu0 %v4038
    %v4309 = vpop.f32.mrf.mxu0
    %v4310 = vadd.f32 %v4297, %v4309
    %v4311 = vpop.f32.mrf.mxu0
    %4312 = vdwg.mxu0
    %4313 = vmatpush.bf16.msra.mxu0 %v2856
    %4314 = vmatpush.bf16.msra.mxu0 %v2843
    %4315 = vmatpush.bf16.msra.mxu0 %v2830
    %4316 = vmatpush.bf16.msra.mxu0 %v2817
    %4317 = vmatpush.bf16.msra.mxu0 %v2804
    %4318 = vmatpush.bf16.msra.mxu0 %v2791
    %4319 = vmatpush.bf16.msra.mxu0 %v2778
    %4320 = vmatpush.bf16.msra.mxu0 %v2765
    %4321 = vmatmul.bf16.gmra.mxu0 %v79
    %v4322 = vpop.f32.mrf.mxu0
    %v4323 = vadd.f32 %v779, %v4322
    %v4324 = vpop.f32.mrf.mxu0
    %4325 = vdwg.mxu0
    %4326 = vmatpush.bf16.msra.mxu0 %v2960
    %4327 = vmatpush.bf16.msra.mxu0 %v2947
    %4328 = vmatpush.bf16.msra.mxu0 %v2934
    %4329 = vmatpush.bf16.msra.mxu0 %v2921
    %4330 = vmatpush.bf16.msra.mxu0 %v2908
    %4331 = vmatpush.bf16.msra.mxu0 %v2895
    %4332 = vmatpush.bf16.msra.mxu0 %v2882
    %4333 = vmatpush.bf16.msra.mxu0 %v2869
    %4334 = vmatmul.bf16.gmra.mxu0 %v80
    %v4335 = vpop.f32.mrf.mxu0
    %v4336 = vadd.f32 %v4323, %v4335
    %v4337 = vpop.f32.mrf.mxu0
    %4338 = vdwg.mxu0
    %4339 = vmatpush.bf16.msra.mxu0 %v3064
    %4340 = vmatpush.bf16.msra.mxu0 %v3051
    %4341 = vmatpush.bf16.msra.mxu0 %v3038
    %4342 = vmatpush.bf16.msra.mxu0 %v3025
    %4343 = vmatpush.bf16.msra.mxu0 %v3012
    %4344 = vmatpush.bf16.msra.mxu0 %v2999
    %4345 = vmatpush.bf16.msra.mxu0 %v2986
    %4346 = vmatpush.bf16.msra.mxu0 %v2973
    %4347 = vmatmul.bf16.gmra.mxu0 %v81
    %v4348 = vpop.f32.mrf.mxu0
    %v4349 = vadd.f32 %v4336, %v4348
    %v4350 = vpop.f32.mrf.mxu0
    %4351 = vdwg.mxu0
    %4352 = vmatpush.bf16.msra.mxu0 %v3168
    %4353 = vmatpush.bf16.msra.mxu0 %v3155
    %4354 = vmatpush.bf16.msra.mxu0 %v3142
    %4355 = vmatpush.bf16.msra.mxu0 %v3129
    %4356 = vmatpush.bf16.msra.mxu0 %v3116
    %4357 = vmatpush.bf16.msra.mxu0 %v3103
    %4358 = vmatpush.bf16.msra.mxu0 %v3090
    %4359 = vmatpush.bf16.msra.mxu0 %v3077
    %4360 = vmatmul.bf16.gmra.mxu0 %v82
    %v4361 = vpop.f32.mrf.mxu0
    %v4362 = vadd.f32 %v4349, %v4361
    %v4363 = vpop.f32.mrf.mxu0
    %4364 = vdwg.mxu0
    %4365 = vmatpush.bf16.msra.mxu0 %v3272
    %4366 = vmatpush.bf16.msra.mxu0 %v3259
    %4367 = vmatpush.bf16.msra.mxu0 %v3246
    %4368 = vmatpush.bf16.msra.mxu0 %v3233
    %4369 = vmatpush.bf16.msra.mxu0 %v3220
    %4370 = vmatpush.bf16.msra.mxu0 %v3207
    %4371 = vmatpush.bf16.msra.mxu0 %v3194
    %4372 = vmatpush.bf16.msra.mxu0 %v3181
    %4373 = vmatmul.bf16.gmra.mxu0 %v83
    %v4374 = vpop.f32.mrf.mxu0
    %v4375 = vadd.f32 %v4362, %v4374
    %v4376 = vpop.f32.mrf.mxu0
    %4377 = vdwg.mxu0
    %4378 = vmatpush.bf16.msra.mxu0 %v3376
    %4379 = vmatpush.bf16.msra.mxu0 %v3363
    %4380 = vmatpush.bf16.msra.mxu0 %v3350
    %4381 = vmatpush.bf16.msra.mxu0 %v3337
    %4382 = vmatpush.bf16.msra.mxu0 %v3324
    %4383 = vmatpush.bf16.msra.mxu0 %v3311
    %4384 = vmatpush.bf16.msra.mxu0 %v3298
    %4385 = vmatpush.bf16.msra.mxu0 %v3285
    %4386 = vmatmul.bf16.gmra.mxu0 %v84
    %v4387 = vpop.f32.mrf.mxu0
    %v4388 = vadd.f32 %v4375, %v4387
    %v4389 = vpop.f32.mrf.mxu0
    %4390 = vdwg.mxu0
    %4391 = vmatpush.bf16.msra.mxu0 0
    %4392 = vmatpush.bf16.msra.mxu0 0
    %4393 = vmatpush.bf16.msra.mxu0 0
    %4394 = vmatpush.bf16.msra.mxu0 0
    %4395 = vmatpush.bf16.msra.mxu0 0
    %4396 = vmatpush.bf16.msra.mxu0 0
    %4397 = vmatpush.bf16.msra.mxu0 0
    %4398 = vmatpush.bf16.msra.mxu0 %v3389
    %4399 = vmatmul.bf16.gmra.mxu0 %v4038
    %v4400 = vpop.f32.mrf.mxu0
    %v4401 = vadd.f32 %v4388, %v4400
    %v4402 = vpop.f32.mrf.mxu0
    %4403 = vdwg.mxu0
    %4404 = vmatpush.bf16.msra.mxu0 %v2857
    %4405 = vmatpush.bf16.msra.mxu0 %v2844
    %4406 = vmatpush.bf16.msra.mxu0 %v2831
    %4407 = vmatpush.bf16.msra.mxu0 %v2818
    %4408 = vmatpush.bf16.msra.mxu0 %v2805
    %4409 = vmatpush.bf16.msra.mxu0 %v2792
    %4410 = vmatpush.bf16.msra.mxu0 %v2779
    %4411 = vmatpush.bf16.msra.mxu0 %v2766
    %4412 = vmatmul.bf16.gmra.mxu0 %v79
    %v4413 = vpop.f32.mrf.mxu0
    %v4414 = vadd.f32 %v780, %v4413
    %v4415 = vpop.f32.mrf.mxu0
    %4416 = vdwg.mxu0
    %4417 = vmatpush.bf16.msra.mxu0 %v2961
    %4418 = vmatpush.bf16.msra.mxu0 %v2948
    %4419 = vmatpush.bf16.msra.mxu0 %v2935
    %4420 = vmatpush.bf16.msra.mxu0 %v2922
    %4421 = vmatpush.bf16.msra.mxu0 %v2909
    %4422 = vmatpush.bf16.msra.mxu0 %v2896
    %4423 = vmatpush.bf16.msra.mxu0 %v2883
    %4424 = vmatpush.bf16.msra.mxu0 %v2870
    %4425 = vmatmul.bf16.gmra.mxu0 %v80
    %v4426 = vpop.f32.mrf.mxu0
    %v4427 = vadd.f32 %v4414, %v4426
    %v4428 = vpop.f32.mrf.mxu0
    %4429 = vdwg.mxu0
    %4430 = vmatpush.bf16.msra.mxu0 %v3065
    %4431 = vmatpush.bf16.msra.mxu0 %v3052
    %4432 = vmatpush.bf16.msra.mxu0 %v3039
    %4433 = vmatpush.bf16.msra.mxu0 %v3026
    %4434 = vmatpush.bf16.msra.mxu0 %v3013
    %4435 = vmatpush.bf16.msra.mxu0 %v3000
    %4436 = vmatpush.bf16.msra.mxu0 %v2987
    %4437 = vmatpush.bf16.msra.mxu0 %v2974
    %4438 = vmatmul.bf16.gmra.mxu0 %v81
    %v4439 = vpop.f32.mrf.mxu0
    %v4440 = vadd.f32 %v4427, %v4439
    %v4441 = vpop.f32.mrf.mxu0
    %4442 = vdwg.mxu0
    %4443 = vmatpush.bf16.msra.mxu0 %v3169
    %4444 = vmatpush.bf16.msra.mxu0 %v3156
    %4445 = vmatpush.bf16.msra.mxu0 %v3143
    %4446 = vmatpush.bf16.msra.mxu0 %v3130
    %4447 = vmatpush.bf16.msra.mxu0 %v3117
    %4448 = vmatpush.bf16.msra.mxu0 %v3104
    %4449 = vmatpush.bf16.msra.mxu0 %v3091
    %4450 = vmatpush.bf16.msra.mxu0 %v3078
    %4451 = vmatmul.bf16.gmra.mxu0 %v82
    %v4452 = vpop.f32.mrf.mxu0
    %v4453 = vadd.f32 %v4440, %v4452
    %v4454 = vpop.f32.mrf.mxu0
    %4455 = vdwg.mxu0
    %4456 = vmatpush.bf16.msra.mxu0 %v3273
    %4457 = vmatpush.bf16.msra.mxu0 %v3260
    %4458 = vmatpush.bf16.msra.mxu0 %v3247
    %4459 = vmatpush.bf16.msra.mxu0 %v3234
    %4460 = vmatpush.bf16.msra.mxu0 %v3221
    %4461 = vmatpush.bf16.msra.mxu0 %v3208
    %4462 = vmatpush.bf16.msra.mxu0 %v3195
    %4463 = vmatpush.bf16.msra.mxu0 %v3182
    %4464 = vmatmul.bf16.gmra.mxu0 %v83
    %v4465 = vpop.f32.mrf.mxu0
    %v4466 = vadd.f32 %v4453, %v4465
    %v4467 = vpop.f32.mrf.mxu0
    %4468 = vdwg.mxu0
    %4469 = vmatpush.bf16.msra.mxu0 %v3377
    %4470 = vmatpush.bf16.msra.mxu0 %v3364
    %4471 = vmatpush.bf16.msra.mxu0 %v3351
    %4472 = vmatpush.bf16.msra.mxu0 %v3338
    %4473 = vmatpush.bf16.msra.mxu0 %v3325
    %4474 = vmatpush.bf16.msra.mxu0 %v3312
    %4475 = vmatpush.bf16.msra.mxu0 %v3299
    %4476 = vmatpush.bf16.msra.mxu0 %v3286
    %4477 = vmatmul.bf16.gmra.mxu0 %v84
    %v4478 = vpop.f32.mrf.mxu0
    %v4479 = vadd.f32 %v4466, %v4478
    %v4480 = vpop.f32.mrf.mxu0
    %4481 = vdwg.mxu0
    %4482 = vmatpush.bf16.msra.mxu0 0
    %4483 = vmatpush.bf16.msra.mxu0 0
    %4484 = vmatpush.bf16.msra.mxu0 0
    %4485 = vmatpush.bf16.msra.mxu0 0
    %4486 = vmatpush.bf16.msra.mxu0 0
    %4487 = vmatpush.bf16.msra.mxu0 0
    %4488 = vmatpush.bf16.msra.mxu0 0
    %4489 = vmatpush.bf16.msra.mxu0 %v3390
    %4490 = vmatmul.bf16.gmra.mxu0 %v4038
    %v4491 = vpop.f32.mrf.mxu0
    %v4492 = vadd.f32 %v4479, %v4491
    %v4493 = vpop.f32.mrf.mxu0
    %4494 = vdwg.mxu0
    %4495 = vmatpush.bf16.msra.mxu0 %v2858
    %4496 = vmatpush.bf16.msra.mxu0 %v2845
    %4497 = vmatpush.bf16.msra.mxu0 %v2832
    %4498 = vmatpush.bf16.msra.mxu0 %v2819
    %4499 = vmatpush.bf16.msra.mxu0 %v2806
    %4500 = vmatpush.bf16.msra.mxu0 %v2793
    %4501 = vmatpush.bf16.msra.mxu0 %v2780
    %4502 = vmatpush.bf16.msra.mxu0 %v2767
    %4503 = vmatmul.bf16.gmra.mxu0 %v79
    %v4504 = vpop.f32.mrf.mxu0
    %v4505 = vadd.f32 %v781, %v4504
    %v4506 = vpop.f32.mrf.mxu0
    %4507 = vdwg.mxu0
    %4508 = vmatpush.bf16.msra.mxu0 %v2962
    %4509 = vmatpush.bf16.msra.mxu0 %v2949
    %4510 = vmatpush.bf16.msra.mxu0 %v2936
    %4511 = vmatpush.bf16.msra.mxu0 %v2923
    %4512 = vmatpush.bf16.msra.mxu0 %v2910
    %4513 = vmatpush.bf16.msra.mxu0 %v2897
    %4514 = vmatpush.bf16.msra.mxu0 %v2884
    %4515 = vmatpush.bf16.msra.mxu0 %v2871
    %4516 = vmatmul.bf16.gmra.mxu0 %v80
    %v4517 = vpop.f32.mrf.mxu0
    %v4518 = vadd.f32 %v4505, %v4517
    %v4519 = vpop.f32.mrf.mxu0
    %4520 = vdwg.mxu0
    %4521 = vmatpush.bf16.msra.mxu0 %v3066
    %4522 = vmatpush.bf16.msra.mxu0 %v3053
    %4523 = vmatpush.bf16.msra.mxu0 %v3040
    %4524 = vmatpush.bf16.msra.mxu0 %v3027
    %4525 = vmatpush.bf16.msra.mxu0 %v3014
    %4526 = vmatpush.bf16.msra.mxu0 %v3001
    %4527 = vmatpush.bf16.msra.mxu0 %v2988
    %4528 = vmatpush.bf16.msra.mxu0 %v2975
    %4529 = vmatmul.bf16.gmra.mxu0 %v81
    %v4530 = vpop.f32.mrf.mxu0
    %v4531 = vadd.f32 %v4518, %v4530
    %v4532 = vpop.f32.mrf.mxu0
    %4533 = vdwg.mxu0
    %4534 = vmatpush.bf16.msra.mxu0 %v3170
    %4535 = vmatpush.bf16.msra.mxu0 %v3157
    %4536 = vmatpush.bf16.msra.mxu0 %v3144
    %4537 = vmatpush.bf16.msra.mxu0 %v3131
    %4538 = vmatpush.bf16.msra.mxu0 %v3118
    %4539 = vmatpush.bf16.msra.mxu0 %v3105
    %4540 = vmatpush.bf16.msra.mxu0 %v3092
    %4541 = vmatpush.bf16.msra.mxu0 %v3079
    %4542 = vmatmul.bf16.gmra.mxu0 %v82
    %v4543 = vpop.f32.mrf.mxu0
    %v4544 = vadd.f32 %v4531, %v4543
    %v4545 = vpop.f32.mrf.mxu0
    %4546 = vdwg.mxu0
    %4547 = vmatpush.bf16.msra.mxu0 %v3274
    %4548 = vmatpush.bf16.msra.mxu0 %v3261
    %4549 = vmatpush.bf16.msra.mxu0 %v3248
    %4550 = vmatpush.bf16.msra.mxu0 %v3235
    %4551 = vmatpush.bf16.msra.mxu0 %v3222
    %4552 = vmatpush.bf16.msra.mxu0 %v3209
    %4553 = vmatpush.bf16.msra.mxu0 %v3196
    %4554 = vmatpush.bf16.msra.mxu0 %v3183
    %4555 = vmatmul.bf16.gmra.mxu0 %v83
    %v4556 = vpop.f32.mrf.mxu0
    %v4557 = vadd.f32 %v4544, %v4556
    %v4558 = vpop.f32.mrf.mxu0
    %4559 = vdwg.mxu0
    %4560 = vmatpush.bf16.msra.mxu0 %v3378
    %4561 = vmatpush.bf16.msra.mxu0 %v3365
    %4562 = vmatpush.bf16.msra.mxu0 %v3352
    %4563 = vmatpush.bf16.msra.mxu0 %v3339
    %4564 = vmatpush.bf16.msra.mxu0 %v3326
    %4565 = vmatpush.bf16.msra.mxu0 %v3313
    %4566 = vmatpush.bf16.msra.mxu0 %v3300
    %4567 = vmatpush.bf16.msra.mxu0 %v3287
    %4568 = vmatmul.bf16.gmra.mxu0 %v84
    %v4569 = vpop.f32.mrf.mxu0
    %v4570 = vadd.f32 %v4557, %v4569
    %v4571 = vpop.f32.mrf.mxu0
    %4572 = vdwg.mxu0
    %4573 = vmatpush.bf16.msra.mxu0 0
    %4574 = vmatpush.bf16.msra.mxu0 0
    %4575 = vmatpush.bf16.msra.mxu0 0
    %4576 = vmatpush.bf16.msra.mxu0 0
    %4577 = vmatpush.bf16.msra.mxu0 0
    %4578 = vmatpush.bf16.msra.mxu0 0
    %4579 = vmatpush.bf16.msra.mxu0 0
    %4580 = vmatpush.bf16.msra.mxu0 %v3391
    %4581 = vmatmul.bf16.gmra.mxu0 %v4038
    %v4582 = vpop.f32.mrf.mxu0
    %v4583 = vadd.f32 %v4570, %v4582
    %v4584 = vpop.f32.mrf.mxu0
    %4585 = vdwg.mxu0
    %4586 = vmatpush.bf16.msra.mxu0 %v2859
    %4587 = vmatpush.bf16.msra.mxu0 %v2846
    %4588 = vmatpush.bf16.msra.mxu0 %v2833
    %4589 = vmatpush.bf16.msra.mxu0 %v2820
    %4590 = vmatpush.bf16.msra.mxu0 %v2807
    %4591 = vmatpush.bf16.msra.mxu0 %v2794
    %4592 = vmatpush.bf16.msra.mxu0 %v2781
    %4593 = vmatpush.bf16.msra.mxu0 %v2768
    %4594 = vmatmul.bf16.gmra.mxu0 %v79
    %v4595 = vpop.f32.mrf.mxu0
    %v4596 = vadd.f32 %v782, %v4595
    %v4597 = vpop.f32.mrf.mxu0
    %4598 = vdwg.mxu0
    %4599 = vmatpush.bf16.msra.mxu0 %v2963
    %4600 = vmatpush.bf16.msra.mxu0 %v2950
    %4601 = vmatpush.bf16.msra.mxu0 %v2937
    %4602 = vmatpush.bf16.msra.mxu0 %v2924
    %4603 = vmatpush.bf16.msra.mxu0 %v2911
    %4604 = vmatpush.bf16.msra.mxu0 %v2898
    %4605 = vmatpush.bf16.msra.mxu0 %v2885
    %4606 = vmatpush.bf16.msra.mxu0 %v2872
    %4607 = vmatmul.bf16.gmra.mxu0 %v80
    %v4608 = vpop.f32.mrf.mxu0
    %v4609 = vadd.f32 %v4596, %v4608
    %v4610 = vpop.f32.mrf.mxu0
    %4611 = vdwg.mxu0
    %4612 = vmatpush.bf16.msra.mxu0 %v3067
    %4613 = vmatpush.bf16.msra.mxu0 %v3054
    %4614 = vmatpush.bf16.msra.mxu0 %v3041
    %4615 = vmatpush.bf16.msra.mxu0 %v3028
    %4616 = vmatpush.bf16.msra.mxu0 %v3015
    %4617 = vmatpush.bf16.msra.mxu0 %v3002
    %4618 = vmatpush.bf16.msra.mxu0 %v2989
    %4619 = vmatpush.bf16.msra.mxu0 %v2976
    %4620 = vmatmul.bf16.gmra.mxu0 %v81
    %v4621 = vpop.f32.mrf.mxu0
    %v4622 = vadd.f32 %v4609, %v4621
    %v4623 = vpop.f32.mrf.mxu0
    %4624 = vdwg.mxu0
    %4625 = vmatpush.bf16.msra.mxu0 %v3171
    %4626 = vmatpush.bf16.msra.mxu0 %v3158
    %4627 = vmatpush.bf16.msra.mxu0 %v3145
    %4628 = vmatpush.bf16.msra.mxu0 %v3132
    %4629 = vmatpush.bf16.msra.mxu0 %v3119
    %4630 = vmatpush.bf16.msra.mxu0 %v3106
    %4631 = vmatpush.bf16.msra.mxu0 %v3093
    %4632 = vmatpush.bf16.msra.mxu0 %v3080
    %4633 = vmatmul.bf16.gmra.mxu0 %v82
    %v4634 = vpop.f32.mrf.mxu0
    %v4635 = vadd.f32 %v4622, %v4634
    %v4636 = vpop.f32.mrf.mxu0
    %4637 = vdwg.mxu0
    %4638 = vmatpush.bf16.msra.mxu0 %v3275
    %4639 = vmatpush.bf16.msra.mxu0 %v3262
    %4640 = vmatpush.bf16.msra.mxu0 %v3249
    %4641 = vmatpush.bf16.msra.mxu0 %v3236
    %4642 = vmatpush.bf16.msra.mxu0 %v3223
    %4643 = vmatpush.bf16.msra.mxu0 %v3210
    %4644 = vmatpush.bf16.msra.mxu0 %v3197
    %4645 = vmatpush.bf16.msra.mxu0 %v3184
    %4646 = vmatmul.bf16.gmra.mxu0 %v83
    %v4647 = vpop.f32.mrf.mxu0
    %v4648 = vadd.f32 %v4635, %v4647
    %v4649 = vpop.f32.mrf.mxu0
    %4650 = vdwg.mxu0
    %4651 = vmatpush.bf16.msra.mxu0 %v3379
    %4652 = vmatpush.bf16.msra.mxu0 %v3366
    %4653 = vmatpush.bf16.msra.mxu0 %v3353
    %4654 = vmatpush.bf16.msra.mxu0 %v3340
    %4655 = vmatpush.bf16.msra.mxu0 %v3327
    %4656 = vmatpush.bf16.msra.mxu0 %v3314
    %4657 = vmatpush.bf16.msra.mxu0 %v3301
    %4658 = vmatpush.bf16.msra.mxu0 %v3288
    %4659 = vmatmul.bf16.gmra.mxu0 %v84
    %v4660 = vpop.f32.mrf.mxu0
    %v4661 = vadd.f32 %v4648, %v4660
    %v4662 = vpop.f32.mrf.mxu0
    %4663 = vdwg.mxu0
    %4664 = vmatpush.bf16.msra.mxu0 0
    %4665 = vmatpush.bf16.msra.mxu0 0
    %4666 = vmatpush.bf16.msra.mxu0 0
    %4667 = vmatpush.bf16.msra.mxu0 0
    %4668 = vmatpush.bf16.msra.mxu0 0
    %4669 = vmatpush.bf16.msra.mxu0 0
    %4670 = vmatpush.bf16.msra.mxu0 0
    %4671 = vmatpush.bf16.msra.mxu0 %v3392
    %4672 = vmatmul.bf16.gmra.mxu0 %v4038
    %v4673 = vpop.f32.mrf.mxu0
    %v4674 = vadd.f32 %v4661, %v4673
    %v4675 = vpop.f32.mrf.mxu0
    %4676 = vdwg.mxu0
    %4677 = vmatpush.bf16.msra.mxu0 %v2860
    %4678 = vmatpush.bf16.msra.mxu0 %v2847
    %4679 = vmatpush.bf16.msra.mxu0 %v2834
    %4680 = vmatpush.bf16.msra.mxu0 %v2821
    %4681 = vmatpush.bf16.msra.mxu0 %v2808
    %4682 = vmatpush.bf16.msra.mxu0 %v2795
    %4683 = vmatpush.bf16.msra.mxu0 %v2782
    %4684 = vmatpush.bf16.msra.mxu0 %v2769
    %4685 = vmatmul.bf16.gmra.mxu0 %v79
    %v4686 = vpop.f32.mrf.mxu0
    %v4687 = vadd.f32 %v783, %v4686
    %v4688 = vpop.f32.mrf.mxu0
    %4689 = vdwg.mxu0
    %4690 = vmatpush.bf16.msra.mxu0 %v2964
    %4691 = vmatpush.bf16.msra.mxu0 %v2951
    %4692 = vmatpush.bf16.msra.mxu0 %v2938
    %4693 = vmatpush.bf16.msra.mxu0 %v2925
    %4694 = vmatpush.bf16.msra.mxu0 %v2912
    %4695 = vmatpush.bf16.msra.mxu0 %v2899
    %4696 = vmatpush.bf16.msra.mxu0 %v2886
    %4697 = vmatpush.bf16.msra.mxu0 %v2873
    %4698 = vmatmul.bf16.gmra.mxu0 %v80
    %v4699 = vpop.f32.mrf.mxu0
    %v4700 = vadd.f32 %v4687, %v4699
    %v4701 = vpop.f32.mrf.mxu0
    %4702 = vdwg.mxu0
    %4703 = vmatpush.bf16.msra.mxu0 %v3068
    %4704 = vmatpush.bf16.msra.mxu0 %v3055
    %4705 = vmatpush.bf16.msra.mxu0 %v3042
    %4706 = vmatpush.bf16.msra.mxu0 %v3029
    %4707 = vmatpush.bf16.msra.mxu0 %v3016
    %4708 = vmatpush.bf16.msra.mxu0 %v3003
    %4709 = vmatpush.bf16.msra.mxu0 %v2990
    %4710 = vmatpush.bf16.msra.mxu0 %v2977
    %4711 = vmatmul.bf16.gmra.mxu0 %v81
    %v4712 = vpop.f32.mrf.mxu0
    %v4713 = vadd.f32 %v4700, %v4712
    %v4714 = vpop.f32.mrf.mxu0
    %4715 = vdwg.mxu0
    %4716 = vmatpush.bf16.msra.mxu0 %v3172
    %4717 = vmatpush.bf16.msra.mxu0 %v3159
    %4718 = vmatpush.bf16.msra.mxu0 %v3146
    %4719 = vmatpush.bf16.msra.mxu0 %v3133
    %4720 = vmatpush.bf16.msra.mxu0 %v3120
    %4721 = vmatpush.bf16.msra.mxu0 %v3107
    %4722 = vmatpush.bf16.msra.mxu0 %v3094
    %4723 = vmatpush.bf16.msra.mxu0 %v3081
    %4724 = vmatmul.bf16.gmra.mxu0 %v82
    %v4725 = vpop.f32.mrf.mxu0
    %v4726 = vadd.f32 %v4713, %v4725
    %v4727 = vpop.f32.mrf.mxu0
    %4728 = vdwg.mxu0
    %4729 = vmatpush.bf16.msra.mxu0 %v3276
    %4730 = vmatpush.bf16.msra.mxu0 %v3263
    %4731 = vmatpush.bf16.msra.mxu0 %v3250
    %4732 = vmatpush.bf16.msra.mxu0 %v3237
    %4733 = vmatpush.bf16.msra.mxu0 %v3224
    %4734 = vmatpush.bf16.msra.mxu0 %v3211
    %4735 = vmatpush.bf16.msra.mxu0 %v3198
    %4736 = vmatpush.bf16.msra.mxu0 %v3185
    %4737 = vmatmul.bf16.gmra.mxu0 %v83
    %v4738 = vpop.f32.mrf.mxu0
    %v4739 = vadd.f32 %v4726, %v4738
    %v4740 = vpop.f32.mrf.mxu0
    %4741 = vdwg.mxu0
    %4742 = vmatpush.bf16.msra.mxu0 %v3380
    %4743 = vmatpush.bf16.msra.mxu0 %v3367
    %4744 = vmatpush.bf16.msra.mxu0 %v3354
    %4745 = vmatpush.bf16.msra.mxu0 %v3341
    %4746 = vmatpush.bf16.msra.mxu0 %v3328
    %4747 = vmatpush.bf16.msra.mxu0 %v3315
    %4748 = vmatpush.bf16.msra.mxu0 %v3302
    %4749 = vmatpush.bf16.msra.mxu0 %v3289
    %4750 = vmatmul.bf16.gmra.mxu0 %v84
    %v4751 = vpop.f32.mrf.mxu0
    %v4752 = vadd.f32 %v4739, %v4751
    %v4753 = vpop.f32.mrf.mxu0
    %4754 = vdwg.mxu0
    %4755 = vmatpush.bf16.msra.mxu0 0
    %4756 = vmatpush.bf16.msra.mxu0 0
    %4757 = vmatpush.bf16.msra.mxu0 0
    %4758 = vmatpush.bf16.msra.mxu0 0
    %4759 = vmatpush.bf16.msra.mxu0 0
    %4760 = vmatpush.bf16.msra.mxu0 0
    %4761 = vmatpush.bf16.msra.mxu0 0
    %4762 = vmatpush.bf16.msra.mxu0 %v3393
    %4763 = vmatmul.bf16.gmra.mxu0 %v4038
    %v4764 = vpop.f32.mrf.mxu0
    %v4765 = vadd.f32 %v4752, %v4764
    %v4766 = vpop.f32.mrf.mxu0
    %4767 = vdwg.mxu0
    %4768 = vmatpush.bf16.msra.mxu0 %v2861
    %4769 = vmatpush.bf16.msra.mxu0 %v2848
    %4770 = vmatpush.bf16.msra.mxu0 %v2835
    %4771 = vmatpush.bf16.msra.mxu0 %v2822
    %4772 = vmatpush.bf16.msra.mxu0 %v2809
    %4773 = vmatpush.bf16.msra.mxu0 %v2796
    %4774 = vmatpush.bf16.msra.mxu0 %v2783
    %4775 = vmatpush.bf16.msra.mxu0 %v2770
    %4776 = vmatmul.bf16.gmra.mxu0 %v79
    %v4777 = vpop.f32.mrf.mxu0
    %v4778 = vadd.f32 %v784, %v4777
    %v4779 = vpop.f32.mrf.mxu0
    %4780 = vdwg.mxu0
    %4781 = vmatpush.bf16.msra.mxu0 %v2965
    %4782 = vmatpush.bf16.msra.mxu0 %v2952
    %4783 = vmatpush.bf16.msra.mxu0 %v2939
    %4784 = vmatpush.bf16.msra.mxu0 %v2926
    %4785 = vmatpush.bf16.msra.mxu0 %v2913
    %4786 = vmatpush.bf16.msra.mxu0 %v2900
    %4787 = vmatpush.bf16.msra.mxu0 %v2887
    %4788 = vmatpush.bf16.msra.mxu0 %v2874
    %4789 = vmatmul.bf16.gmra.mxu0 %v80
    %v4790 = vpop.f32.mrf.mxu0
    %v4791 = vadd.f32 %v4778, %v4790
    %v4792 = vpop.f32.mrf.mxu0
    %4793 = vdwg.mxu0
    %4794 = vmatpush.bf16.msra.mxu0 %v3069
    %4795 = vmatpush.bf16.msra.mxu0 %v3056
    %4796 = vmatpush.bf16.msra.mxu0 %v3043
    %4797 = vmatpush.bf16.msra.mxu0 %v3030
    %4798 = vmatpush.bf16.msra.mxu0 %v3017
    %4799 = vmatpush.bf16.msra.mxu0 %v3004
    %4800 = vmatpush.bf16.msra.mxu0 %v2991
    %4801 = vmatpush.bf16.msra.mxu0 %v2978
    %4802 = vmatmul.bf16.gmra.mxu0 %v81
    %v4803 = vpop.f32.mrf.mxu0
    %v4804 = vadd.f32 %v4791, %v4803
    %v4805 = vpop.f32.mrf.mxu0
    %4806 = vdwg.mxu0
    %4807 = vmatpush.bf16.msra.mxu0 %v3173
    %4808 = vmatpush.bf16.msra.mxu0 %v3160
    %4809 = vmatpush.bf16.msra.mxu0 %v3147
    %4810 = vmatpush.bf16.msra.mxu0 %v3134
    %4811 = vmatpush.bf16.msra.mxu0 %v3121
    %4812 = vmatpush.bf16.msra.mxu0 %v3108
    %4813 = vmatpush.bf16.msra.mxu0 %v3095
    %4814 = vmatpush.bf16.msra.mxu0 %v3082
    %4815 = vmatmul.bf16.gmra.mxu0 %v82
    %v4816 = vpop.f32.mrf.mxu0
    %v4817 = vadd.f32 %v4804, %v4816
    %v4818 = vpop.f32.mrf.mxu0
    %4819 = vdwg.mxu0
    %4820 = vmatpush.bf16.msra.mxu0 %v3277
    %4821 = vmatpush.bf16.msra.mxu0 %v3264
    %4822 = vmatpush.bf16.msra.mxu0 %v3251
    %4823 = vmatpush.bf16.msra.mxu0 %v3238
    %4824 = vmatpush.bf16.msra.mxu0 %v3225
    %4825 = vmatpush.bf16.msra.mxu0 %v3212
    %4826 = vmatpush.bf16.msra.mxu0 %v3199
    %4827 = vmatpush.bf16.msra.mxu0 %v3186
    %4828 = vmatmul.bf16.gmra.mxu0 %v83
    %v4829 = vpop.f32.mrf.mxu0
    %v4830 = vadd.f32 %v4817, %v4829
    %v4831 = vpop.f32.mrf.mxu0
    %4832 = vdwg.mxu0
    %4833 = vmatpush.bf16.msra.mxu0 %v3381
    %4834 = vmatpush.bf16.msra.mxu0 %v3368
    %4835 = vmatpush.bf16.msra.mxu0 %v3355
    %4836 = vmatpush.bf16.msra.mxu0 %v3342
    %4837 = vmatpush.bf16.msra.mxu0 %v3329
    %4838 = vmatpush.bf16.msra.mxu0 %v3316
    %4839 = vmatpush.bf16.msra.mxu0 %v3303
    %4840 = vmatpush.bf16.msra.mxu0 %v3290
    %4841 = vmatmul.bf16.gmra.mxu0 %v84
    %v4842 = vpop.f32.mrf.mxu0
    %v4843 = vadd.f32 %v4830, %v4842
    %v4844 = vpop.f32.mrf.mxu0
    %4845 = vdwg.mxu0
    %4846 = vmatpush.bf16.msra.mxu0 0
    %4847 = vmatpush.bf16.msra.mxu0 0
    %4848 = vmatpush.bf16.msra.mxu0 0
    %4849 = vmatpush.bf16.msra.mxu0 0
    %4850 = vmatpush.bf16.msra.mxu0 0
    %4851 = vmatpush.bf16.msra.mxu0 0
    %4852 = vmatpush.bf16.msra.mxu0 0
    %4853 = vmatpush.bf16.msra.mxu0 %v3394
    %4854 = vmatmul.bf16.gmra.mxu0 %v4038
    %v4855 = vpop.f32.mrf.mxu0
    %v4856 = vadd.f32 %v4843, %v4855
    %v4857 = vpop.f32.mrf.mxu0
    %4858 = vdwg.mxu0
    %4859 = vmatpush.bf16.msra.mxu0 %v2862
    %4860 = vmatpush.bf16.msra.mxu0 %v2849
    %4861 = vmatpush.bf16.msra.mxu0 %v2836
    %4862 = vmatpush.bf16.msra.mxu0 %v2823
    %4863 = vmatpush.bf16.msra.mxu0 %v2810
    %4864 = vmatpush.bf16.msra.mxu0 %v2797
    %4865 = vmatpush.bf16.msra.mxu0 %v2784
    %4866 = vmatpush.bf16.msra.mxu0 %v2771
    %4867 = vmatmul.bf16.gmra.mxu0 %v79
    %v4868 = vpop.f32.mrf.mxu0
    %v4869 = vadd.f32 %v785, %v4868
    %v4870 = vpop.f32.mrf.mxu0
    %4871 = vdwg.mxu0
    %4872 = vmatpush.bf16.msra.mxu0 %v2966
    %4873 = vmatpush.bf16.msra.mxu0 %v2953
    %4874 = vmatpush.bf16.msra.mxu0 %v2940
    %4875 = vmatpush.bf16.msra.mxu0 %v2927
    %4876 = vmatpush.bf16.msra.mxu0 %v2914
    %4877 = vmatpush.bf16.msra.mxu0 %v2901
    %4878 = vmatpush.bf16.msra.mxu0 %v2888
    %4879 = vmatpush.bf16.msra.mxu0 %v2875
    %4880 = vmatmul.bf16.gmra.mxu0 %v80
    %v4881 = vpop.f32.mrf.mxu0
    %v4882 = vadd.f32 %v4869, %v4881
    %v4883 = vpop.f32.mrf.mxu0
    %4884 = vdwg.mxu0
    %4885 = vmatpush.bf16.msra.mxu0 %v3070
    %4886 = vmatpush.bf16.msra.mxu0 %v3057
    %4887 = vmatpush.bf16.msra.mxu0 %v3044
    %4888 = vmatpush.bf16.msra.mxu0 %v3031
    %4889 = vmatpush.bf16.msra.mxu0 %v3018
    %4890 = vmatpush.bf16.msra.mxu0 %v3005
    %4891 = vmatpush.bf16.msra.mxu0 %v2992
    %4892 = vmatpush.bf16.msra.mxu0 %v2979
    %4893 = vmatmul.bf16.gmra.mxu0 %v81
    %v4894 = vpop.f32.mrf.mxu0
    %v4895 = vadd.f32 %v4882, %v4894
    %v4896 = vpop.f32.mrf.mxu0
    %4897 = vdwg.mxu0
    %4898 = vmatpush.bf16.msra.mxu0 %v3174
    %4899 = vmatpush.bf16.msra.mxu0 %v3161
    %4900 = vmatpush.bf16.msra.mxu0 %v3148
    %4901 = vmatpush.bf16.msra.mxu0 %v3135
    %4902 = vmatpush.bf16.msra.mxu0 %v3122
    %4903 = vmatpush.bf16.msra.mxu0 %v3109
    %4904 = vmatpush.bf16.msra.mxu0 %v3096
    %4905 = vmatpush.bf16.msra.mxu0 %v3083
    %4906 = vmatmul.bf16.gmra.mxu0 %v82
    %v4907 = vpop.f32.mrf.mxu0
    %v4908 = vadd.f32 %v4895, %v4907
    %v4909 = vpop.f32.mrf.mxu0
    %4910 = vdwg.mxu0
    %4911 = vmatpush.bf16.msra.mxu0 %v3278
    %4912 = vmatpush.bf16.msra.mxu0 %v3265
    %4913 = vmatpush.bf16.msra.mxu0 %v3252
    %4914 = vmatpush.bf16.msra.mxu0 %v3239
    %4915 = vmatpush.bf16.msra.mxu0 %v3226
    %4916 = vmatpush.bf16.msra.mxu0 %v3213
    %4917 = vmatpush.bf16.msra.mxu0 %v3200
    %4918 = vmatpush.bf16.msra.mxu0 %v3187
    %4919 = vmatmul.bf16.gmra.mxu0 %v83
    %v4920 = vpop.f32.mrf.mxu0
    %v4921 = vadd.f32 %v4908, %v4920
    %v4922 = vpop.f32.mrf.mxu0
    %4923 = vdwg.mxu0
    %4924 = vmatpush.bf16.msra.mxu0 %v3382
    %4925 = vmatpush.bf16.msra.mxu0 %v3369
    %4926 = vmatpush.bf16.msra.mxu0 %v3356
    %4927 = vmatpush.bf16.msra.mxu0 %v3343
    %4928 = vmatpush.bf16.msra.mxu0 %v3330
    %4929 = vmatpush.bf16.msra.mxu0 %v3317
    %4930 = vmatpush.bf16.msra.mxu0 %v3304
    %4931 = vmatpush.bf16.msra.mxu0 %v3291
    %4932 = vmatmul.bf16.gmra.mxu0 %v84
    %v4933 = vpop.f32.mrf.mxu0
    %v4934 = vadd.f32 %v4921, %v4933
    %v4935 = vpop.f32.mrf.mxu0
    %4936 = vdwg.mxu0
    %4937 = vmatpush.bf16.msra.mxu0 0
    %4938 = vmatpush.bf16.msra.mxu0 0
    %4939 = vmatpush.bf16.msra.mxu0 0
    %4940 = vmatpush.bf16.msra.mxu0 0
    %4941 = vmatpush.bf16.msra.mxu0 0
    %4942 = vmatpush.bf16.msra.mxu0 0
    %4943 = vmatpush.bf16.msra.mxu0 0
    %4944 = vmatpush.bf16.msra.mxu0 %v3395
    %4945 = vmatmul.bf16.gmra.mxu0 %v4038
    %v4946 = vpop.f32.mrf.mxu0
    %v4947 = vadd.f32 %v4934, %v4946
    %v4948 = vpop.f32.mrf.mxu0
    %4949 = vdwg.mxu0
    %4950 = vmatpush.bf16.msra.mxu0 %v2863
    %4951 = vmatpush.bf16.msra.mxu0 %v2850
    %4952 = vmatpush.bf16.msra.mxu0 %v2837
    %4953 = vmatpush.bf16.msra.mxu0 %v2824
    %4954 = vmatpush.bf16.msra.mxu0 %v2811
    %4955 = vmatpush.bf16.msra.mxu0 %v2798
    %4956 = vmatpush.bf16.msra.mxu0 %v2785
    %4957 = vmatpush.bf16.msra.mxu0 %v2772
    %4958 = vmatmul.bf16.gmra.mxu0 %v79
    %v4959 = vpop.f32.mrf.mxu0
    %v4960 = vadd.f32 %v786, %v4959
    %v4961 = vpop.f32.mrf.mxu0
    %4962 = vdwg.mxu0
    %4963 = vmatpush.bf16.msra.mxu0 %v2967
    %4964 = vmatpush.bf16.msra.mxu0 %v2954
    %4965 = vmatpush.bf16.msra.mxu0 %v2941
    %4966 = vmatpush.bf16.msra.mxu0 %v2928
    %4967 = vmatpush.bf16.msra.mxu0 %v2915
    %4968 = vmatpush.bf16.msra.mxu0 %v2902
    %4969 = vmatpush.bf16.msra.mxu0 %v2889
    %4970 = vmatpush.bf16.msra.mxu0 %v2876
    %4971 = vmatmul.bf16.gmra.mxu0 %v80
    %v4972 = vpop.f32.mrf.mxu0
    %v4973 = vadd.f32 %v4960, %v4972
    %v4974 = vpop.f32.mrf.mxu0
    %4975 = vdwg.mxu0
    %4976 = vmatpush.bf16.msra.mxu0 %v3071
    %4977 = vmatpush.bf16.msra.mxu0 %v3058
    %4978 = vmatpush.bf16.msra.mxu0 %v3045
    %4979 = vmatpush.bf16.msra.mxu0 %v3032
    %4980 = vmatpush.bf16.msra.mxu0 %v3019
    %4981 = vmatpush.bf16.msra.mxu0 %v3006
    %4982 = vmatpush.bf16.msra.mxu0 %v2993
    %4983 = vmatpush.bf16.msra.mxu0 %v2980
    %4984 = vmatmul.bf16.gmra.mxu0 %v81
    %v4985 = vpop.f32.mrf.mxu0
    %v4986 = vadd.f32 %v4973, %v4985
    %v4987 = vpop.f32.mrf.mxu0
    %4988 = vdwg.mxu0
    %4989 = vmatpush.bf16.msra.mxu0 %v3175
    %4990 = vmatpush.bf16.msra.mxu0 %v3162
    %4991 = vmatpush.bf16.msra.mxu0 %v3149
    %4992 = vmatpush.bf16.msra.mxu0 %v3136
    %4993 = vmatpush.bf16.msra.mxu0 %v3123
    %4994 = vmatpush.bf16.msra.mxu0 %v3110
    %4995 = vmatpush.bf16.msra.mxu0 %v3097
    %4996 = vmatpush.bf16.msra.mxu0 %v3084
    %4997 = vmatmul.bf16.gmra.mxu0 %v82
    %v4998 = vpop.f32.mrf.mxu0
    %v4999 = vadd.f32 %v4986, %v4998
    %v5000 = vpop.f32.mrf.mxu0
    %5001 = vdwg.mxu0
    %5002 = vmatpush.bf16.msra.mxu0 %v3279
    %5003 = vmatpush.bf16.msra.mxu0 %v3266
    %5004 = vmatpush.bf16.msra.mxu0 %v3253
    %5005 = vmatpush.bf16.msra.mxu0 %v3240
    %5006 = vmatpush.bf16.msra.mxu0 %v3227
    %5007 = vmatpush.bf16.msra.mxu0 %v3214
    %5008 = vmatpush.bf16.msra.mxu0 %v3201
    %5009 = vmatpush.bf16.msra.mxu0 %v3188
    %5010 = vmatmul.bf16.gmra.mxu0 %v83
    %v5011 = vpop.f32.mrf.mxu0
    %v5012 = vadd.f32 %v4999, %v5011
    %v5013 = vpop.f32.mrf.mxu0
    %5014 = vdwg.mxu0
    %5015 = vmatpush.bf16.msra.mxu0 %v3383
    %5016 = vmatpush.bf16.msra.mxu0 %v3370
    %5017 = vmatpush.bf16.msra.mxu0 %v3357
    %5018 = vmatpush.bf16.msra.mxu0 %v3344
    %5019 = vmatpush.bf16.msra.mxu0 %v3331
    %5020 = vmatpush.bf16.msra.mxu0 %v3318
    %5021 = vmatpush.bf16.msra.mxu0 %v3305
    %5022 = vmatpush.bf16.msra.mxu0 %v3292
    %5023 = vmatmul.bf16.gmra.mxu0 %v84
    %v5024 = vpop.f32.mrf.mxu0
    %v5025 = vadd.f32 %v5012, %v5024
    %v5026 = vpop.f32.mrf.mxu0
    %5027 = vdwg.mxu0
    %5028 = vmatpush.bf16.msra.mxu0 0
    %5029 = vmatpush.bf16.msra.mxu0 0
    %5030 = vmatpush.bf16.msra.mxu0 0
    %5031 = vmatpush.bf16.msra.mxu0 0
    %5032 = vmatpush.bf16.msra.mxu0 0
    %5033 = vmatpush.bf16.msra.mxu0 0
    %5034 = vmatpush.bf16.msra.mxu0 0
    %5035 = vmatpush.bf16.msra.mxu0 %v3396
    %5036 = vmatmul.bf16.gmra.mxu0 %v4038
    %v5037 = vpop.f32.mrf.mxu0
    %v5038 = vadd.f32 %v5025, %v5037
    %v5039 = vpop.f32.mrf.mxu0
    %5040 = vdwg.mxu0
    %5041 = vmatpush.bf16.msra.mxu0 %v2864
    %5042 = vmatpush.bf16.msra.mxu0 %v2851
    %5043 = vmatpush.bf16.msra.mxu0 %v2838
    %5044 = vmatpush.bf16.msra.mxu0 %v2825
    %5045 = vmatpush.bf16.msra.mxu0 %v2812
    %5046 = vmatpush.bf16.msra.mxu0 %v2799
    %5047 = vmatpush.bf16.msra.mxu0 %v2786
    %5048 = vmatpush.bf16.msra.mxu0 %v2773
    %5049 = vmatmul.bf16.gmra.mxu0 %v79
    %v5050 = vpop.f32.mrf.mxu0
    %v5051 = vadd.f32 %v787, %v5050
    %v5052 = vpop.f32.mrf.mxu0
    %5053 = vdwg.mxu0
    %5054 = vmatpush.bf16.msra.mxu0 %v2968
    %5055 = vmatpush.bf16.msra.mxu0 %v2955
    %5056 = vmatpush.bf16.msra.mxu0 %v2942
    %5057 = vmatpush.bf16.msra.mxu0 %v2929
    %5058 = vmatpush.bf16.msra.mxu0 %v2916
    %5059 = vmatpush.bf16.msra.mxu0 %v2903
    %5060 = vmatpush.bf16.msra.mxu0 %v2890
    %5061 = vmatpush.bf16.msra.mxu0 %v2877
    %5062 = vmatmul.bf16.gmra.mxu0 %v80
    %v5063 = vpop.f32.mrf.mxu0
    %v5064 = vadd.f32 %v5051, %v5063
    %v5065 = vpop.f32.mrf.mxu0
    %5066 = vdwg.mxu0
    %5067 = vmatpush.bf16.msra.mxu0 %v3072
    %5068 = vmatpush.bf16.msra.mxu0 %v3059
    %5069 = vmatpush.bf16.msra.mxu0 %v3046
    %5070 = vmatpush.bf16.msra.mxu0 %v3033
    %5071 = vmatpush.bf16.msra.mxu0 %v3020
    %5072 = vmatpush.bf16.msra.mxu0 %v3007
    %5073 = vmatpush.bf16.msra.mxu0 %v2994
    %5074 = vmatpush.bf16.msra.mxu0 %v2981
    %5075 = vmatmul.bf16.gmra.mxu0 %v81
    %v5076 = vpop.f32.mrf.mxu0
    %v5077 = vadd.f32 %v5064, %v5076
    %v5078 = vpop.f32.mrf.mxu0
    %5079 = vdwg.mxu0
    %5080 = vmatpush.bf16.msra.mxu0 %v3176
    %5081 = vmatpush.bf16.msra.mxu0 %v3163
    %5082 = vmatpush.bf16.msra.mxu0 %v3150
    %5083 = vmatpush.bf16.msra.mxu0 %v3137
    %5084 = vmatpush.bf16.msra.mxu0 %v3124
    %5085 = vmatpush.bf16.msra.mxu0 %v3111
    %5086 = vmatpush.bf16.msra.mxu0 %v3098
    %5087 = vmatpush.bf16.msra.mxu0 %v3085
    %5088 = vmatmul.bf16.gmra.mxu0 %v82
    %v5089 = vpop.f32.mrf.mxu0
    %v5090 = vadd.f32 %v5077, %v5089
    %v5091 = vpop.f32.mrf.mxu0
    %5092 = vdwg.mxu0
    %5093 = vmatpush.bf16.msra.mxu0 %v3280
    %5094 = vmatpush.bf16.msra.mxu0 %v3267
    %5095 = vmatpush.bf16.msra.mxu0 %v3254
    %5096 = vmatpush.bf16.msra.mxu0 %v3241
    %5097 = vmatpush.bf16.msra.mxu0 %v3228
    %5098 = vmatpush.bf16.msra.mxu0 %v3215
    %5099 = vmatpush.bf16.msra.mxu0 %v3202
    %5100 = vmatpush.bf16.msra.mxu0 %v3189
    %5101 = vmatmul.bf16.gmra.mxu0 %v83
    %v5102 = vpop.f32.mrf.mxu0
    %v5103 = vadd.f32 %v5090, %v5102
    %v5104 = vpop.f32.mrf.mxu0
    %5105 = vdwg.mxu0
    %5106 = vmatpush.bf16.msra.mxu0 %v3384
    %5107 = vmatpush.bf16.msra.mxu0 %v3371
    %5108 = vmatpush.bf16.msra.mxu0 %v3358
    %5109 = vmatpush.bf16.msra.mxu0 %v3345
    %5110 = vmatpush.bf16.msra.mxu0 %v3332
    %5111 = vmatpush.bf16.msra.mxu0 %v3319
    %5112 = vmatpush.bf16.msra.mxu0 %v3306
    %5113 = vmatpush.bf16.msra.mxu0 %v3293
    %5114 = vmatmul.bf16.gmra.mxu0 %v84
    %v5115 = vpop.f32.mrf.mxu0
    %v5116 = vadd.f32 %v5103, %v5115
    %v5117 = vpop.f32.mrf.mxu0
    %5118 = vdwg.mxu0
    %5119 = vmatpush.bf16.msra.mxu0 0
    %5120 = vmatpush.bf16.msra.mxu0 0
    %5121 = vmatpush.bf16.msra.mxu0 0
    %5122 = vmatpush.bf16.msra.mxu0 0
    %5123 = vmatpush.bf16.msra.mxu0 0
    %5124 = vmatpush.bf16.msra.mxu0 0
    %5125 = vmatpush.bf16.msra.mxu0 0
    %5126 = vmatpush.bf16.msra.mxu0 %v3397
    %5127 = vmatmul.bf16.gmra.mxu0 %v4038
    %v5128 = vpop.f32.mrf.mxu0
    %v5129 = vadd.f32 %v5116, %v5128
    %v5130 = vpop.f32.mrf.mxu0
    %5131 = vdwg.mxu0
    %5132 = vmatpush.bf16.msra.mxu0 %v2865
    %5133 = vmatpush.bf16.msra.mxu0 %v2852
    %5134 = vmatpush.bf16.msra.mxu0 %v2839
    %5135 = vmatpush.bf16.msra.mxu0 %v2826
    %5136 = vmatpush.bf16.msra.mxu0 %v2813
    %5137 = vmatpush.bf16.msra.mxu0 %v2800
    %5138 = vmatpush.bf16.msra.mxu0 %v2787
    %5139 = vmatpush.bf16.msra.mxu0 %v2774
    %5140 = vmatmul.bf16.gmra.mxu0 %v79
    %v5141 = vpop.f32.mrf.mxu0
    %v5142 = vadd.f32 %v788, %v5141
    %v5143 = vpop.f32.mrf.mxu0
    %5144 = vdwg.mxu0
    %5145 = vmatpush.bf16.msra.mxu0 %v2969
    %5146 = vmatpush.bf16.msra.mxu0 %v2956
    %5147 = vmatpush.bf16.msra.mxu0 %v2943
    %5148 = vmatpush.bf16.msra.mxu0 %v2930
    %5149 = vmatpush.bf16.msra.mxu0 %v2917
    %5150 = vmatpush.bf16.msra.mxu0 %v2904
    %5151 = vmatpush.bf16.msra.mxu0 %v2891
    %5152 = vmatpush.bf16.msra.mxu0 %v2878
    %5153 = vmatmul.bf16.gmra.mxu0 %v80
    %v5154 = vpop.f32.mrf.mxu0
    %v5155 = vadd.f32 %v5142, %v5154
    %v5156 = vpop.f32.mrf.mxu0
    %5157 = vdwg.mxu0
    %5158 = vmatpush.bf16.msra.mxu0 %v3073
    %5159 = vmatpush.bf16.msra.mxu0 %v3060
    %5160 = vmatpush.bf16.msra.mxu0 %v3047
    %5161 = vmatpush.bf16.msra.mxu0 %v3034
    %5162 = vmatpush.bf16.msra.mxu0 %v3021
    %5163 = vmatpush.bf16.msra.mxu0 %v3008
    %5164 = vmatpush.bf16.msra.mxu0 %v2995
    %5165 = vmatpush.bf16.msra.mxu0 %v2982
    %5166 = vmatmul.bf16.gmra.mxu0 %v81
    %v5167 = vpop.f32.mrf.mxu0
    %v5168 = vadd.f32 %v5155, %v5167
    %v5169 = vpop.f32.mrf.mxu0
    %5170 = vdwg.mxu0
    %5171 = vmatpush.bf16.msra.mxu0 %v3177
    %5172 = vmatpush.bf16.msra.mxu0 %v3164
    %5173 = vmatpush.bf16.msra.mxu0 %v3151
    %5174 = vmatpush.bf16.msra.mxu0 %v3138
    %5175 = vmatpush.bf16.msra.mxu0 %v3125
    %5176 = vmatpush.bf16.msra.mxu0 %v3112
    %5177 = vmatpush.bf16.msra.mxu0 %v3099
    %5178 = vmatpush.bf16.msra.mxu0 %v3086
    %5179 = vmatmul.bf16.gmra.mxu0 %v82
    %v5180 = vpop.f32.mrf.mxu0
    %v5181 = vadd.f32 %v5168, %v5180
    %v5182 = vpop.f32.mrf.mxu0
    %5183 = vdwg.mxu0
    %5184 = vmatpush.bf16.msra.mxu0 %v3281
    %5185 = vmatpush.bf16.msra.mxu0 %v3268
    %5186 = vmatpush.bf16.msra.mxu0 %v3255
    %5187 = vmatpush.bf16.msra.mxu0 %v3242
    %5188 = vmatpush.bf16.msra.mxu0 %v3229
    %5189 = vmatpush.bf16.msra.mxu0 %v3216
    %5190 = vmatpush.bf16.msra.mxu0 %v3203
    %5191 = vmatpush.bf16.msra.mxu0 %v3190
    %5192 = vmatmul.bf16.gmra.mxu0 %v83
    %v5193 = vpop.f32.mrf.mxu0
    %v5194 = vadd.f32 %v5181, %v5193
    %v5195 = vpop.f32.mrf.mxu0
    %5196 = vdwg.mxu0
    %5197 = vmatpush.bf16.msra.mxu0 %v3385
    %5198 = vmatpush.bf16.msra.mxu0 %v3372
    %5199 = vmatpush.bf16.msra.mxu0 %v3359
    %5200 = vmatpush.bf16.msra.mxu0 %v3346
    %5201 = vmatpush.bf16.msra.mxu0 %v3333
    %5202 = vmatpush.bf16.msra.mxu0 %v3320
    %5203 = vmatpush.bf16.msra.mxu0 %v3307
    %5204 = vmatpush.bf16.msra.mxu0 %v3294
    %5205 = vmatmul.bf16.gmra.mxu0 %v84
    %v5206 = vpop.f32.mrf.mxu0
    %v5207 = vadd.f32 %v5194, %v5206
    %v5208 = vpop.f32.mrf.mxu0
    %5209 = vdwg.mxu0
    %5210 = vmatpush.bf16.msra.mxu0 0
    %5211 = vmatpush.bf16.msra.mxu0 0
    %5212 = vmatpush.bf16.msra.mxu0 0
    %5213 = vmatpush.bf16.msra.mxu0 0
    %5214 = vmatpush.bf16.msra.mxu0 0
    %5215 = vmatpush.bf16.msra.mxu0 0
    %5216 = vmatpush.bf16.msra.mxu0 0
    %5217 = vmatpush.bf16.msra.mxu0 %v3398
    %5218 = vmatmul.bf16.gmra.mxu0 %v4038
    %v5219 = vpop.f32.mrf.mxu0
    %v5220 = vadd.f32 %v5207, %v5219
    %v5221 = vpop.f32.mrf.mxu0
    %5222 = vdwg.mxu0
    %v5223 = vmax.f32 %v4128, 0.0
    %v5224 = vmax.f32 %v4219, 0.0
    %v5225 = vmax.f32 %v4310, 0.0
    %v5226 = vmax.f32 %v4401, 0.0
    %v5227 = vmax.f32 %v4492, 0.0
    %v5228 = vmax.f32 %v4583, 0.0
    %v5229 = vmax.f32 %v4674, 0.0
    %v5230 = vmax.f32 %v4765, 0.0
    %v5231 = vmax.f32 %v4856, 0.0
    %v5232 = vmax.f32 %v4947, 0.0
    %v5233 = vmax.f32 %v5038, 0.0
    %v5234 = vmax.f32 %v5129, 0.0
    %v5235 = vmax.f32 %v5220, 0.0
    %v5236 = vpack.c.bf16 %v5223, %v5223
    %v5237 = vpack.c.bf16 %v5224, %v5224
    %v5238 = vpack.c.bf16 %v5225, %v5225
    %v5239 = vpack.c.bf16 %v5226, %v5226
    %v5240 = vpack.c.bf16 %v5227, %v5227
    %v5241 = vpack.c.bf16 %v5228, %v5228
    %v5242 = vpack.c.bf16 %v5229, %v5229
    %v5243 = vpack.c.bf16 %v5230, %v5230
    %v5244 = vpack.c.bf16 %v5231, %v5231
    %v5245 = vpack.c.bf16 %v5232, %v5232
    %v5246 = vpack.c.bf16 %v5233, %v5233
    %v5247 = vpack.c.bf16 %v5234, %v5234
    %v5248 = vpack.c.bf16 %v5235, %v5235
    %v5249 = vld [vmem:[%s3] sm:$0xff]
    %v5250 = vld [vmem:[%s3 + $0x8] sm:$0xff]
    %v5251 = vld [vmem:[%s3 + $0x10] sm:$0xff]
    %v5252 = vld [vmem:[%s3 + $0x18] sm:$0xf]
    %v5253 = vld [vmem:[%s3 + $0x1c] sm:$0xff]
    %v5254 = vld [vmem:[%s3 + $0x24] sm:$0xff]
    %v5255 = vld [vmem:[%s3 + $0x2c] sm:$0xff]
    %v5256 = vld [vmem:[%s3 + $0x34] sm:$0xf]
    %v5257 = vld [vmem:[%s3 + $0x38] sm:$0xff]
    %v5258 = vld [vmem:[%s3 + $0x40] sm:$0xff]
    %v5259 = vld [vmem:[%s3 + $0x48] sm:$0xff]
    %v5260 = vld [vmem:[%s3 + $0x50] sm:$0xf]
    %v5261 = vld [vmem:[%s3 + $0x54] sm:$0xff]
    %v5262 = vld [vmem:[%s3 + $0x5c] sm:$0xff]
    %v5263 = vld [vmem:[%s3 + $0x64] sm:$0xff]
    %v5264 = vld [vmem:[%s3 + $0x6c] sm:$0xf]
    %v5265 = vld [vmem:[%s3 + $0x70] sm:$0xff]
    %v5266 = vld [vmem:[%s3 + $0x78] sm:$0xff]
    %v5267 = vld [vmem:[%s3 + $0x80] sm:$0xff]
    %v5268 = vld [vmem:[%s3 + $0x88] sm:$0xf]
    %v5269 = vld [vmem:[%s3 + $0x8c] sm:$0xff]
    %v5270 = vld [vmem:[%s3 + $0x94] sm:$0xff]
    %v5271 = vld [vmem:[%s3 + $0x9c] sm:$0xff]
    %v5272 = vld [vmem:[%s3 + $0xa4] sm:$0xf]
    %v5273 = vld [vmem:[%s3 + $0xa8] sm:$0xff]
    %v5274 = vld [vmem:[%s3 + $0xb0] sm:$0xff]
    %v5275 = vld [vmem:[%s3 + $0xb8] sm:$0xff]
    %v5276 = vld [vmem:[%s3 + $0xc0] sm:$0xf]
    %v5277 = vld [vmem:[%s3 + $0xc4] sm:$0xff]
    %v5278 = vld [vmem:[%s3 + $0xcc] sm:$0xff]
    %v5279 = vld [vmem:[%s3 + $0xd4] sm:$0xff]
    %v5280 = vld [vmem:[%s3 + $0xdc] sm:$0xf]
    %v5281 = vld [vmem:[%s3 + $0xe0] sm:$0xff]
    %v5282 = vld [vmem:[%s3 + $0xe8] sm:$0xff]
    %v5283 = vld [vmem:[%s3 + $0xf0] sm:$0xff]
    %v5284 = vld [vmem:[%s3 + $0xf8] sm:$0xf]
    %v5285 = vld [vmem:[%s3 + $0xfc] sm:$0xff]
    %v5286 = vld [vmem:[%s3 + $0x104] sm:$0xff]
    %v5287 = vld [vmem:[%s3 + $0x10c] sm:$0xff]
    %v5288 = vld [vmem:[%s3 + $0x114] sm:$0xf]
    %v5289 = vld [vmem:[%s3 + $0x118] sm:$0xff]
    %v5290 = vld [vmem:[%s3 + $0x120] sm:$0xff]
    %v5291 = vld [vmem:[%s3 + $0x128] sm:$0xff]
    %v5292 = vld [vmem:[%s3 + $0x130] sm:$0xf]
    %v5293 = vld [vmem:[%s3 + $0x134] sm:$0xff]
    %v5294 = vld [vmem:[%s3 + $0x13c] sm:$0xff]
    %v5295 = vld [vmem:[%s3 + $0x144] sm:$0xff]
    %v5296 = vld [vmem:[%s3 + $0x14c] sm:$0xf]
    %v5297 = vld [vmem:[%s3 + $0x150] sm:$0xff]
    %v5298 = vld [vmem:[%s3 + $0x158] sm:$0xff]
    %v5299 = vld [vmem:[%s3 + $0x160] sm:$0xff]
    %v5300 = vld [vmem:[%s3 + $0x168] sm:$0xf]
    %v5301 = vld [vmem:[%s3 + $0x16c] sm:$0xff]
    %v5302 = vld [vmem:[%s3 + $0x174] sm:$0xff]
    %v5303 = vld [vmem:[%s3 + $0x17c] sm:$0xff]
    %v5304 = vld [vmem:[%s3 + $0x184] sm:$0xf]
    %v5305 = vld [vmem:[%s3 + $0x188] sm:$0xff]
    %v5306 = vld [vmem:[%s3 + $0x190] sm:$0xff]
    %v5307 = vld [vmem:[%s3 + $0x198] sm:$0xff]
    %v5308 = vld [vmem:[%s3 + $0x1a0] sm:$0xf]
    %v5309 = vld [vmem:[%s3 + $0x1a4] sm:$0xff]
    %v5310 = vld [vmem:[%s3 + $0x1ac] sm:$0xff]
    %v5311 = vld [vmem:[%s3 + $0x1b4] sm:$0xff]
    %v5312 = vld [vmem:[%s3 + $0x1bc] sm:$0xf]
    %v5313 = vld [vmem:[%s3 + $0x1c0] sm:$0xff]
    %v5314 = vld [vmem:[%s3 + $0x1c8] sm:$0xff]
    %v5315 = vld [vmem:[%s3 + $0x1d0] sm:$0xff]
    %v5316 = vld [vmem:[%s3 + $0x1d8] sm:$0xf]
    %v5317 = vld [vmem:[%s3 + $0x1dc] sm:$0xff]
    %v5318 = vld [vmem:[%s3 + $0x1e4] sm:$0xff]
    %v5319 = vld [vmem:[%s3 + $0x1ec] sm:$0xff]
    %v5320 = vld [vmem:[%s3 + $0x1f4] sm:$0xf]
    %v5321 = vld [vmem:[%s3 + $0x1f8] sm:$0xff]
    %v5322 = vld [vmem:[%s3 + $0x200] sm:$0xff]
    %v5323 = vld [vmem:[%s3 + $0x208] sm:$0xff]
    %v5324 = vld [vmem:[%s3 + $0x210] sm:$0xf]
    %v5325 = vld [vmem:[%s3 + $0x214] sm:$0xff]
    %v5326 = vld [vmem:[%s3 + $0x21c] sm:$0xff]
    %v5327 = vld [vmem:[%s3 + $0x224] sm:$0xff]
    %v5328 = vld [vmem:[%s3 + $0x22c] sm:$0xf]
    %v5329 = vld [vmem:[%s3 + $0x230] sm:$0xff]
    %v5330 = vld [vmem:[%s3 + $0x238] sm:$0xff]
    %v5331 = vld [vmem:[%s3 + $0x240] sm:$0xff]
    %v5332 = vld [vmem:[%s3 + $0x248] sm:$0xf]
    %v5333 = vld [vmem:[%s3 + $0x24c] sm:$0xff]
    %v5334 = vld [vmem:[%s3 + $0x254] sm:$0xff]
    %v5335 = vld [vmem:[%s3 + $0x25c] sm:$0xff]
    %v5336 = vld [vmem:[%s3 + $0x264] sm:$0xf]
    %v5337 = vld [vmem:[%s3 + $0x268] sm:$0xff]
    %v5338 = vld [vmem:[%s3 + $0x270] sm:$0xff]
    %v5339 = vld [vmem:[%s3 + $0x278] sm:$0xff]
    %v5340 = vld [vmem:[%s3 + $0x280] sm:$0xf]
    %v5341 = vld [vmem:[%s3 + $0x284] sm:$0xff]
    %v5342 = vld [vmem:[%s3 + $0x28c] sm:$0xff]
    %v5343 = vld [vmem:[%s3 + $0x294] sm:$0xff]
    %v5344 = vld [vmem:[%s3 + $0x29c] sm:$0xf]
    %v5345 = vld [vmem:[%s3 + $0x2a0] sm:$0xff]
    %v5346 = vld [vmem:[%s3 + $0x2a8] sm:$0xff]
    %v5347 = vld [vmem:[%s3 + $0x2b0] sm:$0xff]
    %v5348 = vld [vmem:[%s3 + $0x2b8] sm:$0xf]
    %v5349 = vld [vmem:[%s3 + $0x2bc] sm:$0xff]
    %v5350 = vld [vmem:[%s3 + $0x2c4] sm:$0xff]
    %v5351 = vld [vmem:[%s3 + $0x2cc] sm:$0xff]
    %v5352 = vld [vmem:[%s3 + $0x2d4] sm:$0xf]
    %v5353 = vld [vmem:[%s3 + $0x2d8] sm:$0xff]
    %v5354 = vld [vmem:[%s3 + $0x2e0] sm:$0xff]
    %v5355 = vld [vmem:[%s3 + $0x2e8] sm:$0xff]
    %v5356 = vld [vmem:[%s3 + $0x2f0] sm:$0xf]
    %v5357 = vld [vmem:[%s3 + $0x2f4] sm:$0xff]
    %v5358 = vld [vmem:[%s3 + $0x2fc] sm:$0xff]
    %v5359 = vld [vmem:[%s3 + $0x304] sm:$0xff]
    %v5360 = vld [vmem:[%s3 + $0x30c] sm:$0xf]
    %v5361 = vld [vmem:[%s3 + $0x310] sm:$0xff]
    %v5362 = vld [vmem:[%s3 + $0x318] sm:$0xff]
    %v5363 = vld [vmem:[%s3 + $0x320] sm:$0xff]
    %v5364 = vld [vmem:[%s3 + $0x328] sm:$0xf]
    %v5365 = vld [vmem:[%s3 + $0x32c] sm:$0xff]
    %v5366 = vld [vmem:[%s3 + $0x334] sm:$0xff]
    %v5367 = vld [vmem:[%s3 + $0x33c] sm:$0xff]
    %v5368 = vld [vmem:[%s3 + $0x344] sm:$0xf]
    %v5369 = vld [vmem:[%s3 + $0x348] sm:$0xff]
    %v5370 = vld [vmem:[%s3 + $0x350] sm:$0xff]
    %v5371 = vld [vmem:[%s3 + $0x358] sm:$0xff]
    %v5372 = vld [vmem:[%s3 + $0x360] sm:$0xf]
    %v5373 = vld [vmem:[%s3 + $0x364] sm:$0xff]
    %v5374 = vld [vmem:[%s3 + $0x36c] sm:$0xff]
    %v5375 = vld [vmem:[%s3 + $0x374] sm:$0xff]
    %v5376 = vld [vmem:[%s3 + $0x37c] sm:$0xf]
    %v5377 = vld [vmem:[%s3 + $0x380] sm:$0xff]
    %v5378 = vld [vmem:[%s3 + $0x388] sm:$0xff]
    %v5379 = vld [vmem:[%s3 + $0x390] sm:$0xff]
    %v5380 = vld [vmem:[%s3 + $0x398] sm:$0xf]
    %v5381 = vld [vmem:[%s3 + $0x39c] sm:$0xff]
    %v5382 = vld [vmem:[%s3 + $0x3a4] sm:$0xff]
    %v5383 = vld [vmem:[%s3 + $0x3ac] sm:$0xff]
    %v5384 = vld [vmem:[%s3 + $0x3b4] sm:$0xf]
    %v5385 = vld [vmem:[%s3 + $0x3b8] sm:$0xff]
    %v5386 = vld [vmem:[%s3 + $0x3c0] sm:$0xff]
    %v5387 = vld [vmem:[%s3 + $0x3c8] sm:$0xff]
    %v5388 = vld [vmem:[%s3 + $0x3d0] sm:$0xf]
    %v5389 = vld [vmem:[%s3 + $0x3d4] sm:$0xff]
    %v5390 = vld [vmem:[%s3 + $0x3dc] sm:$0xff]
    %v5391 = vld [vmem:[%s3 + $0x3e4] sm:$0xff]
    %v5392 = vld [vmem:[%s3 + $0x3ec] sm:$0xf]
    %v5393 = vld [vmem:[%s3 + $0x3f0] sm:$0xff]
    %v5394 = vld [vmem:[%s3 + $0x3f8] sm:$0xff]
    %v5395 = vld [vmem:[%s3 + $0x400] sm:$0xff]
    %v5396 = vld [vmem:[%s3 + $0x408] sm:$0xf]
    %v5397 = vld [vmem:[%s3 + $0x40c] sm:$0xff]
    %v5398 = vld [vmem:[%s3 + $0x414] sm:$0xff]
    %v5399 = vld [vmem:[%s3 + $0x41c] sm:$0xff]
    %v5400 = vld [vmem:[%s3 + $0x424] sm:$0xf]
    %v5401 = vld [vmem:[%s3 + $0x428] sm:$0xff]
    %v5402 = vld [vmem:[%s3 + $0x430] sm:$0xff]
    %v5403 = vld [vmem:[%s3 + $0x438] sm:$0xff]
    %v5404 = vld [vmem:[%s3 + $0x440] sm:$0xf]
    %v5405 = vld [vmem:[%s3 + $0x444] sm:$0xff]
    %v5406 = vld [vmem:[%s3 + $0x44c] sm:$0xff]
    %v5407 = vld [vmem:[%s3 + $0x454] sm:$0xff]
    %v5408 = vld [vmem:[%s3 + $0x45c] sm:$0xf]
    %v5409 = vld [vmem:[%s3 + $0x460] sm:$0xff]
    %v5410 = vld [vmem:[%s3 + $0x468] sm:$0xff]
    %v5411 = vld [vmem:[%s3 + $0x470] sm:$0xff]
    %v5412 = vld [vmem:[%s3 + $0x478] sm:$0xf]
    %v5413 = vld [vmem:[%s3 + $0x47c] sm:$0xff]
    %v5414 = vld [vmem:[%s3 + $0x484] sm:$0xff]
    %v5415 = vld [vmem:[%s3 + $0x48c] sm:$0xff]
    %v5416 = vld [vmem:[%s3 + $0x494] sm:$0xf]
    %v5417 = vld [vmem:[%s3 + $0x498] sm:$0xff]
    %v5418 = vld [vmem:[%s3 + $0x4a0] sm:$0xff]
    %v5419 = vld [vmem:[%s3 + $0x4a8] sm:$0xff]
    %v5420 = vld [vmem:[%s3 + $0x4b0] sm:$0xf]
    %v5421 = vld [vmem:[%s3 + $0x4b4] sm:$0xff]
    %v5422 = vld [vmem:[%s3 + $0x4bc] sm:$0xff]
    %v5423 = vld [vmem:[%s3 + $0x4c4] sm:$0xff]
    %v5424 = vld [vmem:[%s3 + $0x4cc] sm:$0xf]
    %v5425 = vld [vmem:[%s3 + $0x4d0] sm:$0xff]
    %v5426 = vld [vmem:[%s3 + $0x4d8] sm:$0xff]
    %v5427 = vld [vmem:[%s3 + $0x4e0] sm:$0xff]
    %v5428 = vld [vmem:[%s3 + $0x4e8] sm:$0xf]
    %v5429 = vld [vmem:[%s3 + $0x4ec] sm:$0xff]
    %v5430 = vld [vmem:[%s3 + $0x4f4] sm:$0xff]
    %v5431 = vld [vmem:[%s3 + $0x4fc] sm:$0xff]
    %v5432 = vld [vmem:[%s3 + $0x504] sm:$0xf]
    %v5433 = vld [vmem:[%s3 + $0x508] sm:$0xff]
    %v5434 = vld [vmem:[%s3 + $0x510] sm:$0xff]
    %v5435 = vld [vmem:[%s3 + $0x518] sm:$0xff]
    %v5436 = vld [vmem:[%s3 + $0x520] sm:$0xf]
    %v5437 = vld [vmem:[%s3 + $0x524] sm:$0xff]
    %v5438 = vld [vmem:[%s3 + $0x52c] sm:$0xff]
    %v5439 = vld [vmem:[%s3 + $0x534] sm:$0xff]
    %v5440 = vld [vmem:[%s3 + $0x53c] sm:$0xf]
    %v5441 = vld [vmem:[%s3 + $0x540] sm:$0xff]
    %v5442 = vld [vmem:[%s3 + $0x548] sm:$0xff]
    %v5443 = vld [vmem:[%s3 + $0x550] sm:$0xff]
    %v5444 = vld [vmem:[%s3 + $0x558] sm:$0xf]
    %v5445 = vld [vmem:[%s3 + $0x55c] sm:$0xff]
    %v5446 = vld [vmem:[%s3 + $0x564] sm:$0xff]
    %v5447 = vld [vmem:[%s3 + $0x56c] sm:$0xff]
    %v5448 = vld [vmem:[%s3 + $0x574] sm:$0xf]
    %v5449 = vld [vmem:[%s3 + $0x578] sm:$0xff]
    %v5450 = vld [vmem:[%s3 + $0x580] sm:$0xff]
    %v5451 = vld [vmem:[%s3 + $0x588] sm:$0xff]
    %v5452 = vld [vmem:[%s3 + $0x590] sm:$0xf]
    %v5453 = vld [vmem:[%s3 + $0x594] sm:$0xff]
    %v5454 = vld [vmem:[%s3 + $0x59c] sm:$0xff]
    %v5455 = vld [vmem:[%s3 + $0x5a4] sm:$0xff]
    %v5456 = vld [vmem:[%s3 + $0x5ac] sm:$0xf]
    %v5457 = vld [vmem:[%s3 + $0x5b0] sm:$0xff]
    %v5458 = vld [vmem:[%s3 + $0x5b8] sm:$0xff]
    %v5459 = vld [vmem:[%s3 + $0x5c0] sm:$0xff]
    %v5460 = vld [vmem:[%s3 + $0x5c8] sm:$0xf]
    %v5461 = vld [vmem:[%s3 + $0x5cc] sm:$0xff]
    %v5462 = vld [vmem:[%s3 + $0x5d4] sm:$0xff]
    %v5463 = vld [vmem:[%s3 + $0x5dc] sm:$0xff]
    %v5464 = vld [vmem:[%s3 + $0x5e4] sm:$0xf]
    %v5465 = vld [vmem:[%s3 + $0x5e8] sm:$0xff]
    %v5466 = vld [vmem:[%s3 + $0x5f0] sm:$0xff]
    %v5467 = vld [vmem:[%s3 + $0x5f8] sm:$0xff]
    %v5468 = vld [vmem:[%s3 + $0x600] sm:$0xf]
    %v5469 = vld [vmem:[%s3 + $0x604] sm:$0xff]
    %v5470 = vld [vmem:[%s3 + $0x60c] sm:$0xff]
    %v5471 = vld [vmem:[%s3 + $0x614] sm:$0xff]
    %v5472 = vld [vmem:[%s3 + $0x61c] sm:$0xf]
    %v5473 = vld [vmem:[%s3 + $0x620] sm:$0xff]
    %v5474 = vld [vmem:[%s3 + $0x628] sm:$0xff]
    %v5475 = vld [vmem:[%s3 + $0x630] sm:$0xff]
    %v5476 = vld [vmem:[%s3 + $0x638] sm:$0xf]
    %v5477 = vld [vmem:[%s3 + $0x63c] sm:$0xff]
    %v5478 = vld [vmem:[%s3 + $0x644] sm:$0xff]
    %v5479 = vld [vmem:[%s3 + $0x64c] sm:$0xff]
    %v5480 = vld [vmem:[%s3 + $0x654] sm:$0xf]
    %v5481 = vld [vmem:[%s3 + $0x658] sm:$0xff]
    %v5482 = vld [vmem:[%s3 + $0x660] sm:$0xff]
    %v5483 = vld [vmem:[%s3 + $0x668] sm:$0xff]
    %v5484 = vld [vmem:[%s3 + $0x670] sm:$0xf]
    %v5485 = vld [vmem:[%s3 + $0x674] sm:$0xff]
    %v5486 = vld [vmem:[%s3 + $0x67c] sm:$0xff]
    %v5487 = vld [vmem:[%s3 + $0x684] sm:$0xff]
    %v5488 = vld [vmem:[%s3 + $0x68c] sm:$0xf]
    %v5489 = vld [vmem:[%s3 + $0x690] sm:$0xff]
    %v5490 = vld [vmem:[%s3 + $0x698] sm:$0xff]
    %v5491 = vld [vmem:[%s3 + $0x6a0] sm:$0xff]
    %v5492 = vld [vmem:[%s3 + $0x6a8] sm:$0xf]
    %v5493 = vld [vmem:[%s3 + $0x6ac] sm:$0xff]
    %v5494 = vld [vmem:[%s3 + $0x6b4] sm:$0xff]
    %v5495 = vld [vmem:[%s3 + $0x6bc] sm:$0xff]
    %v5496 = vld [vmem:[%s3 + $0x6c4] sm:$0xf]
    %v5497 = vld [vmem:[%s3 + $0x6c8] sm:$0xff]
    %v5498 = vld [vmem:[%s3 + $0x6d0] sm:$0xff]
    %v5499 = vld [vmem:[%s3 + $0x6d8] sm:$0xff]
    %v5500 = vld [vmem:[%s3 + $0x6e0] sm:$0xf]
    %v5501 = vld [vmem:[%s3 + $0x6e4] sm:$0xff]
    %v5502 = vld [vmem:[%s3 + $0x6ec] sm:$0xff]
    %v5503 = vld [vmem:[%s3 + $0x6f4] sm:$0xff]
    %v5504 = vld [vmem:[%s3 + $0x6fc] sm:$0xf]
    %v5505 = vld [vmem:[%s3 + $0x700] sm:$0xff]
    %v5506 = vld [vmem:[%s3 + $0x708] sm:$0xff]
    %v5507 = vld [vmem:[%s3 + $0x710] sm:$0xff]
    %v5508 = vld [vmem:[%s3 + $0x718] sm:$0xf]
    %v5509 = vld [vmem:[%s3 + $0x71c] sm:$0xff]
    %v5510 = vld [vmem:[%s3 + $0x724] sm:$0xff]
    %v5511 = vld [vmem:[%s3 + $0x72c] sm:$0xff]
    %v5512 = vld [vmem:[%s3 + $0x734] sm:$0xf]
    %v5513 = vld [vmem:[%s3 + $0x738] sm:$0xff]
    %v5514 = vld [vmem:[%s3 + $0x740] sm:$0xff]
    %v5515 = vld [vmem:[%s3 + $0x748] sm:$0xff]
    %v5516 = vld [vmem:[%s3 + $0x750] sm:$0xf]
    %v5517 = vld [vmem:[%s3 + $0x754] sm:$0xff]
    %v5518 = vld [vmem:[%s3 + $0x75c] sm:$0xff]
    %v5519 = vld [vmem:[%s3 + $0x764] sm:$0xff]
    %v5520 = vld [vmem:[%s3 + $0x76c] sm:$0xf]
    %v5521 = vld [vmem:[%s3 + $0x770] sm:$0xff]
    %v5522 = vld [vmem:[%s3 + $0x778] sm:$0xff]
    %v5523 = vld [vmem:[%s3 + $0x780] sm:$0xff]
    %v5524 = vld [vmem:[%s3 + $0x788] sm:$0xf]
    %v5525 = vld [vmem:[%s3 + $0x78c] sm:$0xff]
    %v5526 = vld [vmem:[%s3 + $0x794] sm:$0xff]
    %v5527 = vld [vmem:[%s3 + $0x79c] sm:$0xff]
    %v5528 = vld [vmem:[%s3 + $0x7a4] sm:$0xf]
    %v5529 = vld [vmem:[%s3 + $0x7a8] sm:$0xff]
    %v5530 = vld [vmem:[%s3 + $0x7b0] sm:$0xff]
    %v5531 = vld [vmem:[%s3 + $0x7b8] sm:$0xff]
    %v5532 = vld [vmem:[%s3 + $0x7c0] sm:$0xf]
    %v5533 = vld [vmem:[%s3 + $0x7c4] sm:$0xff]
    %v5534 = vld [vmem:[%s3 + $0x7cc] sm:$0xff]
    %v5535 = vld [vmem:[%s3 + $0x7d4] sm:$0xff]
    %v5536 = vld [vmem:[%s3 + $0x7dc] sm:$0xf]
    %v5537 = vld [vmem:[%s3 + $0x7e0] sm:$0xff]
    %v5538 = vld [vmem:[%s3 + $0x7e8] sm:$0xff]
    %v5539 = vld [vmem:[%s3 + $0x7f0] sm:$0xff]
    %v5540 = vld [vmem:[%s3 + $0x7f8] sm:$0xf]
    %v5541 = vld [vmem:[%s3 + $0x7fc] sm:$0xff]
    %v5542 = vld [vmem:[%s3 + $0x804] sm:$0xff]
    %v5543 = vld [vmem:[%s3 + $0x80c] sm:$0xff]
    %v5544 = vld [vmem:[%s3 + $0x814] sm:$0xf]
    %v5545 = vld [vmem:[%s3 + $0x818] sm:$0xff]
    %v5546 = vld [vmem:[%s3 + $0x820] sm:$0xff]
    %v5547 = vld [vmem:[%s3 + $0x828] sm:$0xff]
    %v5548 = vld [vmem:[%s3 + $0x830] sm:$0xf]
    %v5549 = vld [vmem:[%s3 + $0x834] sm:$0xff]
    %v5550 = vld [vmem:[%s3 + $0x83c] sm:$0xff]
    %v5551 = vld [vmem:[%s3 + $0x844] sm:$0xff]
    %v5552 = vld [vmem:[%s3 + $0x84c] sm:$0xf]
    %v5553 = vld [vmem:[%s3 + $0x850] sm:$0xff]
    %v5554 = vld [vmem:[%s3 + $0x858] sm:$0xff]
    %v5555 = vld [vmem:[%s3 + $0x860] sm:$0xff]
    %v5556 = vld [vmem:[%s3 + $0x868] sm:$0xf]
    %v5557 = vld [vmem:[%s3 + $0x86c] sm:$0xff]
    %v5558 = vld [vmem:[%s3 + $0x874] sm:$0xff]
    %v5559 = vld [vmem:[%s3 + $0x87c] sm:$0xff]
    %v5560 = vld [vmem:[%s3 + $0x884] sm:$0xf]
    %v5561 = vld [vmem:[%s3 + $0x888] sm:$0xff]
    %v5562 = vld [vmem:[%s3 + $0x890] sm:$0xff]
    %v5563 = vld [vmem:[%s3 + $0x898] sm:$0xff]
    %v5564 = vld [vmem:[%s3 + $0x8a0] sm:$0xf]
    %v5565 = vld [vmem:[%s3 + $0x8a4] sm:$0xff]
    %v5566 = vld [vmem:[%s3 + $0x8ac] sm:$0xff]
    %v5567 = vld [vmem:[%s3 + $0x8b4] sm:$0xff]
    %v5568 = vld [vmem:[%s3 + $0x8bc] sm:$0xf]
    %v5569 = vld [vmem:[%s3 + $0x8c0] sm:$0xff]
    %v5570 = vld [vmem:[%s3 + $0x8c8] sm:$0xff]
    %v5571 = vld [vmem:[%s3 + $0x8d0] sm:$0xff]
    %v5572 = vld [vmem:[%s3 + $0x8d8] sm:$0xf]
    %v5573 = vld [vmem:[%s3 + $0x8dc] sm:$0xff]
    %v5574 = vld [vmem:[%s3 + $0x8e4] sm:$0xff]
    %v5575 = vld [vmem:[%s3 + $0x8ec] sm:$0xff]
    %v5576 = vld [vmem:[%s3 + $0x8f4] sm:$0xf]
    %v5577 = vld [vmem:[%s3 + $0x8f8] sm:$0xff]
    %v5578 = vld [vmem:[%s3 + $0x900] sm:$0xff]
    %v5579 = vld [vmem:[%s3 + $0x908] sm:$0xff]
    %v5580 = vld [vmem:[%s3 + $0x910] sm:$0xf]
    %v5581 = vld [vmem:[%s3 + $0x914] sm:$0xff]
    %v5582 = vld [vmem:[%s3 + $0x91c] sm:$0xff]
    %v5583 = vld [vmem:[%s3 + $0x924] sm:$0xff]
    %v5584 = vld [vmem:[%s3 + $0x92c] sm:$0xf]
    %v5585 = vld [vmem:[%s3 + $0x930] sm:$0xff]
    %v5586 = vld [vmem:[%s3 + $0x938] sm:$0xff]
    %v5587 = vld [vmem:[%s3 + $0x940] sm:$0xff]
    %v5588 = vld [vmem:[%s3 + $0x948] sm:$0xf]
    %v5589 = vld [vmem:[%s3 + $0x94c] sm:$0xff]
    %v5590 = vld [vmem:[%s3 + $0x954] sm:$0xff]
    %v5591 = vld [vmem:[%s3 + $0x95c] sm:$0xff]
    %v5592 = vld [vmem:[%s3 + $0x964] sm:$0xf]
    %v5593 = vld [vmem:[%s3 + $0x968] sm:$0xff]
    %v5594 = vld [vmem:[%s3 + $0x970] sm:$0xff]
    %v5595 = vld [vmem:[%s3 + $0x978] sm:$0xff]
    %v5596 = vld [vmem:[%s3 + $0x980] sm:$0xf]
    %v5597 = vld [vmem:[%s3 + $0x984] sm:$0xff]
    %v5598 = vld [vmem:[%s3 + $0x98c] sm:$0xff]
    %v5599 = vld [vmem:[%s3 + $0x994] sm:$0xff]
    %v5600 = vld [vmem:[%s3 + $0x99c] sm:$0xf]
    %v5601 = vld [vmem:[%s3 + $0x9a0] sm:$0xff]
    %v5602 = vld [vmem:[%s3 + $0x9a8] sm:$0xff]
    %v5603 = vld [vmem:[%s3 + $0x9b0] sm:$0xff]
    %v5604 = vld [vmem:[%s3 + $0x9b8] sm:$0xf]
    %v5605 = vld [vmem:[%s3 + $0x9bc] sm:$0xff]
    %v5606 = vld [vmem:[%s3 + $0x9c4] sm:$0xff]
    %v5607 = vld [vmem:[%s3 + $0x9cc] sm:$0xff]
    %v5608 = vld [vmem:[%s3 + $0x9d4] sm:$0xf]
    %v5609 = vld [vmem:[%s3 + $0x9d8] sm:$0xff]
    %v5610 = vld [vmem:[%s3 + $0x9e0] sm:$0xff]
    %v5611 = vld [vmem:[%s3 + $0x9e8] sm:$0xff]
    %v5612 = vld [vmem:[%s3 + $0x9f0] sm:$0xf]
    %v5613 = vld [vmem:[%s3 + $0x9f4] sm:$0xff]
    %v5614 = vld [vmem:[%s3 + $0x9fc] sm:$0xff]
    %v5615 = vld [vmem:[%s3 + $0xa04] sm:$0xff]
    %v5616 = vld [vmem:[%s3 + $0xa0c] sm:$0xf]
    %v5617 = vld [vmem:[%s3 + $0xa10] sm:$0xff]
    %v5618 = vld [vmem:[%s3 + $0xa18] sm:$0xff]
    %v5619 = vld [vmem:[%s3 + $0xa20] sm:$0xff]
    %v5620 = vld [vmem:[%s3 + $0xa28] sm:$0xf]
    %v5621 = vld [vmem:[%s3 + $0xa2c] sm:$0xff]
    %v5622 = vld [vmem:[%s3 + $0xa34] sm:$0xff]
    %v5623 = vld [vmem:[%s3 + $0xa3c] sm:$0xff]
    %v5624 = vld [vmem:[%s3 + $0xa44] sm:$0xf]
    %v5625 = vld [vmem:[%s3 + $0xa48] sm:$0xff]
    %v5626 = vld [vmem:[%s3 + $0xa50] sm:$0xff]
    %v5627 = vld [vmem:[%s3 + $0xa58] sm:$0xff]
    %v5628 = vld [vmem:[%s3 + $0xa60] sm:$0xf]
    %v5629 = vld [vmem:[%s3 + $0xa64] sm:$0xff]
    %v5630 = vld [vmem:[%s3 + $0xa6c] sm:$0xff]
    %v5631 = vld [vmem:[%s3 + $0xa74] sm:$0xff]
    %v5632 = vld [vmem:[%s3 + $0xa7c] sm:$0xf]
    %v5633 = vld [vmem:[%s3 + $0xa80] sm:$0xff]
    %v5634 = vld [vmem:[%s3 + $0xa88] sm:$0xff]
    %v5635 = vld [vmem:[%s3 + $0xa90] sm:$0xff]
    %v5636 = vld [vmem:[%s3 + $0xa98] sm:$0xf]
    %v5637 = vld [vmem:[%s3 + $0xa9c] sm:$0xff]
    %v5638 = vld [vmem:[%s3 + $0xaa4] sm:$0xff]
    %v5639 = vld [vmem:[%s3 + $0xaac] sm:$0xff]
    %v5640 = vld [vmem:[%s3 + $0xab4] sm:$0xf]
    %v5641 = vld [vmem:[%s3 + $0xab8] sm:$0xff]
    %v5642 = vld [vmem:[%s3 + $0xac0] sm:$0xff]
    %v5643 = vld [vmem:[%s3 + $0xac8] sm:$0xff]
    %v5644 = vld [vmem:[%s3 + $0xad0] sm:$0xf]
    %v5645 = vld [vmem:[%s3 + $0xad4] sm:$0xff]
    %v5646 = vld [vmem:[%s3 + $0xadc] sm:$0xff]
    %v5647 = vld [vmem:[%s3 + $0xae4] sm:$0xff]
    %v5648 = vld [vmem:[%s3 + $0xaec] sm:$0xf]
    %v5649 = vld [vmem:[%s3 + $0xaf0] sm:$0xff]
    %v5650 = vld [vmem:[%s3 + $0xaf8] sm:$0xff]
    %v5651 = vld [vmem:[%s3 + $0xb00] sm:$0xff]
    %v5652 = vld [vmem:[%s3 + $0xb08] sm:$0xf]
    %v5653 = vld [vmem:[%s3 + $0xb0c] sm:$0xff]
    %v5654 = vld [vmem:[%s3 + $0xb14] sm:$0xff]
    %v5655 = vld [vmem:[%s3 + $0xb1c] sm:$0xff]
    %v5656 = vld [vmem:[%s3 + $0xb24] sm:$0xf]
    %v5657 = vld [vmem:[%s3 + $0xb28] sm:$0xff]
    %v5658 = vld [vmem:[%s3 + $0xb30] sm:$0xff]
    %v5659 = vld [vmem:[%s3 + $0xb38] sm:$0xff]
    %v5660 = vld [vmem:[%s3 + $0xb40] sm:$0xf]
    %v5661 = vld [vmem:[%s3 + $0xb44] sm:$0xff]
    %v5662 = vld [vmem:[%s3 + $0xb4c] sm:$0xff]
    %v5663 = vld [vmem:[%s3 + $0xb54] sm:$0xff]
    %v5664 = vld [vmem:[%s3 + $0xb5c] sm:$0xf]
    %v5665 = vld [vmem:[%s3 + $0xb60] sm:$0xff]
    %v5666 = vld [vmem:[%s3 + $0xb68] sm:$0xff]
    %v5667 = vld [vmem:[%s3 + $0xb70] sm:$0xff]
    %v5668 = vld [vmem:[%s3 + $0xb78] sm:$0xf]
    %v5669 = vld [vmem:[%s3 + $0xb7c] sm:$0xff]
    %v5670 = vld [vmem:[%s3 + $0xb84] sm:$0xff]
    %v5671 = vld [vmem:[%s3 + $0xb8c] sm:$0xff]
    %v5672 = vld [vmem:[%s3 + $0xb94] sm:$0xf]
    %v5673 = vld [vmem:[%s3 + $0xb98] sm:$0xff]
    %v5674 = vld [vmem:[%s3 + $0xba0] sm:$0xff]
    %v5675 = vld [vmem:[%s3 + $0xba8] sm:$0xff]
    %v5676 = vld [vmem:[%s3 + $0xbb0] sm:$0xf]
    %v5677 = vld [vmem:[%s3 + $0xbb4] sm:$0xff]
    %v5678 = vld [vmem:[%s3 + $0xbbc] sm:$0xff]
    %v5679 = vld [vmem:[%s3 + $0xbc4] sm:$0xff]
    %v5680 = vld [vmem:[%s3 + $0xbcc] sm:$0xf]
    %v5681 = vld [vmem:[%s3 + $0xbd0] sm:$0xff]
    %v5682 = vld [vmem:[%s3 + $0xbd8] sm:$0xff]
    %v5683 = vld [vmem:[%s3 + $0xbe0] sm:$0xff]
    %v5684 = vld [vmem:[%s3 + $0xbe8] sm:$0xf]
    %v5685 = vld [vmem:[%s3 + $0xbec] sm:$0xff]
    %v5686 = vld [vmem:[%s3 + $0xbf4] sm:$0xff]
    %v5687 = vld [vmem:[%s3 + $0xbfc] sm:$0xff]
    %v5688 = vld [vmem:[%s3 + $0xc04] sm:$0xf]
    %v5689 = vld [vmem:[%s3 + $0xc08] sm:$0xff]
    %v5690 = vld [vmem:[%s3 + $0xc10] sm:$0xff]
    %v5691 = vld [vmem:[%s3 + $0xc18] sm:$0xff]
    %v5692 = vld [vmem:[%s3 + $0xc20] sm:$0xf]
    %v5693 = vld [vmem:[%s3 + $0xc24] sm:$0xff]
    %v5694 = vld [vmem:[%s3 + $0xc2c] sm:$0xff]
    %v5695 = vld [vmem:[%s3 + $0xc34] sm:$0xff]
    %v5696 = vld [vmem:[%s3 + $0xc3c] sm:$0xf]
    %v5697 = vld [vmem:[%s3 + $0xc40] sm:$0xff]
    %v5698 = vld [vmem:[%s3 + $0xc48] sm:$0xff]
    %v5699 = vld [vmem:[%s3 + $0xc50] sm:$0xff]
    %v5700 = vld [vmem:[%s3 + $0xc58] sm:$0xf]
    %v5701 = vld [vmem:[%s3 + $0xc5c] sm:$0xff]
    %v5702 = vld [vmem:[%s3 + $0xc64] sm:$0xff]
    %v5703 = vld [vmem:[%s3 + $0xc6c] sm:$0xff]
    %v5704 = vld [vmem:[%s3 + $0xc74] sm:$0xf]
    %v5705 = vld [vmem:[%s3 + $0xc78] sm:$0xff]
    %v5706 = vld [vmem:[%s3 + $0xc80] sm:$0xff]
    %v5707 = vld [vmem:[%s3 + $0xc88] sm:$0xff]
    %v5708 = vld [vmem:[%s3 + $0xc90] sm:$0xf]
    %v5709 = vld [vmem:[%s3 + $0xc94] sm:$0xff]
    %v5710 = vld [vmem:[%s3 + $0xc9c] sm:$0xff]
    %v5711 = vld [vmem:[%s3 + $0xca4] sm:$0xff]
    %v5712 = vld [vmem:[%s3 + $0xcac] sm:$0xf]
    %v5713 = vld [vmem:[%s3 + $0xcb0] sm:$0xff]
    %v5714 = vld [vmem:[%s3 + $0xcb8] sm:$0xff]
    %v5715 = vld [vmem:[%s3 + $0xcc0] sm:$0xff]
    %v5716 = vld [vmem:[%s3 + $0xcc8] sm:$0xf]
    %v5717 = vld [vmem:[%s3 + $0xccc] sm:$0xff]
    %v5718 = vld [vmem:[%s3 + $0xcd4] sm:$0xff]
    %v5719 = vld [vmem:[%s3 + $0xcdc] sm:$0xff]
    %v5720 = vld [vmem:[%s3 + $0xce4] sm:$0xf]
    %v5721 = vld [vmem:[%s3 + $0xce8] sm:$0xff]
    %v5722 = vld [vmem:[%s3 + $0xcf0] sm:$0xff]
    %v5723 = vld [vmem:[%s3 + $0xcf8] sm:$0xff]
    %v5724 = vld [vmem:[%s3 + $0xd00] sm:$0xf]
    %v5725 = vld [vmem:[%s3 + $0xd04] sm:$0xff]
    %v5726 = vld [vmem:[%s3 + $0xd0c] sm:$0xff]
    %v5727 = vld [vmem:[%s3 + $0xd14] sm:$0xff]
    %v5728 = vld [vmem:[%s3 + $0xd1c] sm:$0xf]
    %v5729 = vld [vmem:[%s3 + $0xd20] sm:$0xff]
    %v5730 = vld [vmem:[%s3 + $0xd28] sm:$0xff]
    %v5731 = vld [vmem:[%s3 + $0xd30] sm:$0xff]
    %v5732 = vld [vmem:[%s3 + $0xd38] sm:$0xf]
    %v5733 = vld [vmem:[%s3 + $0xd3c] sm:$0xff]
    %v5734 = vld [vmem:[%s3 + $0xd44] sm:$0xff]
    %v5735 = vld [vmem:[%s3 + $0xd4c] sm:$0xff]
    %v5736 = vld [vmem:[%s3 + $0xd54] sm:$0xf]
    %v5737 = vld [vmem:[%s3 + $0xd58] sm:$0xff]
    %v5738 = vld [vmem:[%s3 + $0xd60] sm:$0xff]
    %v5739 = vld [vmem:[%s3 + $0xd68] sm:$0xff]
    %v5740 = vld [vmem:[%s3 + $0xd70] sm:$0xf]
    %v5741 = vld [vmem:[%s3 + $0xd74] sm:$0xff]
    %v5742 = vld [vmem:[%s3 + $0xd7c] sm:$0xff]
    %v5743 = vld [vmem:[%s3 + $0xd84] sm:$0xff]
    %v5744 = vld [vmem:[%s3 + $0xd8c] sm:$0xf]
    %v5745 = vld [vmem:[%s3 + $0xd90] sm:$0xff]
    %v5746 = vld [vmem:[%s3 + $0xd98] sm:$0xff]
    %v5747 = vld [vmem:[%s3 + $0xda0] sm:$0xff]
    %v5748 = vld [vmem:[%s3 + $0xda8] sm:$0xf]
    %v5749 = vld [vmem:[%s3 + $0xdac] sm:$0xff]
    %v5750 = vld [vmem:[%s3 + $0xdb4] sm:$0xff]
    %v5751 = vld [vmem:[%s3 + $0xdbc] sm:$0xff]
    %v5752 = vld [vmem:[%s3 + $0xdc4] sm:$0xf]
    %v5753 = vld [vmem:[%s3 + $0xdc8] sm:$0xff]
    %v5754 = vld [vmem:[%s3 + $0xdd0] sm:$0xff]
    %v5755 = vld [vmem:[%s3 + $0xdd8] sm:$0xff]
    %v5756 = vld [vmem:[%s3 + $0xde0] sm:$0xf]
    %v5757 = vld [vmem:[%s3 + $0xde4] sm:$0xff]
    %v5758 = vld [vmem:[%s3 + $0xdec] sm:$0xff]
    %v5759 = vld [vmem:[%s3 + $0xdf4] sm:$0xff]
    %v5760 = vld [vmem:[%s3 + $0xdfc] sm:$0xf]
    %v5761 = vld [vmem:[%s3 + $0xe00] sm:$0xff]
    %v5762 = vld [vmem:[%s3 + $0xe08] sm:$0xff]
    %v5763 = vld [vmem:[%s3 + $0xe10] sm:$0xff]
    %v5764 = vld [vmem:[%s3 + $0xe18] sm:$0xf]
    %v5765 = vld [vmem:[%s3 + $0xe1c] sm:$0xff]
    %v5766 = vld [vmem:[%s3 + $0xe24] sm:$0xff]
    %v5767 = vld [vmem:[%s3 + $0xe2c] sm:$0xff]
    %v5768 = vld [vmem:[%s3 + $0xe34] sm:$0xf]
    %v5769 = vld [vmem:[%s3 + $0xe38] sm:$0xff]
    %v5770 = vld [vmem:[%s3 + $0xe40] sm:$0xff]
    %v5771 = vld [vmem:[%s3 + $0xe48] sm:$0xff]
    %v5772 = vld [vmem:[%s3 + $0xe50] sm:$0xf]
    %v5773 = vld [vmem:[%s3 + $0xe54] sm:$0xff]
    %v5774 = vld [vmem:[%s3 + $0xe5c] sm:$0xff]
    %v5775 = vld [vmem:[%s3 + $0xe64] sm:$0xff]
    %v5776 = vld [vmem:[%s3 + $0xe6c] sm:$0xf]
    %v5777 = vld [vmem:[%s3 + $0xe70] sm:$0xff]
    %v5778 = vld [vmem:[%s3 + $0xe78] sm:$0xff]
    %v5779 = vld [vmem:[%s3 + $0xe80] sm:$0xff]
    %v5780 = vld [vmem:[%s3 + $0xe88] sm:$0xf]
    %v5781 = vld [vmem:[%s3 + $0xe8c] sm:$0xff]
    %v5782 = vld [vmem:[%s3 + $0xe94] sm:$0xff]
    %v5783 = vld [vmem:[%s3 + $0xe9c] sm:$0xff]
    %v5784 = vld [vmem:[%s3 + $0xea4] sm:$0xf]
    %v5785 = vld [vmem:[%s3 + $0xea8] sm:$0xff]
    %v5786 = vld [vmem:[%s3 + $0xeb0] sm:$0xff]
    %v5787 = vld [vmem:[%s3 + $0xeb8] sm:$0xff]
    %v5788 = vld [vmem:[%s3 + $0xec0] sm:$0xf]
    %v5789 = vld [vmem:[%s3 + $0xec4] sm:$0xff]
    %v5790 = vld [vmem:[%s3 + $0xecc] sm:$0xff]
    %v5791 = vld [vmem:[%s3 + $0xed4] sm:$0xff]
    %v5792 = vld [vmem:[%s3 + $0xedc] sm:$0xf]
    %v5793 = vld [vmem:[%s3 + $0xee0] sm:$0xff]
    %v5794 = vld [vmem:[%s3 + $0xee8] sm:$0xff]
    %v5795 = vld [vmem:[%s3 + $0xef0] sm:$0xff]
    %v5796 = vld [vmem:[%s3 + $0xef8] sm:$0xf]
    %v5797 = vld [vmem:[%s3 + $0xefc] sm:$0xff]
    %v5798 = vld [vmem:[%s3 + $0xf04] sm:$0xff]
    %v5799 = vld [vmem:[%s3 + $0xf0c] sm:$0xff]
    %v5800 = vld [vmem:[%s3 + $0xf14] sm:$0xf]
    %v5801 = vld [vmem:[%s3 + $0xf18] sm:$0xff]
    %v5802 = vld [vmem:[%s3 + $0xf20] sm:$0xff]
    %v5803 = vld [vmem:[%s3 + $0xf28] sm:$0xff]
    %v5804 = vld [vmem:[%s3 + $0xf30] sm:$0xf]
    %v5805 = vld [vmem:[%s3 + $0xf34] sm:$0xff]
    %v5806 = vld [vmem:[%s3 + $0xf3c] sm:$0xff]
    %v5807 = vld [vmem:[%s3 + $0xf44] sm:$0xff]
    %v5808 = vld [vmem:[%s3 + $0xf4c] sm:$0xf]
    %v5809 = vld [vmem:[%s3 + $0xf50] sm:$0xff]
    %v5810 = vld [vmem:[%s3 + $0xf58] sm:$0xff]
    %v5811 = vld [vmem:[%s3 + $0xf60] sm:$0xff]
    %v5812 = vld [vmem:[%s3 + $0xf68] sm:$0xf]
    %v5813 = vld [vmem:[%s3 + $0xf6c] sm:$0xff]
    %v5814 = vld [vmem:[%s3 + $0xf74] sm:$0xff]
    %v5815 = vld [vmem:[%s3 + $0xf7c] sm:$0xff]
    %v5816 = vld [vmem:[%s3 + $0xf84] sm:$0xf]
    %v5817 = vld [vmem:[%s3 + $0xf88] sm:$0xff]
    %v5818 = vld [vmem:[%s3 + $0xf90] sm:$0xff]
    %v5819 = vld [vmem:[%s3 + $0xf98] sm:$0xff]
    %v5820 = vld [vmem:[%s3 + $0xfa0] sm:$0xf]
    %v5821 = vld [vmem:[%s3 + $0xfa4] sm:$0xff]
    %v5822 = vld [vmem:[%s3 + $0xfac] sm:$0xff]
    %v5823 = vld [vmem:[%s3 + $0xfb4] sm:$0xff]
    %v5824 = vld [vmem:[%s3 + $0xfbc] sm:$0xf]
    %v5825 = vld [vmem:[%s3 + $0xfc0] sm:$0xff]
    %v5826 = vld [vmem:[%s3 + $0xfc8] sm:$0xff]
    %v5827 = vld [vmem:[%s3 + $0xfd0] sm:$0xff]
    %v5828 = vld [vmem:[%s3 + $0xfd8] sm:$0xf]
    %v5829 = vld [vmem:[%s3 + $0xfdc] sm:$0xff]
    %v5830 = vld [vmem:[%s3 + $0xfe4] sm:$0xff]
    %v5831 = vld [vmem:[%s3 + $0xfec] sm:$0xff]
    %v5832 = vld [vmem:[%s3 + $0xff4] sm:$0xf]
    %v5833 = vld [vmem:[%s3 + $0xff8] sm:$0xff]
    %v5834 = vld [vmem:[%s3 + $0x1000] sm:$0xff]
    %v5835 = vld [vmem:[%s3 + $0x1008] sm:$0xff]
    %v5836 = vld [vmem:[%s3 + $0x1010] sm:$0xf]
    %v5837 = vld [vmem:[%s3 + $0x1014] sm:$0xff]
    %v5838 = vld [vmem:[%s3 + $0x101c] sm:$0xff]
    %v5839 = vld [vmem:[%s3 + $0x1024] sm:$0xff]
    %v5840 = vld [vmem:[%s3 + $0x102c] sm:$0xf]
    %v5841 = vld [vmem:[%s3 + $0x1030] sm:$0xff]
    %v5842 = vld [vmem:[%s3 + $0x1038] sm:$0xff]
    %v5843 = vld [vmem:[%s3 + $0x1040] sm:$0xff]
    %v5844 = vld [vmem:[%s3 + $0x1048] sm:$0xf]
    %v5845 = vld [vmem:[%s3 + $0x104c] sm:$0xff]
    %v5846 = vld [vmem:[%s3 + $0x1054] sm:$0xff]
    %v5847 = vld [vmem:[%s3 + $0x105c] sm:$0xff]
    %v5848 = vld [vmem:[%s3 + $0x1064] sm:$0xf]
    %v5849 = vld [vmem:[%s3 + $0x1068] sm:$0xff]
    %v5850 = vld [vmem:[%s3 + $0x1070] sm:$0xff]
    %v5851 = vld [vmem:[%s3 + $0x1078] sm:$0xff]
    %v5852 = vld [vmem:[%s3 + $0x1080] sm:$0xf]
    %v5853 = vld [vmem:[%s3 + $0x1084] sm:$0xff]
    %v5854 = vld [vmem:[%s3 + $0x108c] sm:$0xff]
    %v5855 = vld [vmem:[%s3 + $0x1094] sm:$0xff]
    %v5856 = vld [vmem:[%s3 + $0x109c] sm:$0xf]
    %v5857 = vld [vmem:[%s3 + $0x10a0] sm:$0xff]
    %v5858 = vld [vmem:[%s3 + $0x10a8] sm:$0xff]
    %v5859 = vld [vmem:[%s3 + $0x10b0] sm:$0xff]
    %v5860 = vld [vmem:[%s3 + $0x10b8] sm:$0xf]
    %v5861 = vld [vmem:[%s3 + $0x10bc] sm:$0xff]
    %v5862 = vld [vmem:[%s3 + $0x10c4] sm:$0xff]
    %v5863 = vld [vmem:[%s3 + $0x10cc] sm:$0xff]
    %v5864 = vld [vmem:[%s3 + $0x10d4] sm:$0xf]
    %v5865 = vld [vmem:[%s3 + $0x10d8] sm:$0xff]
    %v5866 = vld [vmem:[%s3 + $0x10e0] sm:$0xff]
    %v5867 = vld [vmem:[%s3 + $0x10e8] sm:$0xff]
    %v5868 = vld [vmem:[%s3 + $0x10f0] sm:$0xf]
    %v5869 = vld [vmem:[%s3 + $0x10f4] sm:$0xff]
    %v5870 = vld [vmem:[%s3 + $0x10fc] sm:$0xff]
    %v5871 = vld [vmem:[%s3 + $0x1104] sm:$0xff]
    %v5872 = vld [vmem:[%s3 + $0x110c] sm:$0xf]
    %v5873 = vld [vmem:[%s3 + $0x1110] sm:$0xff]
    %v5874 = vld [vmem:[%s3 + $0x1118] sm:$0xff]
    %v5875 = vld [vmem:[%s3 + $0x1120] sm:$0xff]
    %v5876 = vld [vmem:[%s3 + $0x1128] sm:$0xf]
    %v5877 = vld [vmem:[%s3 + $0x112c] sm:$0xff]
    %v5878 = vld [vmem:[%s3 + $0x1134] sm:$0xff]
    %v5879 = vld [vmem:[%s3 + $0x113c] sm:$0xff]
    %v5880 = vld [vmem:[%s3 + $0x1144] sm:$0xf]
    %v5881 = vld [vmem:[%s3 + $0x1148] sm:$0xff]
    %v5882 = vld [vmem:[%s3 + $0x1150] sm:$0xff]
    %v5883 = vld [vmem:[%s3 + $0x1158] sm:$0xff]
    %v5884 = vld [vmem:[%s3 + $0x1160] sm:$0xf]
    %v5885 = vld [vmem:[%s3 + $0x1164] sm:$0xff]
    %v5886 = vld [vmem:[%s3 + $0x116c] sm:$0xff]
    %v5887 = vld [vmem:[%s3 + $0x1174] sm:$0xff]
    %v5888 = vld [vmem:[%s3 + $0x117c] sm:$0xf]
    %v5889 = vld [vmem:[%s3 + $0x1180] sm:$0xff]
    %v5890 = vld [vmem:[%s3 + $0x1188] sm:$0xff]
    %v5891 = vld [vmem:[%s3 + $0x1190] sm:$0xff]
    %v5892 = vld [vmem:[%s3 + $0x1198] sm:$0xf]
    %v5893 = vld [vmem:[%s3 + $0x119c] sm:$0xff]
    %v5894 = vld [vmem:[%s3 + $0x11a4] sm:$0xff]
    %v5895 = vld [vmem:[%s3 + $0x11ac] sm:$0xff]
    %v5896 = vld [vmem:[%s3 + $0x11b4] sm:$0xf]
    %v5897 = vld [vmem:[%s3 + $0x11b8] sm:$0xff]
    %v5898 = vld [vmem:[%s3 + $0x11c0] sm:$0xff]
    %v5899 = vld [vmem:[%s3 + $0x11c8] sm:$0xff]
    %v5900 = vld [vmem:[%s3 + $0x11d0] sm:$0xf]
    %v5901 = vld [vmem:[%s3 + $0x11d4] sm:$0xff]
    %v5902 = vld [vmem:[%s3 + $0x11dc] sm:$0xff]
    %v5903 = vld [vmem:[%s3 + $0x11e4] sm:$0xff]
    %v5904 = vld [vmem:[%s3 + $0x11ec] sm:$0xf]
    %v5905 = vld [vmem:[%s3 + $0x11f0] sm:$0xff]
    %v5906 = vld [vmem:[%s3 + $0x11f8] sm:$0xff]
    %v5907 = vld [vmem:[%s3 + $0x1200] sm:$0xff]
    %v5908 = vld [vmem:[%s3 + $0x1208] sm:$0xf]
    %v5909 = vld [vmem:[%s3 + $0x120c] sm:$0xff]
    %v5910 = vld [vmem:[%s3 + $0x1214] sm:$0xff]
    %v5911 = vld [vmem:[%s3 + $0x121c] sm:$0xff]
    %v5912 = vld [vmem:[%s3 + $0x1224] sm:$0xf]
    %v5913 = vld [vmem:[%s3 + $0x1228] sm:$0xff]
    %v5914 = vld [vmem:[%s3 + $0x1230] sm:$0xff]
    %v5915 = vld [vmem:[%s3 + $0x1238] sm:$0xff]
    %v5916 = vld [vmem:[%s3 + $0x1240] sm:$0xf]
    %v5917 = vld [vmem:[%s3 + $0x1244] sm:$0xff]
    %v5918 = vld [vmem:[%s3 + $0x124c] sm:$0xff]
    %v5919 = vld [vmem:[%s3 + $0x1254] sm:$0xff]
    %v5920 = vld [vmem:[%s3 + $0x125c] sm:$0xf]
    %v5921 = vld [vmem:[%s3 + $0x1260] sm:$0xff]
    %v5922 = vld [vmem:[%s3 + $0x1268] sm:$0xff]
    %v5923 = vld [vmem:[%s3 + $0x1270] sm:$0xff]
    %v5924 = vld [vmem:[%s3 + $0x1278] sm:$0xf]
    %v5925 = vld [vmem:[%s3 + $0x127c] sm:$0xff]
    %v5926 = vld [vmem:[%s3 + $0x1284] sm:$0xff]
    %v5927 = vld [vmem:[%s3 + $0x128c] sm:$0xff]
    %v5928 = vld [vmem:[%s3 + $0x1294] sm:$0xf]
    %v5929 = vld [vmem:[%s3 + $0x1298] sm:$0xff]
    %v5930 = vld [vmem:[%s3 + $0x12a0] sm:$0xff]
    %v5931 = vld [vmem:[%s3 + $0x12a8] sm:$0xff]
    %v5932 = vld [vmem:[%s3 + $0x12b0] sm:$0xf]
    %v5933 = vld [vmem:[%s3 + $0x12b4] sm:$0xff]
    %v5934 = vld [vmem:[%s3 + $0x12bc] sm:$0xff]
    %v5935 = vld [vmem:[%s3 + $0x12c4] sm:$0xff]
    %v5936 = vld [vmem:[%s3 + $0x12cc] sm:$0xf]
    %v5937 = vld [vmem:[%s3 + $0x12d0] sm:$0xff]
    %v5938 = vld [vmem:[%s3 + $0x12d8] sm:$0xff]
    %v5939 = vld [vmem:[%s3 + $0x12e0] sm:$0xff]
    %v5940 = vld [vmem:[%s3 + $0x12e8] sm:$0xf]
    %v5941 = vld [vmem:[%s3 + $0x12ec] sm:$0xff]
    %v5942 = vld [vmem:[%s3 + $0x12f4] sm:$0xff]
    %v5943 = vld [vmem:[%s3 + $0x12fc] sm:$0xff]
    %v5944 = vld [vmem:[%s3 + $0x1304] sm:$0xf]
    %v5945 = vld [vmem:[%s3 + $0x1308] sm:$0xff]
    %v5946 = vld [vmem:[%s3 + $0x1310] sm:$0xff]
    %v5947 = vld [vmem:[%s3 + $0x1318] sm:$0xff]
    %v5948 = vld [vmem:[%s3 + $0x1320] sm:$0xf]
    %v5949 = vld [vmem:[%s3 + $0x1324] sm:$0xff]
    %v5950 = vld [vmem:[%s3 + $0x132c] sm:$0xff]
    %v5951 = vld [vmem:[%s3 + $0x1334] sm:$0xff]
    %v5952 = vld [vmem:[%s3 + $0x133c] sm:$0xf]
    %v5953 = vld [vmem:[%s3 + $0x1340] sm:$0xff]
    %v5954 = vld [vmem:[%s3 + $0x1348] sm:$0xff]
    %v5955 = vld [vmem:[%s3 + $0x1350] sm:$0xff]
    %v5956 = vld [vmem:[%s3 + $0x1358] sm:$0xf]
    %v5957 = vld [vmem:[%s3 + $0x135c] sm:$0xff]
    %v5958 = vld [vmem:[%s3 + $0x1364] sm:$0xff]
    %v5959 = vld [vmem:[%s3 + $0x136c] sm:$0xff]
    %v5960 = vld [vmem:[%s3 + $0x1374] sm:$0xf]
    %v5961 = vld [vmem:[%s3 + $0x1378] sm:$0xff]
    %v5962 = vld [vmem:[%s3 + $0x1380] sm:$0xff]
    %v5963 = vld [vmem:[%s3 + $0x1388] sm:$0xff]
    %v5964 = vld [vmem:[%s3 + $0x1390] sm:$0xf]
    %v5965 = vld [vmem:[%s3 + $0x1394] sm:$0xff]
    %v5966 = vld [vmem:[%s3 + $0x139c] sm:$0xff]
    %v5967 = vld [vmem:[%s3 + $0x13a4] sm:$0xff]
    %v5968 = vld [vmem:[%s3 + $0x13ac] sm:$0xf]
    %v5969 = vld [vmem:[%s3 + $0x13b0] sm:$0xff]
    %v5970 = vld [vmem:[%s3 + $0x13b8] sm:$0xff]
    %v5971 = vld [vmem:[%s3 + $0x13c0] sm:$0xff]
    %v5972 = vld [vmem:[%s3 + $0x13c8] sm:$0xf]
    %v5973 = vld [vmem:[%s3 + $0x13cc] sm:$0xff]
    %v5974 = vld [vmem:[%s3 + $0x13d4] sm:$0xff]
    %v5975 = vld [vmem:[%s3 + $0x13dc] sm:$0xff]
    %v5976 = vld [vmem:[%s3 + $0x13e4] sm:$0xf]
    %v5977 = vld [vmem:[%s3 + $0x13e8] sm:$0xff]
    %v5978 = vld [vmem:[%s3 + $0x13f0] sm:$0xff]
    %v5979 = vld [vmem:[%s3 + $0x13f8] sm:$0xff]
    %v5980 = vld [vmem:[%s3 + $0x1400] sm:$0xf]
    %v5981 = vld [vmem:[%s3 + $0x1404] sm:$0xff]
    %v5982 = vld [vmem:[%s3 + $0x140c] sm:$0xff]
    %v5983 = vld [vmem:[%s3 + $0x1414] sm:$0xff]
    %v5984 = vld [vmem:[%s3 + $0x141c] sm:$0xf]
    %v5985 = vld [vmem:[%s3 + $0x1420] sm:$0xff]
    %v5986 = vld [vmem:[%s3 + $0x1428] sm:$0xff]
    %v5987 = vld [vmem:[%s3 + $0x1430] sm:$0xff]
    %v5988 = vld [vmem:[%s3 + $0x1438] sm:$0xf]
    %v5989 = vld [vmem:[%s3 + $0x143c] sm:$0xff]
    %v5990 = vld [vmem:[%s3 + $0x1444] sm:$0xff]
    %v5991 = vld [vmem:[%s3 + $0x144c] sm:$0xff]
    %v5992 = vld [vmem:[%s3 + $0x1454] sm:$0xf]
    %v5993 = vld [vmem:[%s3 + $0x1458] sm:$0xff]
    %v5994 = vld [vmem:[%s3 + $0x1460] sm:$0xff]
    %v5995 = vld [vmem:[%s3 + $0x1468] sm:$0xff]
    %v5996 = vld [vmem:[%s3 + $0x1470] sm:$0xf]
    %v5997 = vld [vmem:[%s3 + $0x1474] sm:$0xff]
    %v5998 = vld [vmem:[%s3 + $0x147c] sm:$0xff]
    %v5999 = vld [vmem:[%s3 + $0x1484] sm:$0xff]
    %v6000 = vld [vmem:[%s3 + $0x148c] sm:$0xf]
    %v6001 = vld [vmem:[%s3 + $0x1490] sm:$0xff]
    %v6002 = vld [vmem:[%s3 + $0x1498] sm:$0xff]
    %v6003 = vld [vmem:[%s3 + $0x14a0] sm:$0xff]
    %v6004 = vld [vmem:[%s3 + $0x14a8] sm:$0xf]
    %v6005 = vld [vmem:[%s3 + $0x14ac] sm:$0xff]
    %v6006 = vld [vmem:[%s3 + $0x14b4] sm:$0xff]
    %v6007 = vld [vmem:[%s3 + $0x14bc] sm:$0xff]
    %v6008 = vld [vmem:[%s3 + $0x14c4] sm:$0xf]
    %v6009 = vld [vmem:[%s3 + $0x14c8] sm:$0xff]
    %v6010 = vld [vmem:[%s3 + $0x14d0] sm:$0xff]
    %v6011 = vld [vmem:[%s3 + $0x14d8] sm:$0xff]
    %v6012 = vld [vmem:[%s3 + $0x14e0] sm:$0xf]
    %v6013 = vld [vmem:[%s3 + $0x14e4] sm:$0xff]
    %v6014 = vld [vmem:[%s3 + $0x14ec] sm:$0xff]
    %v6015 = vld [vmem:[%s3 + $0x14f4] sm:$0xff]
    %v6016 = vld [vmem:[%s3 + $0x14fc] sm:$0xf]
    %v6017 = vld [vmem:[%s3 + $0x1500] sm:$0xff]
    %v6018 = vld [vmem:[%s3 + $0x1508] sm:$0xff]
    %v6019 = vld [vmem:[%s3 + $0x1510] sm:$0xff]
    %v6020 = vld [vmem:[%s3 + $0x1518] sm:$0xf]
    %v6021 = vld [vmem:[%s3 + $0x151c] sm:$0xff]
    %v6022 = vld [vmem:[%s3 + $0x1524] sm:$0xff]
    %v6023 = vld [vmem:[%s3 + $0x152c] sm:$0xff]
    %v6024 = vld [vmem:[%s3 + $0x1534] sm:$0xf]
    %v6025 = vld [vmem:[%s3 + $0x1538] sm:$0xff]
    %v6026 = vld [vmem:[%s3 + $0x1540] sm:$0xff]
    %v6027 = vld [vmem:[%s3 + $0x1548] sm:$0xff]
    %v6028 = vld [vmem:[%s3 + $0x1550] sm:$0xf]
    %v6029 = vld [vmem:[%s3 + $0x1554] sm:$0xff]
    %v6030 = vld [vmem:[%s3 + $0x155c] sm:$0xff]
    %v6031 = vld [vmem:[%s3 + $0x1564] sm:$0xff]
    %v6032 = vld [vmem:[%s3 + $0x156c] sm:$0xf]
    %v6033 = vld [vmem:[%s4] sm:$0x7f]
    %v6035 = vperm.slane %v6033, 0
    %v6036 = vperm.slane %v6033, 1
    %v6037 = vperm.slane %v6033, 2
    %v6038 = vperm.slane %v6033, 3
    %v6039 = vperm.slane %v6033, 4
    %v6040 = vperm.slane %v6033, 5
    %v6041 = vperm.slane %v6033, 6
    %v6833 = vunpack.c.l.b16 %v5249
    %v6834 = vunpack.c.h.b16 %v5249
    %v6835 = vunpack.c.l.b16 %v5250
    %v6836 = vunpack.c.h.b16 %v5250
    %v6837 = vunpack.c.l.b16 %v5251
    %v6838 = vunpack.c.h.b16 %v5251
    %v6839 = vunpack.c.l.b16 %v5252
    %v6840 = vunpack.c.l.b16 %v5253
    %v6841 = vunpack.c.h.b16 %v5253
    %v6842 = vunpack.c.l.b16 %v5254
    %v6843 = vunpack.c.h.b16 %v5254
    %v6844 = vunpack.c.l.b16 %v5255
    %v6845 = vunpack.c.h.b16 %v5255
    %v6846 = vunpack.c.l.b16 %v5256
    %v6847 = vunpack.c.l.b16 %v5257
    %v6848 = vunpack.c.h.b16 %v5257
    %v6849 = vunpack.c.l.b16 %v5258
    %v6850 = vunpack.c.h.b16 %v5258
    %v6851 = vunpack.c.l.b16 %v5259
    %v6852 = vunpack.c.h.b16 %v5259
    %v6853 = vunpack.c.l.b16 %v5260
    %v6854 = vunpack.c.l.b16 %v5261
    %v6855 = vunpack.c.h.b16 %v5261
    %v6856 = vunpack.c.l.b16 %v5262
    %v6857 = vunpack.c.h.b16 %v5262
    %v6858 = vunpack.c.l.b16 %v5263
    %v6859 = vunpack.c.h.b16 %v5263
    %v6860 = vunpack.c.l.b16 %v5264
    %v6861 = vunpack.c.l.b16 %v5265
    %v6862 = vunpack.c.h.b16 %v5265
    %v6863 = vunpack.c.l.b16 %v5266
    %v6864 = vunpack.c.h.b16 %v5266
    %v6865 = vunpack.c.l.b16 %v5267
    %v6866 = vunpack.c.h.b16 %v5267
    %v6867 = vunpack.c.l.b16 %v5268
    %v6868 = vunpack.c.l.b16 %v5269
    %v6869 = vunpack.c.h.b16 %v5269
    %v6870 = vunpack.c.l.b16 %v5270
    %v6871 = vunpack.c.h.b16 %v5270
    %v6872 = vunpack.c.l.b16 %v5271
    %v6873 = vunpack.c.h.b16 %v5271
    %v6874 = vunpack.c.l.b16 %v5272
    %v6875 = vunpack.c.l.b16 %v5273
    %v6876 = vunpack.c.h.b16 %v5273
    %v6877 = vunpack.c.l.b16 %v5274
    %v6878 = vunpack.c.h.b16 %v5274
    %v6879 = vunpack.c.l.b16 %v5275
    %v6880 = vunpack.c.h.b16 %v5275
    %v6881 = vunpack.c.l.b16 %v5276
    %v6882 = vunpack.c.l.b16 %v5277
    %v6883 = vunpack.c.h.b16 %v5277
    %v6884 = vunpack.c.l.b16 %v5278
    %v6885 = vunpack.c.h.b16 %v5278
    %v6886 = vunpack.c.l.b16 %v5279
    %v6887 = vunpack.c.h.b16 %v5279
    %v6888 = vunpack.c.l.b16 %v5280
    %v6889 = vunpack.c.l.b16 %v5281
    %v6890 = vunpack.c.h.b16 %v5281
    %v6891 = vunpack.c.l.b16 %v5282
    %v6892 = vunpack.c.h.b16 %v5282
    %v6893 = vunpack.c.l.b16 %v5283
    %v6894 = vunpack.c.h.b16 %v5283
    %v6895 = vunpack.c.l.b16 %v5284
    %v6896 = vunpack.c.l.b16 %v5285
    %v6897 = vunpack.c.h.b16 %v5285
    %v6898 = vunpack.c.l.b16 %v5286
    %v6899 = vunpack.c.h.b16 %v5286
    %v6900 = vunpack.c.l.b16 %v5287
    %v6901 = vunpack.c.h.b16 %v5287
    %v6902 = vunpack.c.l.b16 %v5288
    %v6903 = vunpack.c.l.b16 %v5289
    %v6904 = vunpack.c.h.b16 %v5289
    %v6905 = vunpack.c.l.b16 %v5290
    %v6906 = vunpack.c.h.b16 %v5290
    %v6907 = vunpack.c.l.b16 %v5291
    %v6908 = vunpack.c.h.b16 %v5291
    %v6909 = vunpack.c.l.b16 %v5292
    %v6910 = vunpack.c.l.b16 %v5293
    %v6911 = vunpack.c.h.b16 %v5293
    %v6912 = vunpack.c.l.b16 %v5294
    %v6913 = vunpack.c.h.b16 %v5294
    %v6914 = vunpack.c.l.b16 %v5295
    %v6915 = vunpack.c.h.b16 %v5295
    %v6916 = vunpack.c.l.b16 %v5296
    %v6917 = vunpack.c.l.b16 %v5297
    %v6918 = vunpack.c.h.b16 %v5297
    %v6919 = vunpack.c.l.b16 %v5298
    %v6920 = vunpack.c.h.b16 %v5298
    %v6921 = vunpack.c.l.b16 %v5299
    %v6922 = vunpack.c.h.b16 %v5299
    %v6923 = vunpack.c.l.b16 %v5300
    %v6924 = vunpack.c.l.b16 %v5301
    %v6925 = vunpack.c.h.b16 %v5301
    %v6926 = vunpack.c.l.b16 %v5302
    %v6927 = vunpack.c.h.b16 %v5302
    %v6928 = vunpack.c.l.b16 %v5303
    %v6929 = vunpack.c.h.b16 %v5303
    %v6930 = vunpack.c.l.b16 %v5304
    %v6931 = vunpack.c.l.b16 %v5305
    %v6932 = vunpack.c.h.b16 %v5305
    %v6933 = vunpack.c.l.b16 %v5306
    %v6934 = vunpack.c.h.b16 %v5306
    %v6935 = vunpack.c.l.b16 %v5307
    %v6936 = vunpack.c.h.b16 %v5307
    %v6937 = vunpack.c.l.b16 %v5308
    %v6938 = vunpack.c.l.b16 %v5309
    %v6939 = vunpack.c.h.b16 %v5309
    %v6940 = vunpack.c.l.b16 %v5310
    %v6941 = vunpack.c.h.b16 %v5310
    %v6942 = vunpack.c.l.b16 %v5311
    %v6943 = vunpack.c.h.b16 %v5311
    %v6944 = vunpack.c.l.b16 %v5312
    %v6945 = vunpack.c.l.b16 %v5313
    %v6946 = vunpack.c.h.b16 %v5313
    %v6947 = vunpack.c.l.b16 %v5314
    %v6948 = vunpack.c.h.b16 %v5314
    %v6949 = vunpack.c.l.b16 %v5315
    %v6950 = vunpack.c.h.b16 %v5315
    %v6951 = vunpack.c.l.b16 %v5316
    %v6952 = vunpack.c.l.b16 %v5317
    %v6953 = vunpack.c.h.b16 %v5317
    %v6954 = vunpack.c.l.b16 %v5318
    %v6955 = vunpack.c.h.b16 %v5318
    %v6956 = vunpack.c.l.b16 %v5319
    %v6957 = vunpack.c.h.b16 %v5319
    %v6958 = vunpack.c.l.b16 %v5320
    %v6959 = vunpack.c.l.b16 %v5321
    %v6960 = vunpack.c.h.b16 %v5321
    %v6961 = vunpack.c.l.b16 %v5322
    %v6962 = vunpack.c.h.b16 %v5322
    %v6963 = vunpack.c.l.b16 %v5323
    %v6964 = vunpack.c.h.b16 %v5323
    %v6965 = vunpack.c.l.b16 %v5324
    %v6966 = vunpack.c.l.b16 %v5325
    %v6967 = vunpack.c.h.b16 %v5325
    %v6968 = vunpack.c.l.b16 %v5326
    %v6969 = vunpack.c.h.b16 %v5326
    %v6970 = vunpack.c.l.b16 %v5327
    %v6971 = vunpack.c.h.b16 %v5327
    %v6972 = vunpack.c.l.b16 %v5328
    %v6973 = vunpack.c.l.b16 %v5329
    %v6974 = vunpack.c.h.b16 %v5329
    %v6975 = vunpack.c.l.b16 %v5330
    %v6976 = vunpack.c.h.b16 %v5330
    %v6977 = vunpack.c.l.b16 %v5331
    %v6978 = vunpack.c.h.b16 %v5331
    %v6979 = vunpack.c.l.b16 %v5332
    %v6980 = vunpack.c.l.b16 %v5333
    %v6981 = vunpack.c.h.b16 %v5333
    %v6982 = vunpack.c.l.b16 %v5334
    %v6983 = vunpack.c.h.b16 %v5334
    %v6984 = vunpack.c.l.b16 %v5335
    %v6985 = vunpack.c.h.b16 %v5335
    %v6986 = vunpack.c.l.b16 %v5336
    %v6987 = vunpack.c.l.b16 %v5337
    %v6988 = vunpack.c.h.b16 %v5337
    %v6989 = vunpack.c.l.b16 %v5338
    %v6990 = vunpack.c.h.b16 %v5338
    %v6991 = vunpack.c.l.b16 %v5339
    %v6992 = vunpack.c.h.b16 %v5339
    %v6993 = vunpack.c.l.b16 %v5340
    %v6994 = vunpack.c.l.b16 %v5341
    %v6995 = vunpack.c.h.b16 %v5341
    %v6996 = vunpack.c.l.b16 %v5342
    %v6997 = vunpack.c.h.b16 %v5342
    %v6998 = vunpack.c.l.b16 %v5343
    %v6999 = vunpack.c.h.b16 %v5343
    %v7000 = vunpack.c.l.b16 %v5344
    %v7001 = vunpack.c.l.b16 %v5345
    %v7002 = vunpack.c.h.b16 %v5345
    %v7003 = vunpack.c.l.b16 %v5346
    %v7004 = vunpack.c.h.b16 %v5346
    %v7005 = vunpack.c.l.b16 %v5347
    %v7006 = vunpack.c.h.b16 %v5347
    %v7007 = vunpack.c.l.b16 %v5348
    %v7008 = vunpack.c.l.b16 %v5349
    %v7009 = vunpack.c.h.b16 %v5349
    %v7010 = vunpack.c.l.b16 %v5350
    %v7011 = vunpack.c.h.b16 %v5350
    %v7012 = vunpack.c.l.b16 %v5351
    %v7013 = vunpack.c.h.b16 %v5351
    %v7014 = vunpack.c.l.b16 %v5352
    %v7015 = vunpack.c.l.b16 %v5353
    %v7016 = vunpack.c.h.b16 %v5353
    %v7017 = vunpack.c.l.b16 %v5354
    %v7018 = vunpack.c.h.b16 %v5354
    %v7019 = vunpack.c.l.b16 %v5355
    %v7020 = vunpack.c.h.b16 %v5355
    %v7021 = vunpack.c.l.b16 %v5356
    %v7022 = vunpack.c.l.b16 %v5357
    %v7023 = vunpack.c.h.b16 %v5357
    %v7024 = vunpack.c.l.b16 %v5358
    %v7025 = vunpack.c.h.b16 %v5358
    %v7026 = vunpack.c.l.b16 %v5359
    %v7027 = vunpack.c.h.b16 %v5359
    %v7028 = vunpack.c.l.b16 %v5360
    %v7029 = vunpack.c.l.b16 %v5361
    %v7030 = vunpack.c.h.b16 %v5361
    %v7031 = vunpack.c.l.b16 %v5362
    %v7032 = vunpack.c.h.b16 %v5362
    %v7033 = vunpack.c.l.b16 %v5363
    %v7034 = vunpack.c.h.b16 %v5363
    %v7035 = vunpack.c.l.b16 %v5364
    %v7036 = vunpack.c.l.b16 %v5365
    %v7037 = vunpack.c.h.b16 %v5365
    %v7038 = vunpack.c.l.b16 %v5366
    %v7039 = vunpack.c.h.b16 %v5366
    %v7040 = vunpack.c.l.b16 %v5367
    %v7041 = vunpack.c.h.b16 %v5367
    %v7042 = vunpack.c.l.b16 %v5368
    %v7043 = vunpack.c.l.b16 %v5369
    %v7044 = vunpack.c.h.b16 %v5369
    %v7045 = vunpack.c.l.b16 %v5370
    %v7046 = vunpack.c.h.b16 %v5370
    %v7047 = vunpack.c.l.b16 %v5371
    %v7048 = vunpack.c.h.b16 %v5371
    %v7049 = vunpack.c.l.b16 %v5372
    %v7050 = vunpack.c.l.b16 %v5373
    %v7051 = vunpack.c.h.b16 %v5373
    %v7052 = vunpack.c.l.b16 %v5374
    %v7053 = vunpack.c.h.b16 %v5374
    %v7054 = vunpack.c.l.b16 %v5375
    %v7055 = vunpack.c.h.b16 %v5375
    %v7056 = vunpack.c.l.b16 %v5376
    %v7057 = vunpack.c.l.b16 %v5377
    %v7058 = vunpack.c.h.b16 %v5377
    %v7059 = vunpack.c.l.b16 %v5378
    %v7060 = vunpack.c.h.b16 %v5378
    %v7061 = vunpack.c.l.b16 %v5379
    %v7062 = vunpack.c.h.b16 %v5379
    %v7063 = vunpack.c.l.b16 %v5380
    %v7064 = vunpack.c.l.b16 %v5381
    %v7065 = vunpack.c.h.b16 %v5381
    %v7066 = vunpack.c.l.b16 %v5382
    %v7067 = vunpack.c.h.b16 %v5382
    %v7068 = vunpack.c.l.b16 %v5383
    %v7069 = vunpack.c.h.b16 %v5383
    %v7070 = vunpack.c.l.b16 %v5384
    %v7071 = vunpack.c.l.b16 %v5385
    %v7072 = vunpack.c.h.b16 %v5385
    %v7073 = vunpack.c.l.b16 %v5386
    %v7074 = vunpack.c.h.b16 %v5386
    %v7075 = vunpack.c.l.b16 %v5387
    %v7076 = vunpack.c.h.b16 %v5387
    %v7077 = vunpack.c.l.b16 %v5388
    %v7078 = vunpack.c.l.b16 %v5389
    %v7079 = vunpack.c.h.b16 %v5389
    %v7080 = vunpack.c.l.b16 %v5390
    %v7081 = vunpack.c.h.b16 %v5390
    %v7082 = vunpack.c.l.b16 %v5391
    %v7083 = vunpack.c.h.b16 %v5391
    %v7084 = vunpack.c.l.b16 %v5392
    %v7085 = vunpack.c.l.b16 %v5393
    %v7086 = vunpack.c.h.b16 %v5393
    %v7087 = vunpack.c.l.b16 %v5394
    %v7088 = vunpack.c.h.b16 %v5394
    %v7089 = vunpack.c.l.b16 %v5395
    %v7090 = vunpack.c.h.b16 %v5395
    %v7091 = vunpack.c.l.b16 %v5396
    %v7092 = vunpack.c.l.b16 %v5397
    %v7093 = vunpack.c.h.b16 %v5397
    %v7094 = vunpack.c.l.b16 %v5398
    %v7095 = vunpack.c.h.b16 %v5398
    %v7096 = vunpack.c.l.b16 %v5399
    %v7097 = vunpack.c.h.b16 %v5399
    %v7098 = vunpack.c.l.b16 %v5400
    %v7099 = vunpack.c.l.b16 %v5401
    %v7100 = vunpack.c.h.b16 %v5401
    %v7101 = vunpack.c.l.b16 %v5402
    %v7102 = vunpack.c.h.b16 %v5402
    %v7103 = vunpack.c.l.b16 %v5403
    %v7104 = vunpack.c.h.b16 %v5403
    %v7105 = vunpack.c.l.b16 %v5404
    %v7106 = vunpack.c.l.b16 %v5405
    %v7107 = vunpack.c.h.b16 %v5405
    %v7108 = vunpack.c.l.b16 %v5406
    %v7109 = vunpack.c.h.b16 %v5406
    %v7110 = vunpack.c.l.b16 %v5407
    %v7111 = vunpack.c.h.b16 %v5407
    %v7112 = vunpack.c.l.b16 %v5408
    %v7113 = vunpack.c.l.b16 %v5409
    %v7114 = vunpack.c.h.b16 %v5409
    %v7115 = vunpack.c.l.b16 %v5410
    %v7116 = vunpack.c.h.b16 %v5410
    %v7117 = vunpack.c.l.b16 %v5411
    %v7118 = vunpack.c.h.b16 %v5411
    %v7119 = vunpack.c.l.b16 %v5412
    %v7120 = vunpack.c.l.b16 %v5413
    %v7121 = vunpack.c.h.b16 %v5413
    %v7122 = vunpack.c.l.b16 %v5414
    %v7123 = vunpack.c.h.b16 %v5414
    %v7124 = vunpack.c.l.b16 %v5415
    %v7125 = vunpack.c.h.b16 %v5415
    %v7126 = vunpack.c.l.b16 %v5416
    %v7127 = vunpack.c.l.b16 %v5417
    %v7128 = vunpack.c.h.b16 %v5417
    %v7129 = vunpack.c.l.b16 %v5418
    %v7130 = vunpack.c.h.b16 %v5418
    %v7131 = vunpack.c.l.b16 %v5419
    %v7132 = vunpack.c.h.b16 %v5419
    %v7133 = vunpack.c.l.b16 %v5420
    %v7134 = vunpack.c.l.b16 %v5421
    %v7135 = vunpack.c.h.b16 %v5421
    %v7136 = vunpack.c.l.b16 %v5422
    %v7137 = vunpack.c.h.b16 %v5422
    %v7138 = vunpack.c.l.b16 %v5423
    %v7139 = vunpack.c.h.b16 %v5423
    %v7140 = vunpack.c.l.b16 %v5424
    %v7141 = vunpack.c.l.b16 %v5425
    %v7142 = vunpack.c.h.b16 %v5425
    %v7143 = vunpack.c.l.b16 %v5426
    %v7144 = vunpack.c.h.b16 %v5426
    %v7145 = vunpack.c.l.b16 %v5427
    %v7146 = vunpack.c.h.b16 %v5427
    %v7147 = vunpack.c.l.b16 %v5428
    %v7148 = vunpack.c.l.b16 %v5429
    %v7149 = vunpack.c.h.b16 %v5429
    %v7150 = vunpack.c.l.b16 %v5430
    %v7151 = vunpack.c.h.b16 %v5430
    %v7152 = vunpack.c.l.b16 %v5431
    %v7153 = vunpack.c.h.b16 %v5431
    %v7154 = vunpack.c.l.b16 %v5432
    %v7155 = vunpack.c.l.b16 %v5433
    %v7156 = vunpack.c.h.b16 %v5433
    %v7157 = vunpack.c.l.b16 %v5434
    %v7158 = vunpack.c.h.b16 %v5434
    %v7159 = vunpack.c.l.b16 %v5435
    %v7160 = vunpack.c.h.b16 %v5435
    %v7161 = vunpack.c.l.b16 %v5436
    %v7162 = vunpack.c.l.b16 %v5437
    %v7163 = vunpack.c.h.b16 %v5437
    %v7164 = vunpack.c.l.b16 %v5438
    %v7165 = vunpack.c.h.b16 %v5438
    %v7166 = vunpack.c.l.b16 %v5439
    %v7167 = vunpack.c.h.b16 %v5439
    %v7168 = vunpack.c.l.b16 %v5440
    %v7169 = vunpack.c.l.b16 %v5441
    %v7170 = vunpack.c.h.b16 %v5441
    %v7171 = vunpack.c.l.b16 %v5442
    %v7172 = vunpack.c.h.b16 %v5442
    %v7173 = vunpack.c.l.b16 %v5443
    %v7174 = vunpack.c.h.b16 %v5443
    %v7175 = vunpack.c.l.b16 %v5444
    %v7176 = vunpack.c.l.b16 %v5445
    %v7177 = vunpack.c.h.b16 %v5445
    %v7178 = vunpack.c.l.b16 %v5446
    %v7179 = vunpack.c.h.b16 %v5446
    %v7180 = vunpack.c.l.b16 %v5447
    %v7181 = vunpack.c.h.b16 %v5447
    %v7182 = vunpack.c.l.b16 %v5448
    %v7183 = vunpack.c.l.b16 %v5449
    %v7184 = vunpack.c.h.b16 %v5449
    %v7185 = vunpack.c.l.b16 %v5450
    %v7186 = vunpack.c.h.b16 %v5450
    %v7187 = vunpack.c.l.b16 %v5451
    %v7188 = vunpack.c.h.b16 %v5451
    %v7189 = vunpack.c.l.b16 %v5452
    %v7190 = vunpack.c.l.b16 %v5453
    %v7191 = vunpack.c.h.b16 %v5453
    %v7192 = vunpack.c.l.b16 %v5454
    %v7193 = vunpack.c.h.b16 %v5454
    %v7194 = vunpack.c.l.b16 %v5455
    %v7195 = vunpack.c.h.b16 %v5455
    %v7196 = vunpack.c.l.b16 %v5456
    %v7197 = vunpack.c.l.b16 %v5457
    %v7198 = vunpack.c.h.b16 %v5457
    %v7199 = vunpack.c.l.b16 %v5458
    %v7200 = vunpack.c.h.b16 %v5458
    %v7201 = vunpack.c.l.b16 %v5459
    %v7202 = vunpack.c.h.b16 %v5459
    %v7203 = vunpack.c.l.b16 %v5460
    %v7204 = vunpack.c.l.b16 %v5461
    %v7205 = vunpack.c.h.b16 %v5461
    %v7206 = vunpack.c.l.b16 %v5462
    %v7207 = vunpack.c.h.b16 %v5462
    %v7208 = vunpack.c.l.b16 %v5463
    %v7209 = vunpack.c.h.b16 %v5463
    %v7210 = vunpack.c.l.b16 %v5464
    %v7211 = vunpack.c.l.b16 %v5465
    %v7212 = vunpack.c.h.b16 %v5465
    %v7213 = vunpack.c.l.b16 %v5466
    %v7214 = vunpack.c.h.b16 %v5466
    %v7215 = vunpack.c.l.b16 %v5467
    %v7216 = vunpack.c.h.b16 %v5467
    %v7217 = vunpack.c.l.b16 %v5468
    %v7218 = vunpack.c.l.b16 %v5469
    %v7219 = vunpack.c.h.b16 %v5469
    %v7220 = vunpack.c.l.b16 %v5470
    %v7221 = vunpack.c.h.b16 %v5470
    %v7222 = vunpack.c.l.b16 %v5471
    %v7223 = vunpack.c.h.b16 %v5471
    %v7224 = vunpack.c.l.b16 %v5472
    %v7225 = vunpack.c.l.b16 %v5473
    %v7226 = vunpack.c.h.b16 %v5473
    %v7227 = vunpack.c.l.b16 %v5474
    %v7228 = vunpack.c.h.b16 %v5474
    %v7229 = vunpack.c.l.b16 %v5475
    %v7230 = vunpack.c.h.b16 %v5475
    %v7231 = vunpack.c.l.b16 %v5476
    %v7232 = vunpack.c.l.b16 %v5477
    %v7233 = vunpack.c.h.b16 %v5477
    %v7234 = vunpack.c.l.b16 %v5478
    %v7235 = vunpack.c.h.b16 %v5478
    %v7236 = vunpack.c.l.b16 %v5479
    %v7237 = vunpack.c.h.b16 %v5479
    %v7238 = vunpack.c.l.b16 %v5480
    %v7239 = vunpack.c.l.b16 %v5481
    %v7240 = vunpack.c.h.b16 %v5481
    %v7241 = vunpack.c.l.b16 %v5482
    %v7242 = vunpack.c.h.b16 %v5482
    %v7243 = vunpack.c.l.b16 %v5483
    %v7244 = vunpack.c.h.b16 %v5483
    %v7245 = vunpack.c.l.b16 %v5484
    %v7246 = vunpack.c.l.b16 %v5485
    %v7247 = vunpack.c.h.b16 %v5485
    %v7248 = vunpack.c.l.b16 %v5486
    %v7249 = vunpack.c.h.b16 %v5486
    %v7250 = vunpack.c.l.b16 %v5487
    %v7251 = vunpack.c.h.b16 %v5487
    %v7252 = vunpack.c.l.b16 %v5488
    %v7253 = vunpack.c.l.b16 %v5489
    %v7254 = vunpack.c.h.b16 %v5489
    %v7255 = vunpack.c.l.b16 %v5490
    %v7256 = vunpack.c.h.b16 %v5490
    %v7257 = vunpack.c.l.b16 %v5491
    %v7258 = vunpack.c.h.b16 %v5491
    %v7259 = vunpack.c.l.b16 %v5492
    %v7260 = vunpack.c.l.b16 %v5493
    %v7261 = vunpack.c.h.b16 %v5493
    %v7262 = vunpack.c.l.b16 %v5494
    %v7263 = vunpack.c.h.b16 %v5494
    %v7264 = vunpack.c.l.b16 %v5495
    %v7265 = vunpack.c.h.b16 %v5495
    %v7266 = vunpack.c.l.b16 %v5496
    %v7267 = vunpack.c.l.b16 %v5497
    %v7268 = vunpack.c.h.b16 %v5497
    %v7269 = vunpack.c.l.b16 %v5498
    %v7270 = vunpack.c.h.b16 %v5498
    %v7271 = vunpack.c.l.b16 %v5499
    %v7272 = vunpack.c.h.b16 %v5499
    %v7273 = vunpack.c.l.b16 %v5500
    %v7274 = vunpack.c.l.b16 %v5501
    %v7275 = vunpack.c.h.b16 %v5501
    %v7276 = vunpack.c.l.b16 %v5502
    %v7277 = vunpack.c.h.b16 %v5502
    %v7278 = vunpack.c.l.b16 %v5503
    %v7279 = vunpack.c.h.b16 %v5503
    %v7280 = vunpack.c.l.b16 %v5504
    %v7281 = vunpack.c.l.b16 %v5505
    %v7282 = vunpack.c.h.b16 %v5505
    %v7283 = vunpack.c.l.b16 %v5506
    %v7284 = vunpack.c.h.b16 %v5506
    %v7285 = vunpack.c.l.b16 %v5507
    %v7286 = vunpack.c.h.b16 %v5507
    %v7287 = vunpack.c.l.b16 %v5508
    %v7288 = vunpack.c.l.b16 %v5509
    %v7289 = vunpack.c.h.b16 %v5509
    %v7290 = vunpack.c.l.b16 %v5510
    %v7291 = vunpack.c.h.b16 %v5510
    %v7292 = vunpack.c.l.b16 %v5511
    %v7293 = vunpack.c.h.b16 %v5511
    %v7294 = vunpack.c.l.b16 %v5512
    %v7295 = vunpack.c.l.b16 %v5513
    %v7296 = vunpack.c.h.b16 %v5513
    %v7297 = vunpack.c.l.b16 %v5514
    %v7298 = vunpack.c.h.b16 %v5514
    %v7299 = vunpack.c.l.b16 %v5515
    %v7300 = vunpack.c.h.b16 %v5515
    %v7301 = vunpack.c.l.b16 %v5516
    %v7302 = vunpack.c.l.b16 %v5517
    %v7303 = vunpack.c.h.b16 %v5517
    %v7304 = vunpack.c.l.b16 %v5518
    %v7305 = vunpack.c.h.b16 %v5518
    %v7306 = vunpack.c.l.b16 %v5519
    %v7307 = vunpack.c.h.b16 %v5519
    %v7308 = vunpack.c.l.b16 %v5520
    %v7309 = vunpack.c.l.b16 %v5521
    %v7310 = vunpack.c.h.b16 %v5521
    %v7311 = vunpack.c.l.b16 %v5522
    %v7312 = vunpack.c.h.b16 %v5522
    %v7313 = vunpack.c.l.b16 %v5523
    %v7314 = vunpack.c.h.b16 %v5523
    %v7315 = vunpack.c.l.b16 %v5524
    %v7316 = vunpack.c.l.b16 %v5525
    %v7317 = vunpack.c.h.b16 %v5525
    %v7318 = vunpack.c.l.b16 %v5526
    %v7319 = vunpack.c.h.b16 %v5526
    %v7320 = vunpack.c.l.b16 %v5527
    %v7321 = vunpack.c.h.b16 %v5527
    %v7322 = vunpack.c.l.b16 %v5528
    %v7323 = vunpack.c.l.b16 %v5529
    %v7324 = vunpack.c.h.b16 %v5529
    %v7325 = vunpack.c.l.b16 %v5530
    %v7326 = vunpack.c.h.b16 %v5530
    %v7327 = vunpack.c.l.b16 %v5531
    %v7328 = vunpack.c.h.b16 %v5531
    %v7329 = vunpack.c.l.b16 %v5532
    %v7330 = vunpack.c.l.b16 %v5533
    %v7331 = vunpack.c.h.b16 %v5533
    %v7332 = vunpack.c.l.b16 %v5534
    %v7333 = vunpack.c.h.b16 %v5534
    %v7334 = vunpack.c.l.b16 %v5535
    %v7335 = vunpack.c.h.b16 %v5535
    %v7336 = vunpack.c.l.b16 %v5536
    %v7337 = vunpack.c.l.b16 %v5537
    %v7338 = vunpack.c.h.b16 %v5537
    %v7339 = vunpack.c.l.b16 %v5538
    %v7340 = vunpack.c.h.b16 %v5538
    %v7341 = vunpack.c.l.b16 %v5539
    %v7342 = vunpack.c.h.b16 %v5539
    %v7343 = vunpack.c.l.b16 %v5540
    %v7344 = vunpack.c.l.b16 %v5541
    %v7345 = vunpack.c.h.b16 %v5541
    %v7346 = vunpack.c.l.b16 %v5542
    %v7347 = vunpack.c.h.b16 %v5542
    %v7348 = vunpack.c.l.b16 %v5543
    %v7349 = vunpack.c.h.b16 %v5543
    %v7350 = vunpack.c.l.b16 %v5544
    %v7351 = vunpack.c.l.b16 %v5545
    %v7352 = vunpack.c.h.b16 %v5545
    %v7353 = vunpack.c.l.b16 %v5546
    %v7354 = vunpack.c.h.b16 %v5546
    %v7355 = vunpack.c.l.b16 %v5547
    %v7356 = vunpack.c.h.b16 %v5547
    %v7357 = vunpack.c.l.b16 %v5548
    %v7358 = vunpack.c.l.b16 %v5549
    %v7359 = vunpack.c.h.b16 %v5549
    %v7360 = vunpack.c.l.b16 %v5550
    %v7361 = vunpack.c.h.b16 %v5550
    %v7362 = vunpack.c.l.b16 %v5551
    %v7363 = vunpack.c.h.b16 %v5551
    %v7364 = vunpack.c.l.b16 %v5552
    %v7365 = vunpack.c.l.b16 %v5553
    %v7366 = vunpack.c.h.b16 %v5553
    %v7367 = vunpack.c.l.b16 %v5554
    %v7368 = vunpack.c.h.b16 %v5554
    %v7369 = vunpack.c.l.b16 %v5555
    %v7370 = vunpack.c.h.b16 %v5555
    %v7371 = vunpack.c.l.b16 %v5556
    %v7372 = vunpack.c.l.b16 %v5557
    %v7373 = vunpack.c.h.b16 %v5557
    %v7374 = vunpack.c.l.b16 %v5558
    %v7375 = vunpack.c.h.b16 %v5558
    %v7376 = vunpack.c.l.b16 %v5559
    %v7377 = vunpack.c.h.b16 %v5559
    %v7378 = vunpack.c.l.b16 %v5560
    %v7379 = vunpack.c.l.b16 %v5561
    %v7380 = vunpack.c.h.b16 %v5561
    %v7381 = vunpack.c.l.b16 %v5562
    %v7382 = vunpack.c.h.b16 %v5562
    %v7383 = vunpack.c.l.b16 %v5563
    %v7384 = vunpack.c.h.b16 %v5563
    %v7385 = vunpack.c.l.b16 %v5564
    %v7386 = vunpack.c.l.b16 %v5565
    %v7387 = vunpack.c.h.b16 %v5565
    %v7388 = vunpack.c.l.b16 %v5566
    %v7389 = vunpack.c.h.b16 %v5566
    %v7390 = vunpack.c.l.b16 %v5567
    %v7391 = vunpack.c.h.b16 %v5567
    %v7392 = vunpack.c.l.b16 %v5568
    %v7393 = vunpack.c.l.b16 %v5569
    %v7394 = vunpack.c.h.b16 %v5569
    %v7395 = vunpack.c.l.b16 %v5570
    %v7396 = vunpack.c.h.b16 %v5570
    %v7397 = vunpack.c.l.b16 %v5571
    %v7398 = vunpack.c.h.b16 %v5571
    %v7399 = vunpack.c.l.b16 %v5572
    %v7400 = vunpack.c.l.b16 %v5573
    %v7401 = vunpack.c.h.b16 %v5573
    %v7402 = vunpack.c.l.b16 %v5574
    %v7403 = vunpack.c.h.b16 %v5574
    %v7404 = vunpack.c.l.b16 %v5575
    %v7405 = vunpack.c.h.b16 %v5575
    %v7406 = vunpack.c.l.b16 %v5576
    %v7407 = vunpack.c.l.b16 %v5577
    %v7408 = vunpack.c.h.b16 %v5577
    %v7409 = vunpack.c.l.b16 %v5578
    %v7410 = vunpack.c.h.b16 %v5578
    %v7411 = vunpack.c.l.b16 %v5579
    %v7412 = vunpack.c.h.b16 %v5579
    %v7413 = vunpack.c.l.b16 %v5580
    %v7414 = vunpack.c.l.b16 %v5581
    %v7415 = vunpack.c.h.b16 %v5581
    %v7416 = vunpack.c.l.b16 %v5582
    %v7417 = vunpack.c.h.b16 %v5582
    %v7418 = vunpack.c.l.b16 %v5583
    %v7419 = vunpack.c.h.b16 %v5583
    %v7420 = vunpack.c.l.b16 %v5584
    %v7421 = vunpack.c.l.b16 %v5585
    %v7422 = vunpack.c.h.b16 %v5585
    %v7423 = vunpack.c.l.b16 %v5586
    %v7424 = vunpack.c.h.b16 %v5586
    %v7425 = vunpack.c.l.b16 %v5587
    %v7426 = vunpack.c.h.b16 %v5587
    %v7427 = vunpack.c.l.b16 %v5588
    %v7428 = vunpack.c.l.b16 %v5589
    %v7429 = vunpack.c.h.b16 %v5589
    %v7430 = vunpack.c.l.b16 %v5590
    %v7431 = vunpack.c.h.b16 %v5590
    %v7432 = vunpack.c.l.b16 %v5591
    %v7433 = vunpack.c.h.b16 %v5591
    %v7434 = vunpack.c.l.b16 %v5592
    %v7435 = vunpack.c.l.b16 %v5593
    %v7436 = vunpack.c.h.b16 %v5593
    %v7437 = vunpack.c.l.b16 %v5594
    %v7438 = vunpack.c.h.b16 %v5594
    %v7439 = vunpack.c.l.b16 %v5595
    %v7440 = vunpack.c.h.b16 %v5595
    %v7441 = vunpack.c.l.b16 %v5596
    %v7442 = vunpack.c.l.b16 %v5597
    %v7443 = vunpack.c.h.b16 %v5597
    %v7444 = vunpack.c.l.b16 %v5598
    %v7445 = vunpack.c.h.b16 %v5598
    %v7446 = vunpack.c.l.b16 %v5599
    %v7447 = vunpack.c.h.b16 %v5599
    %v7448 = vunpack.c.l.b16 %v5600
    %v7449 = vunpack.c.l.b16 %v5601
    %v7450 = vunpack.c.h.b16 %v5601
    %v7451 = vunpack.c.l.b16 %v5602
    %v7452 = vunpack.c.h.b16 %v5602
    %v7453 = vunpack.c.l.b16 %v5603
    %v7454 = vunpack.c.h.b16 %v5603
    %v7455 = vunpack.c.l.b16 %v5604
    %v7456 = vunpack.c.l.b16 %v5605
    %v7457 = vunpack.c.h.b16 %v5605
    %v7458 = vunpack.c.l.b16 %v5606
    %v7459 = vunpack.c.h.b16 %v5606
    %v7460 = vunpack.c.l.b16 %v5607
    %v7461 = vunpack.c.h.b16 %v5607
    %v7462 = vunpack.c.l.b16 %v5608
    %v7463 = vunpack.c.l.b16 %v5609
    %v7464 = vunpack.c.h.b16 %v5609
    %v7465 = vunpack.c.l.b16 %v5610
    %v7466 = vunpack.c.h.b16 %v5610
    %v7467 = vunpack.c.l.b16 %v5611
    %v7468 = vunpack.c.h.b16 %v5611
    %v7469 = vunpack.c.l.b16 %v5612
    %v7470 = vunpack.c.l.b16 %v5613
    %v7471 = vunpack.c.h.b16 %v5613
    %v7472 = vunpack.c.l.b16 %v5614
    %v7473 = vunpack.c.h.b16 %v5614
    %v7474 = vunpack.c.l.b16 %v5615
    %v7475 = vunpack.c.h.b16 %v5615
    %v7476 = vunpack.c.l.b16 %v5616
    %v7477 = vunpack.c.l.b16 %v5617
    %v7478 = vunpack.c.h.b16 %v5617
    %v7479 = vunpack.c.l.b16 %v5618
    %v7480 = vunpack.c.h.b16 %v5618
    %v7481 = vunpack.c.l.b16 %v5619
    %v7482 = vunpack.c.h.b16 %v5619
    %v7483 = vunpack.c.l.b16 %v5620
    %v7484 = vunpack.c.l.b16 %v5621
    %v7485 = vunpack.c.h.b16 %v5621
    %v7486 = vunpack.c.l.b16 %v5622
    %v7487 = vunpack.c.h.b16 %v5622
    %v7488 = vunpack.c.l.b16 %v5623
    %v7489 = vunpack.c.h.b16 %v5623
    %v7490 = vunpack.c.l.b16 %v5624
    %v7491 = vunpack.c.l.b16 %v5625
    %v7492 = vunpack.c.h.b16 %v5625
    %v7493 = vunpack.c.l.b16 %v5626
    %v7494 = vunpack.c.h.b16 %v5626
    %v7495 = vunpack.c.l.b16 %v5627
    %v7496 = vunpack.c.h.b16 %v5627
    %v7497 = vunpack.c.l.b16 %v5628
    %v7498 = vunpack.c.l.b16 %v5629
    %v7499 = vunpack.c.h.b16 %v5629
    %v7500 = vunpack.c.l.b16 %v5630
    %v7501 = vunpack.c.h.b16 %v5630
    %v7502 = vunpack.c.l.b16 %v5631
    %v7503 = vunpack.c.h.b16 %v5631
    %v7504 = vunpack.c.l.b16 %v5632
    %v7505 = vunpack.c.l.b16 %v5633
    %v7506 = vunpack.c.h.b16 %v5633
    %v7507 = vunpack.c.l.b16 %v5634
    %v7508 = vunpack.c.h.b16 %v5634
    %v7509 = vunpack.c.l.b16 %v5635
    %v7510 = vunpack.c.h.b16 %v5635
    %v7511 = vunpack.c.l.b16 %v5636
    %v7512 = vunpack.c.l.b16 %v5637
    %v7513 = vunpack.c.h.b16 %v5637
    %v7514 = vunpack.c.l.b16 %v5638
    %v7515 = vunpack.c.h.b16 %v5638
    %v7516 = vunpack.c.l.b16 %v5639
    %v7517 = vunpack.c.h.b16 %v5639
    %v7518 = vunpack.c.l.b16 %v5640
    %v7519 = vunpack.c.l.b16 %v5641
    %v7520 = vunpack.c.h.b16 %v5641
    %v7521 = vunpack.c.l.b16 %v5642
    %v7522 = vunpack.c.h.b16 %v5642
    %v7523 = vunpack.c.l.b16 %v5643
    %v7524 = vunpack.c.h.b16 %v5643
    %v7525 = vunpack.c.l.b16 %v5644
    %v7526 = vunpack.c.l.b16 %v5645
    %v7527 = vunpack.c.h.b16 %v5645
    %v7528 = vunpack.c.l.b16 %v5646
    %v7529 = vunpack.c.h.b16 %v5646
    %v7530 = vunpack.c.l.b16 %v5647
    %v7531 = vunpack.c.h.b16 %v5647
    %v7532 = vunpack.c.l.b16 %v5648
    %v7533 = vunpack.c.l.b16 %v5649
    %v7534 = vunpack.c.h.b16 %v5649
    %v7535 = vunpack.c.l.b16 %v5650
    %v7536 = vunpack.c.h.b16 %v5650
    %v7537 = vunpack.c.l.b16 %v5651
    %v7538 = vunpack.c.h.b16 %v5651
    %v7539 = vunpack.c.l.b16 %v5652
    %v7540 = vunpack.c.l.b16 %v5653
    %v7541 = vunpack.c.h.b16 %v5653
    %v7542 = vunpack.c.l.b16 %v5654
    %v7543 = vunpack.c.h.b16 %v5654
    %v7544 = vunpack.c.l.b16 %v5655
    %v7545 = vunpack.c.h.b16 %v5655
    %v7546 = vunpack.c.l.b16 %v5656
    %v7547 = vunpack.c.l.b16 %v5657
    %v7548 = vunpack.c.h.b16 %v5657
    %v7549 = vunpack.c.l.b16 %v5658
    %v7550 = vunpack.c.h.b16 %v5658
    %v7551 = vunpack.c.l.b16 %v5659
    %v7552 = vunpack.c.h.b16 %v5659
    %v7553 = vunpack.c.l.b16 %v5660
    %v7554 = vunpack.c.l.b16 %v5661
    %v7555 = vunpack.c.h.b16 %v5661
    %v7556 = vunpack.c.l.b16 %v5662
    %v7557 = vunpack.c.h.b16 %v5662
    %v7558 = vunpack.c.l.b16 %v5663
    %v7559 = vunpack.c.h.b16 %v5663
    %v7560 = vunpack.c.l.b16 %v5664
    %v7561 = vunpack.c.l.b16 %v5665
    %v7562 = vunpack.c.h.b16 %v5665
    %v7563 = vunpack.c.l.b16 %v5666
    %v7564 = vunpack.c.h.b16 %v5666
    %v7565 = vunpack.c.l.b16 %v5667
    %v7566 = vunpack.c.h.b16 %v5667
    %v7567 = vunpack.c.l.b16 %v5668
    %v7568 = vunpack.c.l.b16 %v5669
    %v7569 = vunpack.c.h.b16 %v5669
    %v7570 = vunpack.c.l.b16 %v5670
    %v7571 = vunpack.c.h.b16 %v5670
    %v7572 = vunpack.c.l.b16 %v5671
    %v7573 = vunpack.c.h.b16 %v5671
    %v7574 = vunpack.c.l.b16 %v5672
    %v7575 = vunpack.c.l.b16 %v5673
    %v7576 = vunpack.c.h.b16 %v5673
    %v7577 = vunpack.c.l.b16 %v5674
    %v7578 = vunpack.c.h.b16 %v5674
    %v7579 = vunpack.c.l.b16 %v5675
    %v7580 = vunpack.c.h.b16 %v5675
    %v7581 = vunpack.c.l.b16 %v5676
    %v7582 = vunpack.c.l.b16 %v5677
    %v7583 = vunpack.c.h.b16 %v5677
    %v7584 = vunpack.c.l.b16 %v5678
    %v7585 = vunpack.c.h.b16 %v5678
    %v7586 = vunpack.c.l.b16 %v5679
    %v7587 = vunpack.c.h.b16 %v5679
    %v7588 = vunpack.c.l.b16 %v5680
    %v7589 = vunpack.c.l.b16 %v5681
    %v7590 = vunpack.c.h.b16 %v5681
    %v7591 = vunpack.c.l.b16 %v5682
    %v7592 = vunpack.c.h.b16 %v5682
    %v7593 = vunpack.c.l.b16 %v5683
    %v7594 = vunpack.c.h.b16 %v5683
    %v7595 = vunpack.c.l.b16 %v5684
    %v7596 = vunpack.c.l.b16 %v5685
    %v7597 = vunpack.c.h.b16 %v5685
    %v7598 = vunpack.c.l.b16 %v5686
    %v7599 = vunpack.c.h.b16 %v5686
    %v7600 = vunpack.c.l.b16 %v5687
    %v7601 = vunpack.c.h.b16 %v5687
    %v7602 = vunpack.c.l.b16 %v5688
    %v7603 = vunpack.c.l.b16 %v5689
    %v7604 = vunpack.c.h.b16 %v5689
    %v7605 = vunpack.c.l.b16 %v5690
    %v7606 = vunpack.c.h.b16 %v5690
    %v7607 = vunpack.c.l.b16 %v5691
    %v7608 = vunpack.c.h.b16 %v5691
    %v7609 = vunpack.c.l.b16 %v5692
    %v7610 = vunpack.c.l.b16 %v5693
    %v7611 = vunpack.c.h.b16 %v5693
    %v7612 = vunpack.c.l.b16 %v5694
    %v7613 = vunpack.c.h.b16 %v5694
    %v7614 = vunpack.c.l.b16 %v5695
    %v7615 = vunpack.c.h.b16 %v5695
    %v7616 = vunpack.c.l.b16 %v5696
    %v7617 = vunpack.c.l.b16 %v5697
    %v7618 = vunpack.c.h.b16 %v5697
    %v7619 = vunpack.c.l.b16 %v5698
    %v7620 = vunpack.c.h.b16 %v5698
    %v7621 = vunpack.c.l.b16 %v5699
    %v7622 = vunpack.c.h.b16 %v5699
    %v7623 = vunpack.c.l.b16 %v5700
    %v7624 = vunpack.c.l.b16 %v5701
    %v7625 = vunpack.c.h.b16 %v5701
    %v7626 = vunpack.c.l.b16 %v5702
    %v7627 = vunpack.c.h.b16 %v5702
    %v7628 = vunpack.c.l.b16 %v5703
    %v7629 = vunpack.c.h.b16 %v5703
    %v7630 = vunpack.c.l.b16 %v5704
    %v7631 = vunpack.c.l.b16 %v5705
    %v7632 = vunpack.c.h.b16 %v5705
    %v7633 = vunpack.c.l.b16 %v5706
    %v7634 = vunpack.c.h.b16 %v5706
    %v7635 = vunpack.c.l.b16 %v5707
    %v7636 = vunpack.c.h.b16 %v5707
    %v7637 = vunpack.c.l.b16 %v5708
    %v7638 = vunpack.c.l.b16 %v5709
    %v7639 = vunpack.c.h.b16 %v5709
    %v7640 = vunpack.c.l.b16 %v5710
    %v7641 = vunpack.c.h.b16 %v5710
    %v7642 = vunpack.c.l.b16 %v5711
    %v7643 = vunpack.c.h.b16 %v5711
    %v7644 = vunpack.c.l.b16 %v5712
    %v7645 = vunpack.c.l.b16 %v5713
    %v7646 = vunpack.c.h.b16 %v5713
    %v7647 = vunpack.c.l.b16 %v5714
    %v7648 = vunpack.c.h.b16 %v5714
    %v7649 = vunpack.c.l.b16 %v5715
    %v7650 = vunpack.c.h.b16 %v5715
    %v7651 = vunpack.c.l.b16 %v5716
    %v7652 = vunpack.c.l.b16 %v5717
    %v7653 = vunpack.c.h.b16 %v5717
    %v7654 = vunpack.c.l.b16 %v5718
    %v7655 = vunpack.c.h.b16 %v5718
    %v7656 = vunpack.c.l.b16 %v5719
    %v7657 = vunpack.c.h.b16 %v5719
    %v7658 = vunpack.c.l.b16 %v5720
    %v7659 = vunpack.c.l.b16 %v5721
    %v7660 = vunpack.c.h.b16 %v5721
    %v7661 = vunpack.c.l.b16 %v5722
    %v7662 = vunpack.c.h.b16 %v5722
    %v7663 = vunpack.c.l.b16 %v5723
    %v7664 = vunpack.c.h.b16 %v5723
    %v7665 = vunpack.c.l.b16 %v5724
    %v7666 = vunpack.c.l.b16 %v5725
    %v7667 = vunpack.c.h.b16 %v5725
    %v7668 = vunpack.c.l.b16 %v5726
    %v7669 = vunpack.c.h.b16 %v5726
    %v7670 = vunpack.c.l.b16 %v5727
    %v7671 = vunpack.c.h.b16 %v5727
    %v7672 = vunpack.c.l.b16 %v5728
    %v7673 = vunpack.c.l.b16 %v5729
    %v7674 = vunpack.c.h.b16 %v5729
    %v7675 = vunpack.c.l.b16 %v5730
    %v7676 = vunpack.c.h.b16 %v5730
    %v7677 = vunpack.c.l.b16 %v5731
    %v7678 = vunpack.c.h.b16 %v5731
    %v7679 = vunpack.c.l.b16 %v5732
    %v7680 = vunpack.c.l.b16 %v5733
    %v7681 = vunpack.c.h.b16 %v5733
    %v7682 = vunpack.c.l.b16 %v5734
    %v7683 = vunpack.c.h.b16 %v5734
    %v7684 = vunpack.c.l.b16 %v5735
    %v7685 = vunpack.c.h.b16 %v5735
    %v7686 = vunpack.c.l.b16 %v5736
    %v7687 = vunpack.c.l.b16 %v5737
    %v7688 = vunpack.c.h.b16 %v5737
    %v7689 = vunpack.c.l.b16 %v5738
    %v7690 = vunpack.c.h.b16 %v5738
    %v7691 = vunpack.c.l.b16 %v5739
    %v7692 = vunpack.c.h.b16 %v5739
    %v7693 = vunpack.c.l.b16 %v5740
    %v7694 = vunpack.c.l.b16 %v5741
    %v7695 = vunpack.c.h.b16 %v5741
    %v7696 = vunpack.c.l.b16 %v5742
    %v7697 = vunpack.c.h.b16 %v5742
    %v7698 = vunpack.c.l.b16 %v5743
    %v7699 = vunpack.c.h.b16 %v5743
    %v7700 = vunpack.c.l.b16 %v5744
    %v7701 = vunpack.c.l.b16 %v5745
    %v7702 = vunpack.c.h.b16 %v5745
    %v7703 = vunpack.c.l.b16 %v5746
    %v7704 = vunpack.c.h.b16 %v5746
    %v7705 = vunpack.c.l.b16 %v5747
    %v7706 = vunpack.c.h.b16 %v5747
    %v7707 = vunpack.c.l.b16 %v5748
    %v7708 = vunpack.c.l.b16 %v5749
    %v7709 = vunpack.c.h.b16 %v5749
    %v7710 = vunpack.c.l.b16 %v5750
    %v7711 = vunpack.c.h.b16 %v5750
    %v7712 = vunpack.c.l.b16 %v5751
    %v7713 = vunpack.c.h.b16 %v5751
    %v7714 = vunpack.c.l.b16 %v5752
    %v7715 = vunpack.c.l.b16 %v5753
    %v7716 = vunpack.c.h.b16 %v5753
    %v7717 = vunpack.c.l.b16 %v5754
    %v7718 = vunpack.c.h.b16 %v5754
    %v7719 = vunpack.c.l.b16 %v5755
    %v7720 = vunpack.c.h.b16 %v5755
    %v7721 = vunpack.c.l.b16 %v5756
    %v7722 = vunpack.c.l.b16 %v5757
    %v7723 = vunpack.c.h.b16 %v5757
    %v7724 = vunpack.c.l.b16 %v5758
    %v7725 = vunpack.c.h.b16 %v5758
    %v7726 = vunpack.c.l.b16 %v5759
    %v7727 = vunpack.c.h.b16 %v5759
    %v7728 = vunpack.c.l.b16 %v5760
    %v7729 = vunpack.c.l.b16 %v5761
    %v7730 = vunpack.c.h.b16 %v5761
    %v7731 = vunpack.c.l.b16 %v5762
    %v7732 = vunpack.c.h.b16 %v5762
    %v7733 = vunpack.c.l.b16 %v5763
    %v7734 = vunpack.c.h.b16 %v5763
    %v7735 = vunpack.c.l.b16 %v5764
    %v7736 = vunpack.c.l.b16 %v5765
    %v7737 = vunpack.c.h.b16 %v5765
    %v7738 = vunpack.c.l.b16 %v5766
    %v7739 = vunpack.c.h.b16 %v5766
    %v7740 = vunpack.c.l.b16 %v5767
    %v7741 = vunpack.c.h.b16 %v5767
    %v7742 = vunpack.c.l.b16 %v5768
    %v7743 = vunpack.c.l.b16 %v5769
    %v7744 = vunpack.c.h.b16 %v5769
    %v7745 = vunpack.c.l.b16 %v5770
    %v7746 = vunpack.c.h.b16 %v5770
    %v7747 = vunpack.c.l.b16 %v5771
    %v7748 = vunpack.c.h.b16 %v5771
    %v7749 = vunpack.c.l.b16 %v5772
    %v7750 = vunpack.c.l.b16 %v5773
    %v7751 = vunpack.c.h.b16 %v5773
    %v7752 = vunpack.c.l.b16 %v5774
    %v7753 = vunpack.c.h.b16 %v5774
    %v7754 = vunpack.c.l.b16 %v5775
    %v7755 = vunpack.c.h.b16 %v5775
    %v7756 = vunpack.c.l.b16 %v5776
    %v7757 = vunpack.c.l.b16 %v5777
    %v7758 = vunpack.c.h.b16 %v5777
    %v7759 = vunpack.c.l.b16 %v5778
    %v7760 = vunpack.c.h.b16 %v5778
    %v7761 = vunpack.c.l.b16 %v5779
    %v7762 = vunpack.c.h.b16 %v5779
    %v7763 = vunpack.c.l.b16 %v5780
    %v7764 = vunpack.c.l.b16 %v5781
    %v7765 = vunpack.c.h.b16 %v5781
    %v7766 = vunpack.c.l.b16 %v5782
    %v7767 = vunpack.c.h.b16 %v5782
    %v7768 = vunpack.c.l.b16 %v5783
    %v7769 = vunpack.c.h.b16 %v5783
    %v7770 = vunpack.c.l.b16 %v5784
    %v7771 = vunpack.c.l.b16 %v5785
    %v7772 = vunpack.c.h.b16 %v5785
    %v7773 = vunpack.c.l.b16 %v5786
    %v7774 = vunpack.c.h.b16 %v5786
    %v7775 = vunpack.c.l.b16 %v5787
    %v7776 = vunpack.c.h.b16 %v5787
    %v7777 = vunpack.c.l.b16 %v5788
    %v7778 = vunpack.c.l.b16 %v5789
    %v7779 = vunpack.c.h.b16 %v5789
    %v7780 = vunpack.c.l.b16 %v5790
    %v7781 = vunpack.c.h.b16 %v5790
    %v7782 = vunpack.c.l.b16 %v5791
    %v7783 = vunpack.c.h.b16 %v5791
    %v7784 = vunpack.c.l.b16 %v5792
    %v7785 = vunpack.c.l.b16 %v5793
    %v7786 = vunpack.c.h.b16 %v5793
    %v7787 = vunpack.c.l.b16 %v5794
    %v7788 = vunpack.c.h.b16 %v5794
    %v7789 = vunpack.c.l.b16 %v5795
    %v7790 = vunpack.c.h.b16 %v5795
    %v7791 = vunpack.c.l.b16 %v5796
    %v7792 = vunpack.c.l.b16 %v5797
    %v7793 = vunpack.c.h.b16 %v5797
    %v7794 = vunpack.c.l.b16 %v5798
    %v7795 = vunpack.c.h.b16 %v5798
    %v7796 = vunpack.c.l.b16 %v5799
    %v7797 = vunpack.c.h.b16 %v5799
    %v7798 = vunpack.c.l.b16 %v5800
    %v7799 = vunpack.c.l.b16 %v5801
    %v7800 = vunpack.c.h.b16 %v5801
    %v7801 = vunpack.c.l.b16 %v5802
    %v7802 = vunpack.c.h.b16 %v5802
    %v7803 = vunpack.c.l.b16 %v5803
    %v7804 = vunpack.c.h.b16 %v5803
    %v7805 = vunpack.c.l.b16 %v5804
    %v7806 = vunpack.c.l.b16 %v5805
    %v7807 = vunpack.c.h.b16 %v5805
    %v7808 = vunpack.c.l.b16 %v5806
    %v7809 = vunpack.c.h.b16 %v5806
    %v7810 = vunpack.c.l.b16 %v5807
    %v7811 = vunpack.c.h.b16 %v5807
    %v7812 = vunpack.c.l.b16 %v5808
    %v7813 = vunpack.c.l.b16 %v5809
    %v7814 = vunpack.c.h.b16 %v5809
    %v7815 = vunpack.c.l.b16 %v5810
    %v7816 = vunpack.c.h.b16 %v5810
    %v7817 = vunpack.c.l.b16 %v5811
    %v7818 = vunpack.c.h.b16 %v5811
    %v7819 = vunpack.c.l.b16 %v5812
    %v7820 = vunpack.c.l.b16 %v5813
    %v7821 = vunpack.c.h.b16 %v5813
    %v7822 = vunpack.c.l.b16 %v5814
    %v7823 = vunpack.c.h.b16 %v5814
    %v7824 = vunpack.c.l.b16 %v5815
    %v7825 = vunpack.c.h.b16 %v5815
    %v7826 = vunpack.c.l.b16 %v5816
    %v7827 = vunpack.c.l.b16 %v5817
    %v7828 = vunpack.c.h.b16 %v5817
    %v7829 = vunpack.c.l.b16 %v5818
    %v7830 = vunpack.c.h.b16 %v5818
    %v7831 = vunpack.c.l.b16 %v5819
    %v7832 = vunpack.c.h.b16 %v5819
    %v7833 = vunpack.c.l.b16 %v5820
    %v7834 = vunpack.c.l.b16 %v5821
    %v7835 = vunpack.c.h.b16 %v5821
    %v7836 = vunpack.c.l.b16 %v5822
    %v7837 = vunpack.c.h.b16 %v5822
    %v7838 = vunpack.c.l.b16 %v5823
    %v7839 = vunpack.c.h.b16 %v5823
    %v7840 = vunpack.c.l.b16 %v5824
    %v7841 = vunpack.c.l.b16 %v5825
    %v7842 = vunpack.c.h.b16 %v5825
    %v7843 = vunpack.c.l.b16 %v5826
    %v7844 = vunpack.c.h.b16 %v5826
    %v7845 = vunpack.c.l.b16 %v5827
    %v7846 = vunpack.c.h.b16 %v5827
    %v7847 = vunpack.c.l.b16 %v5828
    %v7848 = vunpack.c.l.b16 %v5829
    %v7849 = vunpack.c.h.b16 %v5829
    %v7850 = vunpack.c.l.b16 %v5830
    %v7851 = vunpack.c.h.b16 %v5830
    %v7852 = vunpack.c.l.b16 %v5831
    %v7853 = vunpack.c.h.b16 %v5831
    %v7854 = vunpack.c.l.b16 %v5832
    %v7855 = vunpack.c.l.b16 %v5833
    %v7856 = vunpack.c.h.b16 %v5833
    %v7857 = vunpack.c.l.b16 %v5834
    %v7858 = vunpack.c.h.b16 %v5834
    %v7859 = vunpack.c.l.b16 %v5835
    %v7860 = vunpack.c.h.b16 %v5835
    %v7861 = vunpack.c.l.b16 %v5836
    %v7862 = vunpack.c.l.b16 %v5837
    %v7863 = vunpack.c.h.b16 %v5837
    %v7864 = vunpack.c.l.b16 %v5838
    %v7865 = vunpack.c.h.b16 %v5838
    %v7866 = vunpack.c.l.b16 %v5839
    %v7867 = vunpack.c.h.b16 %v5839
    %v7868 = vunpack.c.l.b16 %v5840
    %v7869 = vunpack.c.l.b16 %v5841
    %v7870 = vunpack.c.h.b16 %v5841
    %v7871 = vunpack.c.l.b16 %v5842
    %v7872 = vunpack.c.h.b16 %v5842
    %v7873 = vunpack.c.l.b16 %v5843
    %v7874 = vunpack.c.h.b16 %v5843
    %v7875 = vunpack.c.l.b16 %v5844
    %v7876 = vunpack.c.l.b16 %v5845
    %v7877 = vunpack.c.h.b16 %v5845
    %v7878 = vunpack.c.l.b16 %v5846
    %v7879 = vunpack.c.h.b16 %v5846
    %v7880 = vunpack.c.l.b16 %v5847
    %v7881 = vunpack.c.h.b16 %v5847
    %v7882 = vunpack.c.l.b16 %v5848
    %v7883 = vunpack.c.l.b16 %v5849
    %v7884 = vunpack.c.h.b16 %v5849
    %v7885 = vunpack.c.l.b16 %v5850
    %v7886 = vunpack.c.h.b16 %v5850
    %v7887 = vunpack.c.l.b16 %v5851
    %v7888 = vunpack.c.h.b16 %v5851
    %v7889 = vunpack.c.l.b16 %v5852
    %v7890 = vunpack.c.l.b16 %v5853
    %v7891 = vunpack.c.h.b16 %v5853
    %v7892 = vunpack.c.l.b16 %v5854
    %v7893 = vunpack.c.h.b16 %v5854
    %v7894 = vunpack.c.l.b16 %v5855
    %v7895 = vunpack.c.h.b16 %v5855
    %v7896 = vunpack.c.l.b16 %v5856
    %v7897 = vunpack.c.l.b16 %v5857
    %v7898 = vunpack.c.h.b16 %v5857
    %v7899 = vunpack.c.l.b16 %v5858
    %v7900 = vunpack.c.h.b16 %v5858
    %v7901 = vunpack.c.l.b16 %v5859
    %v7902 = vunpack.c.h.b16 %v5859
    %v7903 = vunpack.c.l.b16 %v5860
    %v7904 = vunpack.c.l.b16 %v5861
    %v7905 = vunpack.c.h.b16 %v5861
    %v7906 = vunpack.c.l.b16 %v5862
    %v7907 = vunpack.c.h.b16 %v5862
    %v7908 = vunpack.c.l.b16 %v5863
    %v7909 = vunpack.c.h.b16 %v5863
    %v7910 = vunpack.c.l.b16 %v5864
    %v7911 = vunpack.c.l.b16 %v5865
    %v7912 = vunpack.c.h.b16 %v5865
    %v7913 = vunpack.c.l.b16 %v5866
    %v7914 = vunpack.c.h.b16 %v5866
    %v7915 = vunpack.c.l.b16 %v5867
    %v7916 = vunpack.c.h.b16 %v5867
    %v7917 = vunpack.c.l.b16 %v5868
    %v7918 = vunpack.c.l.b16 %v5869
    %v7919 = vunpack.c.h.b16 %v5869
    %v7920 = vunpack.c.l.b16 %v5870
    %v7921 = vunpack.c.h.b16 %v5870
    %v7922 = vunpack.c.l.b16 %v5871
    %v7923 = vunpack.c.h.b16 %v5871
    %v7924 = vunpack.c.l.b16 %v5872
    %v7925 = vunpack.c.l.b16 %v5873
    %v7926 = vunpack.c.h.b16 %v5873
    %v7927 = vunpack.c.l.b16 %v5874
    %v7928 = vunpack.c.h.b16 %v5874
    %v7929 = vunpack.c.l.b16 %v5875
    %v7930 = vunpack.c.h.b16 %v5875
    %v7931 = vunpack.c.l.b16 %v5876
    %v7932 = vunpack.c.l.b16 %v5877
    %v7933 = vunpack.c.h.b16 %v5877
    %v7934 = vunpack.c.l.b16 %v5878
    %v7935 = vunpack.c.h.b16 %v5878
    %v7936 = vunpack.c.l.b16 %v5879
    %v7937 = vunpack.c.h.b16 %v5879
    %v7938 = vunpack.c.l.b16 %v5880
    %v7939 = vunpack.c.l.b16 %v5881
    %v7940 = vunpack.c.h.b16 %v5881
    %v7941 = vunpack.c.l.b16 %v5882
    %v7942 = vunpack.c.h.b16 %v5882
    %v7943 = vunpack.c.l.b16 %v5883
    %v7944 = vunpack.c.h.b16 %v5883
    %v7945 = vunpack.c.l.b16 %v5884
    %v7946 = vunpack.c.l.b16 %v5885
    %v7947 = vunpack.c.h.b16 %v5885
    %v7948 = vunpack.c.l.b16 %v5886
    %v7949 = vunpack.c.h.b16 %v5886
    %v7950 = vunpack.c.l.b16 %v5887
    %v7951 = vunpack.c.h.b16 %v5887
    %v7952 = vunpack.c.l.b16 %v5888
    %v7953 = vunpack.c.l.b16 %v5889
    %v7954 = vunpack.c.h.b16 %v5889
    %v7955 = vunpack.c.l.b16 %v5890
    %v7956 = vunpack.c.h.b16 %v5890
    %v7957 = vunpack.c.l.b16 %v5891
    %v7958 = vunpack.c.h.b16 %v5891
    %v7959 = vunpack.c.l.b16 %v5892
    %v7960 = vunpack.c.l.b16 %v5893
    %v7961 = vunpack.c.h.b16 %v5893
    %v7962 = vunpack.c.l.b16 %v5894
    %v7963 = vunpack.c.h.b16 %v5894
    %v7964 = vunpack.c.l.b16 %v5895
    %v7965 = vunpack.c.h.b16 %v5895
    %v7966 = vunpack.c.l.b16 %v5896
    %v7967 = vunpack.c.l.b16 %v5897
    %v7968 = vunpack.c.h.b16 %v5897
    %v7969 = vunpack.c.l.b16 %v5898
    %v7970 = vunpack.c.h.b16 %v5898
    %v7971 = vunpack.c.l.b16 %v5899
    %v7972 = vunpack.c.h.b16 %v5899
    %v7973 = vunpack.c.l.b16 %v5900
    %v7974 = vunpack.c.l.b16 %v5901
    %v7975 = vunpack.c.h.b16 %v5901
    %v7976 = vunpack.c.l.b16 %v5902
    %v7977 = vunpack.c.h.b16 %v5902
    %v7978 = vunpack.c.l.b16 %v5903
    %v7979 = vunpack.c.h.b16 %v5903
    %v7980 = vunpack.c.l.b16 %v5904
    %v7981 = vunpack.c.l.b16 %v5905
    %v7982 = vunpack.c.h.b16 %v5905
    %v7983 = vunpack.c.l.b16 %v5906
    %v7984 = vunpack.c.h.b16 %v5906
    %v7985 = vunpack.c.l.b16 %v5907
    %v7986 = vunpack.c.h.b16 %v5907
    %v7987 = vunpack.c.l.b16 %v5908
    %v7988 = vunpack.c.l.b16 %v5909
    %v7989 = vunpack.c.h.b16 %v5909
    %v7990 = vunpack.c.l.b16 %v5910
    %v7991 = vunpack.c.h.b16 %v5910
    %v7992 = vunpack.c.l.b16 %v5911
    %v7993 = vunpack.c.h.b16 %v5911
    %v7994 = vunpack.c.l.b16 %v5912
    %v7995 = vunpack.c.l.b16 %v5913
    %v7996 = vunpack.c.h.b16 %v5913
    %v7997 = vunpack.c.l.b16 %v5914
    %v7998 = vunpack.c.h.b16 %v5914
    %v7999 = vunpack.c.l.b16 %v5915
    %v8000 = vunpack.c.h.b16 %v5915
    %v8001 = vunpack.c.l.b16 %v5916
    %v8002 = vunpack.c.l.b16 %v5917
    %v8003 = vunpack.c.h.b16 %v5917
    %v8004 = vunpack.c.l.b16 %v5918
    %v8005 = vunpack.c.h.b16 %v5918
    %v8006 = vunpack.c.l.b16 %v5919
    %v8007 = vunpack.c.h.b16 %v5919
    %v8008 = vunpack.c.l.b16 %v5920
    %v8009 = vunpack.c.l.b16 %v5921
    %v8010 = vunpack.c.h.b16 %v5921
    %v8011 = vunpack.c.l.b16 %v5922
    %v8012 = vunpack.c.h.b16 %v5922
    %v8013 = vunpack.c.l.b16 %v5923
    %v8014 = vunpack.c.h.b16 %v5923
    %v8015 = vunpack.c.l.b16 %v5924
    %v8016 = vunpack.c.l.b16 %v5925
    %v8017 = vunpack.c.h.b16 %v5925
    %v8018 = vunpack.c.l.b16 %v5926
    %v8019 = vunpack.c.h.b16 %v5926
    %v8020 = vunpack.c.l.b16 %v5927
    %v8021 = vunpack.c.h.b16 %v5927
    %v8022 = vunpack.c.l.b16 %v5928
    %v8023 = vunpack.c.l.b16 %v5929
    %v8024 = vunpack.c.h.b16 %v5929
    %v8025 = vunpack.c.l.b16 %v5930
    %v8026 = vunpack.c.h.b16 %v5930
    %v8027 = vunpack.c.l.b16 %v5931
    %v8028 = vunpack.c.h.b16 %v5931
    %v8029 = vunpack.c.l.b16 %v5932
    %v8030 = vunpack.c.l.b16 %v5933
    %v8031 = vunpack.c.h.b16 %v5933
    %v8032 = vunpack.c.l.b16 %v5934
    %v8033 = vunpack.c.h.b16 %v5934
    %v8034 = vunpack.c.l.b16 %v5935
    %v8035 = vunpack.c.h.b16 %v5935
    %v8036 = vunpack.c.l.b16 %v5936
    %v8037 = vunpack.c.l.b16 %v5937
    %v8038 = vunpack.c.h.b16 %v5937
    %v8039 = vunpack.c.l.b16 %v5938
    %v8040 = vunpack.c.h.b16 %v5938
    %v8041 = vunpack.c.l.b16 %v5939
    %v8042 = vunpack.c.h.b16 %v5939
    %v8043 = vunpack.c.l.b16 %v5940
    %v8044 = vunpack.c.l.b16 %v5941
    %v8045 = vunpack.c.h.b16 %v5941
    %v8046 = vunpack.c.l.b16 %v5942
    %v8047 = vunpack.c.h.b16 %v5942
    %v8048 = vunpack.c.l.b16 %v5943
    %v8049 = vunpack.c.h.b16 %v5943
    %v8050 = vunpack.c.l.b16 %v5944
    %v8051 = vunpack.c.l.b16 %v5945
    %v8052 = vunpack.c.h.b16 %v5945
    %v8053 = vunpack.c.l.b16 %v5946
    %v8054 = vunpack.c.h.b16 %v5946
    %v8055 = vunpack.c.l.b16 %v5947
    %v8056 = vunpack.c.h.b16 %v5947
    %v8057 = vunpack.c.l.b16 %v5948
    %v8058 = vunpack.c.l.b16 %v5949
    %v8059 = vunpack.c.h.b16 %v5949
    %v8060 = vunpack.c.l.b16 %v5950
    %v8061 = vunpack.c.h.b16 %v5950
    %v8062 = vunpack.c.l.b16 %v5951
    %v8063 = vunpack.c.h.b16 %v5951
    %v8064 = vunpack.c.l.b16 %v5952
    %v8065 = vunpack.c.l.b16 %v5953
    %v8066 = vunpack.c.h.b16 %v5953
    %v8067 = vunpack.c.l.b16 %v5954
    %v8068 = vunpack.c.h.b16 %v5954
    %v8069 = vunpack.c.l.b16 %v5955
    %v8070 = vunpack.c.h.b16 %v5955
    %v8071 = vunpack.c.l.b16 %v5956
    %v8072 = vunpack.c.l.b16 %v5957
    %v8073 = vunpack.c.h.b16 %v5957
    %v8074 = vunpack.c.l.b16 %v5958
    %v8075 = vunpack.c.h.b16 %v5958
    %v8076 = vunpack.c.l.b16 %v5959
    %v8077 = vunpack.c.h.b16 %v5959
    %v8078 = vunpack.c.l.b16 %v5960
    %v8079 = vunpack.c.l.b16 %v5961
    %v8080 = vunpack.c.h.b16 %v5961
    %v8081 = vunpack.c.l.b16 %v5962
    %v8082 = vunpack.c.h.b16 %v5962
    %v8083 = vunpack.c.l.b16 %v5963
    %v8084 = vunpack.c.h.b16 %v5963
    %v8085 = vunpack.c.l.b16 %v5964
    %v8086 = vunpack.c.l.b16 %v5965
    %v8087 = vunpack.c.h.b16 %v5965
    %v8088 = vunpack.c.l.b16 %v5966
    %v8089 = vunpack.c.h.b16 %v5966
    %v8090 = vunpack.c.l.b16 %v5967
    %v8091 = vunpack.c.h.b16 %v5967
    %v8092 = vunpack.c.l.b16 %v5968
    %v8093 = vunpack.c.l.b16 %v5969
    %v8094 = vunpack.c.h.b16 %v5969
    %v8095 = vunpack.c.l.b16 %v5970
    %v8096 = vunpack.c.h.b16 %v5970
    %v8097 = vunpack.c.l.b16 %v5971
    %v8098 = vunpack.c.h.b16 %v5971
    %v8099 = vunpack.c.l.b16 %v5972
    %v8100 = vunpack.c.l.b16 %v5973
    %v8101 = vunpack.c.h.b16 %v5973
    %v8102 = vunpack.c.l.b16 %v5974
    %v8103 = vunpack.c.h.b16 %v5974
    %v8104 = vunpack.c.l.b16 %v5975
    %v8105 = vunpack.c.h.b16 %v5975
    %v8106 = vunpack.c.l.b16 %v5976
    %v8107 = vunpack.c.l.b16 %v5977
    %v8108 = vunpack.c.h.b16 %v5977
    %v8109 = vunpack.c.l.b16 %v5978
    %v8110 = vunpack.c.h.b16 %v5978
    %v8111 = vunpack.c.l.b16 %v5979
    %v8112 = vunpack.c.h.b16 %v5979
    %v8113 = vunpack.c.l.b16 %v5980
    %v8114 = vunpack.c.l.b16 %v5981
    %v8115 = vunpack.c.h.b16 %v5981
    %v8116 = vunpack.c.l.b16 %v5982
    %v8117 = vunpack.c.h.b16 %v5982
    %v8118 = vunpack.c.l.b16 %v5983
    %v8119 = vunpack.c.h.b16 %v5983
    %v8120 = vunpack.c.l.b16 %v5984
    %v8121 = vunpack.c.l.b16 %v5985
    %v8122 = vunpack.c.h.b16 %v5985
    %v8123 = vunpack.c.l.b16 %v5986
    %v8124 = vunpack.c.h.b16 %v5986
    %v8125 = vunpack.c.l.b16 %v5987
    %v8126 = vunpack.c.h.b16 %v5987
    %v8127 = vunpack.c.l.b16 %v5988
    %v8128 = vunpack.c.l.b16 %v5989
    %v8129 = vunpack.c.h.b16 %v5989
    %v8130 = vunpack.c.l.b16 %v5990
    %v8131 = vunpack.c.h.b16 %v5990
    %v8132 = vunpack.c.l.b16 %v5991
    %v8133 = vunpack.c.h.b16 %v5991
    %v8134 = vunpack.c.l.b16 %v5992
    %v8135 = vunpack.c.l.b16 %v5993
    %v8136 = vunpack.c.h.b16 %v5993
    %v8137 = vunpack.c.l.b16 %v5994
    %v8138 = vunpack.c.h.b16 %v5994
    %v8139 = vunpack.c.l.b16 %v5995
    %v8140 = vunpack.c.h.b16 %v5995
    %v8141 = vunpack.c.l.b16 %v5996
    %v8142 = vunpack.c.l.b16 %v5997
    %v8143 = vunpack.c.h.b16 %v5997
    %v8144 = vunpack.c.l.b16 %v5998
    %v8145 = vunpack.c.h.b16 %v5998
    %v8146 = vunpack.c.l.b16 %v5999
    %v8147 = vunpack.c.h.b16 %v5999
    %v8148 = vunpack.c.l.b16 %v6000
    %v8149 = vunpack.c.l.b16 %v6001
    %v8150 = vunpack.c.h.b16 %v6001
    %v8151 = vunpack.c.l.b16 %v6002
    %v8152 = vunpack.c.h.b16 %v6002
    %v8153 = vunpack.c.l.b16 %v6003
    %v8154 = vunpack.c.h.b16 %v6003
    %v8155 = vunpack.c.l.b16 %v6004
    %v8156 = vunpack.c.l.b16 %v6005
    %v8157 = vunpack.c.h.b16 %v6005
    %v8158 = vunpack.c.l.b16 %v6006
    %v8159 = vunpack.c.h.b16 %v6006
    %v8160 = vunpack.c.l.b16 %v6007
    %v8161 = vunpack.c.h.b16 %v6007
    %v8162 = vunpack.c.l.b16 %v6008
    %v8163 = vunpack.c.l.b16 %v6009
    %v8164 = vunpack.c.h.b16 %v6009
    %v8165 = vunpack.c.l.b16 %v6010
    %v8166 = vunpack.c.h.b16 %v6010
    %v8167 = vunpack.c.l.b16 %v6011
    %v8168 = vunpack.c.h.b16 %v6011
    %v8169 = vunpack.c.l.b16 %v6012
    %v8170 = vunpack.c.l.b16 %v6013
    %v8171 = vunpack.c.h.b16 %v6013
    %v8172 = vunpack.c.l.b16 %v6014
    %v8173 = vunpack.c.h.b16 %v6014
    %v8174 = vunpack.c.l.b16 %v6015
    %v8175 = vunpack.c.h.b16 %v6015
    %v8176 = vunpack.c.l.b16 %v6016
    %v8177 = vunpack.c.l.b16 %v6017
    %v8178 = vunpack.c.h.b16 %v6017
    %v8179 = vunpack.c.l.b16 %v6018
    %v8180 = vunpack.c.h.b16 %v6018
    %v8181 = vunpack.c.l.b16 %v6019
    %v8182 = vunpack.c.h.b16 %v6019
    %v8183 = vunpack.c.l.b16 %v6020
    %v8184 = vunpack.c.l.b16 %v6021
    %v8185 = vunpack.c.h.b16 %v6021
    %v8186 = vunpack.c.l.b16 %v6022
    %v8187 = vunpack.c.h.b16 %v6022
    %v8188 = vunpack.c.l.b16 %v6023
    %v8189 = vunpack.c.h.b16 %v6023
    %v8190 = vunpack.c.l.b16 %v6024
    %v8191 = vunpack.c.l.b16 %v6025
    %v8192 = vunpack.c.h.b16 %v6025
    %v8193 = vunpack.c.l.b16 %v6026
    %v8194 = vunpack.c.h.b16 %v6026
    %v8195 = vunpack.c.l.b16 %v6027
    %v8196 = vunpack.c.h.b16 %v6027
    %v8197 = vunpack.c.l.b16 %v6028
    %v8198 = vunpack.c.l.b16 %v6029
    %v8199 = vunpack.c.h.b16 %v6029
    %v8200 = vunpack.c.l.b16 %v6030
    %v8201 = vunpack.c.h.b16 %v6030
    %v8202 = vunpack.c.l.b16 %v6031
    %v8203 = vunpack.c.h.b16 %v6031
    %v8204 = vunpack.c.l.b16 %v6032
    %v8205 = vpack.c.b16 %v6840, %v6833
    %v8206 = vpack.c.b16 %v6841, %v6834
    %v8207 = vpack.c.b16 %v6842, %v6835
    %v8208 = vpack.c.b16 %v6843, %v6836
    %v8209 = vpack.c.b16 %v6844, %v6837
    %v8210 = vpack.c.b16 %v6845, %v6838
    %v8211 = vpack.c.b16 %v6846, %v6839
    %v8212 = vpack.c.b16 %v6854, %v6847
    %v8213 = vpack.c.b16 %v6855, %v6848
    %v8214 = vpack.c.b16 %v6856, %v6849
    %v8215 = vpack.c.b16 %v6857, %v6850
    %v8216 = vpack.c.b16 %v6858, %v6851
    %v8217 = vpack.c.b16 %v6859, %v6852
    %v8218 = vpack.c.b16 %v6860, %v6853
    %v8219 = vpack.c.b16 %v6868, %v6861
    %v8220 = vpack.c.b16 %v6869, %v6862
    %v8221 = vpack.c.b16 %v6870, %v6863
    %v8222 = vpack.c.b16 %v6871, %v6864
    %v8223 = vpack.c.b16 %v6872, %v6865
    %v8224 = vpack.c.b16 %v6873, %v6866
    %v8225 = vpack.c.b16 %v6874, %v6867
    %v8226 = vpack.c.b16 %v6882, %v6875
    %v8227 = vpack.c.b16 %v6883, %v6876
    %v8228 = vpack.c.b16 %v6884, %v6877
    %v8229 = vpack.c.b16 %v6885, %v6878
    %v8230 = vpack.c.b16 %v6886, %v6879
    %v8231 = vpack.c.b16 %v6887, %v6880
    %v8232 = vpack.c.b16 %v6888, %v6881
    %v8233 = vpack.c.b16 %v6896, %v6889
    %v8234 = vpack.c.b16 %v6897, %v6890
    %v8235 = vpack.c.b16 %v6898, %v6891
    %v8236 = vpack.c.b16 %v6899, %v6892
    %v8237 = vpack.c.b16 %v6900, %v6893
    %v8238 = vpack.c.b16 %v6901, %v6894
    %v8239 = vpack.c.b16 %v6902, %v6895
    %v8240 = vpack.c.b16 %v6910, %v6903
    %v8241 = vpack.c.b16 %v6911, %v6904
    %v8242 = vpack.c.b16 %v6912, %v6905
    %v8243 = vpack.c.b16 %v6913, %v6906
    %v8244 = vpack.c.b16 %v6914, %v6907
    %v8245 = vpack.c.b16 %v6915, %v6908
    %v8246 = vpack.c.b16 %v6916, %v6909
    %v8247 = vpack.c.b16 %v6924, %v6917
    %v8248 = vpack.c.b16 %v6925, %v6918
    %v8249 = vpack.c.b16 %v6926, %v6919
    %v8250 = vpack.c.b16 %v6927, %v6920
    %v8251 = vpack.c.b16 %v6928, %v6921
    %v8252 = vpack.c.b16 %v6929, %v6922
    %v8253 = vpack.c.b16 %v6930, %v6923
    %v8254 = vpack.c.b16 %v6938, %v6931
    %v8255 = vpack.c.b16 %v6939, %v6932
    %v8256 = vpack.c.b16 %v6940, %v6933
    %v8257 = vpack.c.b16 %v6941, %v6934
    %v8258 = vpack.c.b16 %v6942, %v6935
    %v8259 = vpack.c.b16 %v6943, %v6936
    %v8260 = vpack.c.b16 %v6944, %v6937
    %v8261 = vpack.c.b16 %v6952, %v6945
    %v8262 = vpack.c.b16 %v6953, %v6946
    %v8263 = vpack.c.b16 %v6954, %v6947
    %v8264 = vpack.c.b16 %v6955, %v6948
    %v8265 = vpack.c.b16 %v6956, %v6949
    %v8266 = vpack.c.b16 %v6957, %v6950
    %v8267 = vpack.c.b16 %v6958, %v6951
    %v8268 = vpack.c.b16 %v6966, %v6959
    %v8269 = vpack.c.b16 %v6967, %v6960
    %v8270 = vpack.c.b16 %v6968, %v6961
    %v8271 = vpack.c.b16 %v6969, %v6962
    %v8272 = vpack.c.b16 %v6970, %v6963
    %v8273 = vpack.c.b16 %v6971, %v6964
    %v8274 = vpack.c.b16 %v6972, %v6965
    %v8275 = vpack.c.b16 %v6980, %v6973
    %v8276 = vpack.c.b16 %v6981, %v6974
    %v8277 = vpack.c.b16 %v6982, %v6975
    %v8278 = vpack.c.b16 %v6983, %v6976
    %v8279 = vpack.c.b16 %v6984, %v6977
    %v8280 = vpack.c.b16 %v6985, %v6978
    %v8281 = vpack.c.b16 %v6986, %v6979
    %v8282 = vpack.c.b16 %v6994, %v6987
    %v8283 = vpack.c.b16 %v6995, %v6988
    %v8284 = vpack.c.b16 %v6996, %v6989
    %v8285 = vpack.c.b16 %v6997, %v6990
    %v8286 = vpack.c.b16 %v6998, %v6991
    %v8287 = vpack.c.b16 %v6999, %v6992
    %v8288 = vpack.c.b16 %v7000, %v6993
    %v8289 = vpack.c.b16 %v7008, %v7001
    %v8290 = vpack.c.b16 %v7009, %v7002
    %v8291 = vpack.c.b16 %v7010, %v7003
    %v8292 = vpack.c.b16 %v7011, %v7004
    %v8293 = vpack.c.b16 %v7012, %v7005
    %v8294 = vpack.c.b16 %v7013, %v7006
    %v8295 = vpack.c.b16 %v7014, %v7007
    %v8296 = vpack.c.b16 %v7022, %v7015
    %v8297 = vpack.c.b16 %v7023, %v7016
    %v8298 = vpack.c.b16 %v7024, %v7017
    %v8299 = vpack.c.b16 %v7025, %v7018
    %v8300 = vpack.c.b16 %v7026, %v7019
    %v8301 = vpack.c.b16 %v7027, %v7020
    %v8302 = vpack.c.b16 %v7028, %v7021
    %v8303 = vpack.c.b16 %v7036, %v7029
    %v8304 = vpack.c.b16 %v7037, %v7030
    %v8305 = vpack.c.b16 %v7038, %v7031
    %v8306 = vpack.c.b16 %v7039, %v7032
    %v8307 = vpack.c.b16 %v7040, %v7033
    %v8308 = vpack.c.b16 %v7041, %v7034
    %v8309 = vpack.c.b16 %v7042, %v7035
    %v8310 = vpack.c.b16 %v7050, %v7043
    %v8311 = vpack.c.b16 %v7051, %v7044
    %v8312 = vpack.c.b16 %v7052, %v7045
    %v8313 = vpack.c.b16 %v7053, %v7046
    %v8314 = vpack.c.b16 %v7054, %v7047
    %v8315 = vpack.c.b16 %v7055, %v7048
    %v8316 = vpack.c.b16 %v7056, %v7049
    %v8317 = vpack.c.b16 %v7064, %v7057
    %v8318 = vpack.c.b16 %v7065, %v7058
    %v8319 = vpack.c.b16 %v7066, %v7059
    %v8320 = vpack.c.b16 %v7067, %v7060
    %v8321 = vpack.c.b16 %v7068, %v7061
    %v8322 = vpack.c.b16 %v7069, %v7062
    %v8323 = vpack.c.b16 %v7070, %v7063
    %v8324 = vpack.c.b16 %v7078, %v7071
    %v8325 = vpack.c.b16 %v7079, %v7072
    %v8326 = vpack.c.b16 %v7080, %v7073
    %v8327 = vpack.c.b16 %v7081, %v7074
    %v8328 = vpack.c.b16 %v7082, %v7075
    %v8329 = vpack.c.b16 %v7083, %v7076
    %v8330 = vpack.c.b16 %v7084, %v7077
    %v8331 = vpack.c.b16 %v7092, %v7085
    %v8332 = vpack.c.b16 %v7093, %v7086
    %v8333 = vpack.c.b16 %v7094, %v7087
    %v8334 = vpack.c.b16 %v7095, %v7088
    %v8335 = vpack.c.b16 %v7096, %v7089
    %v8336 = vpack.c.b16 %v7097, %v7090
    %v8337 = vpack.c.b16 %v7098, %v7091
    %v8338 = vpack.c.b16 %v7106, %v7099
    %v8339 = vpack.c.b16 %v7107, %v7100
    %v8340 = vpack.c.b16 %v7108, %v7101
    %v8341 = vpack.c.b16 %v7109, %v7102
    %v8342 = vpack.c.b16 %v7110, %v7103
    %v8343 = vpack.c.b16 %v7111, %v7104
    %v8344 = vpack.c.b16 %v7112, %v7105
    %v8345 = vpack.c.b16 %v7120, %v7113
    %v8346 = vpack.c.b16 %v7121, %v7114
    %v8347 = vpack.c.b16 %v7122, %v7115
    %v8348 = vpack.c.b16 %v7123, %v7116
    %v8349 = vpack.c.b16 %v7124, %v7117
    %v8350 = vpack.c.b16 %v7125, %v7118
    %v8351 = vpack.c.b16 %v7126, %v7119
    %v8352 = vpack.c.b16 %v7134, %v7127
    %v8353 = vpack.c.b16 %v7135, %v7128
    %v8354 = vpack.c.b16 %v7136, %v7129
    %v8355 = vpack.c.b16 %v7137, %v7130
    %v8356 = vpack.c.b16 %v7138, %v7131
    %v8357 = vpack.c.b16 %v7139, %v7132
    %v8358 = vpack.c.b16 %v7140, %v7133
    %v8359 = vpack.c.b16 %v7148, %v7141
    %v8360 = vpack.c.b16 %v7149, %v7142
    %v8361 = vpack.c.b16 %v7150, %v7143
    %v8362 = vpack.c.b16 %v7151, %v7144
    %v8363 = vpack.c.b16 %v7152, %v7145
    %v8364 = vpack.c.b16 %v7153, %v7146
    %v8365 = vpack.c.b16 %v7154, %v7147
    %v8366 = vpack.c.b16 %v7162, %v7155
    %v8367 = vpack.c.b16 %v7163, %v7156
    %v8368 = vpack.c.b16 %v7164, %v7157
    %v8369 = vpack.c.b16 %v7165, %v7158
    %v8370 = vpack.c.b16 %v7166, %v7159
    %v8371 = vpack.c.b16 %v7167, %v7160
    %v8372 = vpack.c.b16 %v7168, %v7161
    %v8373 = vpack.c.b16 %v7176, %v7169
    %v8374 = vpack.c.b16 %v7177, %v7170
    %v8375 = vpack.c.b16 %v7178, %v7171
    %v8376 = vpack.c.b16 %v7179, %v7172
    %v8377 = vpack.c.b16 %v7180, %v7173
    %v8378 = vpack.c.b16 %v7181, %v7174
    %v8379 = vpack.c.b16 %v7182, %v7175
    %v8380 = vpack.c.b16 %v7190, %v7183
    %v8381 = vpack.c.b16 %v7191, %v7184
    %v8382 = vpack.c.b16 %v7192, %v7185
    %v8383 = vpack.c.b16 %v7193, %v7186
    %v8384 = vpack.c.b16 %v7194, %v7187
    %v8385 = vpack.c.b16 %v7195, %v7188
    %v8386 = vpack.c.b16 %v7196, %v7189
    %v8387 = vpack.c.b16 %v7204, %v7197
    %v8388 = vpack.c.b16 %v7205, %v7198
    %v8389 = vpack.c.b16 %v7206, %v7199
    %v8390 = vpack.c.b16 %v7207, %v7200
    %v8391 = vpack.c.b16 %v7208, %v7201
    %v8392 = vpack.c.b16 %v7209, %v7202
    %v8393 = vpack.c.b16 %v7210, %v7203
    %v8394 = vpack.c.b16 %v7218, %v7211
    %v8395 = vpack.c.b16 %v7219, %v7212
    %v8396 = vpack.c.b16 %v7220, %v7213
    %v8397 = vpack.c.b16 %v7221, %v7214
    %v8398 = vpack.c.b16 %v7222, %v7215
    %v8399 = vpack.c.b16 %v7223, %v7216
    %v8400 = vpack.c.b16 %v7224, %v7217
    %v8401 = vpack.c.b16 %v7232, %v7225
    %v8402 = vpack.c.b16 %v7233, %v7226
    %v8403 = vpack.c.b16 %v7234, %v7227
    %v8404 = vpack.c.b16 %v7235, %v7228
    %v8405 = vpack.c.b16 %v7236, %v7229
    %v8406 = vpack.c.b16 %v7237, %v7230
    %v8407 = vpack.c.b16 %v7238, %v7231
    %v8408 = vpack.c.b16 %v7246, %v7239
    %v8409 = vpack.c.b16 %v7247, %v7240
    %v8410 = vpack.c.b16 %v7248, %v7241
    %v8411 = vpack.c.b16 %v7249, %v7242
    %v8412 = vpack.c.b16 %v7250, %v7243
    %v8413 = vpack.c.b16 %v7251, %v7244
    %v8414 = vpack.c.b16 %v7252, %v7245
    %v8415 = vpack.c.b16 %v7260, %v7253
    %v8416 = vpack.c.b16 %v7261, %v7254
    %v8417 = vpack.c.b16 %v7262, %v7255
    %v8418 = vpack.c.b16 %v7263, %v7256
    %v8419 = vpack.c.b16 %v7264, %v7257
    %v8420 = vpack.c.b16 %v7265, %v7258
    %v8421 = vpack.c.b16 %v7266, %v7259
    %v8422 = vpack.c.b16 %v7274, %v7267
    %v8423 = vpack.c.b16 %v7275, %v7268
    %v8424 = vpack.c.b16 %v7276, %v7269
    %v8425 = vpack.c.b16 %v7277, %v7270
    %v8426 = vpack.c.b16 %v7278, %v7271
    %v8427 = vpack.c.b16 %v7279, %v7272
    %v8428 = vpack.c.b16 %v7280, %v7273
    %v8429 = vpack.c.b16 %v7288, %v7281
    %v8430 = vpack.c.b16 %v7289, %v7282
    %v8431 = vpack.c.b16 %v7290, %v7283
    %v8432 = vpack.c.b16 %v7291, %v7284
    %v8433 = vpack.c.b16 %v7292, %v7285
    %v8434 = vpack.c.b16 %v7293, %v7286
    %v8435 = vpack.c.b16 %v7294, %v7287
    %v8436 = vpack.c.b16 %v7302, %v7295
    %v8437 = vpack.c.b16 %v7303, %v7296
    %v8438 = vpack.c.b16 %v7304, %v7297
    %v8439 = vpack.c.b16 %v7305, %v7298
    %v8440 = vpack.c.b16 %v7306, %v7299
    %v8441 = vpack.c.b16 %v7307, %v7300
    %v8442 = vpack.c.b16 %v7308, %v7301
    %v8443 = vpack.c.b16 %v7316, %v7309
    %v8444 = vpack.c.b16 %v7317, %v7310
    %v8445 = vpack.c.b16 %v7318, %v7311
    %v8446 = vpack.c.b16 %v7319, %v7312
    %v8447 = vpack.c.b16 %v7320, %v7313
    %v8448 = vpack.c.b16 %v7321, %v7314
    %v8449 = vpack.c.b16 %v7322, %v7315
    %v8450 = vpack.c.b16 %v7330, %v7323
    %v8451 = vpack.c.b16 %v7331, %v7324
    %v8452 = vpack.c.b16 %v7332, %v7325
    %v8453 = vpack.c.b16 %v7333, %v7326
    %v8454 = vpack.c.b16 %v7334, %v7327
    %v8455 = vpack.c.b16 %v7335, %v7328
    %v8456 = vpack.c.b16 %v7336, %v7329
    %v8457 = vpack.c.b16 %v7344, %v7337
    %v8458 = vpack.c.b16 %v7345, %v7338
    %v8459 = vpack.c.b16 %v7346, %v7339
    %v8460 = vpack.c.b16 %v7347, %v7340
    %v8461 = vpack.c.b16 %v7348, %v7341
    %v8462 = vpack.c.b16 %v7349, %v7342
    %v8463 = vpack.c.b16 %v7350, %v7343
    %v8464 = vpack.c.b16 %v7358, %v7351
    %v8465 = vpack.c.b16 %v7359, %v7352
    %v8466 = vpack.c.b16 %v7360, %v7353
    %v8467 = vpack.c.b16 %v7361, %v7354
    %v8468 = vpack.c.b16 %v7362, %v7355
    %v8469 = vpack.c.b16 %v7363, %v7356
    %v8470 = vpack.c.b16 %v7364, %v7357
    %v8471 = vpack.c.b16 %v7372, %v7365
    %v8472 = vpack.c.b16 %v7373, %v7366
    %v8473 = vpack.c.b16 %v7374, %v7367
    %v8474 = vpack.c.b16 %v7375, %v7368
    %v8475 = vpack.c.b16 %v7376, %v7369
    %v8476 = vpack.c.b16 %v7377, %v7370
    %v8477 = vpack.c.b16 %v7378, %v7371
    %v8478 = vpack.c.b16 %v7386, %v7379
    %v8479 = vpack.c.b16 %v7387, %v7380
    %v8480 = vpack.c.b16 %v7388, %v7381
    %v8481 = vpack.c.b16 %v7389, %v7382
    %v8482 = vpack.c.b16 %v7390, %v7383
    %v8483 = vpack.c.b16 %v7391, %v7384
    %v8484 = vpack.c.b16 %v7392, %v7385
    %v8485 = vpack.c.b16 %v7400, %v7393
    %v8486 = vpack.c.b16 %v7401, %v7394
    %v8487 = vpack.c.b16 %v7402, %v7395
    %v8488 = vpack.c.b16 %v7403, %v7396
    %v8489 = vpack.c.b16 %v7404, %v7397
    %v8490 = vpack.c.b16 %v7405, %v7398
    %v8491 = vpack.c.b16 %v7406, %v7399
    %v8492 = vpack.c.b16 %v7414, %v7407
    %v8493 = vpack.c.b16 %v7415, %v7408
    %v8494 = vpack.c.b16 %v7416, %v7409
    %v8495 = vpack.c.b16 %v7417, %v7410
    %v8496 = vpack.c.b16 %v7418, %v7411
    %v8497 = vpack.c.b16 %v7419, %v7412
    %v8498 = vpack.c.b16 %v7420, %v7413
    %v8499 = vpack.c.b16 %v7428, %v7421
    %v8500 = vpack.c.b16 %v7429, %v7422
    %v8501 = vpack.c.b16 %v7430, %v7423
    %v8502 = vpack.c.b16 %v7431, %v7424
    %v8503 = vpack.c.b16 %v7432, %v7425
    %v8504 = vpack.c.b16 %v7433, %v7426
    %v8505 = vpack.c.b16 %v7434, %v7427
    %v8506 = vpack.c.b16 %v7442, %v7435
    %v8507 = vpack.c.b16 %v7443, %v7436
    %v8508 = vpack.c.b16 %v7444, %v7437
    %v8509 = vpack.c.b16 %v7445, %v7438
    %v8510 = vpack.c.b16 %v7446, %v7439
    %v8511 = vpack.c.b16 %v7447, %v7440
    %v8512 = vpack.c.b16 %v7448, %v7441
    %v8513 = vpack.c.b16 %v7456, %v7449
    %v8514 = vpack.c.b16 %v7457, %v7450
    %v8515 = vpack.c.b16 %v7458, %v7451
    %v8516 = vpack.c.b16 %v7459, %v7452
    %v8517 = vpack.c.b16 %v7460, %v7453
    %v8518 = vpack.c.b16 %v7461, %v7454
    %v8519 = vpack.c.b16 %v7462, %v7455
    %v8520 = vpack.c.b16 %v7470, %v7463
    %v8521 = vpack.c.b16 %v7471, %v7464
    %v8522 = vpack.c.b16 %v7472, %v7465
    %v8523 = vpack.c.b16 %v7473, %v7466
    %v8524 = vpack.c.b16 %v7474, %v7467
    %v8525 = vpack.c.b16 %v7475, %v7468
    %v8526 = vpack.c.b16 %v7476, %v7469
    %v8527 = vpack.c.b16 %v7484, %v7477
    %v8528 = vpack.c.b16 %v7485, %v7478
    %v8529 = vpack.c.b16 %v7486, %v7479
    %v8530 = vpack.c.b16 %v7487, %v7480
    %v8531 = vpack.c.b16 %v7488, %v7481
    %v8532 = vpack.c.b16 %v7489, %v7482
    %v8533 = vpack.c.b16 %v7490, %v7483
    %v8534 = vpack.c.b16 %v7498, %v7491
    %v8535 = vpack.c.b16 %v7499, %v7492
    %v8536 = vpack.c.b16 %v7500, %v7493
    %v8537 = vpack.c.b16 %v7501, %v7494
    %v8538 = vpack.c.b16 %v7502, %v7495
    %v8539 = vpack.c.b16 %v7503, %v7496
    %v8540 = vpack.c.b16 %v7504, %v7497
    %v8541 = vpack.c.b16 %v7512, %v7505
    %v8542 = vpack.c.b16 %v7513, %v7506
    %v8543 = vpack.c.b16 %v7514, %v7507
    %v8544 = vpack.c.b16 %v7515, %v7508
    %v8545 = vpack.c.b16 %v7516, %v7509
    %v8546 = vpack.c.b16 %v7517, %v7510
    %v8547 = vpack.c.b16 %v7518, %v7511
    %v8548 = vpack.c.b16 %v7526, %v7519
    %v8549 = vpack.c.b16 %v7527, %v7520
    %v8550 = vpack.c.b16 %v7528, %v7521
    %v8551 = vpack.c.b16 %v7529, %v7522
    %v8552 = vpack.c.b16 %v7530, %v7523
    %v8553 = vpack.c.b16 %v7531, %v7524
    %v8554 = vpack.c.b16 %v7532, %v7525
    %v8555 = vpack.c.b16 %v7540, %v7533
    %v8556 = vpack.c.b16 %v7541, %v7534
    %v8557 = vpack.c.b16 %v7542, %v7535
    %v8558 = vpack.c.b16 %v7543, %v7536
    %v8559 = vpack.c.b16 %v7544, %v7537
    %v8560 = vpack.c.b16 %v7545, %v7538
    %v8561 = vpack.c.b16 %v7546, %v7539
    %v8562 = vpack.c.b16 %v7554, %v7547
    %v8563 = vpack.c.b16 %v7555, %v7548
    %v8564 = vpack.c.b16 %v7556, %v7549
    %v8565 = vpack.c.b16 %v7557, %v7550
    %v8566 = vpack.c.b16 %v7558, %v7551
    %v8567 = vpack.c.b16 %v7559, %v7552
    %v8568 = vpack.c.b16 %v7560, %v7553
    %v8569 = vpack.c.b16 %v7568, %v7561
    %v8570 = vpack.c.b16 %v7569, %v7562
    %v8571 = vpack.c.b16 %v7570, %v7563
    %v8572 = vpack.c.b16 %v7571, %v7564
    %v8573 = vpack.c.b16 %v7572, %v7565
    %v8574 = vpack.c.b16 %v7573, %v7566
    %v8575 = vpack.c.b16 %v7574, %v7567
    %v8576 = vpack.c.b16 %v7582, %v7575
    %v8577 = vpack.c.b16 %v7583, %v7576
    %v8578 = vpack.c.b16 %v7584, %v7577
    %v8579 = vpack.c.b16 %v7585, %v7578
    %v8580 = vpack.c.b16 %v7586, %v7579
    %v8581 = vpack.c.b16 %v7587, %v7580
    %v8582 = vpack.c.b16 %v7588, %v7581
    %v8583 = vpack.c.b16 %v7596, %v7589
    %v8584 = vpack.c.b16 %v7597, %v7590
    %v8585 = vpack.c.b16 %v7598, %v7591
    %v8586 = vpack.c.b16 %v7599, %v7592
    %v8587 = vpack.c.b16 %v7600, %v7593
    %v8588 = vpack.c.b16 %v7601, %v7594
    %v8589 = vpack.c.b16 %v7602, %v7595
    %v8590 = vpack.c.b16 %v7610, %v7603
    %v8591 = vpack.c.b16 %v7611, %v7604
    %v8592 = vpack.c.b16 %v7612, %v7605
    %v8593 = vpack.c.b16 %v7613, %v7606
    %v8594 = vpack.c.b16 %v7614, %v7607
    %v8595 = vpack.c.b16 %v7615, %v7608
    %v8596 = vpack.c.b16 %v7616, %v7609
    %v8597 = vpack.c.b16 %v7624, %v7617
    %v8598 = vpack.c.b16 %v7625, %v7618
    %v8599 = vpack.c.b16 %v7626, %v7619
    %v8600 = vpack.c.b16 %v7627, %v7620
    %v8601 = vpack.c.b16 %v7628, %v7621
    %v8602 = vpack.c.b16 %v7629, %v7622
    %v8603 = vpack.c.b16 %v7630, %v7623
    %v8604 = vpack.c.b16 %v7638, %v7631
    %v8605 = vpack.c.b16 %v7639, %v7632
    %v8606 = vpack.c.b16 %v7640, %v7633
    %v8607 = vpack.c.b16 %v7641, %v7634
    %v8608 = vpack.c.b16 %v7642, %v7635
    %v8609 = vpack.c.b16 %v7643, %v7636
    %v8610 = vpack.c.b16 %v7644, %v7637
    %v8611 = vpack.c.b16 %v7652, %v7645
    %v8612 = vpack.c.b16 %v7653, %v7646
    %v8613 = vpack.c.b16 %v7654, %v7647
    %v8614 = vpack.c.b16 %v7655, %v7648
    %v8615 = vpack.c.b16 %v7656, %v7649
    %v8616 = vpack.c.b16 %v7657, %v7650
    %v8617 = vpack.c.b16 %v7658, %v7651
    %v8618 = vpack.c.b16 %v7666, %v7659
    %v8619 = vpack.c.b16 %v7667, %v7660
    %v8620 = vpack.c.b16 %v7668, %v7661
    %v8621 = vpack.c.b16 %v7669, %v7662
    %v8622 = vpack.c.b16 %v7670, %v7663
    %v8623 = vpack.c.b16 %v7671, %v7664
    %v8624 = vpack.c.b16 %v7672, %v7665
    %v8625 = vpack.c.b16 %v7680, %v7673
    %v8626 = vpack.c.b16 %v7681, %v7674
    %v8627 = vpack.c.b16 %v7682, %v7675
    %v8628 = vpack.c.b16 %v7683, %v7676
    %v8629 = vpack.c.b16 %v7684, %v7677
    %v8630 = vpack.c.b16 %v7685, %v7678
    %v8631 = vpack.c.b16 %v7686, %v7679
    %v8632 = vpack.c.b16 %v7694, %v7687
    %v8633 = vpack.c.b16 %v7695, %v7688
    %v8634 = vpack.c.b16 %v7696, %v7689
    %v8635 = vpack.c.b16 %v7697, %v7690
    %v8636 = vpack.c.b16 %v7698, %v7691
    %v8637 = vpack.c.b16 %v7699, %v7692
    %v8638 = vpack.c.b16 %v7700, %v7693
    %v8639 = vpack.c.b16 %v7708, %v7701
    %v8640 = vpack.c.b16 %v7709, %v7702
    %v8641 = vpack.c.b16 %v7710, %v7703
    %v8642 = vpack.c.b16 %v7711, %v7704
    %v8643 = vpack.c.b16 %v7712, %v7705
    %v8644 = vpack.c.b16 %v7713, %v7706
    %v8645 = vpack.c.b16 %v7714, %v7707
    %v8646 = vpack.c.b16 %v7722, %v7715
    %v8647 = vpack.c.b16 %v7723, %v7716
    %v8648 = vpack.c.b16 %v7724, %v7717
    %v8649 = vpack.c.b16 %v7725, %v7718
    %v8650 = vpack.c.b16 %v7726, %v7719
    %v8651 = vpack.c.b16 %v7727, %v7720
    %v8652 = vpack.c.b16 %v7728, %v7721
    %v8653 = vpack.c.b16 %v7736, %v7729
    %v8654 = vpack.c.b16 %v7737, %v7730
    %v8655 = vpack.c.b16 %v7738, %v7731
    %v8656 = vpack.c.b16 %v7739, %v7732
    %v8657 = vpack.c.b16 %v7740, %v7733
    %v8658 = vpack.c.b16 %v7741, %v7734
    %v8659 = vpack.c.b16 %v7742, %v7735
    %v8660 = vpack.c.b16 %v7750, %v7743
    %v8661 = vpack.c.b16 %v7751, %v7744
    %v8662 = vpack.c.b16 %v7752, %v7745
    %v8663 = vpack.c.b16 %v7753, %v7746
    %v8664 = vpack.c.b16 %v7754, %v7747
    %v8665 = vpack.c.b16 %v7755, %v7748
    %v8666 = vpack.c.b16 %v7756, %v7749
    %v8667 = vpack.c.b16 %v7764, %v7757
    %v8668 = vpack.c.b16 %v7765, %v7758
    %v8669 = vpack.c.b16 %v7766, %v7759
    %v8670 = vpack.c.b16 %v7767, %v7760
    %v8671 = vpack.c.b16 %v7768, %v7761
    %v8672 = vpack.c.b16 %v7769, %v7762
    %v8673 = vpack.c.b16 %v7770, %v7763
    %v8674 = vpack.c.b16 %v7778, %v7771
    %v8675 = vpack.c.b16 %v7779, %v7772
    %v8676 = vpack.c.b16 %v7780, %v7773
    %v8677 = vpack.c.b16 %v7781, %v7774
    %v8678 = vpack.c.b16 %v7782, %v7775
    %v8679 = vpack.c.b16 %v7783, %v7776
    %v8680 = vpack.c.b16 %v7784, %v7777
    %v8681 = vpack.c.b16 %v7792, %v7785
    %v8682 = vpack.c.b16 %v7793, %v7786
    %v8683 = vpack.c.b16 %v7794, %v7787
    %v8684 = vpack.c.b16 %v7795, %v7788
    %v8685 = vpack.c.b16 %v7796, %v7789
    %v8686 = vpack.c.b16 %v7797, %v7790
    %v8687 = vpack.c.b16 %v7798, %v7791
    %v8688 = vpack.c.b16 %v7806, %v7799
    %v8689 = vpack.c.b16 %v7807, %v7800
    %v8690 = vpack.c.b16 %v7808, %v7801
    %v8691 = vpack.c.b16 %v7809, %v7802
    %v8692 = vpack.c.b16 %v7810, %v7803
    %v8693 = vpack.c.b16 %v7811, %v7804
    %v8694 = vpack.c.b16 %v7812, %v7805
    %v8695 = vpack.c.b16 %v7820, %v7813
    %v8696 = vpack.c.b16 %v7821, %v7814
    %v8697 = vpack.c.b16 %v7822, %v7815
    %v8698 = vpack.c.b16 %v7823, %v7816
    %v8699 = vpack.c.b16 %v7824, %v7817
    %v8700 = vpack.c.b16 %v7825, %v7818
    %v8701 = vpack.c.b16 %v7826, %v7819
    %v8702 = vpack.c.b16 %v7834, %v7827
    %v8703 = vpack.c.b16 %v7835, %v7828
    %v8704 = vpack.c.b16 %v7836, %v7829
    %v8705 = vpack.c.b16 %v7837, %v7830
    %v8706 = vpack.c.b16 %v7838, %v7831
    %v8707 = vpack.c.b16 %v7839, %v7832
    %v8708 = vpack.c.b16 %v7840, %v7833
    %v8709 = vpack.c.b16 %v7848, %v7841
    %v8710 = vpack.c.b16 %v7849, %v7842
    %v8711 = vpack.c.b16 %v7850, %v7843
    %v8712 = vpack.c.b16 %v7851, %v7844
    %v8713 = vpack.c.b16 %v7852, %v7845
    %v8714 = vpack.c.b16 %v7853, %v7846
    %v8715 = vpack.c.b16 %v7854, %v7847
    %v8716 = vpack.c.b16 %v7862, %v7855
    %v8717 = vpack.c.b16 %v7863, %v7856
    %v8718 = vpack.c.b16 %v7864, %v7857
    %v8719 = vpack.c.b16 %v7865, %v7858
    %v8720 = vpack.c.b16 %v7866, %v7859
    %v8721 = vpack.c.b16 %v7867, %v7860
    %v8722 = vpack.c.b16 %v7868, %v7861
    %v8723 = vpack.c.b16 %v7876, %v7869
    %v8724 = vpack.c.b16 %v7877, %v7870
    %v8725 = vpack.c.b16 %v7878, %v7871
    %v8726 = vpack.c.b16 %v7879, %v7872
    %v8727 = vpack.c.b16 %v7880, %v7873
    %v8728 = vpack.c.b16 %v7881, %v7874
    %v8729 = vpack.c.b16 %v7882, %v7875
    %v8730 = vpack.c.b16 %v7890, %v7883
    %v8731 = vpack.c.b16 %v7891, %v7884
    %v8732 = vpack.c.b16 %v7892, %v7885
    %v8733 = vpack.c.b16 %v7893, %v7886
    %v8734 = vpack.c.b16 %v7894, %v7887
    %v8735 = vpack.c.b16 %v7895, %v7888
    %v8736 = vpack.c.b16 %v7896, %v7889
    %v8737 = vpack.c.b16 %v7904, %v7897
    %v8738 = vpack.c.b16 %v7905, %v7898
    %v8739 = vpack.c.b16 %v7906, %v7899
    %v8740 = vpack.c.b16 %v7907, %v7900
    %v8741 = vpack.c.b16 %v7908, %v7901
    %v8742 = vpack.c.b16 %v7909, %v7902
    %v8743 = vpack.c.b16 %v7910, %v7903
    %v8744 = vpack.c.b16 %v7918, %v7911
    %v8745 = vpack.c.b16 %v7919, %v7912
    %v8746 = vpack.c.b16 %v7920, %v7913
    %v8747 = vpack.c.b16 %v7921, %v7914
    %v8748 = vpack.c.b16 %v7922, %v7915
    %v8749 = vpack.c.b16 %v7923, %v7916
    %v8750 = vpack.c.b16 %v7924, %v7917
    %v8751 = vpack.c.b16 %v7932, %v7925
    %v8752 = vpack.c.b16 %v7933, %v7926
    %v8753 = vpack.c.b16 %v7934, %v7927
    %v8754 = vpack.c.b16 %v7935, %v7928
    %v8755 = vpack.c.b16 %v7936, %v7929
    %v8756 = vpack.c.b16 %v7937, %v7930
    %v8757 = vpack.c.b16 %v7938, %v7931
    %v8758 = vpack.c.b16 %v7946, %v7939
    %v8759 = vpack.c.b16 %v7947, %v7940
    %v8760 = vpack.c.b16 %v7948, %v7941
    %v8761 = vpack.c.b16 %v7949, %v7942
    %v8762 = vpack.c.b16 %v7950, %v7943
    %v8763 = vpack.c.b16 %v7951, %v7944
    %v8764 = vpack.c.b16 %v7952, %v7945
    %v8765 = vpack.c.b16 %v7960, %v7953
    %v8766 = vpack.c.b16 %v7961, %v7954
    %v8767 = vpack.c.b16 %v7962, %v7955
    %v8768 = vpack.c.b16 %v7963, %v7956
    %v8769 = vpack.c.b16 %v7964, %v7957
    %v8770 = vpack.c.b16 %v7965, %v7958
    %v8771 = vpack.c.b16 %v7966, %v7959
    %v8772 = vpack.c.b16 %v7974, %v7967
    %v8773 = vpack.c.b16 %v7975, %v7968
    %v8774 = vpack.c.b16 %v7976, %v7969
    %v8775 = vpack.c.b16 %v7977, %v7970
    %v8776 = vpack.c.b16 %v7978, %v7971
    %v8777 = vpack.c.b16 %v7979, %v7972
    %v8778 = vpack.c.b16 %v7980, %v7973
    %v8779 = vpack.c.b16 %v7988, %v7981
    %v8780 = vpack.c.b16 %v7989, %v7982
    %v8781 = vpack.c.b16 %v7990, %v7983
    %v8782 = vpack.c.b16 %v7991, %v7984
    %v8783 = vpack.c.b16 %v7992, %v7985
    %v8784 = vpack.c.b16 %v7993, %v7986
    %v8785 = vpack.c.b16 %v7994, %v7987
    %v8786 = vpack.c.b16 %v8002, %v7995
    %v8787 = vpack.c.b16 %v8003, %v7996
    %v8788 = vpack.c.b16 %v8004, %v7997
    %v8789 = vpack.c.b16 %v8005, %v7998
    %v8790 = vpack.c.b16 %v8006, %v7999
    %v8791 = vpack.c.b16 %v8007, %v8000
    %v8792 = vpack.c.b16 %v8008, %v8001
    %v8793 = vpack.c.b16 %v8016, %v8009
    %v8794 = vpack.c.b16 %v8017, %v8010
    %v8795 = vpack.c.b16 %v8018, %v8011
    %v8796 = vpack.c.b16 %v8019, %v8012
    %v8797 = vpack.c.b16 %v8020, %v8013
    %v8798 = vpack.c.b16 %v8021, %v8014
    %v8799 = vpack.c.b16 %v8022, %v8015
    %v8800 = vpack.c.b16 %v8030, %v8023
    %v8801 = vpack.c.b16 %v8031, %v8024
    %v8802 = vpack.c.b16 %v8032, %v8025
    %v8803 = vpack.c.b16 %v8033, %v8026
    %v8804 = vpack.c.b16 %v8034, %v8027
    %v8805 = vpack.c.b16 %v8035, %v8028
    %v8806 = vpack.c.b16 %v8036, %v8029
    %v8807 = vpack.c.b16 %v8044, %v8037
    %v8808 = vpack.c.b16 %v8045, %v8038
    %v8809 = vpack.c.b16 %v8046, %v8039
    %v8810 = vpack.c.b16 %v8047, %v8040
    %v8811 = vpack.c.b16 %v8048, %v8041
    %v8812 = vpack.c.b16 %v8049, %v8042
    %v8813 = vpack.c.b16 %v8050, %v8043
    %v8814 = vpack.c.b16 %v8058, %v8051
    %v8815 = vpack.c.b16 %v8059, %v8052
    %v8816 = vpack.c.b16 %v8060, %v8053
    %v8817 = vpack.c.b16 %v8061, %v8054
    %v8818 = vpack.c.b16 %v8062, %v8055
    %v8819 = vpack.c.b16 %v8063, %v8056
    %v8820 = vpack.c.b16 %v8064, %v8057
    %v8821 = vpack.c.b16 %v8072, %v8065
    %v8822 = vpack.c.b16 %v8073, %v8066
    %v8823 = vpack.c.b16 %v8074, %v8067
    %v8824 = vpack.c.b16 %v8075, %v8068
    %v8825 = vpack.c.b16 %v8076, %v8069
    %v8826 = vpack.c.b16 %v8077, %v8070
    %v8827 = vpack.c.b16 %v8078, %v8071
    %v8828 = vpack.c.b16 %v8086, %v8079
    %v8829 = vpack.c.b16 %v8087, %v8080
    %v8830 = vpack.c.b16 %v8088, %v8081
    %v8831 = vpack.c.b16 %v8089, %v8082
    %v8832 = vpack.c.b16 %v8090, %v8083
    %v8833 = vpack.c.b16 %v8091, %v8084
    %v8834 = vpack.c.b16 %v8092, %v8085
    %v8835 = vpack.c.b16 %v8100, %v8093
    %v8836 = vpack.c.b16 %v8101, %v8094
    %v8837 = vpack.c.b16 %v8102, %v8095
    %v8838 = vpack.c.b16 %v8103, %v8096
    %v8839 = vpack.c.b16 %v8104, %v8097
    %v8840 = vpack.c.b16 %v8105, %v8098
    %v8841 = vpack.c.b16 %v8106, %v8099
    %v8842 = vpack.c.b16 %v8114, %v8107
    %v8843 = vpack.c.b16 %v8115, %v8108
    %v8844 = vpack.c.b16 %v8116, %v8109
    %v8845 = vpack.c.b16 %v8117, %v8110
    %v8846 = vpack.c.b16 %v8118, %v8111
    %v8847 = vpack.c.b16 %v8119, %v8112
    %v8848 = vpack.c.b16 %v8120, %v8113
    %v8849 = vpack.c.b16 %v8128, %v8121
    %v8850 = vpack.c.b16 %v8129, %v8122
    %v8851 = vpack.c.b16 %v8130, %v8123
    %v8852 = vpack.c.b16 %v8131, %v8124
    %v8853 = vpack.c.b16 %v8132, %v8125
    %v8854 = vpack.c.b16 %v8133, %v8126
    %v8855 = vpack.c.b16 %v8134, %v8127
    %v8856 = vpack.c.b16 %v8142, %v8135
    %v8857 = vpack.c.b16 %v8143, %v8136
    %v8858 = vpack.c.b16 %v8144, %v8137
    %v8859 = vpack.c.b16 %v8145, %v8138
    %v8860 = vpack.c.b16 %v8146, %v8139
    %v8861 = vpack.c.b16 %v8147, %v8140
    %v8862 = vpack.c.b16 %v8148, %v8141
    %v8863 = vpack.c.b16 %v8156, %v8149
    %v8864 = vpack.c.b16 %v8157, %v8150
    %v8865 = vpack.c.b16 %v8158, %v8151
    %v8866 = vpack.c.b16 %v8159, %v8152
    %v8867 = vpack.c.b16 %v8160, %v8153
    %v8868 = vpack.c.b16 %v8161, %v8154
    %v8869 = vpack.c.b16 %v8162, %v8155
    %v8870 = vpack.c.b16 %v8170, %v8163
    %v8871 = vpack.c.b16 %v8171, %v8164
    %v8872 = vpack.c.b16 %v8172, %v8165
    %v8873 = vpack.c.b16 %v8173, %v8166
    %v8874 = vpack.c.b16 %v8174, %v8167
    %v8875 = vpack.c.b16 %v8175, %v8168
    %v8876 = vpack.c.b16 %v8176, %v8169
    %v8877 = vpack.c.b16 %v8184, %v8177
    %v8878 = vpack.c.b16 %v8185, %v8178
    %v8879 = vpack.c.b16 %v8186, %v8179
    %v8880 = vpack.c.b16 %v8187, %v8180
    %v8881 = vpack.c.b16 %v8188, %v8181
    %v8882 = vpack.c.b16 %v8189, %v8182
    %v8883 = vpack.c.b16 %v8190, %v8183
    %v8884 = vpack.c.b16 %v8198, %v8191
    %v8885 = vpack.c.b16 %v8199, %v8192
    %v8886 = vpack.c.b16 %v8200, %v8193
    %v8887 = vpack.c.b16 %v8201, %v8194
    %v8888 = vpack.c.b16 %v8202, %v8195
    %v8889 = vpack.c.b16 %v8203, %v8196
    %v8890 = vpack.c.b16 %v8204, %v8197
    %vm9577 = vcmask 261120
    %v9579 = vsel %vm9577, %v5248, 0
    %9581 = vmatpush.bf16.msra.mxu0 %v8254
    %9582 = vmatpush.bf16.msra.mxu0 %v8247
    %9583 = vmatpush.bf16.msra.mxu0 %v8240
    %9584 = vmatpush.bf16.msra.mxu0 %v8233
    %9585 = vmatpush.bf16.msra.mxu0 %v8226
    %9586 = vmatpush.bf16.msra.mxu0 %v8219
    %9587 = vmatpush.bf16.msra.mxu0 %v8212
    %9588 = vmatpush.bf16.msra.mxu0 %v8205
    %9589 = vmatmul.bf16.gmra.mxu0 %v5236
    %v9590 = vpop.f32.mrf.mxu0
    %v9591 = vadd.f32 %v6035, %v9590
    %v9592 = vpop.f32.mrf.mxu0
    %9593 = vdwg.mxu0
    %9594 = vmatpush.bf16.msra.mxu0 %v8310
    %9595 = vmatpush.bf16.msra.mxu0 %v8303
    %9596 = vmatpush.bf16.msra.mxu0 %v8296
    %9597 = vmatpush.bf16.msra.mxu0 %v8289
    %9598 = vmatpush.bf16.msra.mxu0 %v8282
    %9599 = vmatpush.bf16.msra.mxu0 %v8275
    %9600 = vmatpush.bf16.msra.mxu0 %v8268
    %9601 = vmatpush.bf16.msra.mxu0 %v8261
    %9602 = vmatmul.bf16.gmra.mxu0 %v5237
    %v9603 = vpop.f32.mrf.mxu0
    %v9604 = vadd.f32 %v9591, %v9603
    %v9605 = vpop.f32.mrf.mxu0
    %9606 = vdwg.mxu0
    %9607 = vmatpush.bf16.msra.mxu0 %v8366
    %9608 = vmatpush.bf16.msra.mxu0 %v8359
    %9609 = vmatpush.bf16.msra.mxu0 %v8352
    %9610 = vmatpush.bf16.msra.mxu0 %v8345
    %9611 = vmatpush.bf16.msra.mxu0 %v8338
    %9612 = vmatpush.bf16.msra.mxu0 %v8331
    %9613 = vmatpush.bf16.msra.mxu0 %v8324
    %9614 = vmatpush.bf16.msra.mxu0 %v8317
    %9615 = vmatmul.bf16.gmra.mxu0 %v5238
    %v9616 = vpop.f32.mrf.mxu0
    %v9617 = vadd.f32 %v9604, %v9616
    %v9618 = vpop.f32.mrf.mxu0
    %9619 = vdwg.mxu0
    %9620 = vmatpush.bf16.msra.mxu0 %v8422
    %9621 = vmatpush.bf16.msra.mxu0 %v8415
    %9622 = vmatpush.bf16.msra.mxu0 %v8408
    %9623 = vmatpush.bf16.msra.mxu0 %v8401
    %9624 = vmatpush.bf16.msra.mxu0 %v8394
    %9625 = vmatpush.bf16.msra.mxu0 %v8387
    %9626 = vmatpush.bf16.msra.mxu0 %v8380
    %9627 = vmatpush.bf16.msra.mxu0 %v8373
    %9628 = vmatmul.bf16.gmra.mxu0 %v5239
    %v9629 = vpop.f32.mrf.mxu0
    %v9630 = vadd.f32 %v9617, %v9629
    %v9631 = vpop.f32.mrf.mxu0
    %9632 = vdwg.mxu0
    %9633 = vmatpush.bf16.msra.mxu0 %v8478
    %9634 = vmatpush.bf16.msra.mxu0 %v8471
    %9635 = vmatpush.bf16.msra.mxu0 %v8464
    %9636 = vmatpush.bf16.msra.mxu0 %v8457
    %9637 = vmatpush.bf16.msra.mxu0 %v8450
    %9638 = vmatpush.bf16.msra.mxu0 %v8443
    %9639 = vmatpush.bf16.msra.mxu0 %v8436
    %9640 = vmatpush.bf16.msra.mxu0 %v8429
    %9641 = vmatmul.bf16.gmra.mxu0 %v5240
    %v9642 = vpop.f32.mrf.mxu0
    %v9643 = vadd.f32 %v9630, %v9642
    %v9644 = vpop.f32.mrf.mxu0
    %9645 = vdwg.mxu0
    %9646 = vmatpush.bf16.msra.mxu0 %v8534
    %9647 = vmatpush.bf16.msra.mxu0 %v8527
    %9648 = vmatpush.bf16.msra.mxu0 %v8520
    %9649 = vmatpush.bf16.msra.mxu0 %v8513
    %9650 = vmatpush.bf16.msra.mxu0 %v8506
    %9651 = vmatpush.bf16.msra.mxu0 %v8499
    %9652 = vmatpush.bf16.msra.mxu0 %v8492
    %9653 = vmatpush.bf16.msra.mxu0 %v8485
    %9654 = vmatmul.bf16.gmra.mxu0 %v5241
    %v9655 = vpop.f32.mrf.mxu0
    %v9656 = vadd.f32 %v9643, %v9655
    %v9657 = vpop.f32.mrf.mxu0
    %9658 = vdwg.mxu0
    %9659 = vmatpush.bf16.msra.mxu0 %v8590
    %9660 = vmatpush.bf16.msra.mxu0 %v8583
    %9661 = vmatpush.bf16.msra.mxu0 %v8576
    %9662 = vmatpush.bf16.msra.mxu0 %v8569
    %9663 = vmatpush.bf16.msra.mxu0 %v8562
    %9664 = vmatpush.bf16.msra.mxu0 %v8555
    %9665 = vmatpush.bf16.msra.mxu0 %v8548
    %9666 = vmatpush.bf16.msra.mxu0 %v8541
    %9667 = vmatmul.bf16.gmra.mxu0 %v5242
    %v9668 = vpop.f32.mrf.mxu0
    %v9669 = vadd.f32 %v9656, %v9668
    %v9670 = vpop.f32.mrf.mxu0
    %9671 = vdwg.mxu0
    %9672 = vmatpush.bf16.msra.mxu0 %v8646
    %9673 = vmatpush.bf16.msra.mxu0 %v8639
    %9674 = vmatpush.bf16.msra.mxu0 %v8632
    %9675 = vmatpush.bf16.msra.mxu0 %v8625
    %9676 = vmatpush.bf16.msra.mxu0 %v8618
    %9677 = vmatpush.bf16.msra.mxu0 %v8611
    %9678 = vmatpush.bf16.msra.mxu0 %v8604
    %9679 = vmatpush.bf16.msra.mxu0 %v8597
    %9680 = vmatmul.bf16.gmra.mxu0 %v5243
    %v9681 = vpop.f32.mrf.mxu0
    %v9682 = vadd.f32 %v9669, %v9681
    %v9683 = vpop.f32.mrf.mxu0
    %9684 = vdwg.mxu0
    %9685 = vmatpush.bf16.msra.mxu0 %v8702
    %9686 = vmatpush.bf16.msra.mxu0 %v8695
    %9687 = vmatpush.bf16.msra.mxu0 %v8688
    %9688 = vmatpush.bf16.msra.mxu0 %v8681
    %9689 = vmatpush.bf16.msra.mxu0 %v8674
    %9690 = vmatpush.bf16.msra.mxu0 %v8667
    %9691 = vmatpush.bf16.msra.mxu0 %v8660
    %9692 = vmatpush.bf16.msra.mxu0 %v8653
    %9693 = vmatmul.bf16.gmra.mxu0 %v5244
    %v9694 = vpop.f32.mrf.mxu0
    %v9695 = vadd.f32 %v9682, %v9694
    %v9696 = vpop.f32.mrf.mxu0
    %9697 = vdwg.mxu0
    %9698 = vmatpush.bf16.msra.mxu0 %v8758
    %9699 = vmatpush.bf16.msra.mxu0 %v8751
    %9700 = vmatpush.bf16.msra.mxu0 %v8744
    %9701 = vmatpush.bf16.msra.mxu0 %v8737
    %9702 = vmatpush.bf16.msra.mxu0 %v8730
    %9703 = vmatpush.bf16.msra.mxu0 %v8723
    %9704 = vmatpush.bf16.msra.mxu0 %v8716
    %9705 = vmatpush.bf16.msra.mxu0 %v8709
    %9706 = vmatmul.bf16.gmra.mxu0 %v5245
    %v9707 = vpop.f32.mrf.mxu0
    %v9708 = vadd.f32 %v9695, %v9707
    %v9709 = vpop.f32.mrf.mxu0
    %9710 = vdwg.mxu0
    %9711 = vmatpush.bf16.msra.mxu0 %v8814
    %9712 = vmatpush.bf16.msra.mxu0 %v8807
    %9713 = vmatpush.bf16.msra.mxu0 %v8800
    %9714 = vmatpush.bf16.msra.mxu0 %v8793
    %9715 = vmatpush.bf16.msra.mxu0 %v8786
    %9716 = vmatpush.bf16.msra.mxu0 %v8779
    %9717 = vmatpush.bf16.msra.mxu0 %v8772
    %9718 = vmatpush.bf16.msra.mxu0 %v8765
    %9719 = vmatmul.bf16.gmra.mxu0 %v5246
    %v9720 = vpop.f32.mrf.mxu0
    %v9721 = vadd.f32 %v9708, %v9720
    %v9722 = vpop.f32.mrf.mxu0
    %9723 = vdwg.mxu0
    %9724 = vmatpush.bf16.msra.mxu0 %v8870
    %9725 = vmatpush.bf16.msra.mxu0 %v8863
    %9726 = vmatpush.bf16.msra.mxu0 %v8856
    %9727 = vmatpush.bf16.msra.mxu0 %v8849
    %9728 = vmatpush.bf16.msra.mxu0 %v8842
    %9729 = vmatpush.bf16.msra.mxu0 %v8835
    %9730 = vmatpush.bf16.msra.mxu0 %v8828
    %9731 = vmatpush.bf16.msra.mxu0 %v8821
    %9732 = vmatmul.bf16.gmra.mxu0 %v5247
    %v9733 = vpop.f32.mrf.mxu0
    %v9734 = vadd.f32 %v9721, %v9733
    %v9735 = vpop.f32.mrf.mxu0
    %9736 = vdwg.mxu0
    %9737 = vmatpush.bf16.msra.mxu0 0
    %9738 = vmatpush.bf16.msra.mxu0 0
    %9739 = vmatpush.bf16.msra.mxu0 0
    %9740 = vmatpush.bf16.msra.mxu0 0
    %9741 = vmatpush.bf16.msra.mxu0 0
    %9742 = vmatpush.bf16.msra.mxu0 0
    %9743 = vmatpush.bf16.msra.mxu0 %v8884
    %9744 = vmatpush.bf16.msra.mxu0 %v8877
    %9745 = vmatmul.bf16.gmra.mxu0 %v9579
    %v9746 = vpop.f32.mrf.mxu0
    %v9747 = vadd.f32 %v9734, %v9746
    %v9748 = vpop.f32.mrf.mxu0
    %9749 = vdwg.mxu0
    %9750 = vmatpush.bf16.msra.mxu0 %v8255
    %9751 = vmatpush.bf16.msra.mxu0 %v8248
    %9752 = vmatpush.bf16.msra.mxu0 %v8241
    %9753 = vmatpush.bf16.msra.mxu0 %v8234
    %9754 = vmatpush.bf16.msra.mxu0 %v8227
    %9755 = vmatpush.bf16.msra.mxu0 %v8220
    %9756 = vmatpush.bf16.msra.mxu0 %v8213
    %9757 = vmatpush.bf16.msra.mxu0 %v8206
    %9758 = vmatmul.bf16.gmra.mxu0 %v5236
    %v9759 = vpop.f32.mrf.mxu0
    %v9760 = vadd.f32 %v6036, %v9759
    %v9761 = vpop.f32.mrf.mxu0
    %9762 = vdwg.mxu0
    %9763 = vmatpush.bf16.msra.mxu0 %v8311
    %9764 = vmatpush.bf16.msra.mxu0 %v8304
    %9765 = vmatpush.bf16.msra.mxu0 %v8297
    %9766 = vmatpush.bf16.msra.mxu0 %v8290
    %9767 = vmatpush.bf16.msra.mxu0 %v8283
    %9768 = vmatpush.bf16.msra.mxu0 %v8276
    %9769 = vmatpush.bf16.msra.mxu0 %v8269
    %9770 = vmatpush.bf16.msra.mxu0 %v8262
    %9771 = vmatmul.bf16.gmra.mxu0 %v5237
    %v9772 = vpop.f32.mrf.mxu0
    %v9773 = vadd.f32 %v9760, %v9772
    %v9774 = vpop.f32.mrf.mxu0
    %9775 = vdwg.mxu0
    %9776 = vmatpush.bf16.msra.mxu0 %v8367
    %9777 = vmatpush.bf16.msra.mxu0 %v8360
    %9778 = vmatpush.bf16.msra.mxu0 %v8353
    %9779 = vmatpush.bf16.msra.mxu0 %v8346
    %9780 = vmatpush.bf16.msra.mxu0 %v8339
    %9781 = vmatpush.bf16.msra.mxu0 %v8332
    %9782 = vmatpush.bf16.msra.mxu0 %v8325
    %9783 = vmatpush.bf16.msra.mxu0 %v8318
    %9784 = vmatmul.bf16.gmra.mxu0 %v5238
    %v9785 = vpop.f32.mrf.mxu0
    %v9786 = vadd.f32 %v9773, %v9785
    %v9787 = vpop.f32.mrf.mxu0
    %9788 = vdwg.mxu0
    %9789 = vmatpush.bf16.msra.mxu0 %v8423
    %9790 = vmatpush.bf16.msra.mxu0 %v8416
    %9791 = vmatpush.bf16.msra.mxu0 %v8409
    %9792 = vmatpush.bf16.msra.mxu0 %v8402
    %9793 = vmatpush.bf16.msra.mxu0 %v8395
    %9794 = vmatpush.bf16.msra.mxu0 %v8388
    %9795 = vmatpush.bf16.msra.mxu0 %v8381
    %9796 = vmatpush.bf16.msra.mxu0 %v8374
    %9797 = vmatmul.bf16.gmra.mxu0 %v5239
    %v9798 = vpop.f32.mrf.mxu0
    %v9799 = vadd.f32 %v9786, %v9798
    %v9800 = vpop.f32.mrf.mxu0
    %9801 = vdwg.mxu0
    %9802 = vmatpush.bf16.msra.mxu0 %v8479
    %9803 = vmatpush.bf16.msra.mxu0 %v8472
    %9804 = vmatpush.bf16.msra.mxu0 %v8465
    %9805 = vmatpush.bf16.msra.mxu0 %v8458
    %9806 = vmatpush.bf16.msra.mxu0 %v8451
    %9807 = vmatpush.bf16.msra.mxu0 %v8444
    %9808 = vmatpush.bf16.msra.mxu0 %v8437
    %9809 = vmatpush.bf16.msra.mxu0 %v8430
    %9810 = vmatmul.bf16.gmra.mxu0 %v5240
    %v9811 = vpop.f32.mrf.mxu0
    %v9812 = vadd.f32 %v9799, %v9811
    %v9813 = vpop.f32.mrf.mxu0
    %9814 = vdwg.mxu0
    %9815 = vmatpush.bf16.msra.mxu0 %v8535
    %9816 = vmatpush.bf16.msra.mxu0 %v8528
    %9817 = vmatpush.bf16.msra.mxu0 %v8521
    %9818 = vmatpush.bf16.msra.mxu0 %v8514
    %9819 = vmatpush.bf16.msra.mxu0 %v8507
    %9820 = vmatpush.bf16.msra.mxu0 %v8500
    %9821 = vmatpush.bf16.msra.mxu0 %v8493
    %9822 = vmatpush.bf16.msra.mxu0 %v8486
    %9823 = vmatmul.bf16.gmra.mxu0 %v5241
    %v9824 = vpop.f32.mrf.mxu0
    %v9825 = vadd.f32 %v9812, %v9824
    %v9826 = vpop.f32.mrf.mxu0
    %9827 = vdwg.mxu0
    %9828 = vmatpush.bf16.msra.mxu0 %v8591
    %9829 = vmatpush.bf16.msra.mxu0 %v8584
    %9830 = vmatpush.bf16.msra.mxu0 %v8577
    %9831 = vmatpush.bf16.msra.mxu0 %v8570
    %9832 = vmatpush.bf16.msra.mxu0 %v8563
    %9833 = vmatpush.bf16.msra.mxu0 %v8556
    %9834 = vmatpush.bf16.msra.mxu0 %v8549
    %9835 = vmatpush.bf16.msra.mxu0 %v8542
    %9836 = vmatmul.bf16.gmra.mxu0 %v5242
    %v9837 = vpop.f32.mrf.mxu0
    %v9838 = vadd.f32 %v9825, %v9837
    %v9839 = vpop.f32.mrf.mxu0
    %9840 = vdwg.mxu0
    %9841 = vmatpush.bf16.msra.mxu0 %v8647
    %9842 = vmatpush.bf16.msra.mxu0 %v8640
    %9843 = vmatpush.bf16.msra.mxu0 %v8633
    %9844 = vmatpush.bf16.msra.mxu0 %v8626
    %9845 = vmatpush.bf16.msra.mxu0 %v8619
    %9846 = vmatpush.bf16.msra.mxu0 %v8612
    %9847 = vmatpush.bf16.msra.mxu0 %v8605
    %9848 = vmatpush.bf16.msra.mxu0 %v8598
    %9849 = vmatmul.bf16.gmra.mxu0 %v5243
    %v9850 = vpop.f32.mrf.mxu0
    %v9851 = vadd.f32 %v9838, %v9850
    %v9852 = vpop.f32.mrf.mxu0
    %9853 = vdwg.mxu0
    %9854 = vmatpush.bf16.msra.mxu0 %v8703
    %9855 = vmatpush.bf16.msra.mxu0 %v8696
    %9856 = vmatpush.bf16.msra.mxu0 %v8689
    %9857 = vmatpush.bf16.msra.mxu0 %v8682
    %9858 = vmatpush.bf16.msra.mxu0 %v8675
    %9859 = vmatpush.bf16.msra.mxu0 %v8668
    %9860 = vmatpush.bf16.msra.mxu0 %v8661
    %9861 = vmatpush.bf16.msra.mxu0 %v8654
    %9862 = vmatmul.bf16.gmra.mxu0 %v5244
    %v9863 = vpop.f32.mrf.mxu0
    %v9864 = vadd.f32 %v9851, %v9863
    %v9865 = vpop.f32.mrf.mxu0
    %9866 = vdwg.mxu0
    %9867 = vmatpush.bf16.msra.mxu0 %v8759
    %9868 = vmatpush.bf16.msra.mxu0 %v8752
    %9869 = vmatpush.bf16.msra.mxu0 %v8745
    %9870 = vmatpush.bf16.msra.mxu0 %v8738
    %9871 = vmatpush.bf16.msra.mxu0 %v8731
    %9872 = vmatpush.bf16.msra.mxu0 %v8724
    %9873 = vmatpush.bf16.msra.mxu0 %v8717
    %9874 = vmatpush.bf16.msra.mxu0 %v8710
    %9875 = vmatmul.bf16.gmra.mxu0 %v5245
    %v9876 = vpop.f32.mrf.mxu0
    %v9877 = vadd.f32 %v9864, %v9876
    %v9878 = vpop.f32.mrf.mxu0
    %9879 = vdwg.mxu0
    %9880 = vmatpush.bf16.msra.mxu0 %v8815
    %9881 = vmatpush.bf16.msra.mxu0 %v8808
    %9882 = vmatpush.bf16.msra.mxu0 %v8801
    %9883 = vmatpush.bf16.msra.mxu0 %v8794
    %9884 = vmatpush.bf16.msra.mxu0 %v8787
    %9885 = vmatpush.bf16.msra.mxu0 %v8780
    %9886 = vmatpush.bf16.msra.mxu0 %v8773
    %9887 = vmatpush.bf16.msra.mxu0 %v8766
    %9888 = vmatmul.bf16.gmra.mxu0 %v5246
    %v9889 = vpop.f32.mrf.mxu0
    %v9890 = vadd.f32 %v9877, %v9889
    %v9891 = vpop.f32.mrf.mxu0
    %9892 = vdwg.mxu0
    %9893 = vmatpush.bf16.msra.mxu0 %v8871
    %9894 = vmatpush.bf16.msra.mxu0 %v8864
    %9895 = vmatpush.bf16.msra.mxu0 %v8857
    %9896 = vmatpush.bf16.msra.mxu0 %v8850
    %9897 = vmatpush.bf16.msra.mxu0 %v8843
    %9898 = vmatpush.bf16.msra.mxu0 %v8836
    %9899 = vmatpush.bf16.msra.mxu0 %v8829
    %9900 = vmatpush.bf16.msra.mxu0 %v8822
    %9901 = vmatmul.bf16.gmra.mxu0 %v5247
    %v9902 = vpop.f32.mrf.mxu0
    %v9903 = vadd.f32 %v9890, %v9902
    %v9904 = vpop.f32.mrf.mxu0
    %9905 = vdwg.mxu0
    %9906 = vmatpush.bf16.msra.mxu0 0
    %9907 = vmatpush.bf16.msra.mxu0 0
    %9908 = vmatpush.bf16.msra.mxu0 0
    %9909 = vmatpush.bf16.msra.mxu0 0
    %9910 = vmatpush.bf16.msra.mxu0 0
    %9911 = vmatpush.bf16.msra.mxu0 0
    %9912 = vmatpush.bf16.msra.mxu0 %v8885
    %9913 = vmatpush.bf16.msra.mxu0 %v8878
    %9914 = vmatmul.bf16.gmra.mxu0 %v9579
    %v9915 = vpop.f32.mrf.mxu0
    %v9916 = vadd.f32 %v9903, %v9915
    %v9917 = vpop.f32.mrf.mxu0
    %9918 = vdwg.mxu0
    %9919 = vmatpush.bf16.msra.mxu0 %v8256
    %9920 = vmatpush.bf16.msra.mxu0 %v8249
    %9921 = vmatpush.bf16.msra.mxu0 %v8242
    %9922 = vmatpush.bf16.msra.mxu0 %v8235
    %9923 = vmatpush.bf16.msra.mxu0 %v8228
    %9924 = vmatpush.bf16.msra.mxu0 %v8221
    %9925 = vmatpush.bf16.msra.mxu0 %v8214
    %9926 = vmatpush.bf16.msra.mxu0 %v8207
    %9927 = vmatmul.bf16.gmra.mxu0 %v5236
    %v9928 = vpop.f32.mrf.mxu0
    %v9929 = vadd.f32 %v6037, %v9928
    %v9930 = vpop.f32.mrf.mxu0
    %9931 = vdwg.mxu0
    %9932 = vmatpush.bf16.msra.mxu0 %v8312
    %9933 = vmatpush.bf16.msra.mxu0 %v8305
    %9934 = vmatpush.bf16.msra.mxu0 %v8298
    %9935 = vmatpush.bf16.msra.mxu0 %v8291
    %9936 = vmatpush.bf16.msra.mxu0 %v8284
    %9937 = vmatpush.bf16.msra.mxu0 %v8277
    %9938 = vmatpush.bf16.msra.mxu0 %v8270
    %9939 = vmatpush.bf16.msra.mxu0 %v8263
    %9940 = vmatmul.bf16.gmra.mxu0 %v5237
    %v9941 = vpop.f32.mrf.mxu0
    %v9942 = vadd.f32 %v9929, %v9941
    %v9943 = vpop.f32.mrf.mxu0
    %9944 = vdwg.mxu0
    %9945 = vmatpush.bf16.msra.mxu0 %v8368
    %9946 = vmatpush.bf16.msra.mxu0 %v8361
    %9947 = vmatpush.bf16.msra.mxu0 %v8354
    %9948 = vmatpush.bf16.msra.mxu0 %v8347
    %9949 = vmatpush.bf16.msra.mxu0 %v8340
    %9950 = vmatpush.bf16.msra.mxu0 %v8333
    %9951 = vmatpush.bf16.msra.mxu0 %v8326
    %9952 = vmatpush.bf16.msra.mxu0 %v8319
    %9953 = vmatmul.bf16.gmra.mxu0 %v5238
    %v9954 = vpop.f32.mrf.mxu0
    %v9955 = vadd.f32 %v9942, %v9954
    %v9956 = vpop.f32.mrf.mxu0
    %9957 = vdwg.mxu0
    %9958 = vmatpush.bf16.msra.mxu0 %v8424
    %9959 = vmatpush.bf16.msra.mxu0 %v8417
    %9960 = vmatpush.bf16.msra.mxu0 %v8410
    %9961 = vmatpush.bf16.msra.mxu0 %v8403
    %9962 = vmatpush.bf16.msra.mxu0 %v8396
    %9963 = vmatpush.bf16.msra.mxu0 %v8389
    %9964 = vmatpush.bf16.msra.mxu0 %v8382
    %9965 = vmatpush.bf16.msra.mxu0 %v8375
    %9966 = vmatmul.bf16.gmra.mxu0 %v5239
    %v9967 = vpop.f32.mrf.mxu0
    %v9968 = vadd.f32 %v9955, %v9967
    %v9969 = vpop.f32.mrf.mxu0
    %9970 = vdwg.mxu0
    %9971 = vmatpush.bf16.msra.mxu0 %v8480
    %9972 = vmatpush.bf16.msra.mxu0 %v8473
    %9973 = vmatpush.bf16.msra.mxu0 %v8466
    %9974 = vmatpush.bf16.msra.mxu0 %v8459
    %9975 = vmatpush.bf16.msra.mxu0 %v8452
    %9976 = vmatpush.bf16.msra.mxu0 %v8445
    %9977 = vmatpush.bf16.msra.mxu0 %v8438
    %9978 = vmatpush.bf16.msra.mxu0 %v8431
    %9979 = vmatmul.bf16.gmra.mxu0 %v5240
    %v9980 = vpop.f32.mrf.mxu0
    %v9981 = vadd.f32 %v9968, %v9980
    %v9982 = vpop.f32.mrf.mxu0
    %9983 = vdwg.mxu0
    %9984 = vmatpush.bf16.msra.mxu0 %v8536
    %9985 = vmatpush.bf16.msra.mxu0 %v8529
    %9986 = vmatpush.bf16.msra.mxu0 %v8522
    %9987 = vmatpush.bf16.msra.mxu0 %v8515
    %9988 = vmatpush.bf16.msra.mxu0 %v8508
    %9989 = vmatpush.bf16.msra.mxu0 %v8501
    %9990 = vmatpush.bf16.msra.mxu0 %v8494
    %9991 = vmatpush.bf16.msra.mxu0 %v8487
    %9992 = vmatmul.bf16.gmra.mxu0 %v5241
    %v9993 = vpop.f32.mrf.mxu0
    %v9994 = vadd.f32 %v9981, %v9993
    %v9995 = vpop.f32.mrf.mxu0
    %9996 = vdwg.mxu0
    %9997 = vmatpush.bf16.msra.mxu0 %v8592
    %9998 = vmatpush.bf16.msra.mxu0 %v8585
    %9999 = vmatpush.bf16.msra.mxu0 %v8578
    %10000 = vmatpush.bf16.msra.mxu0 %v8571
    %10001 = vmatpush.bf16.msra.mxu0 %v8564
    %10002 = vmatpush.bf16.msra.mxu0 %v8557
    %10003 = vmatpush.bf16.msra.mxu0 %v8550
    %10004 = vmatpush.bf16.msra.mxu0 %v8543
    %10005 = vmatmul.bf16.gmra.mxu0 %v5242
    %v10006 = vpop.f32.mrf.mxu0
    %v10007 = vadd.f32 %v9994, %v10006
    %v10008 = vpop.f32.mrf.mxu0
    %10009 = vdwg.mxu0
    %10010 = vmatpush.bf16.msra.mxu0 %v8648
    %10011 = vmatpush.bf16.msra.mxu0 %v8641
    %10012 = vmatpush.bf16.msra.mxu0 %v8634
    %10013 = vmatpush.bf16.msra.mxu0 %v8627
    %10014 = vmatpush.bf16.msra.mxu0 %v8620
    %10015 = vmatpush.bf16.msra.mxu0 %v8613
    %10016 = vmatpush.bf16.msra.mxu0 %v8606
    %10017 = vmatpush.bf16.msra.mxu0 %v8599
    %10018 = vmatmul.bf16.gmra.mxu0 %v5243
    %v10019 = vpop.f32.mrf.mxu0
    %v10020 = vadd.f32 %v10007, %v10019
    %v10021 = vpop.f32.mrf.mxu0
    %10022 = vdwg.mxu0
    %10023 = vmatpush.bf16.msra.mxu0 %v8704
    %10024 = vmatpush.bf16.msra.mxu0 %v8697
    %10025 = vmatpush.bf16.msra.mxu0 %v8690
    %10026 = vmatpush.bf16.msra.mxu0 %v8683
    %10027 = vmatpush.bf16.msra.mxu0 %v8676
    %10028 = vmatpush.bf16.msra.mxu0 %v8669
    %10029 = vmatpush.bf16.msra.mxu0 %v8662
    %10030 = vmatpush.bf16.msra.mxu0 %v8655
    %10031 = vmatmul.bf16.gmra.mxu0 %v5244
    %v10032 = vpop.f32.mrf.mxu0
    %v10033 = vadd.f32 %v10020, %v10032
    %v10034 = vpop.f32.mrf.mxu0
    %10035 = vdwg.mxu0
    %10036 = vmatpush.bf16.msra.mxu0 %v8760
    %10037 = vmatpush.bf16.msra.mxu0 %v8753
    %10038 = vmatpush.bf16.msra.mxu0 %v8746
    %10039 = vmatpush.bf16.msra.mxu0 %v8739
    %10040 = vmatpush.bf16.msra.mxu0 %v8732
    %10041 = vmatpush.bf16.msra.mxu0 %v8725
    %10042 = vmatpush.bf16.msra.mxu0 %v8718
    %10043 = vmatpush.bf16.msra.mxu0 %v8711
    %10044 = vmatmul.bf16.gmra.mxu0 %v5245
    %v10045 = vpop.f32.mrf.mxu0
    %v10046 = vadd.f32 %v10033, %v10045
    %v10047 = vpop.f32.mrf.mxu0
    %10048 = vdwg.mxu0
    %10049 = vmatpush.bf16.msra.mxu0 %v8816
    %10050 = vmatpush.bf16.msra.mxu0 %v8809
    %10051 = vmatpush.bf16.msra.mxu0 %v8802
    %10052 = vmatpush.bf16.msra.mxu0 %v8795
    %10053 = vmatpush.bf16.msra.mxu0 %v8788
    %10054 = vmatpush.bf16.msra.mxu0 %v8781
    %10055 = vmatpush.bf16.msra.mxu0 %v8774
    %10056 = vmatpush.bf16.msra.mxu0 %v8767
    %10057 = vmatmul.bf16.gmra.mxu0 %v5246
    %v10058 = vpop.f32.mrf.mxu0
    %v10059 = vadd.f32 %v10046, %v10058
    %v10060 = vpop.f32.mrf.mxu0
    %10061 = vdwg.mxu0
    %10062 = vmatpush.bf16.msra.mxu0 %v8872
    %10063 = vmatpush.bf16.msra.mxu0 %v8865
    %10064 = vmatpush.bf16.msra.mxu0 %v8858
    %10065 = vmatpush.bf16.msra.mxu0 %v8851
    %10066 = vmatpush.bf16.msra.mxu0 %v8844
    %10067 = vmatpush.bf16.msra.mxu0 %v8837
    %10068 = vmatpush.bf16.msra.mxu0 %v8830
    %10069 = vmatpush.bf16.msra.mxu0 %v8823
    %10070 = vmatmul.bf16.gmra.mxu0 %v5247
    %v10071 = vpop.f32.mrf.mxu0
    %v10072 = vadd.f32 %v10059, %v10071
    %v10073 = vpop.f32.mrf.mxu0
    %10074 = vdwg.mxu0
    %10075 = vmatpush.bf16.msra.mxu0 0
    %10076 = vmatpush.bf16.msra.mxu0 0
    %10077 = vmatpush.bf16.msra.mxu0 0
    %10078 = vmatpush.bf16.msra.mxu0 0
    %10079 = vmatpush.bf16.msra.mxu0 0
    %10080 = vmatpush.bf16.msra.mxu0 0
    %10081 = vmatpush.bf16.msra.mxu0 %v8886
    %10082 = vmatpush.bf16.msra.mxu0 %v8879
    %10083 = vmatmul.bf16.gmra.mxu0 %v9579
    %v10084 = vpop.f32.mrf.mxu0
    %v10085 = vadd.f32 %v10072, %v10084
    %v10086 = vpop.f32.mrf.mxu0
    %10087 = vdwg.mxu0
    %10088 = vmatpush.bf16.msra.mxu0 %v8257
    %10089 = vmatpush.bf16.msra.mxu0 %v8250
    %10090 = vmatpush.bf16.msra.mxu0 %v8243
    %10091 = vmatpush.bf16.msra.mxu0 %v8236
    %10092 = vmatpush.bf16.msra.mxu0 %v8229
    %10093 = vmatpush.bf16.msra.mxu0 %v8222
    %10094 = vmatpush.bf16.msra.mxu0 %v8215
    %10095 = vmatpush.bf16.msra.mxu0 %v8208
    %10096 = vmatmul.bf16.gmra.mxu0 %v5236
    %v10097 = vpop.f32.mrf.mxu0
    %v10098 = vadd.f32 %v6038, %v10097
    %v10099 = vpop.f32.mrf.mxu0
    %10100 = vdwg.mxu0
    %10101 = vmatpush.bf16.msra.mxu0 %v8313
    %10102 = vmatpush.bf16.msra.mxu0 %v8306
    %10103 = vmatpush.bf16.msra.mxu0 %v8299
    %10104 = vmatpush.bf16.msra.mxu0 %v8292
    %10105 = vmatpush.bf16.msra.mxu0 %v8285
    %10106 = vmatpush.bf16.msra.mxu0 %v8278
    %10107 = vmatpush.bf16.msra.mxu0 %v8271
    %10108 = vmatpush.bf16.msra.mxu0 %v8264
    %10109 = vmatmul.bf16.gmra.mxu0 %v5237
    %v10110 = vpop.f32.mrf.mxu0
    %v10111 = vadd.f32 %v10098, %v10110
    %v10112 = vpop.f32.mrf.mxu0
    %10113 = vdwg.mxu0
    %10114 = vmatpush.bf16.msra.mxu0 %v8369
    %10115 = vmatpush.bf16.msra.mxu0 %v8362
    %10116 = vmatpush.bf16.msra.mxu0 %v8355
    %10117 = vmatpush.bf16.msra.mxu0 %v8348
    %10118 = vmatpush.bf16.msra.mxu0 %v8341
    %10119 = vmatpush.bf16.msra.mxu0 %v8334
    %10120 = vmatpush.bf16.msra.mxu0 %v8327
    %10121 = vmatpush.bf16.msra.mxu0 %v8320
    %10122 = vmatmul.bf16.gmra.mxu0 %v5238
    %v10123 = vpop.f32.mrf.mxu0
    %v10124 = vadd.f32 %v10111, %v10123
    %v10125 = vpop.f32.mrf.mxu0
    %10126 = vdwg.mxu0
    %10127 = vmatpush.bf16.msra.mxu0 %v8425
    %10128 = vmatpush.bf16.msra.mxu0 %v8418
    %10129 = vmatpush.bf16.msra.mxu0 %v8411
    %10130 = vmatpush.bf16.msra.mxu0 %v8404
    %10131 = vmatpush.bf16.msra.mxu0 %v8397
    %10132 = vmatpush.bf16.msra.mxu0 %v8390
    %10133 = vmatpush.bf16.msra.mxu0 %v8383
    %10134 = vmatpush.bf16.msra.mxu0 %v8376
    %10135 = vmatmul.bf16.gmra.mxu0 %v5239
    %v10136 = vpop.f32.mrf.mxu0
    %v10137 = vadd.f32 %v10124, %v10136
    %v10138 = vpop.f32.mrf.mxu0
    %10139 = vdwg.mxu0
    %10140 = vmatpush.bf16.msra.mxu0 %v8481
    %10141 = vmatpush.bf16.msra.mxu0 %v8474
    %10142 = vmatpush.bf16.msra.mxu0 %v8467
    %10143 = vmatpush.bf16.msra.mxu0 %v8460
    %10144 = vmatpush.bf16.msra.mxu0 %v8453
    %10145 = vmatpush.bf16.msra.mxu0 %v8446
    %10146 = vmatpush.bf16.msra.mxu0 %v8439
    %10147 = vmatpush.bf16.msra.mxu0 %v8432
    %10148 = vmatmul.bf16.gmra.mxu0 %v5240
    %v10149 = vpop.f32.mrf.mxu0
    %v10150 = vadd.f32 %v10137, %v10149
    %v10151 = vpop.f32.mrf.mxu0
    %10152 = vdwg.mxu0
    %10153 = vmatpush.bf16.msra.mxu0 %v8537
    %10154 = vmatpush.bf16.msra.mxu0 %v8530
    %10155 = vmatpush.bf16.msra.mxu0 %v8523
    %10156 = vmatpush.bf16.msra.mxu0 %v8516
    %10157 = vmatpush.bf16.msra.mxu0 %v8509
    %10158 = vmatpush.bf16.msra.mxu0 %v8502
    %10159 = vmatpush.bf16.msra.mxu0 %v8495
    %10160 = vmatpush.bf16.msra.mxu0 %v8488
    %10161 = vmatmul.bf16.gmra.mxu0 %v5241
    %v10162 = vpop.f32.mrf.mxu0
    %v10163 = vadd.f32 %v10150, %v10162
    %v10164 = vpop.f32.mrf.mxu0
    %10165 = vdwg.mxu0
    %10166 = vmatpush.bf16.msra.mxu0 %v8593
    %10167 = vmatpush.bf16.msra.mxu0 %v8586
    %10168 = vmatpush.bf16.msra.mxu0 %v8579
    %10169 = vmatpush.bf16.msra.mxu0 %v8572
    %10170 = vmatpush.bf16.msra.mxu0 %v8565
    %10171 = vmatpush.bf16.msra.mxu0 %v8558
    %10172 = vmatpush.bf16.msra.mxu0 %v8551
    %10173 = vmatpush.bf16.msra.mxu0 %v8544
    %10174 = vmatmul.bf16.gmra.mxu0 %v5242
    %v10175 = vpop.f32.mrf.mxu0
    %v10176 = vadd.f32 %v10163, %v10175
    %v10177 = vpop.f32.mrf.mxu0
    %10178 = vdwg.mxu0
    %10179 = vmatpush.bf16.msra.mxu0 %v8649
    %10180 = vmatpush.bf16.msra.mxu0 %v8642
    %10181 = vmatpush.bf16.msra.mxu0 %v8635
    %10182 = vmatpush.bf16.msra.mxu0 %v8628
    %10183 = vmatpush.bf16.msra.mxu0 %v8621
    %10184 = vmatpush.bf16.msra.mxu0 %v8614
    %10185 = vmatpush.bf16.msra.mxu0 %v8607
    %10186 = vmatpush.bf16.msra.mxu0 %v8600
    %10187 = vmatmul.bf16.gmra.mxu0 %v5243
    %v10188 = vpop.f32.mrf.mxu0
    %v10189 = vadd.f32 %v10176, %v10188
    %v10190 = vpop.f32.mrf.mxu0
    %10191 = vdwg.mxu0
    %10192 = vmatpush.bf16.msra.mxu0 %v8705
    %10193 = vmatpush.bf16.msra.mxu0 %v8698
    %10194 = vmatpush.bf16.msra.mxu0 %v8691
    %10195 = vmatpush.bf16.msra.mxu0 %v8684
    %10196 = vmatpush.bf16.msra.mxu0 %v8677
    %10197 = vmatpush.bf16.msra.mxu0 %v8670
    %10198 = vmatpush.bf16.msra.mxu0 %v8663
    %10199 = vmatpush.bf16.msra.mxu0 %v8656
    %10200 = vmatmul.bf16.gmra.mxu0 %v5244
    %v10201 = vpop.f32.mrf.mxu0
    %v10202 = vadd.f32 %v10189, %v10201
    %v10203 = vpop.f32.mrf.mxu0
    %10204 = vdwg.mxu0
    %10205 = vmatpush.bf16.msra.mxu0 %v8761
    %10206 = vmatpush.bf16.msra.mxu0 %v8754
    %10207 = vmatpush.bf16.msra.mxu0 %v8747
    %10208 = vmatpush.bf16.msra.mxu0 %v8740
    %10209 = vmatpush.bf16.msra.mxu0 %v8733
    %10210 = vmatpush.bf16.msra.mxu0 %v8726
    %10211 = vmatpush.bf16.msra.mxu0 %v8719
    %10212 = vmatpush.bf16.msra.mxu0 %v8712
    %10213 = vmatmul.bf16.gmra.mxu0 %v5245
    %v10214 = vpop.f32.mrf.mxu0
    %v10215 = vadd.f32 %v10202, %v10214
    %v10216 = vpop.f32.mrf.mxu0
    %10217 = vdwg.mxu0
    %10218 = vmatpush.bf16.msra.mxu0 %v8817
    %10219 = vmatpush.bf16.msra.mxu0 %v8810
    %10220 = vmatpush.bf16.msra.mxu0 %v8803
    %10221 = vmatpush.bf16.msra.mxu0 %v8796
    %10222 = vmatpush.bf16.msra.mxu0 %v8789
    %10223 = vmatpush.bf16.msra.mxu0 %v8782
    %10224 = vmatpush.bf16.msra.mxu0 %v8775
    %10225 = vmatpush.bf16.msra.mxu0 %v8768
    %10226 = vmatmul.bf16.gmra.mxu0 %v5246
    %v10227 = vpop.f32.mrf.mxu0
    %v10228 = vadd.f32 %v10215, %v10227
    %v10229 = vpop.f32.mrf.mxu0
    %10230 = vdwg.mxu0
    %10231 = vmatpush.bf16.msra.mxu0 %v8873
    %10232 = vmatpush.bf16.msra.mxu0 %v8866
    %10233 = vmatpush.bf16.msra.mxu0 %v8859
    %10234 = vmatpush.bf16.msra.mxu0 %v8852
    %10235 = vmatpush.bf16.msra.mxu0 %v8845
    %10236 = vmatpush.bf16.msra.mxu0 %v8838
    %10237 = vmatpush.bf16.msra.mxu0 %v8831
    %10238 = vmatpush.bf16.msra.mxu0 %v8824
    %10239 = vmatmul.bf16.gmra.mxu0 %v5247
    %v10240 = vpop.f32.mrf.mxu0
    %v10241 = vadd.f32 %v10228, %v10240
    %v10242 = vpop.f32.mrf.mxu0
    %10243 = vdwg.mxu0
    %10244 = vmatpush.bf16.msra.mxu0 0
    %10245 = vmatpush.bf16.msra.mxu0 0
    %10246 = vmatpush.bf16.msra.mxu0 0
    %10247 = vmatpush.bf16.msra.mxu0 0
    %10248 = vmatpush.bf16.msra.mxu0 0
    %10249 = vmatpush.bf16.msra.mxu0 0
    %10250 = vmatpush.bf16.msra.mxu0 %v8887
    %10251 = vmatpush.bf16.msra.mxu0 %v8880
    %10252 = vmatmul.bf16.gmra.mxu0 %v9579
    %v10253 = vpop.f32.mrf.mxu0
    %v10254 = vadd.f32 %v10241, %v10253
    %v10255 = vpop.f32.mrf.mxu0
    %10256 = vdwg.mxu0
    %10257 = vmatpush.bf16.msra.mxu0 %v8258
    %10258 = vmatpush.bf16.msra.mxu0 %v8251
    %10259 = vmatpush.bf16.msra.mxu0 %v8244
    %10260 = vmatpush.bf16.msra.mxu0 %v8237
    %10261 = vmatpush.bf16.msra.mxu0 %v8230
    %10262 = vmatpush.bf16.msra.mxu0 %v8223
    %10263 = vmatpush.bf16.msra.mxu0 %v8216
    %10264 = vmatpush.bf16.msra.mxu0 %v8209
    %10265 = vmatmul.bf16.gmra.mxu0 %v5236
    %v10266 = vpop.f32.mrf.mxu0
    %v10267 = vadd.f32 %v6039, %v10266
    %v10268 = vpop.f32.mrf.mxu0
    %10269 = vdwg.mxu0
    %10270 = vmatpush.bf16.msra.mxu0 %v8314
    %10271 = vmatpush.bf16.msra.mxu0 %v8307
    %10272 = vmatpush.bf16.msra.mxu0 %v8300
    %10273 = vmatpush.bf16.msra.mxu0 %v8293
    %10274 = vmatpush.bf16.msra.mxu0 %v8286
    %10275 = vmatpush.bf16.msra.mxu0 %v8279
    %10276 = vmatpush.bf16.msra.mxu0 %v8272
    %10277 = vmatpush.bf16.msra.mxu0 %v8265
    %10278 = vmatmul.bf16.gmra.mxu0 %v5237
    %v10279 = vpop.f32.mrf.mxu0
    %v10280 = vadd.f32 %v10267, %v10279
    %v10281 = vpop.f32.mrf.mxu0
    %10282 = vdwg.mxu0
    %10283 = vmatpush.bf16.msra.mxu0 %v8370
    %10284 = vmatpush.bf16.msra.mxu0 %v8363
    %10285 = vmatpush.bf16.msra.mxu0 %v8356
    %10286 = vmatpush.bf16.msra.mxu0 %v8349
    %10287 = vmatpush.bf16.msra.mxu0 %v8342
    %10288 = vmatpush.bf16.msra.mxu0 %v8335
    %10289 = vmatpush.bf16.msra.mxu0 %v8328
    %10290 = vmatpush.bf16.msra.mxu0 %v8321
    %10291 = vmatmul.bf16.gmra.mxu0 %v5238
    %v10292 = vpop.f32.mrf.mxu0
    %v10293 = vadd.f32 %v10280, %v10292
    %v10294 = vpop.f32.mrf.mxu0
    %10295 = vdwg.mxu0
    %10296 = vmatpush.bf16.msra.mxu0 %v8426
    %10297 = vmatpush.bf16.msra.mxu0 %v8419
    %10298 = vmatpush.bf16.msra.mxu0 %v8412
    %10299 = vmatpush.bf16.msra.mxu0 %v8405
    %10300 = vmatpush.bf16.msra.mxu0 %v8398
    %10301 = vmatpush.bf16.msra.mxu0 %v8391
    %10302 = vmatpush.bf16.msra.mxu0 %v8384
    %10303 = vmatpush.bf16.msra.mxu0 %v8377
    %10304 = vmatmul.bf16.gmra.mxu0 %v5239
    %v10305 = vpop.f32.mrf.mxu0
    %v10306 = vadd.f32 %v10293, %v10305
    %v10307 = vpop.f32.mrf.mxu0
    %10308 = vdwg.mxu0
    %10309 = vmatpush.bf16.msra.mxu0 %v8482
    %10310 = vmatpush.bf16.msra.mxu0 %v8475
    %10311 = vmatpush.bf16.msra.mxu0 %v8468
    %10312 = vmatpush.bf16.msra.mxu0 %v8461
    %10313 = vmatpush.bf16.msra.mxu0 %v8454
    %10314 = vmatpush.bf16.msra.mxu0 %v8447
    %10315 = vmatpush.bf16.msra.mxu0 %v8440
    %10316 = vmatpush.bf16.msra.mxu0 %v8433
    %10317 = vmatmul.bf16.gmra.mxu0 %v5240
    %v10318 = vpop.f32.mrf.mxu0
    %v10319 = vadd.f32 %v10306, %v10318
    %v10320 = vpop.f32.mrf.mxu0
    %10321 = vdwg.mxu0
    %10322 = vmatpush.bf16.msra.mxu0 %v8538
    %10323 = vmatpush.bf16.msra.mxu0 %v8531
    %10324 = vmatpush.bf16.msra.mxu0 %v8524
    %10325 = vmatpush.bf16.msra.mxu0 %v8517
    %10326 = vmatpush.bf16.msra.mxu0 %v8510
    %10327 = vmatpush.bf16.msra.mxu0 %v8503
    %10328 = vmatpush.bf16.msra.mxu0 %v8496
    %10329 = vmatpush.bf16.msra.mxu0 %v8489
    %10330 = vmatmul.bf16.gmra.mxu0 %v5241
    %v10331 = vpop.f32.mrf.mxu0
    %v10332 = vadd.f32 %v10319, %v10331
    %v10333 = vpop.f32.mrf.mxu0
    %10334 = vdwg.mxu0
    %10335 = vmatpush.bf16.msra.mxu0 %v8594
    %10336 = vmatpush.bf16.msra.mxu0 %v8587
    %10337 = vmatpush.bf16.msra.mxu0 %v8580
    %10338 = vmatpush.bf16.msra.mxu0 %v8573
    %10339 = vmatpush.bf16.msra.mxu0 %v8566
    %10340 = vmatpush.bf16.msra.mxu0 %v8559
    %10341 = vmatpush.bf16.msra.mxu0 %v8552
    %10342 = vmatpush.bf16.msra.mxu0 %v8545
    %10343 = vmatmul.bf16.gmra.mxu0 %v5242
    %v10344 = vpop.f32.mrf.mxu0
    %v10345 = vadd.f32 %v10332, %v10344
    %v10346 = vpop.f32.mrf.mxu0
    %10347 = vdwg.mxu0
    %10348 = vmatpush.bf16.msra.mxu0 %v8650
    %10349 = vmatpush.bf16.msra.mxu0 %v8643
    %10350 = vmatpush.bf16.msra.mxu0 %v8636
    %10351 = vmatpush.bf16.msra.mxu0 %v8629
    %10352 = vmatpush.bf16.msra.mxu0 %v8622
    %10353 = vmatpush.bf16.msra.mxu0 %v8615
    %10354 = vmatpush.bf16.msra.mxu0 %v8608
    %10355 = vmatpush.bf16.msra.mxu0 %v8601
    %10356 = vmatmul.bf16.gmra.mxu0 %v5243
    %v10357 = vpop.f32.mrf.mxu0
    %v10358 = vadd.f32 %v10345, %v10357
    %v10359 = vpop.f32.mrf.mxu0
    %10360 = vdwg.mxu0
    %10361 = vmatpush.bf16.msra.mxu0 %v8706
    %10362 = vmatpush.bf16.msra.mxu0 %v8699
    %10363 = vmatpush.bf16.msra.mxu0 %v8692
    %10364 = vmatpush.bf16.msra.mxu0 %v8685
    %10365 = vmatpush.bf16.msra.mxu0 %v8678
    %10366 = vmatpush.bf16.msra.mxu0 %v8671
    %10367 = vmatpush.bf16.msra.mxu0 %v8664
    %10368 = vmatpush.bf16.msra.mxu0 %v8657
    %10369 = vmatmul.bf16.gmra.mxu0 %v5244
    %v10370 = vpop.f32.mrf.mxu0
    %v10371 = vadd.f32 %v10358, %v10370
    %v10372 = vpop.f32.mrf.mxu0
    %10373 = vdwg.mxu0
    %10374 = vmatpush.bf16.msra.mxu0 %v8762
    %10375 = vmatpush.bf16.msra.mxu0 %v8755
    %10376 = vmatpush.bf16.msra.mxu0 %v8748
    %10377 = vmatpush.bf16.msra.mxu0 %v8741
    %10378 = vmatpush.bf16.msra.mxu0 %v8734
    %10379 = vmatpush.bf16.msra.mxu0 %v8727
    %10380 = vmatpush.bf16.msra.mxu0 %v8720
    %10381 = vmatpush.bf16.msra.mxu0 %v8713
    %10382 = vmatmul.bf16.gmra.mxu0 %v5245
    %v10383 = vpop.f32.mrf.mxu0
    %v10384 = vadd.f32 %v10371, %v10383
    %v10385 = vpop.f32.mrf.mxu0
    %10386 = vdwg.mxu0
    %10387 = vmatpush.bf16.msra.mxu0 %v8818
    %10388 = vmatpush.bf16.msra.mxu0 %v8811
    %10389 = vmatpush.bf16.msra.mxu0 %v8804
    %10390 = vmatpush.bf16.msra.mxu0 %v8797
    %10391 = vmatpush.bf16.msra.mxu0 %v8790
    %10392 = vmatpush.bf16.msra.mxu0 %v8783
    %10393 = vmatpush.bf16.msra.mxu0 %v8776
    %10394 = vmatpush.bf16.msra.mxu0 %v8769
    %10395 = vmatmul.bf16.gmra.mxu0 %v5246
    %v10396 = vpop.f32.mrf.mxu0
    %v10397 = vadd.f32 %v10384, %v10396
    %v10398 = vpop.f32.mrf.mxu0
    %10399 = vdwg.mxu0
    %10400 = vmatpush.bf16.msra.mxu0 %v8874
    %10401 = vmatpush.bf16.msra.mxu0 %v8867
    %10402 = vmatpush.bf16.msra.mxu0 %v8860
    %10403 = vmatpush.bf16.msra.mxu0 %v8853
    %10404 = vmatpush.bf16.msra.mxu0 %v8846
    %10405 = vmatpush.bf16.msra.mxu0 %v8839
    %10406 = vmatpush.bf16.msra.mxu0 %v8832
    %10407 = vmatpush.bf16.msra.mxu0 %v8825
    %10408 = vmatmul.bf16.gmra.mxu0 %v5247
    %v10409 = vpop.f32.mrf.mxu0
    %v10410 = vadd.f32 %v10397, %v10409
    %v10411 = vpop.f32.mrf.mxu0
    %10412 = vdwg.mxu0
    %10413 = vmatpush.bf16.msra.mxu0 0
    %10414 = vmatpush.bf16.msra.mxu0 0
    %10415 = vmatpush.bf16.msra.mxu0 0
    %10416 = vmatpush.bf16.msra.mxu0 0
    %10417 = vmatpush.bf16.msra.mxu0 0
    %10418 = vmatpush.bf16.msra.mxu0 0
    %10419 = vmatpush.bf16.msra.mxu0 %v8888
    %10420 = vmatpush.bf16.msra.mxu0 %v8881
    %10421 = vmatmul.bf16.gmra.mxu0 %v9579
    %v10422 = vpop.f32.mrf.mxu0
    %v10423 = vadd.f32 %v10410, %v10422
    %v10424 = vpop.f32.mrf.mxu0
    %10425 = vdwg.mxu0
    %10426 = vmatpush.bf16.msra.mxu0 %v8259
    %10427 = vmatpush.bf16.msra.mxu0 %v8252
    %10428 = vmatpush.bf16.msra.mxu0 %v8245
    %10429 = vmatpush.bf16.msra.mxu0 %v8238
    %10430 = vmatpush.bf16.msra.mxu0 %v8231
    %10431 = vmatpush.bf16.msra.mxu0 %v8224
    %10432 = vmatpush.bf16.msra.mxu0 %v8217
    %10433 = vmatpush.bf16.msra.mxu0 %v8210
    %10434 = vmatmul.bf16.gmra.mxu0 %v5236
    %v10435 = vpop.f32.mrf.mxu0
    %v10436 = vadd.f32 %v6040, %v10435
    %v10437 = vpop.f32.mrf.mxu0
    %10438 = vdwg.mxu0
    %10439 = vmatpush.bf16.msra.mxu0 %v8315
    %10440 = vmatpush.bf16.msra.mxu0 %v8308
    %10441 = vmatpush.bf16.msra.mxu0 %v8301
    %10442 = vmatpush.bf16.msra.mxu0 %v8294
    %10443 = vmatpush.bf16.msra.mxu0 %v8287
    %10444 = vmatpush.bf16.msra.mxu0 %v8280
    %10445 = vmatpush.bf16.msra.mxu0 %v8273
    %10446 = vmatpush.bf16.msra.mxu0 %v8266
    %10447 = vmatmul.bf16.gmra.mxu0 %v5237
    %v10448 = vpop.f32.mrf.mxu0
    %v10449 = vadd.f32 %v10436, %v10448
    %v10450 = vpop.f32.mrf.mxu0
    %10451 = vdwg.mxu0
    %10452 = vmatpush.bf16.msra.mxu0 %v8371
    %10453 = vmatpush.bf16.msra.mxu0 %v8364
    %10454 = vmatpush.bf16.msra.mxu0 %v8357
    %10455 = vmatpush.bf16.msra.mxu0 %v8350
    %10456 = vmatpush.bf16.msra.mxu0 %v8343
    %10457 = vmatpush.bf16.msra.mxu0 %v8336
    %10458 = vmatpush.bf16.msra.mxu0 %v8329
    %10459 = vmatpush.bf16.msra.mxu0 %v8322
    %10460 = vmatmul.bf16.gmra.mxu0 %v5238
    %v10461 = vpop.f32.mrf.mxu0
    %v10462 = vadd.f32 %v10449, %v10461
    %v10463 = vpop.f32.mrf.mxu0
    %10464 = vdwg.mxu0
    %10465 = vmatpush.bf16.msra.mxu0 %v8427
    %10466 = vmatpush.bf16.msra.mxu0 %v8420
    %10467 = vmatpush.bf16.msra.mxu0 %v8413
    %10468 = vmatpush.bf16.msra.mxu0 %v8406
    %10469 = vmatpush.bf16.msra.mxu0 %v8399
    %10470 = vmatpush.bf16.msra.mxu0 %v8392
    %10471 = vmatpush.bf16.msra.mxu0 %v8385
    %10472 = vmatpush.bf16.msra.mxu0 %v8378
    %10473 = vmatmul.bf16.gmra.mxu0 %v5239
    %v10474 = vpop.f32.mrf.mxu0
    %v10475 = vadd.f32 %v10462, %v10474
    %v10476 = vpop.f32.mrf.mxu0
    %10477 = vdwg.mxu0
    %10478 = vmatpush.bf16.msra.mxu0 %v8483
    %10479 = vmatpush.bf16.msra.mxu0 %v8476
    %10480 = vmatpush.bf16.msra.mxu0 %v8469
    %10481 = vmatpush.bf16.msra.mxu0 %v8462
    %10482 = vmatpush.bf16.msra.mxu0 %v8455
    %10483 = vmatpush.bf16.msra.mxu0 %v8448
    %10484 = vmatpush.bf16.msra.mxu0 %v8441
    %10485 = vmatpush.bf16.msra.mxu0 %v8434
    %10486 = vmatmul.bf16.gmra.mxu0 %v5240
    %v10487 = vpop.f32.mrf.mxu0
    %v10488 = vadd.f32 %v10475, %v10487
    %v10489 = vpop.f32.mrf.mxu0
    %10490 = vdwg.mxu0
    %10491 = vmatpush.bf16.msra.mxu0 %v8539
    %10492 = vmatpush.bf16.msra.mxu0 %v8532
    %10493 = vmatpush.bf16.msra.mxu0 %v8525
    %10494 = vmatpush.bf16.msra.mxu0 %v8518
    %10495 = vmatpush.bf16.msra.mxu0 %v8511
    %10496 = vmatpush.bf16.msra.mxu0 %v8504
    %10497 = vmatpush.bf16.msra.mxu0 %v8497
    %10498 = vmatpush.bf16.msra.mxu0 %v8490
    %10499 = vmatmul.bf16.gmra.mxu0 %v5241
    %v10500 = vpop.f32.mrf.mxu0
    %v10501 = vadd.f32 %v10488, %v10500
    %v10502 = vpop.f32.mrf.mxu0
    %10503 = vdwg.mxu0
    %10504 = vmatpush.bf16.msra.mxu0 %v8595
    %10505 = vmatpush.bf16.msra.mxu0 %v8588
    %10506 = vmatpush.bf16.msra.mxu0 %v8581
    %10507 = vmatpush.bf16.msra.mxu0 %v8574
    %10508 = vmatpush.bf16.msra.mxu0 %v8567
    %10509 = vmatpush.bf16.msra.mxu0 %v8560
    %10510 = vmatpush.bf16.msra.mxu0 %v8553
    %10511 = vmatpush.bf16.msra.mxu0 %v8546
    %10512 = vmatmul.bf16.gmra.mxu0 %v5242
    %v10513 = vpop.f32.mrf.mxu0
    %v10514 = vadd.f32 %v10501, %v10513
    %v10515 = vpop.f32.mrf.mxu0
    %10516 = vdwg.mxu0
    %10517 = vmatpush.bf16.msra.mxu0 %v8651
    %10518 = vmatpush.bf16.msra.mxu0 %v8644
    %10519 = vmatpush.bf16.msra.mxu0 %v8637
    %10520 = vmatpush.bf16.msra.mxu0 %v8630
    %10521 = vmatpush.bf16.msra.mxu0 %v8623
    %10522 = vmatpush.bf16.msra.mxu0 %v8616
    %10523 = vmatpush.bf16.msra.mxu0 %v8609
    %10524 = vmatpush.bf16.msra.mxu0 %v8602
    %10525 = vmatmul.bf16.gmra.mxu0 %v5243
    %v10526 = vpop.f32.mrf.mxu0
    %v10527 = vadd.f32 %v10514, %v10526
    %v10528 = vpop.f32.mrf.mxu0
    %10529 = vdwg.mxu0
    %10530 = vmatpush.bf16.msra.mxu0 %v8707
    %10531 = vmatpush.bf16.msra.mxu0 %v8700
    %10532 = vmatpush.bf16.msra.mxu0 %v8693
    %10533 = vmatpush.bf16.msra.mxu0 %v8686
    %10534 = vmatpush.bf16.msra.mxu0 %v8679
    %10535 = vmatpush.bf16.msra.mxu0 %v8672
    %10536 = vmatpush.bf16.msra.mxu0 %v8665
    %10537 = vmatpush.bf16.msra.mxu0 %v8658
    %10538 = vmatmul.bf16.gmra.mxu0 %v5244
    %v10539 = vpop.f32.mrf.mxu0
    %v10540 = vadd.f32 %v10527, %v10539
    %v10541 = vpop.f32.mrf.mxu0
    %10542 = vdwg.mxu0
    %10543 = vmatpush.bf16.msra.mxu0 %v8763
    %10544 = vmatpush.bf16.msra.mxu0 %v8756
    %10545 = vmatpush.bf16.msra.mxu0 %v8749
    %10546 = vmatpush.bf16.msra.mxu0 %v8742
    %10547 = vmatpush.bf16.msra.mxu0 %v8735
    %10548 = vmatpush.bf16.msra.mxu0 %v8728
    %10549 = vmatpush.bf16.msra.mxu0 %v8721
    %10550 = vmatpush.bf16.msra.mxu0 %v8714
    %10551 = vmatmul.bf16.gmra.mxu0 %v5245
    %v10552 = vpop.f32.mrf.mxu0
    %v10553 = vadd.f32 %v10540, %v10552
    %v10554 = vpop.f32.mrf.mxu0
    %10555 = vdwg.mxu0
    %10556 = vmatpush.bf16.msra.mxu0 %v8819
    %10557 = vmatpush.bf16.msra.mxu0 %v8812
    %10558 = vmatpush.bf16.msra.mxu0 %v8805
    %10559 = vmatpush.bf16.msra.mxu0 %v8798
    %10560 = vmatpush.bf16.msra.mxu0 %v8791
    %10561 = vmatpush.bf16.msra.mxu0 %v8784
    %10562 = vmatpush.bf16.msra.mxu0 %v8777
    %10563 = vmatpush.bf16.msra.mxu0 %v8770
    %10564 = vmatmul.bf16.gmra.mxu0 %v5246
    %v10565 = vpop.f32.mrf.mxu0
    %v10566 = vadd.f32 %v10553, %v10565
    %v10567 = vpop.f32.mrf.mxu0
    %10568 = vdwg.mxu0
    %10569 = vmatpush.bf16.msra.mxu0 %v8875
    %10570 = vmatpush.bf16.msra.mxu0 %v8868
    %10571 = vmatpush.bf16.msra.mxu0 %v8861
    %10572 = vmatpush.bf16.msra.mxu0 %v8854
    %10573 = vmatpush.bf16.msra.mxu0 %v8847
    %10574 = vmatpush.bf16.msra.mxu0 %v8840
    %10575 = vmatpush.bf16.msra.mxu0 %v8833
    %10576 = vmatpush.bf16.msra.mxu0 %v8826
    %10577 = vmatmul.bf16.gmra.mxu0 %v5247
    %v10578 = vpop.f32.mrf.mxu0
    %v10579 = vadd.f32 %v10566, %v10578
    %v10580 = vpop.f32.mrf.mxu0
    %10581 = vdwg.mxu0
    %10582 = vmatpush.bf16.msra.mxu0 0
    %10583 = vmatpush.bf16.msra.mxu0 0
    %10584 = vmatpush.bf16.msra.mxu0 0
    %10585 = vmatpush.bf16.msra.mxu0 0
    %10586 = vmatpush.bf16.msra.mxu0 0
    %10587 = vmatpush.bf16.msra.mxu0 0
    %10588 = vmatpush.bf16.msra.mxu0 %v8889
    %10589 = vmatpush.bf16.msra.mxu0 %v8882
    %10590 = vmatmul.bf16.gmra.mxu0 %v9579
    %v10591 = vpop.f32.mrf.mxu0
    %v10592 = vadd.f32 %v10579, %v10591
    %v10593 = vpop.f32.mrf.mxu0
    %10594 = vdwg.mxu0
    %10595 = vmatpush.bf16.msra.mxu0 %v8260
    %10596 = vmatpush.bf16.msra.mxu0 %v8253
    %10597 = vmatpush.bf16.msra.mxu0 %v8246
    %10598 = vmatpush.bf16.msra.mxu0 %v8239
    %10599 = vmatpush.bf16.msra.mxu0 %v8232
    %10600 = vmatpush.bf16.msra.mxu0 %v8225
    %10601 = vmatpush.bf16.msra.mxu0 %v8218
    %10602 = vmatpush.bf16.msra.mxu0 %v8211
    %10603 = vmatmul.bf16.gmra.mxu0 %v5236
    %v10604 = vpop.f32.mrf.mxu0
    %v10605 = vadd.f32 %v6041, %v10604
    %v10606 = vpop.f32.mrf.mxu0
    %10607 = vdwg.mxu0
    %10608 = vmatpush.bf16.msra.mxu0 %v8316
    %10609 = vmatpush.bf16.msra.mxu0 %v8309
    %10610 = vmatpush.bf16.msra.mxu0 %v8302
    %10611 = vmatpush.bf16.msra.mxu0 %v8295
    %10612 = vmatpush.bf16.msra.mxu0 %v8288
    %10613 = vmatpush.bf16.msra.mxu0 %v8281
    %10614 = vmatpush.bf16.msra.mxu0 %v8274
    %10615 = vmatpush.bf16.msra.mxu0 %v8267
    %10616 = vmatmul.bf16.gmra.mxu0 %v5237
    %v10617 = vpop.f32.mrf.mxu0
    %v10618 = vadd.f32 %v10605, %v10617
    %v10619 = vpop.f32.mrf.mxu0
    %10620 = vdwg.mxu0
    %10621 = vmatpush.bf16.msra.mxu0 %v8372
    %10622 = vmatpush.bf16.msra.mxu0 %v8365
    %10623 = vmatpush.bf16.msra.mxu0 %v8358
    %10624 = vmatpush.bf16.msra.mxu0 %v8351
    %10625 = vmatpush.bf16.msra.mxu0 %v8344
    %10626 = vmatpush.bf16.msra.mxu0 %v8337
    %10627 = vmatpush.bf16.msra.mxu0 %v8330
    %10628 = vmatpush.bf16.msra.mxu0 %v8323
    %10629 = vmatmul.bf16.gmra.mxu0 %v5238
    %v10630 = vpop.f32.mrf.mxu0
    %v10631 = vadd.f32 %v10618, %v10630
    %v10632 = vpop.f32.mrf.mxu0
    %10633 = vdwg.mxu0
    %10634 = vmatpush.bf16.msra.mxu0 %v8428
    %10635 = vmatpush.bf16.msra.mxu0 %v8421
    %10636 = vmatpush.bf16.msra.mxu0 %v8414
    %10637 = vmatpush.bf16.msra.mxu0 %v8407
    %10638 = vmatpush.bf16.msra.mxu0 %v8400
    %10639 = vmatpush.bf16.msra.mxu0 %v8393
    %10640 = vmatpush.bf16.msra.mxu0 %v8386
    %10641 = vmatpush.bf16.msra.mxu0 %v8379
    %10642 = vmatmul.bf16.gmra.mxu0 %v5239
    %v10643 = vpop.f32.mrf.mxu0
    %v10644 = vadd.f32 %v10631, %v10643
    %v10645 = vpop.f32.mrf.mxu0
    %10646 = vdwg.mxu0
    %10647 = vmatpush.bf16.msra.mxu0 %v8484
    %10648 = vmatpush.bf16.msra.mxu0 %v8477
    %10649 = vmatpush.bf16.msra.mxu0 %v8470
    %10650 = vmatpush.bf16.msra.mxu0 %v8463
    %10651 = vmatpush.bf16.msra.mxu0 %v8456
    %10652 = vmatpush.bf16.msra.mxu0 %v8449
    %10653 = vmatpush.bf16.msra.mxu0 %v8442
    %10654 = vmatpush.bf16.msra.mxu0 %v8435
    %10655 = vmatmul.bf16.gmra.mxu0 %v5240
    %v10656 = vpop.f32.mrf.mxu0
    %v10657 = vadd.f32 %v10644, %v10656
    %v10658 = vpop.f32.mrf.mxu0
    %10659 = vdwg.mxu0
    %10660 = vmatpush.bf16.msra.mxu0 %v8540
    %10661 = vmatpush.bf16.msra.mxu0 %v8533
    %10662 = vmatpush.bf16.msra.mxu0 %v8526
    %10663 = vmatpush.bf16.msra.mxu0 %v8519
    %10664 = vmatpush.bf16.msra.mxu0 %v8512
    %10665 = vmatpush.bf16.msra.mxu0 %v8505
    %10666 = vmatpush.bf16.msra.mxu0 %v8498
    %10667 = vmatpush.bf16.msra.mxu0 %v8491
    %10668 = vmatmul.bf16.gmra.mxu0 %v5241
    %v10669 = vpop.f32.mrf.mxu0
    %v10670 = vadd.f32 %v10657, %v10669
    %v10671 = vpop.f32.mrf.mxu0
    %10672 = vdwg.mxu0
    %10673 = vmatpush.bf16.msra.mxu0 %v8596
    %10674 = vmatpush.bf16.msra.mxu0 %v8589
    %10675 = vmatpush.bf16.msra.mxu0 %v8582
    %10676 = vmatpush.bf16.msra.mxu0 %v8575
    %10677 = vmatpush.bf16.msra.mxu0 %v8568
    %10678 = vmatpush.bf16.msra.mxu0 %v8561
    %10679 = vmatpush.bf16.msra.mxu0 %v8554
    %10680 = vmatpush.bf16.msra.mxu0 %v8547
    %10681 = vmatmul.bf16.gmra.mxu0 %v5242
    %v10682 = vpop.f32.mrf.mxu0
    %v10683 = vadd.f32 %v10670, %v10682
    %v10684 = vpop.f32.mrf.mxu0
    %10685 = vdwg.mxu0
    %10686 = vmatpush.bf16.msra.mxu0 %v8652
    %10687 = vmatpush.bf16.msra.mxu0 %v8645
    %10688 = vmatpush.bf16.msra.mxu0 %v8638
    %10689 = vmatpush.bf16.msra.mxu0 %v8631
    %10690 = vmatpush.bf16.msra.mxu0 %v8624
    %10691 = vmatpush.bf16.msra.mxu0 %v8617
    %10692 = vmatpush.bf16.msra.mxu0 %v8610
    %10693 = vmatpush.bf16.msra.mxu0 %v8603
    %10694 = vmatmul.bf16.gmra.mxu0 %v5243
    %v10695 = vpop.f32.mrf.mxu0
    %v10696 = vadd.f32 %v10683, %v10695
    %v10697 = vpop.f32.mrf.mxu0
    %10698 = vdwg.mxu0
    %10699 = vmatpush.bf16.msra.mxu0 %v8708
    %10700 = vmatpush.bf16.msra.mxu0 %v8701
    %10701 = vmatpush.bf16.msra.mxu0 %v8694
    %10702 = vmatpush.bf16.msra.mxu0 %v8687
    %10703 = vmatpush.bf16.msra.mxu0 %v8680
    %10704 = vmatpush.bf16.msra.mxu0 %v8673
    %10705 = vmatpush.bf16.msra.mxu0 %v8666
    %10706 = vmatpush.bf16.msra.mxu0 %v8659
    %10707 = vmatmul.bf16.gmra.mxu0 %v5244
    %v10708 = vpop.f32.mrf.mxu0
    %v10709 = vadd.f32 %v10696, %v10708
    %v10710 = vpop.f32.mrf.mxu0
    %10711 = vdwg.mxu0
    %10712 = vmatpush.bf16.msra.mxu0 %v8764
    %10713 = vmatpush.bf16.msra.mxu0 %v8757
    %10714 = vmatpush.bf16.msra.mxu0 %v8750
    %10715 = vmatpush.bf16.msra.mxu0 %v8743
    %10716 = vmatpush.bf16.msra.mxu0 %v8736
    %10717 = vmatpush.bf16.msra.mxu0 %v8729
    %10718 = vmatpush.bf16.msra.mxu0 %v8722
    %10719 = vmatpush.bf16.msra.mxu0 %v8715
    %10720 = vmatmul.bf16.gmra.mxu0 %v5245
    %v10721 = vpop.f32.mrf.mxu0
    %v10722 = vadd.f32 %v10709, %v10721
    %v10723 = vpop.f32.mrf.mxu0
    %10724 = vdwg.mxu0
    %10725 = vmatpush.bf16.msra.mxu0 %v8820
    %10726 = vmatpush.bf16.msra.mxu0 %v8813
    %10727 = vmatpush.bf16.msra.mxu0 %v8806
    %10728 = vmatpush.bf16.msra.mxu0 %v8799
    %10729 = vmatpush.bf16.msra.mxu0 %v8792
    %10730 = vmatpush.bf16.msra.mxu0 %v8785
    %10731 = vmatpush.bf16.msra.mxu0 %v8778
    %10732 = vmatpush.bf16.msra.mxu0 %v8771
    %10733 = vmatmul.bf16.gmra.mxu0 %v5246
    %v10734 = vpop.f32.mrf.mxu0
    %v10735 = vadd.f32 %v10722, %v10734
    %v10736 = vpop.f32.mrf.mxu0
    %10737 = vdwg.mxu0
    %10738 = vmatpush.bf16.msra.mxu0 %v8876
    %10739 = vmatpush.bf16.msra.mxu0 %v8869
    %10740 = vmatpush.bf16.msra.mxu0 %v8862
    %10741 = vmatpush.bf16.msra.mxu0 %v8855
    %10742 = vmatpush.bf16.msra.mxu0 %v8848
    %10743 = vmatpush.bf16.msra.mxu0 %v8841
    %10744 = vmatpush.bf16.msra.mxu0 %v8834
    %10745 = vmatpush.bf16.msra.mxu0 %v8827
    %10746 = vmatmul.bf16.gmra.mxu0 %v5247
    %v10747 = vpop.f32.mrf.mxu0
    %v10748 = vadd.f32 %v10735, %v10747
    %v10749 = vpop.f32.mrf.mxu0
    %10750 = vdwg.mxu0
    %10751 = vmatpush.bf16.msra.mxu0 0
    %10752 = vmatpush.bf16.msra.mxu0 0
    %10753 = vmatpush.bf16.msra.mxu0 0
    %10754 = vmatpush.bf16.msra.mxu0 0
    %10755 = vmatpush.bf16.msra.mxu0 0
    %10756 = vmatpush.bf16.msra.mxu0 0
    %10757 = vmatpush.bf16.msra.mxu0 %v8890
    %10758 = vmatpush.bf16.msra.mxu0 %v8883
    %10759 = vmatmul.bf16.gmra.mxu0 %v9579
    %v10760 = vpop.f32.mrf.mxu0
    %v10761 = vadd.f32 %v10748, %v10760
    %v10762 = vpop.f32.mrf.mxu0
    %10763 = vdwg.mxu0
    %vm10764 = vcmask 1041408
    %v10765 = vsel %vm10764, %v9747, 0.0
    %v10766 = vrot.slane %v10765, 4
    %v10767 = vadd.f32 %v10765, %v10766
    %v10768 = vrot.slane %v10767, 2
    %v10769 = vadd.f32 %v10767, %v10768
    %v10770 = vrot.slane %v10769, 1
    %v10771 = vadd.f32 %v10769, %v10770
    %v10772 = vsel %vm10764, %v9916, 0.0
    %v10773 = vrot.slane %v10772, 4
    %v10774 = vadd.f32 %v10772, %v10773
    %v10775 = vrot.slane %v10774, 2
    %v10776 = vadd.f32 %v10774, %v10775
    %v10777 = vrot.slane %v10776, 1
    %v10778 = vadd.f32 %v10776, %v10777
    %v10779 = vsel %vm10764, %v10085, 0.0
    %v10780 = vrot.slane %v10779, 4
    %v10781 = vadd.f32 %v10779, %v10780
    %v10782 = vrot.slane %v10781, 2
    %v10783 = vadd.f32 %v10781, %v10782
    %v10784 = vrot.slane %v10783, 1
    %v10785 = vadd.f32 %v10783, %v10784
    %v10786 = vsel %vm10764, %v10254, 0.0
    %v10787 = vrot.slane %v10786, 4
    %v10788 = vadd.f32 %v10786, %v10787
    %v10789 = vrot.slane %v10788, 2
    %v10790 = vadd.f32 %v10788, %v10789
    %v10791 = vrot.slane %v10790, 1
    %v10792 = vadd.f32 %v10790, %v10791
    %v10793 = vsel %vm10764, %v10423, 0.0
    %v10794 = vrot.slane %v10793, 4
    %v10795 = vadd.f32 %v10793, %v10794
    %v10796 = vrot.slane %v10795, 2
    %v10797 = vadd.f32 %v10795, %v10796
    %v10798 = vrot.slane %v10797, 1
    %v10799 = vadd.f32 %v10797, %v10798
    %v10800 = vsel %vm10764, %v10592, 0.0
    %v10801 = vrot.slane %v10800, 4
    %v10802 = vadd.f32 %v10800, %v10801
    %v10803 = vrot.slane %v10802, 2
    %v10804 = vadd.f32 %v10802, %v10803
    %v10805 = vrot.slane %v10804, 1
    %v10806 = vadd.f32 %v10804, %v10805
    %vm10807 = vcmask 123904
    %v10808 = vsel %vm10807, %v10761, 0.0
    %v10809 = vrot.slane %v10808, 4
    %v10810 = vadd.f32 %v10808, %v10809
    %v10811 = vrot.slane %v10810, 2
    %v10812 = vadd.f32 %v10810, %v10811
    %v10813 = vrot.slane %v10812, 1
    %v10814 = vadd.f32 %v10812, %v10813
    %v10815 = vmul.f32 %v9747, %v9747
    %v10816 = vmul.f32 %v9916, %v9916
    %v10817 = vmul.f32 %v10085, %v10085
    %v10818 = vmul.f32 %v10254, %v10254
    %v10819 = vmul.f32 %v10423, %v10423
    %v10820 = vmul.f32 %v10592, %v10592
    %v10821 = vmul.f32 %v10761, %v10761
    %v10822 = vsel %vm10764, %v10815, 0.0
    %v10823 = vrot.slane %v10822, 4
    %v10824 = vadd.f32 %v10822, %v10823
    %v10825 = vrot.slane %v10824, 2
    %v10826 = vadd.f32 %v10824, %v10825
    %v10827 = vrot.slane %v10826, 1
    %v10828 = vadd.f32 %v10826, %v10827
    %v10829 = vsel %vm10764, %v10816, 0.0
    %v10830 = vrot.slane %v10829, 4
    %v10831 = vadd.f32 %v10829, %v10830
    %v10832 = vrot.slane %v10831, 2
    %v10833 = vadd.f32 %v10831, %v10832
    %v10834 = vrot.slane %v10833, 1
    %v10835 = vadd.f32 %v10833, %v10834
    %v10836 = vsel %vm10764, %v10817, 0.0
    %v10837 = vrot.slane %v10836, 4
    %v10838 = vadd.f32 %v10836, %v10837
    %v10839 = vrot.slane %v10838, 2
    %v10840 = vadd.f32 %v10838, %v10839
    %v10841 = vrot.slane %v10840, 1
    %v10842 = vadd.f32 %v10840, %v10841
    %v10843 = vsel %vm10764, %v10818, 0.0
    %v10844 = vrot.slane %v10843, 4
    %v10845 = vadd.f32 %v10843, %v10844
    %v10846 = vrot.slane %v10845, 2
    %v10847 = vadd.f32 %v10845, %v10846
    %v10848 = vrot.slane %v10847, 1
    %v10849 = vadd.f32 %v10847, %v10848
    %v10850 = vsel %vm10764, %v10819, 0.0
    %v10851 = vrot.slane %v10850, 4
    %v10852 = vadd.f32 %v10850, %v10851
    %v10853 = vrot.slane %v10852, 2
    %v10854 = vadd.f32 %v10852, %v10853
    %v10855 = vrot.slane %v10854, 1
    %v10856 = vadd.f32 %v10854, %v10855
    %v10857 = vsel %vm10764, %v10820, 0.0
    %v10858 = vrot.slane %v10857, 4
    %v10859 = vadd.f32 %v10857, %v10858
    %v10860 = vrot.slane %v10859, 2
    %v10861 = vadd.f32 %v10859, %v10860
    %v10862 = vrot.slane %v10861, 1
    %v10863 = vadd.f32 %v10861, %v10862
    %v10864 = vsel %vm10807, %v10821, 0.0
    %v10865 = vrot.slane %v10864, 4
    %v10866 = vadd.f32 %v10864, %v10865
    %v10867 = vrot.slane %v10866, 2
    %v10868 = vadd.f32 %v10866, %v10867
    %v10869 = vrot.slane %v10868, 1
    %v10870 = vadd.f32 %v10868, %v10869
    %v10871 = vld [vmem:[%s7] sm:$0xff]
    %v10872 = vld [vmem:[%s7 + $0x8] sm:$0xff]
    %v10873 = vld [vmem:[%s7 + $0x10] sm:$0xff]
    %v10874 = vld [vmem:[%s7 + $0x18] sm:$0xff]
    %v10875 = vld [vmem:[%s7 + $0x20] sm:$0xff]
    %v10876 = vld [vmem:[%s7 + $0x28] sm:$0xff]
    %v10877 = vld [vmem:[%s7 + $0x30] sm:$0xff]
    %v10878 = vld [vmem:[%s7 + $0x38] sm:$0xff]
    %v10879 = vld [vmem:[%s7 + $0x40] sm:$0xff]
    %v10880 = vld [vmem:[%s7 + $0x48] sm:$0xff]
    %v10881 = vld [vmem:[%s7 + $0x50] sm:$0xff]
    %v10882 = vld [vmem:[%s7 + $0x58] sm:$0xff]
    %v10883 = vld [vmem:[%s7 + $0x60] sm:$0xff]
    %v10884 = vld [vmem:[%s7 + $0x68] sm:$0xff]
    %v10885 = vld [vmem:[%s7 + $0x70] sm:$0xff]
    %v10886 = vld [vmem:[%s7 + $0x78] sm:$0xff]
    %v10887 = vld [vmem:[%s7 + $0x80] sm:$0xff]
    %v10888 = vld [vmem:[%s7 + $0x88] sm:$0xff]
    %v10889 = vld [vmem:[%s7 + $0x90] sm:$0xff]
    %v10890 = vld [vmem:[%s7 + $0x98] sm:$0xff]
    %v10891 = vld [vmem:[%s7 + $0xa0] sm:$0xff]
    %v10892 = vld [vmem:[%s7 + $0xa8] sm:$0xff]
    %v10893 = vld [vmem:[%s7 + $0xb0] sm:$0xff]
    %v10894 = vld [vmem:[%s7 + $0xb8] sm:$0xff]
    %v10895 = vld [vmem:[%s7 + $0xc0] sm:$0xff]
    %v10896 = vld [vmem:[%s7 + $0xc8] sm:$0xff]
    %v10897 = vld [vmem:[%s7 + $0xd0] sm:$0xff]
    %v10898 = vld [vmem:[%s7 + $0xd8] sm:$0xff]
    %v10899 = vld [vmem:[%s7 + $0xe0] sm:$0xff]
    %v10900 = vld [vmem:[%s7 + $0xe8] sm:$0xff]
    %v10901 = vld [vmem:[%s7 + $0xf0] sm:$0xff]
    %v10902 = vld [vmem:[%s7 + $0xf8] sm:$0xff]
    %v10903 = vld [vmem:[%s7 + $0x100] sm:$0xff]
    %v10904 = vld [vmem:[%s7 + $0x108] sm:$0xff]
    %v10905 = vld [vmem:[%s7 + $0x110] sm:$0xff]
    %v10906 = vld [vmem:[%s7 + $0x118] sm:$0xff]
    %v10907 = vld [vmem:[%s7 + $0x120] sm:$0xff]
    %v10908 = vld [vmem:[%s7 + $0x128] sm:$0xff]
    %v10909 = vld [vmem:[%s7 + $0x130] sm:$0xff]
    %v10910 = vld [vmem:[%s7 + $0x138] sm:$0xff]
    %v10911 = vld [vmem:[%s7 + $0x140] sm:$0xff]
    %v10912 = vld [vmem:[%s7 + $0x148] sm:$0xff]
    %v10913 = vld [vmem:[%s7 + $0x150] sm:$0xff]
    %v10914 = vld [vmem:[%s7 + $0x158] sm:$0xff]
    %v10915 = vld [vmem:[%s7 + $0x160] sm:$0xff]
    %v10916 = vld [vmem:[%s7 + $0x168] sm:$0xff]
    %v10917 = vld [vmem:[%s7 + $0x170] sm:$0xff]
    %v10918 = vld [vmem:[%s7 + $0x178] sm:$0xff]
    %v10919 = vld [vmem:[%s7 + $0x180] sm:$0xff]
    %v10920 = vld [vmem:[%s7 + $0x188] sm:$0xff]
    %v10921 = vld [vmem:[%s7 + $0x190] sm:$0xff]
    %v10922 = vld [vmem:[%s7 + $0x198] sm:$0xff]
    %v10923 = vld [vmem:[%s7 + $0x1a0] sm:$0xff]
    %v10924 = vld [vmem:[%s7 + $0x1a8] sm:$0xff]
    %v10925 = vld [vmem:[%s7 + $0x1b0] sm:$0xff]
    %v10926 = vld [vmem:[%s7 + $0x1b8] sm:$0xff]
    %v10927 = vld [vmem:[%s7 + $0x1c0] sm:$0xff]
    %v10928 = vld [vmem:[%s7 + $0x1c8] sm:$0xff]
    %v10929 = vld [vmem:[%s7 + $0x1d0] sm:$0xff]
    %v10930 = vld [vmem:[%s7 + $0x1d8] sm:$0xff]
    %v10931 = vld [vmem:[%s7 + $0x1e0] sm:$0xff]
    %v10932 = vld [vmem:[%s7 + $0x1e8] sm:$0xff]
    %v10933 = vld [vmem:[%s7 + $0x1f0] sm:$0xff]
    %v10934 = vld [vmem:[%s7 + $0x1f8] sm:$0xff]
    %v10935 = vld [vmem:[%s7 + $0x200] sm:$0xff]
    %v10936 = vld [vmem:[%s7 + $0x208] sm:$0xff]
    %v10937 = vld [vmem:[%s7 + $0x210] sm:$0xff]
    %v10938 = vld [vmem:[%s7 + $0x218] sm:$0xff]
    %v10939 = vld [vmem:[%s7 + $0x220] sm:$0xff]
    %v10940 = vld [vmem:[%s7 + $0x228] sm:$0xff]
    %v10941 = vld [vmem:[%s7 + $0x230] sm:$0xff]
    %v10942 = vld [vmem:[%s7 + $0x238] sm:$0xff]
    %v10943 = vld [vmem:[%s7 + $0x240] sm:$0xff]
    %v10944 = vld [vmem:[%s7 + $0x248] sm:$0xff]
    %v10945 = vld [vmem:[%s7 + $0x250] sm:$0xff]
    %v10946 = vld [vmem:[%s7 + $0x258] sm:$0xff]
    %v10947 = vld [vmem:[%s7 + $0x260] sm:$0xff]
    %v10948 = vld [vmem:[%s7 + $0x268] sm:$0xff]
    %v10949 = vld [vmem:[%s7 + $0x270] sm:$0xff]
    %v10950 = vld [vmem:[%s7 + $0x278] sm:$0xff]
    %v10951 = vld [vmem:[%s7 + $0x280] sm:$0xff]
    %v10952 = vld [vmem:[%s7 + $0x288] sm:$0xff]
    %v10953 = vld [vmem:[%s7 + $0x290] sm:$0xff]
    %v10954 = vld [vmem:[%s7 + $0x298] sm:$0xff]
    %v10955 = vld [vmem:[%s7 + $0x2a0] sm:$0xff]
    %v10956 = vld [vmem:[%s7 + $0x2a8] sm:$0xff]
    %v10957 = vld [vmem:[%s7 + $0x2b0] sm:$0xff]
    %v10958 = vld [vmem:[%s7 + $0x2b8] sm:$0xff]
    %v10959 = vld [vmem:[%s7 + $0x2c0] sm:$0xff]
    %v10960 = vld [vmem:[%s7 + $0x2c8] sm:$0xff]
    %v10961 = vld [vmem:[%s7 + $0x2d0] sm:$0xff]
    %v10962 = vld [vmem:[%s7 + $0x2d8] sm:$0xff]
    %v10963 = vld [vmem:[%s7 + $0x2e0] sm:$0xff]
    %v10964 = vld [vmem:[%s7 + $0x2e8] sm:$0xff]
    %v10965 = vld [vmem:[%s7 + $0x2f0] sm:$0xff]
    %v10966 = vld [vmem:[%s7 + $0x2f8] sm:$0xff]
    %v10967 = vld [vmem:[%s7 + $0x300] sm:$0xff]
    %v10968 = vld [vmem:[%s7 + $0x308] sm:$0xff]
    %v10970 = vsel %vm4036, %v10814, 0
    %10972 = vmatpush.msra.mxu0 %v10886
    %10973 = vmatpush.msra.mxu0 %v10885
    %10974 = vmatpush.msra.mxu0 %v10884
    %10975 = vmatpush.msra.mxu0 %v10883
    %10976 = vmatpush.msra.mxu0 %v10882
    %10977 = vmatpush.msra.mxu0 %v10881
    %10978 = vmatpush.msra.mxu0 %v10880
    %10979 = vmatpush.msra.mxu0 %v10879
    %10980 = vmatpush.msra.mxu0 %v10878
    %10981 = vmatpush.msra.mxu0 %v10877
    %10982 = vmatpush.msra.mxu0 %v10876
    %10983 = vmatpush.msra.mxu0 %v10875
    %10984 = vmatpush.msra.mxu0 %v10874
    %10985 = vmatpush.msra.mxu0 %v10873
    %10986 = vmatpush.msra.mxu0 %v10872
    %10987 = vmatpush.msra.mxu0 %v10871
    %10988 = vmatmul.f32.gmra.mxu0 %v10771
    %v10989 = vpop.f32.mrf.mxu0
    %v10990 = vadd.f32 0.0, %v10989
    %10991 = vdwg.mxu0
    %10992 = vmatpush.msra.mxu0 %v10902
    %10993 = vmatpush.msra.mxu0 %v10901
    %10994 = vmatpush.msra.mxu0 %v10900
    %10995 = vmatpush.msra.mxu0 %v10899
    %10996 = vmatpush.msra.mxu0 %v10898
    %10997 = vmatpush.msra.mxu0 %v10897
    %10998 = vmatpush.msra.mxu0 %v10896
    %10999 = vmatpush.msra.mxu0 %v10895
    %11000 = vmatpush.msra.mxu0 %v10894
    %11001 = vmatpush.msra.mxu0 %v10893
    %11002 = vmatpush.msra.mxu0 %v10892
    %11003 = vmatpush.msra.mxu0 %v10891
    %11004 = vmatpush.msra.mxu0 %v10890
    %11005 = vmatpush.msra.mxu0 %v10889
    %11006 = vmatpush.msra.mxu0 %v10888
    %11007 = vmatpush.msra.mxu0 %v10887
    %11008 = vmatmul.f32.gmra.mxu0 %v10778
    %v11009 = vpop.f32.mrf.mxu0
    %v11010 = vadd.f32 %v10990, %v11009
    %11011 = vdwg.mxu0
    %11012 = vmatpush.msra.mxu0 %v10918
    %11013 = vmatpush.msra.mxu0 %v10917
    %11014 = vmatpush.msra.mxu0 %v10916
    %11015 = vmatpush.msra.mxu0 %v10915
    %11016 = vmatpush.msra.mxu0 %v10914
    %11017 = vmatpush.msra.mxu0 %v10913
    %11018 = vmatpush.msra.mxu0 %v10912
    %11019 = vmatpush.msra.mxu0 %v10911
    %11020 = vmatpush.msra.mxu0 %v10910
    %11021 = vmatpush.msra.mxu0 %v10909
    %11022 = vmatpush.msra.mxu0 %v10908
    %11023 = vmatpush.msra.mxu0 %v10907
    %11024 = vmatpush.msra.mxu0 %v10906
    %11025 = vmatpush.msra.mxu0 %v10905
    %11026 = vmatpush.msra.mxu0 %v10904
    %11027 = vmatpush.msra.mxu0 %v10903
    %11028 = vmatmul.f32.gmra.mxu0 %v10785
    %v11029 = vpop.f32.mrf.mxu0
    %v11030 = vadd.f32 %v11010, %v11029
    %11031 = vdwg.mxu0
    %11032 = vmatpush.msra.mxu0 %v10934
    %11033 = vmatpush.msra.mxu0 %v10933
    %11034 = vmatpush.msra.mxu0 %v10932
    %11035 = vmatpush.msra.mxu0 %v10931
    %11036 = vmatpush.msra.mxu0 %v10930
    %11037 = vmatpush.msra.mxu0 %v10929
    %11038 = vmatpush.msra.mxu0 %v10928
    %11039 = vmatpush.msra.mxu0 %v10927
    %11040 = vmatpush.msra.mxu0 %v10926
    %11041 = vmatpush.msra.mxu0 %v10925
    %11042 = vmatpush.msra.mxu0 %v10924
    %11043 = vmatpush.msra.mxu0 %v10923
    %11044 = vmatpush.msra.mxu0 %v10922
    %11045 = vmatpush.msra.mxu0 %v10921
    %11046 = vmatpush.msra.mxu0 %v10920
    %11047 = vmatpush.msra.mxu0 %v10919
    %11048 = vmatmul.f32.gmra.mxu0 %v10792
    %v11049 = vpop.f32.mrf.mxu0
    %v11050 = vadd.f32 %v11030, %v11049
    %11051 = vdwg.mxu0
    %11052 = vmatpush.msra.mxu0 %v10950
    %11053 = vmatpush.msra.mxu0 %v10949
    %11054 = vmatpush.msra.mxu0 %v10948
    %11055 = vmatpush.msra.mxu0 %v10947
    %11056 = vmatpush.msra.mxu0 %v10946
    %11057 = vmatpush.msra.mxu0 %v10945
    %11058 = vmatpush.msra.mxu0 %v10944
    %11059 = vmatpush.msra.mxu0 %v10943
    %11060 = vmatpush.msra.mxu0 %v10942
    %11061 = vmatpush.msra.mxu0 %v10941
    %11062 = vmatpush.msra.mxu0 %v10940
    %11063 = vmatpush.msra.mxu0 %v10939
    %11064 = vmatpush.msra.mxu0 %v10938
    %11065 = vmatpush.msra.mxu0 %v10937
    %11066 = vmatpush.msra.mxu0 %v10936
    %11067 = vmatpush.msra.mxu0 %v10935
    %11068 = vmatmul.f32.gmra.mxu0 %v10799
    %v11069 = vpop.f32.mrf.mxu0
    %v11070 = vadd.f32 %v11050, %v11069
    %11071 = vdwg.mxu0
    %11072 = vmatpush.msra.mxu0 %v10966
    %11073 = vmatpush.msra.mxu0 %v10965
    %11074 = vmatpush.msra.mxu0 %v10964
    %11075 = vmatpush.msra.mxu0 %v10963
    %11076 = vmatpush.msra.mxu0 %v10962
    %11077 = vmatpush.msra.mxu0 %v10961
    %11078 = vmatpush.msra.mxu0 %v10960
    %11079 = vmatpush.msra.mxu0 %v10959
    %11080 = vmatpush.msra.mxu0 %v10958
    %11081 = vmatpush.msra.mxu0 %v10957
    %11082 = vmatpush.msra.mxu0 %v10956
    %11083 = vmatpush.msra.mxu0 %v10955
    %11084 = vmatpush.msra.mxu0 %v10954
    %11085 = vmatpush.msra.mxu0 %v10953
    %11086 = vmatpush.msra.mxu0 %v10952
    %11087 = vmatpush.msra.mxu0 %v10951
    %11088 = vmatmul.f32.gmra.mxu0 %v10806
    %v11089 = vpop.f32.mrf.mxu0
    %v11090 = vadd.f32 %v11070, %v11089
    %11091 = vdwg.mxu0
    %11092 = vmatpush.msra.mxu0 0.0
    %11093 = vmatpush.msra.mxu0 0.0
    %11094 = vmatpush.msra.mxu0 0.0
    %11095 = vmatpush.msra.mxu0 0.0
    %11096 = vmatpush.msra.mxu0 0.0
    %11097 = vmatpush.msra.mxu0 0.0
    %11098 = vmatpush.msra.mxu0 0.0
    %11099 = vmatpush.msra.mxu0 0.0
    %11100 = vmatpush.msra.mxu0 0.0
    %11101 = vmatpush.msra.mxu0 0.0
    %11102 = vmatpush.msra.mxu0 0.0
    %11103 = vmatpush.msra.mxu0 0.0
    %11104 = vmatpush.msra.mxu0 0.0
    %11105 = vmatpush.msra.mxu0 0.0
    %11106 = vmatpush.msra.mxu0 %v10968
    %11107 = vmatpush.msra.mxu0 %v10967
    %11108 = vmatmul.f32.gmra.mxu0 %v10970
    %v11109 = vpop.f32.mrf.mxu0
    %v11110 = vadd.f32 %v11090, %v11109
    %11111 = vdwg.mxu0
    %v11112 = vmul.f32 %v11110, 0.010204081
    %v11114 = vsel %vm4036, %v10870, 0
    %11116 = vmatpush.msra.mxu0 %v10886
    %11117 = vmatpush.msra.mxu0 %v10885
    %11118 = vmatpush.msra.mxu0 %v10884
    %11119 = vmatpush.msra.mxu0 %v10883
    %11120 = vmatpush.msra.mxu0 %v10882
    %11121 = vmatpush.msra.mxu0 %v10881
    %11122 = vmatpush.msra.mxu0 %v10880
    %11123 = vmatpush.msra.mxu0 %v10879
    %11124 = vmatpush.msra.mxu0 %v10878
    %11125 = vmatpush.msra.mxu0 %v10877
    %11126 = vmatpush.msra.mxu0 %v10876
    %11127 = vmatpush.msra.mxu0 %v10875
    %11128 = vmatpush.msra.mxu0 %v10874
    %11129 = vmatpush.msra.mxu0 %v10873
    %11130 = vmatpush.msra.mxu0 %v10872
    %11131 = vmatpush.msra.mxu0 %v10871
    %11132 = vmatmul.f32.gmra.mxu0 %v10828
    %v11133 = vpop.f32.mrf.mxu0
    %v11134 = vadd.f32 0.0, %v11133
    %11135 = vdwg.mxu0
    %11136 = vmatpush.msra.mxu0 %v10902
    %11137 = vmatpush.msra.mxu0 %v10901
    %11138 = vmatpush.msra.mxu0 %v10900
    %11139 = vmatpush.msra.mxu0 %v10899
    %11140 = vmatpush.msra.mxu0 %v10898
    %11141 = vmatpush.msra.mxu0 %v10897
    %11142 = vmatpush.msra.mxu0 %v10896
    %11143 = vmatpush.msra.mxu0 %v10895
    %11144 = vmatpush.msra.mxu0 %v10894
    %11145 = vmatpush.msra.mxu0 %v10893
    %11146 = vmatpush.msra.mxu0 %v10892
    %11147 = vmatpush.msra.mxu0 %v10891
    %11148 = vmatpush.msra.mxu0 %v10890
    %11149 = vmatpush.msra.mxu0 %v10889
    %11150 = vmatpush.msra.mxu0 %v10888
    %11151 = vmatpush.msra.mxu0 %v10887
    %11152 = vmatmul.f32.gmra.mxu0 %v10835
    %v11153 = vpop.f32.mrf.mxu0
    %v11154 = vadd.f32 %v11134, %v11153
    %11155 = vdwg.mxu0
    %11156 = vmatpush.msra.mxu0 %v10918
    %11157 = vmatpush.msra.mxu0 %v10917
    %11158 = vmatpush.msra.mxu0 %v10916
    %11159 = vmatpush.msra.mxu0 %v10915
    %11160 = vmatpush.msra.mxu0 %v10914
    %11161 = vmatpush.msra.mxu0 %v10913
    %11162 = vmatpush.msra.mxu0 %v10912
    %11163 = vmatpush.msra.mxu0 %v10911
    %11164 = vmatpush.msra.mxu0 %v10910
    %11165 = vmatpush.msra.mxu0 %v10909
    %11166 = vmatpush.msra.mxu0 %v10908
    %11167 = vmatpush.msra.mxu0 %v10907
    %11168 = vmatpush.msra.mxu0 %v10906
    %11169 = vmatpush.msra.mxu0 %v10905
    %11170 = vmatpush.msra.mxu0 %v10904
    %11171 = vmatpush.msra.mxu0 %v10903
    %11172 = vmatmul.f32.gmra.mxu0 %v10842
    %v11173 = vpop.f32.mrf.mxu0
    %v11174 = vadd.f32 %v11154, %v11173
    %11175 = vdwg.mxu0
    %11176 = vmatpush.msra.mxu0 %v10934
    %11177 = vmatpush.msra.mxu0 %v10933
    %11178 = vmatpush.msra.mxu0 %v10932
    %11179 = vmatpush.msra.mxu0 %v10931
    %11180 = vmatpush.msra.mxu0 %v10930
    %11181 = vmatpush.msra.mxu0 %v10929
    %11182 = vmatpush.msra.mxu0 %v10928
    %11183 = vmatpush.msra.mxu0 %v10927
    %11184 = vmatpush.msra.mxu0 %v10926
    %11185 = vmatpush.msra.mxu0 %v10925
    %11186 = vmatpush.msra.mxu0 %v10924
    %11187 = vmatpush.msra.mxu0 %v10923
    %11188 = vmatpush.msra.mxu0 %v10922
    %11189 = vmatpush.msra.mxu0 %v10921
    %11190 = vmatpush.msra.mxu0 %v10920
    %11191 = vmatpush.msra.mxu0 %v10919
    %11192 = vmatmul.f32.gmra.mxu0 %v10849
    %v11193 = vpop.f32.mrf.mxu0
    %v11194 = vadd.f32 %v11174, %v11193
    %11195 = vdwg.mxu0
    %11196 = vmatpush.msra.mxu0 %v10950
    %11197 = vmatpush.msra.mxu0 %v10949
    %11198 = vmatpush.msra.mxu0 %v10948
    %11199 = vmatpush.msra.mxu0 %v10947
    %11200 = vmatpush.msra.mxu0 %v10946
    %11201 = vmatpush.msra.mxu0 %v10945
    %11202 = vmatpush.msra.mxu0 %v10944
    %11203 = vmatpush.msra.mxu0 %v10943
    %11204 = vmatpush.msra.mxu0 %v10942
    %11205 = vmatpush.msra.mxu0 %v10941
    %11206 = vmatpush.msra.mxu0 %v10940
    %11207 = vmatpush.msra.mxu0 %v10939
    %11208 = vmatpush.msra.mxu0 %v10938
    %11209 = vmatpush.msra.mxu0 %v10937
    %11210 = vmatpush.msra.mxu0 %v10936
    %11211 = vmatpush.msra.mxu0 %v10935
    %11212 = vmatmul.f32.gmra.mxu0 %v10856
    %v11213 = vpop.f32.mrf.mxu0
    %v11214 = vadd.f32 %v11194, %v11213
    %11215 = vdwg.mxu0
    %11216 = vmatpush.msra.mxu0 %v10966
    %11217 = vmatpush.msra.mxu0 %v10965
    %11218 = vmatpush.msra.mxu0 %v10964
    %11219 = vmatpush.msra.mxu0 %v10963
    %11220 = vmatpush.msra.mxu0 %v10962
    %11221 = vmatpush.msra.mxu0 %v10961
    %11222 = vmatpush.msra.mxu0 %v10960
    %11223 = vmatpush.msra.mxu0 %v10959
    %11224 = vmatpush.msra.mxu0 %v10958
    %11225 = vmatpush.msra.mxu0 %v10957
    %11226 = vmatpush.msra.mxu0 %v10956
    %11227 = vmatpush.msra.mxu0 %v10955
    %11228 = vmatpush.msra.mxu0 %v10954
    %11229 = vmatpush.msra.mxu0 %v10953
    %11230 = vmatpush.msra.mxu0 %v10952
    %11231 = vmatpush.msra.mxu0 %v10951
    %11232 = vmatmul.f32.gmra.mxu0 %v10863
    %v11233 = vpop.f32.mrf.mxu0
    %v11234 = vadd.f32 %v11214, %v11233
    %11235 = vdwg.mxu0
    %11236 = vmatpush.msra.mxu0 0.0
    %11237 = vmatpush.msra.mxu0 0.0
    %11238 = vmatpush.msra.mxu0 0.0
    %11239 = vmatpush.msra.mxu0 0.0
    %11240 = vmatpush.msra.mxu0 0.0
    %11241 = vmatpush.msra.mxu0 0.0
    %11242 = vmatpush.msra.mxu0 0.0
    %11243 = vmatpush.msra.mxu0 0.0
    %11244 = vmatpush.msra.mxu0 0.0
    %11245 = vmatpush.msra.mxu0 0.0
    %11246 = vmatpush.msra.mxu0 0.0
    %11247 = vmatpush.msra.mxu0 0.0
    %11248 = vmatpush.msra.mxu0 0.0
    %11249 = vmatpush.msra.mxu0 0.0
    %11250 = vmatpush.msra.mxu0 %v10968
    %11251 = vmatpush.msra.mxu0 %v10967
    %11252 = vmatmul.f32.gmra.mxu0 %v11114
    %v11253 = vpop.f32.mrf.mxu0
    %v11254 = vadd.f32 %v11234, %v11253
    %11255 = vdwg.mxu0
    %v11256 = vmul.f32 %v11254, 0.010204081
    %v11257 = vmul.f32 %v11112, %v11112
    %v11258 = vsub.f32 %v11256, %v11257
    %v11259 = vld [vmem:[%s8] sm:$0xff]
    %v11260 = vld [vmem:[%s8 + $0x8] sm:$0xff]
    %v11261 = vld [vmem:[%s8 + $0x10] sm:$0xff]
    %v11262 = vld [vmem:[%s8 + $0x18] sm:$0xff]
    %v11263 = vld [vmem:[%s8 + $0x20] sm:$0xff]
    %v11264 = vld [vmem:[%s8 + $0x28] sm:$0xff]
    %v11265 = vld [vmem:[%s8 + $0x30] sm:$0xff]
    %v11266 = vld [vmem:[%s8 + $0x38] sm:$0xff]
    %v11267 = vld [vmem:[%s8 + $0x40] sm:$0xff]
    %v11268 = vld [vmem:[%s8 + $0x48] sm:$0xff]
    %v11269 = vld [vmem:[%s8 + $0x50] sm:$0xff]
    %v11270 = vld [vmem:[%s8 + $0x58] sm:$0xff]
    %v11271 = vld [vmem:[%s8 + $0x60] sm:$0xff]
    %v11272 = vld [vmem:[%s8 + $0x68] sm:$0xff]
    %v11274 = vsel %vm4036, %v11112, 0
    %11276 = vmatpush.msra.mxu0 0.0
    %11277 = vmatpush.msra.mxu0 0.0
    %11278 = vmatpush.msra.mxu0 0.0
    %11279 = vmatpush.msra.mxu0 0.0
    %11280 = vmatpush.msra.mxu0 0.0
    %11281 = vmatpush.msra.mxu0 0.0
    %11282 = vmatpush.msra.mxu0 0.0
    %11283 = vmatpush.msra.mxu0 0.0
    %11284 = vmatpush.msra.mxu0 0.0
    %11285 = vmatpush.msra.mxu0 0.0
    %11286 = vmatpush.msra.mxu0 0.0
    %11287 = vmatpush.msra.mxu0 0.0
    %11288 = vmatpush.msra.mxu0 0.0
    %11289 = vmatpush.msra.mxu0 0.0
    %11290 = vmatpush.msra.mxu0 %v11266
    %11291 = vmatpush.msra.mxu0 %v11259
    %11292 = vmatmul.f32.gmra.mxu0 %v11274
    %v11293 = vpop.f32.mrf.mxu0
    %v11294 = vadd.f32 0.0, %v11293
    %11295 = vdwg.mxu0
    %11296 = vmatpush.msra.mxu0 0.0
    %11297 = vmatpush.msra.mxu0 0.0
    %11298 = vmatpush.msra.mxu0 0.0
    %11299 = vmatpush.msra.mxu0 0.0
    %11300 = vmatpush.msra.mxu0 0.0
    %11301 = vmatpush.msra.mxu0 0.0
    %11302 = vmatpush.msra.mxu0 0.0
    %11303 = vmatpush.msra.mxu0 0.0
    %11304 = vmatpush.msra.mxu0 0.0
    %11305 = vmatpush.msra.mxu0 0.0
    %11306 = vmatpush.msra.mxu0 0.0
    %11307 = vmatpush.msra.mxu0 0.0
    %11308 = vmatpush.msra.mxu0 0.0
    %11309 = vmatpush.msra.mxu0 0.0
    %11310 = vmatpush.msra.mxu0 %v11267
    %11311 = vmatpush.msra.mxu0 %v11260
    %11312 = vmatmul.f32.gmra.mxu0 %v11274
    %v11313 = vpop.f32.mrf.mxu0
    %v11314 = vadd.f32 0.0, %v11313
    %11315 = vdwg.mxu0
    %11316 = vmatpush.msra.mxu0 0.0
    %11317 = vmatpush.msra.mxu0 0.0
    %11318 = vmatpush.msra.mxu0 0.0
    %11319 = vmatpush.msra.mxu0 0.0
    %11320 = vmatpush.msra.mxu0 0.0
    %11321 = vmatpush.msra.mxu0 0.0
    %11322 = vmatpush.msra.mxu0 0.0
    %11323 = vmatpush.msra.mxu0 0.0
    %11324 = vmatpush.msra.mxu0 0.0
    %11325 = vmatpush.msra.mxu0 0.0
    %11326 = vmatpush.msra.mxu0 0.0
    %11327 = vmatpush.msra.mxu0 0.0
    %11328 = vmatpush.msra.mxu0 0.0
    %11329 = vmatpush.msra.mxu0 0.0
    %11330 = vmatpush.msra.mxu0 %v11268
    %11331 = vmatpush.msra.mxu0 %v11261
    %11332 = vmatmul.f32.gmra.mxu0 %v11274
    %v11333 = vpop.f32.mrf.mxu0
    %v11334 = vadd.f32 0.0, %v11333
    %11335 = vdwg.mxu0
    %11336 = vmatpush.msra.mxu0 0.0
    %11337 = vmatpush.msra.mxu0 0.0
    %11338 = vmatpush.msra.mxu0 0.0
    %11339 = vmatpush.msra.mxu0 0.0
    %11340 = vmatpush.msra.mxu0 0.0
    %11341 = vmatpush.msra.mxu0 0.0
    %11342 = vmatpush.msra.mxu0 0.0
    %11343 = vmatpush.msra.mxu0 0.0
    %11344 = vmatpush.msra.mxu0 0.0
    %11345 = vmatpush.msra.mxu0 0.0
    %11346 = vmatpush.msra.mxu0 0.0
    %11347 = vmatpush.msra.mxu0 0.0
    %11348 = vmatpush.msra.mxu0 0.0
    %11349 = vmatpush.msra.mxu0 0.0
    %11350 = vmatpush.msra.mxu0 %v11269
    %11351 = vmatpush.msra.mxu0 %v11262
    %11352 = vmatmul.f32.gmra.mxu0 %v11274
    %v11353 = vpop.f32.mrf.mxu0
    %v11354 = vadd.f32 0.0, %v11353
    %11355 = vdwg.mxu0
    %11356 = vmatpush.msra.mxu0 0.0
    %11357 = vmatpush.msra.mxu0 0.0
    %11358 = vmatpush.msra.mxu0 0.0
    %11359 = vmatpush.msra.mxu0 0.0
    %11360 = vmatpush.msra.mxu0 0.0
    %11361 = vmatpush.msra.mxu0 0.0
    %11362 = vmatpush.msra.mxu0 0.0
    %11363 = vmatpush.msra.mxu0 0.0
    %11364 = vmatpush.msra.mxu0 0.0
    %11365 = vmatpush.msra.mxu0 0.0
    %11366 = vmatpush.msra.mxu0 0.0
    %11367 = vmatpush.msra.mxu0 0.0
    %11368 = vmatpush.msra.mxu0 0.0
    %11369 = vmatpush.msra.mxu0 0.0
    %11370 = vmatpush.msra.mxu0 %v11270
    %11371 = vmatpush.msra.mxu0 %v11263
    %11372 = vmatmul.f32.gmra.mxu0 %v11274
    %v11373 = vpop.f32.mrf.mxu0
    %v11374 = vadd.f32 0.0, %v11373
    %11375 = vdwg.mxu0
    %11376 = vmatpush.msra.mxu0 0.0
    %11377 = vmatpush.msra.mxu0 0.0
    %11378 = vmatpush.msra.mxu0 0.0
    %11379 = vmatpush.msra.mxu0 0.0
    %11380 = vmatpush.msra.mxu0 0.0
    %11381 = vmatpush.msra.mxu0 0.0
    %11382 = vmatpush.msra.mxu0 0.0
    %11383 = vmatpush.msra.mxu0 0.0
    %11384 = vmatpush.msra.mxu0 0.0
    %11385 = vmatpush.msra.mxu0 0.0
    %11386 = vmatpush.msra.mxu0 0.0
    %11387 = vmatpush.msra.mxu0 0.0
    %11388 = vmatpush.msra.mxu0 0.0
    %11389 = vmatpush.msra.mxu0 0.0
    %11390 = vmatpush.msra.mxu0 %v11271
    %11391 = vmatpush.msra.mxu0 %v11264
    %11392 = vmatmul.f32.gmra.mxu0 %v11274
    %v11393 = vpop.f32.mrf.mxu0
    %v11394 = vadd.f32 0.0, %v11393
    %11395 = vdwg.mxu0
    %11396 = vmatpush.msra.mxu0 0.0
    %11397 = vmatpush.msra.mxu0 0.0
    %11398 = vmatpush.msra.mxu0 0.0
    %11399 = vmatpush.msra.mxu0 0.0
    %11400 = vmatpush.msra.mxu0 0.0
    %11401 = vmatpush.msra.mxu0 0.0
    %11402 = vmatpush.msra.mxu0 0.0
    %11403 = vmatpush.msra.mxu0 0.0
    %11404 = vmatpush.msra.mxu0 0.0
    %11405 = vmatpush.msra.mxu0 0.0
    %11406 = vmatpush.msra.mxu0 0.0
    %11407 = vmatpush.msra.mxu0 0.0
    %11408 = vmatpush.msra.mxu0 0.0
    %11409 = vmatpush.msra.mxu0 0.0
    %11410 = vmatpush.msra.mxu0 %v11272
    %11411 = vmatpush.msra.mxu0 %v11265
    %11412 = vmatmul.f32.gmra.mxu0 %v11274
    %v11413 = vpop.f32.mrf.mxu0
    %v11414 = vadd.f32 0.0, %v11413
    %11415 = vdwg.mxu0
    %v11416 = vadd.f32 %v11258, 1e-05
    %v11417 = vrsqrt.pop %v11416
    %v11418 = vmul.f32 %v11417, %v11416
    %v11419 = vmul.f32 %v11418, %v11417
    %v11420 = vmul.f32 0.5, %v11419
    %v11421 = vsub.f32 1.5, %v11420
    %v11422 = vmul.f32 %v11417, %v11421
    %vm11423 = vweird.f32 %v11416
    %vm11424 = vweird.f32 %v11417
    %vm11425 = vmor %vm11423, %vm11424
    %v11426 = vsel %vm11425, %v11417, %v11422
    %v11428 = vsel %vm4036, %v11426, 0
    %11430 = vmatpush.msra.mxu0 0.0
    %11431 = vmatpush.msra.mxu0 0.0
    %11432 = vmatpush.msra.mxu0 0.0
    %11433 = vmatpush.msra.mxu0 0.0
    %11434 = vmatpush.msra.mxu0 0.0
    %11435 = vmatpush.msra.mxu0 0.0
    %11436 = vmatpush.msra.mxu0 0.0
    %11437 = vmatpush.msra.mxu0 0.0
    %11438 = vmatpush.msra.mxu0 0.0
    %11439 = vmatpush.msra.mxu0 0.0
    %11440 = vmatpush.msra.mxu0 0.0
    %11441 = vmatpush.msra.mxu0 0.0
    %11442 = vmatpush.msra.mxu0 0.0
    %11443 = vmatpush.msra.mxu0 0.0
    %11444 = vmatpush.msra.mxu0 %v11266
    %11445 = vmatpush.msra.mxu0 %v11259
    %11446 = vmatmul.f32.gmra.mxu0 %v11428
    %v11447 = vpop.f32.mrf.mxu0
    %v11448 = vadd.f32 0.0, %v11447
    %11449 = vdwg.mxu0
    %11450 = vmatpush.msra.mxu0 0.0
    %11451 = vmatpush.msra.mxu0 0.0
    %11452 = vmatpush.msra.mxu0 0.0
    %11453 = vmatpush.msra.mxu0 0.0
    %11454 = vmatpush.msra.mxu0 0.0
    %11455 = vmatpush.msra.mxu0 0.0
    %11456 = vmatpush.msra.mxu0 0.0
    %11457 = vmatpush.msra.mxu0 0.0
    %11458 = vmatpush.msra.mxu0 0.0
    %11459 = vmatpush.msra.mxu0 0.0
    %11460 = vmatpush.msra.mxu0 0.0
    %11461 = vmatpush.msra.mxu0 0.0
    %11462 = vmatpush.msra.mxu0 0.0
    %11463 = vmatpush.msra.mxu0 0.0
    %11464 = vmatpush.msra.mxu0 %v11267
    %11465 = vmatpush.msra.mxu0 %v11260
    %11466 = vmatmul.f32.gmra.mxu0 %v11428
    %v11467 = vpop.f32.mrf.mxu0
    %v11468 = vadd.f32 0.0, %v11467
    %11469 = vdwg.mxu0
    %11470 = vmatpush.msra.mxu0 0.0
    %11471 = vmatpush.msra.mxu0 0.0
    %11472 = vmatpush.msra.mxu0 0.0
    %11473 = vmatpush.msra.mxu0 0.0
    %11474 = vmatpush.msra.mxu0 0.0
    %11475 = vmatpush.msra.mxu0 0.0
    %11476 = vmatpush.msra.mxu0 0.0
    %11477 = vmatpush.msra.mxu0 0.0
    %11478 = vmatpush.msra.mxu0 0.0
    %11479 = vmatpush.msra.mxu0 0.0
    %11480 = vmatpush.msra.mxu0 0.0
    %11481 = vmatpush.msra.mxu0 0.0
    %11482 = vmatpush.msra.mxu0 0.0
    %11483 = vmatpush.msra.mxu0 0.0
    %11484 = vmatpush.msra.mxu0 %v11268
    %11485 = vmatpush.msra.mxu0 %v11261
    %11486 = vmatmul.f32.gmra.mxu0 %v11428
    %v11487 = vpop.f32.mrf.mxu0
    %v11488 = vadd.f32 0.0, %v11487
    %11489 = vdwg.mxu0
    %11490 = vmatpush.msra.mxu0 0.0
    %11491 = vmatpush.msra.mxu0 0.0
    %11492 = vmatpush.msra.mxu0 0.0
    %11493 = vmatpush.msra.mxu0 0.0
    %11494 = vmatpush.msra.mxu0 0.0
    %11495 = vmatpush.msra.mxu0 0.0
    %11496 = vmatpush.msra.mxu0 0.0
    %11497 = vmatpush.msra.mxu0 0.0
    %11498 = vmatpush.msra.mxu0 0.0
    %11499 = vmatpush.msra.mxu0 0.0
    %11500 = vmatpush.msra.mxu0 0.0
    %11501 = vmatpush.msra.mxu0 0.0
    %11502 = vmatpush.msra.mxu0 0.0
    %11503 = vmatpush.msra.mxu0 0.0
    %11504 = vmatpush.msra.mxu0 %v11269
    %11505 = vmatpush.msra.mxu0 %v11262
    %11506 = vmatmul.f32.gmra.mxu0 %v11428
    %v11507 = vpop.f32.mrf.mxu0
    %v11508 = vadd.f32 0.0, %v11507
    %11509 = vdwg.mxu0
    %11510 = vmatpush.msra.mxu0 0.0
    %11511 = vmatpush.msra.mxu0 0.0
    %11512 = vmatpush.msra.mxu0 0.0
    %11513 = vmatpush.msra.mxu0 0.0
    %11514 = vmatpush.msra.mxu0 0.0
    %11515 = vmatpush.msra.mxu0 0.0
    %11516 = vmatpush.msra.mxu0 0.0
    %11517 = vmatpush.msra.mxu0 0.0
    %11518 = vmatpush.msra.mxu0 0.0
    %11519 = vmatpush.msra.mxu0 0.0
    %11520 = vmatpush.msra.mxu0 0.0
    %11521 = vmatpush.msra.mxu0 0.0
    %11522 = vmatpush.msra.mxu0 0.0
    %11523 = vmatpush.msra.mxu0 0.0
    %11524 = vmatpush.msra.mxu0 %v11270
    %11525 = vmatpush.msra.mxu0 %v11263
    %11526 = vmatmul.f32.gmra.mxu0 %v11428
    %v11527 = vpop.f32.mrf.mxu0
    %v11528 = vadd.f32 0.0, %v11527
    %11529 = vdwg.mxu0
    %11530 = vmatpush.msra.mxu0 0.0
    %11531 = vmatpush.msra.mxu0 0.0
    %11532 = vmatpush.msra.mxu0 0.0
    %11533 = vmatpush.msra.mxu0 0.0
    %11534 = vmatpush.msra.mxu0 0.0
    %11535 = vmatpush.msra.mxu0 0.0
    %11536 = vmatpush.msra.mxu0 0.0
    %11537 = vmatpush.msra.mxu0 0.0
    %11538 = vmatpush.msra.mxu0 0.0
    %11539 = vmatpush.msra.mxu0 0.0
    %11540 = vmatpush.msra.mxu0 0.0
    %11541 = vmatpush.msra.mxu0 0.0
    %11542 = vmatpush.msra.mxu0 0.0
    %11543 = vmatpush.msra.mxu0 0.0
    %11544 = vmatpush.msra.mxu0 %v11271
    %11545 = vmatpush.msra.mxu0 %v11264
    %11546 = vmatmul.f32.gmra.mxu0 %v11428
    %v11547 = vpop.f32.mrf.mxu0
    %v11548 = vadd.f32 0.0, %v11547
    %11549 = vdwg.mxu0
    %11550 = vmatpush.msra.mxu0 0.0
    %11551 = vmatpush.msra.mxu0 0.0
    %11552 = vmatpush.msra.mxu0 0.0
    %11553 = vmatpush.msra.mxu0 0.0
    %11554 = vmatpush.msra.mxu0 0.0
    %11555 = vmatpush.msra.mxu0 0.0
    %11556 = vmatpush.msra.mxu0 0.0
    %11557 = vmatpush.msra.mxu0 0.0
    %11558 = vmatpush.msra.mxu0 0.0
    %11559 = vmatpush.msra.mxu0 0.0
    %11560 = vmatpush.msra.mxu0 0.0
    %11561 = vmatpush.msra.mxu0 0.0
    %11562 = vmatpush.msra.mxu0 0.0
    %11563 = vmatpush.msra.mxu0 0.0
    %11564 = vmatpush.msra.mxu0 %v11272
    %11565 = vmatpush.msra.mxu0 %v11265
    %11566 = vmatmul.f32.gmra.mxu0 %v11428
    %v11567 = vpop.f32.mrf.mxu0
    %v11568 = vadd.f32 0.0, %v11567
    %11569 = vdwg.mxu0
    %v11570 = vperm.slane %v11294, 0
    %v11571 = vperm.slane %v11314, 0
    %v11572 = vperm.slane %v11334, 0
    %v11573 = vperm.slane %v11354, 0
    %v11574 = vperm.slane %v11374, 0
    %v11575 = vperm.slane %v11394, 0
    %v11576 = vperm.slane %v11414, 0
    %v11577 = vsub.f32 %v9747, %v11570
    %v11578 = vsub.f32 %v9916, %v11571
    %v11579 = vsub.f32 %v10085, %v11572
    %v11580 = vsub.f32 %v10254, %v11573
    %v11581 = vsub.f32 %v10423, %v11574
    %v11582 = vsub.f32 %v10592, %v11575
    %v11583 = vsub.f32 %v10761, %v11576
    %v11584 = vperm.slane %v11448, 0
    %v11585 = vperm.slane %v11468, 0
    %v11586 = vperm.slane %v11488, 0
    %v11587 = vperm.slane %v11508, 0
    %v11588 = vperm.slane %v11528, 0
    %v11589 = vperm.slane %v11548, 0
    %v11590 = vperm.slane %v11568, 0
    %v11591 = vmul.f32 %v11577, %v11584
    %v11592 = vmul.f32 %v11578, %v11585
    %v11593 = vmul.f32 %v11579, %v11586
    %v11594 = vmul.f32 %v11580, %v11587
    %v11595 = vmul.f32 %v11581, %v11588
    %v11596 = vmul.f32 %v11582, %v11589
    %v11597 = vmul.f32 %v11583, %v11590
    %v11598 = vld [vmem:[%s5] sm:$0x7f]
    %v11600 = vperm.slane %v11598, 0
    %v11601 = vperm.slane %v11598, 1
    %v11602 = vperm.slane %v11598, 2
    %v11603 = vperm.slane %v11598, 3
    %v11604 = vperm.slane %v11598, 4
    %v11605 = vperm.slane %v11598, 5
    %v11606 = vperm.slane %v11598, 6
    %v11614 = vmul.f32 %v11591, %v11600
    %v11615 = vmul.f32 %v11592, %v11601
    %v11616 = vmul.f32 %v11593, %v11602
    %v11617 = vmul.f32 %v11594, %v11603
    %v11618 = vmul.f32 %v11595, %v11604
    %v11619 = vmul.f32 %v11596, %v11605
    %v11620 = vmul.f32 %v11597, %v11606
    %v11621 = vld [vmem:[%s6] sm:$0x7f]
    %v11623 = vperm.slane %v11621, 0
    %v11624 = vperm.slane %v11621, 1
    %v11625 = vperm.slane %v11621, 2
    %v11626 = vperm.slane %v11621, 3
    %v11627 = vperm.slane %v11621, 4
    %v11628 = vperm.slane %v11621, 5
    %v11629 = vperm.slane %v11621, 6
    %v11637 = vadd.f32 %v11614, %v11623
    %v11638 = vadd.f32 %v11615, %v11624
    %v11639 = vadd.f32 %v11616, %v11625
    %v11640 = vadd.f32 %v11617, %v11626
    %v11641 = vadd.f32 %v11618, %v11627
    %v11642 = vadd.f32 %v11619, %v11628
    %v11643 = vadd.f32 %v11620, %v11629
    %v11644 = vmax.f32 %v11637, 0.0
    %v11645 = vmax.f32 %v11638, 0.0
    %v11646 = vmax.f32 %v11639, 0.0
    %v11647 = vmax.f32 %v11640, 0.0
    %v11648 = vmax.f32 %v11641, 0.0
    %v11649 = vmax.f32 %v11642, 0.0
    %v11650 = vmax.f32 %v11643, 0.0
    %v11651 = vpack.c.bf16 %v11644, %v11644
    %v11652 = vpack.c.bf16 %v11645, %v11645
    %v11653 = vpack.c.bf16 %v11646, %v11646
    %v11654 = vpack.c.bf16 %v11647, %v11647
    %v11655 = vpack.c.bf16 %v11648, %v11648
    %v11656 = vpack.c.bf16 %v11649, %v11649
    %v11657 = vpack.c.bf16 %v11650, %v11650
    %v11658 = vld [vmem:[%s9] sm:$0xff]
    %v11659 = vld [vmem:[%s9 + $0x8] sm:$0xf]
    %v11660 = vld [vmem:[%s9 + $0xc] sm:$0xff]
    %v11661 = vld [vmem:[%s9 + $0x14] sm:$0xf]
    %v11662 = vld [vmem:[%s9 + $0x18] sm:$0xff]
    %v11663 = vld [vmem:[%s9 + $0x20] sm:$0xf]
    %v11664 = vld [vmem:[%s9 + $0x24] sm:$0xff]
    %v11665 = vld [vmem:[%s9 + $0x2c] sm:$0xf]
    %v11666 = vld [vmem:[%s9 + $0x30] sm:$0xff]
    %v11667 = vld [vmem:[%s9 + $0x38] sm:$0xf]
    %v11668 = vld [vmem:[%s9 + $0x3c] sm:$0xff]
    %v11669 = vld [vmem:[%s9 + $0x44] sm:$0xf]
    %v11670 = vld [vmem:[%s9 + $0x48] sm:$0xff]
    %v11671 = vld [vmem:[%s9 + $0x50] sm:$0xf]
    %v11672 = vld [vmem:[%s9 + $0x54] sm:$0xff]
    %v11673 = vld [vmem:[%s9 + $0x5c] sm:$0xf]
    %v11674 = vld [vmem:[%s9 + $0x60] sm:$0xff]
    %v11675 = vld [vmem:[%s9 + $0x68] sm:$0xf]
    %v11676 = vld [vmem:[%s9 + $0x6c] sm:$0xff]
    %v11677 = vld [vmem:[%s9 + $0x74] sm:$0xf]
    %v11678 = vld [vmem:[%s9 + $0x78] sm:$0xff]
    %v11679 = vld [vmem:[%s9 + $0x80] sm:$0xf]
    %v11680 = vld [vmem:[%s9 + $0x84] sm:$0xff]
    %v11681 = vld [vmem:[%s9 + $0x8c] sm:$0xf]
    %v11682 = vld [vmem:[%s9 + $0x90] sm:$0xff]
    %v11683 = vld [vmem:[%s9 + $0x98] sm:$0xf]
    %v11684 = vld [vmem:[%s9 + $0x9c] sm:$0xff]
    %v11685 = vld [vmem:[%s9 + $0xa4] sm:$0xf]
    %v11686 = vld [vmem:[%s9 + $0xa8] sm:$0xff]
    %v11687 = vld [vmem:[%s9 + $0xb0] sm:$0xf]
    %v11688 = vld [vmem:[%s9 + $0xb4] sm:$0xff]
    %v11689 = vld [vmem:[%s9 + $0xbc] sm:$0xf]
    %v11690 = vld [vmem:[%s9 + $0xc0] sm:$0xff]
    %v11691 = vld [vmem:[%s9 + $0xc8] sm:$0xf]
    %v11692 = vld [vmem:[%s9 + $0xcc] sm:$0xff]
    %v11693 = vld [vmem:[%s9 + $0xd4] sm:$0xf]
    %v11694 = vld [vmem:[%s9 + $0xd8] sm:$0xff]
    %v11695 = vld [vmem:[%s9 + $0xe0] sm:$0xf]
    %v11696 = vld [vmem:[%s9 + $0xe4] sm:$0xff]
    %v11697 = vld [vmem:[%s9 + $0xec] sm:$0xf]
    %v11698 = vld [vmem:[%s9 + $0xf0] sm:$0xff]
    %v11699 = vld [vmem:[%s9 + $0xf8] sm:$0xf]
    %v11700 = vld [vmem:[%s9 + $0xfc] sm:$0xff]
    %v11701 = vld [vmem:[%s9 + $0x104] sm:$0xf]
    %v11702 = vld [vmem:[%s9 + $0x108] sm:$0xff]
    %v11703 = vld [vmem:[%s9 + $0x110] sm:$0xf]
    %v11704 = vld [vmem:[%s9 + $0x114] sm:$0xff]
    %v11705 = vld [vmem:[%s9 + $0x11c] sm:$0xf]
    %v11706 = vld [vmem:[%s9 + $0x120] sm:$0xff]
    %v11707 = vld [vmem:[%s9 + $0x128] sm:$0xf]
    %v11708 = vld [vmem:[%s9 + $0x12c] sm:$0xff]
    %v11709 = vld [vmem:[%s9 + $0x134] sm:$0xf]
    %v11710 = vld [vmem:[%s9 + $0x138] sm:$0xff]
    %v11711 = vld [vmem:[%s9 + $0x140] sm:$0xf]
    %v11712 = vld [vmem:[%s9 + $0x144] sm:$0xff]
    %v11713 = vld [vmem:[%s9 + $0x14c] sm:$0xf]
    %v11714 = vld [vmem:[%s9 + $0x150] sm:$0xff]
    %v11715 = vld [vmem:[%s9 + $0x158] sm:$0xf]
    %v11716 = vld [vmem:[%s9 + $0x15c] sm:$0xff]
    %v11717 = vld [vmem:[%s9 + $0x164] sm:$0xf]
    %v11718 = vld [vmem:[%s9 + $0x168] sm:$0xff]
    %v11719 = vld [vmem:[%s9 + $0x170] sm:$0xf]
    %v11720 = vld [vmem:[%s9 + $0x174] sm:$0xff]
    %v11721 = vld [vmem:[%s9 + $0x17c] sm:$0xf]
    %v11722 = vld [vmem:[%s9 + $0x180] sm:$0xff]
    %v11723 = vld [vmem:[%s9 + $0x188] sm:$0xf]
    %v11724 = vld [vmem:[%s9 + $0x18c] sm:$0xff]
    %v11725 = vld [vmem:[%s9 + $0x194] sm:$0xf]
    %v11726 = vld [vmem:[%s9 + $0x198] sm:$0xff]
    %v11727 = vld [vmem:[%s9 + $0x1a0] sm:$0xf]
    %v11728 = vld [vmem:[%s9 + $0x1a4] sm:$0xff]
    %v11729 = vld [vmem:[%s9 + $0x1ac] sm:$0xf]
    %v11730 = vld [vmem:[%s9 + $0x1b0] sm:$0xff]
    %v11731 = vld [vmem:[%s9 + $0x1b8] sm:$0xf]
    %v11732 = vld [vmem:[%s9 + $0x1bc] sm:$0xff]
    %v11733 = vld [vmem:[%s9 + $0x1c4] sm:$0xf]
    %v11734 = vld [vmem:[%s9 + $0x1c8] sm:$0xff]
    %v11735 = vld [vmem:[%s9 + $0x1d0] sm:$0xf]
    %v11736 = vld [vmem:[%s9 + $0x1d4] sm:$0xff]
    %v11737 = vld [vmem:[%s9 + $0x1dc] sm:$0xf]
    %v11738 = vld [vmem:[%s9 + $0x1e0] sm:$0xff]
    %v11739 = vld [vmem:[%s9 + $0x1e8] sm:$0xf]
    %v11740 = vld [vmem:[%s9 + $0x1ec] sm:$0xff]
    %v11741 = vld [vmem:[%s9 + $0x1f4] sm:$0xf]
    %v11742 = vld [vmem:[%s9 + $0x1f8] sm:$0xff]
    %v11743 = vld [vmem:[%s9 + $0x200] sm:$0xf]
    %v11744 = vld [vmem:[%s9 + $0x204] sm:$0xff]
    %v11745 = vld [vmem:[%s9 + $0x20c] sm:$0xf]
    %v11746 = vld [vmem:[%s9 + $0x210] sm:$0xff]
    %v11747 = vld [vmem:[%s9 + $0x218] sm:$0xf]
    %v11748 = vld [vmem:[%s9 + $0x21c] sm:$0xff]
    %v11749 = vld [vmem:[%s9 + $0x224] sm:$0xf]
    %v11750 = vld [vmem:[%s9 + $0x228] sm:$0xff]
    %v11751 = vld [vmem:[%s9 + $0x230] sm:$0xf]
    %v11752 = vld [vmem:[%s9 + $0x234] sm:$0xff]
    %v11753 = vld [vmem:[%s9 + $0x23c] sm:$0xf]
    %v11754 = vld [vmem:[%s9 + $0x240] sm:$0xff]
    %v11755 = vld [vmem:[%s9 + $0x248] sm:$0xf]
    %v11756 = vld [vmem:[%s9 + $0x24c] sm:$0xff]
    %v11757 = vld [vmem:[%s9 + $0x254] sm:$0xf]
    %v11758 = vld [vmem:[%s9 + $0x258] sm:$0xff]
    %v11759 = vld [vmem:[%s9 + $0x260] sm:$0xf]
    %v11760 = vld [vmem:[%s9 + $0x264] sm:$0xff]
    %v11761 = vld [vmem:[%s9 + $0x26c] sm:$0xf]
    %v11762 = vld [vmem:[%s9 + $0x270] sm:$0xff]
    %v11763 = vld [vmem:[%s9 + $0x278] sm:$0xf]
    %v11764 = vld [vmem:[%s9 + $0x27c] sm:$0xff]
    %v11765 = vld [vmem:[%s9 + $0x284] sm:$0xf]
    %v11766 = vld [vmem:[%s9 + $0x288] sm:$0xff]
    %v11767 = vld [vmem:[%s9 + $0x290] sm:$0xf]
    %v11768 = vld [vmem:[%s9 + $0x294] sm:$0xff]
    %v11769 = vld [vmem:[%s9 + $0x29c] sm:$0xf]
    %v11770 = vld [vmem:[%s9 + $0x2a0] sm:$0xff]
    %v11771 = vld [vmem:[%s9 + $0x2a8] sm:$0xf]
    %v11772 = vld [vmem:[%s9 + $0x2ac] sm:$0xff]
    %v11773 = vld [vmem:[%s9 + $0x2b4] sm:$0xf]
    %v11774 = vld [vmem:[%s9 + $0x2b8] sm:$0xff]
    %v11775 = vld [vmem:[%s9 + $0x2c0] sm:$0xf]
    %v11776 = vld [vmem:[%s9 + $0x2c4] sm:$0xff]
    %v11777 = vld [vmem:[%s9 + $0x2cc] sm:$0xf]
    %v11778 = vld [vmem:[%s9 + $0x2d0] sm:$0xff]
    %v11779 = vld [vmem:[%s9 + $0x2d8] sm:$0xf]
    %v11780 = vld [vmem:[%s9 + $0x2dc] sm:$0xff]
    %v11781 = vld [vmem:[%s9 + $0x2e4] sm:$0xf]
    %v11782 = vld [vmem:[%s9 + $0x2e8] sm:$0xff]
    %v11783 = vld [vmem:[%s9 + $0x2f0] sm:$0xf]
    %v11784 = vld [vmem:[%s9 + $0x2f4] sm:$0xff]
    %v11785 = vld [vmem:[%s9 + $0x2fc] sm:$0xf]
    %v11786 = vld [vmem:[%s9 + $0x300] sm:$0xff]
    %v11787 = vld [vmem:[%s9 + $0x308] sm:$0xf]
    %v11788 = vld [vmem:[%s9 + $0x30c] sm:$0xff]
    %v11789 = vld [vmem:[%s9 + $0x314] sm:$0xf]
    %v11790 = vld [vmem:[%s9 + $0x318] sm:$0xff]
    %v11791 = vld [vmem:[%s9 + $0x320] sm:$0xf]
    %v11792 = vld [vmem:[%s9 + $0x324] sm:$0xff]
    %v11793 = vld [vmem:[%s9 + $0x32c] sm:$0xf]
    %v11794 = vld [vmem:[%s9 + $0x330] sm:$0xff]
    %v11795 = vld [vmem:[%s9 + $0x338] sm:$0xf]
    %v11796 = vld [vmem:[%s9 + $0x33c] sm:$0xff]
    %v11797 = vld [vmem:[%s9 + $0x344] sm:$0xf]
    %v11798 = vld [vmem:[%s9 + $0x348] sm:$0xff]
    %v11799 = vld [vmem:[%s9 + $0x350] sm:$0xf]
    %v11800 = vld [vmem:[%s9 + $0x354] sm:$0xff]
    %v11801 = vld [vmem:[%s9 + $0x35c] sm:$0xf]
    %v11802 = vld [vmem:[%s9 + $0x360] sm:$0xff]
    %v11803 = vld [vmem:[%s9 + $0x368] sm:$0xf]
    %v11804 = vld [vmem:[%s9 + $0x36c] sm:$0xff]
    %v11805 = vld [vmem:[%s9 + $0x374] sm:$0xf]
    %v11806 = vld [vmem:[%s9 + $0x378] sm:$0xff]
    %v11807 = vld [vmem:[%s9 + $0x380] sm:$0xf]
    %v11808 = vld [vmem:[%s9 + $0x384] sm:$0xff]
    %v11809 = vld [vmem:[%s9 + $0x38c] sm:$0xf]
    %v11810 = vld [vmem:[%s9 + $0x390] sm:$0xff]
    %v11811 = vld [vmem:[%s9 + $0x398] sm:$0xf]
    %v11812 = vld [vmem:[%s9 + $0x39c] sm:$0xff]
    %v11813 = vld [vmem:[%s9 + $0x3a4] sm:$0xf]
    %v11814 = vld [vmem:[%s9 + $0x3a8] sm:$0xff]
    %v11815 = vld [vmem:[%s9 + $0x3b0] sm:$0xf]
    %v11816 = vld [vmem:[%s9 + $0x3b4] sm:$0xff]
    %v11817 = vld [vmem:[%s9 + $0x3bc] sm:$0xf]
    %v11818 = vld [vmem:[%s9 + $0x3c0] sm:$0xff]
    %v11819 = vld [vmem:[%s9 + $0x3c8] sm:$0xf]
    %v11820 = vld [vmem:[%s9 + $0x3cc] sm:$0xff]
    %v11821 = vld [vmem:[%s9 + $0x3d4] sm:$0xf]
    %v11822 = vld [vmem:[%s9 + $0x3d8] sm:$0xff]
    %v11823 = vld [vmem:[%s9 + $0x3e0] sm:$0xf]
    %v11824 = vld [vmem:[%s9 + $0x3e4] sm:$0xff]
    %v11825 = vld [vmem:[%s9 + $0x3ec] sm:$0xf]
    %v11826 = vld [vmem:[%s9 + $0x3f0] sm:$0xff]
    %v11827 = vld [vmem:[%s9 + $0x3f8] sm:$0xf]
    %v11828 = vld [vmem:[%s9 + $0x3fc] sm:$0xff]
    %v11829 = vld [vmem:[%s9 + $0x404] sm:$0xf]
    %v11830 = vld [vmem:[%s9 + $0x408] sm:$0xff]
    %v11831 = vld [vmem:[%s9 + $0x410] sm:$0xf]
    %v11832 = vld [vmem:[%s9 + $0x414] sm:$0xff]
    %v11833 = vld [vmem:[%s9 + $0x41c] sm:$0xf]
    %v11834 = vld [vmem:[%s9 + $0x420] sm:$0xff]
    %v11835 = vld [vmem:[%s9 + $0x428] sm:$0xf]
    %v11836 = vld [vmem:[%s9 + $0x42c] sm:$0xff]
    %v11837 = vld [vmem:[%s9 + $0x434] sm:$0xf]
    %v11838 = vld [vmem:[%s9 + $0x438] sm:$0xff]
    %v11839 = vld [vmem:[%s9 + $0x440] sm:$0xf]
    %v11840 = vld [vmem:[%s9 + $0x444] sm:$0xff]
    %v11841 = vld [vmem:[%s9 + $0x44c] sm:$0xf]
    %v11842 = vld [vmem:[%s9 + $0x450] sm:$0xff]
    %v11843 = vld [vmem:[%s9 + $0x458] sm:$0xf]
    %v11844 = vld [vmem:[%s9 + $0x45c] sm:$0xff]
    %v11845 = vld [vmem:[%s9 + $0x464] sm:$0xf]
    %v11846 = vld [vmem:[%s9 + $0x468] sm:$0xff]
    %v11847 = vld [vmem:[%s9 + $0x470] sm:$0xf]
    %v11848 = vld [vmem:[%s9 + $0x474] sm:$0xff]
    %v11849 = vld [vmem:[%s9 + $0x47c] sm:$0xf]
    %v11850 = vld [vmem:[%s9 + $0x480] sm:$0xff]
    %v11851 = vld [vmem:[%s9 + $0x488] sm:$0xf]
    %v11852 = vld [vmem:[%s9 + $0x48c] sm:$0xff]
    %v11853 = vld [vmem:[%s9 + $0x494] sm:$0xf]
    %v11854 = vld [vmem:[%s10] sm:$0x7]
    %v11856 = vperm.slane %v11854, 0
    %v11857 = vperm.slane %v11854, 1
    %v11858 = vperm.slane %v11854, 2
    %v12058 = vunpack.c.l.b16 %v11658
    %v12059 = vunpack.c.h.b16 %v11658
    %v12060 = vunpack.c.l.b16 %v11659
    %v12061 = vunpack.c.l.b16 %v11660
    %v12062 = vunpack.c.h.b16 %v11660
    %v12063 = vunpack.c.l.b16 %v11661
    %v12064 = vunpack.c.l.b16 %v11662
    %v12065 = vunpack.c.h.b16 %v11662
    %v12066 = vunpack.c.l.b16 %v11663
    %v12067 = vunpack.c.l.b16 %v11664
    %v12068 = vunpack.c.h.b16 %v11664
    %v12069 = vunpack.c.l.b16 %v11665
    %v12070 = vunpack.c.l.b16 %v11666
    %v12071 = vunpack.c.h.b16 %v11666
    %v12072 = vunpack.c.l.b16 %v11667
    %v12073 = vunpack.c.l.b16 %v11668
    %v12074 = vunpack.c.h.b16 %v11668
    %v12075 = vunpack.c.l.b16 %v11669
    %v12076 = vunpack.c.l.b16 %v11670
    %v12077 = vunpack.c.h.b16 %v11670
    %v12078 = vunpack.c.l.b16 %v11671
    %v12079 = vunpack.c.l.b16 %v11672
    %v12080 = vunpack.c.h.b16 %v11672
    %v12081 = vunpack.c.l.b16 %v11673
    %v12082 = vunpack.c.l.b16 %v11674
    %v12083 = vunpack.c.h.b16 %v11674
    %v12084 = vunpack.c.l.b16 %v11675
    %v12085 = vunpack.c.l.b16 %v11676
    %v12086 = vunpack.c.h.b16 %v11676
    %v12087 = vunpack.c.l.b16 %v11677
    %v12088 = vunpack.c.l.b16 %v11678
    %v12089 = vunpack.c.h.b16 %v11678
    %v12090 = vunpack.c.l.b16 %v11679
    %v12091 = vunpack.c.l.b16 %v11680
    %v12092 = vunpack.c.h.b16 %v11680
    %v12093 = vunpack.c.l.b16 %v11681
    %v12094 = vunpack.c.l.b16 %v11682
    %v12095 = vunpack.c.h.b16 %v11682
    %v12096 = vunpack.c.l.b16 %v11683
    %v12097 = vunpack.c.l.b16 %v11684
    %v12098 = vunpack.c.h.b16 %v11684
    %v12099 = vunpack.c.l.b16 %v11685
    %v12100 = vunpack.c.l.b16 %v11686
    %v12101 = vunpack.c.h.b16 %v11686
    %v12102 = vunpack.c.l.b16 %v11687
    %v12103 = vunpack.c.l.b16 %v11688
    %v12104 = vunpack.c.h.b16 %v11688
    %v12105 = vunpack.c.l.b16 %v11689
    %v12106 = vunpack.c.l.b16 %v11690
    %v12107 = vunpack.c.h.b16 %v11690
    %v12108 = vunpack.c.l.b16 %v11691
    %v12109 = vunpack.c.l.b16 %v11692
    %v12110 = vunpack.c.h.b16 %v11692
    %v12111 = vunpack.c.l.b16 %v11693
    %v12112 = vunpack.c.l.b16 %v11694
    %v12113 = vunpack.c.h.b16 %v11694
    %v12114 = vunpack.c.l.b16 %v11695
    %v12115 = vunpack.c.l.b16 %v11696
    %v12116 = vunpack.c.h.b16 %v11696
    %v12117 = vunpack.c.l.b16 %v11697
    %v12118 = vunpack.c.l.b16 %v11698
    %v12119 = vunpack.c.h.b16 %v11698
    %v12120 = vunpack.c.l.b16 %v11699
    %v12121 = vunpack.c.l.b16 %v11700
    %v12122 = vunpack.c.h.b16 %v11700
    %v12123 = vunpack.c.l.b16 %v11701
    %v12124 = vunpack.c.l.b16 %v11702
    %v12125 = vunpack.c.h.b16 %v11702
    %v12126 = vunpack.c.l.b16 %v11703
    %v12127 = vunpack.c.l.b16 %v11704
    %v12128 = vunpack.c.h.b16 %v11704
    %v12129 = vunpack.c.l.b16 %v11705
    %v12130 = vunpack.c.l.b16 %v11706
    %v12131 = vunpack.c.h.b16 %v11706
    %v12132 = vunpack.c.l.b16 %v11707
    %v12133 = vunpack.c.l.b16 %v11708
    %v12134 = vunpack.c.h.b16 %v11708
    %v12135 = vunpack.c.l.b16 %v11709
    %v12136 = vunpack.c.l.b16 %v11710
    %v12137 = vunpack.c.h.b16 %v11710
    %v12138 = vunpack.c.l.b16 %v11711
    %v12139 = vunpack.c.l.b16 %v11712
    %v12140 = vunpack.c.h.b16 %v11712
    %v12141 = vunpack.c.l.b16 %v11713
    %v12142 = vunpack.c.l.b16 %v11714
    %v12143 = vunpack.c.h.b16 %v11714
    %v12144 = vunpack.c.l.b16 %v11715
    %v12145 = vunpack.c.l.b16 %v11716
    %v12146 = vunpack.c.h.b16 %v11716
    %v12147 = vunpack.c.l.b16 %v11717
    %v12148 = vunpack.c.l.b16 %v11718
    %v12149 = vunpack.c.h.b16 %v11718
    %v12150 = vunpack.c.l.b16 %v11719
    %v12151 = vunpack.c.l.b16 %v11720
    %v12152 = vunpack.c.h.b16 %v11720
    %v12153 = vunpack.c.l.b16 %v11721
    %v12154 = vunpack.c.l.b16 %v11722
    %v12155 = vunpack.c.h.b16 %v11722
    %v12156 = vunpack.c.l.b16 %v11723
    %v12157 = vunpack.c.l.b16 %v11724
    %v12158 = vunpack.c.h.b16 %v11724
    %v12159 = vunpack.c.l.b16 %v11725
    %v12160 = vunpack.c.l.b16 %v11726
    %v12161 = vunpack.c.h.b16 %v11726
    %v12162 = vunpack.c.l.b16 %v11727
    %v12163 = vunpack.c.l.b16 %v11728
    %v12164 = vunpack.c.h.b16 %v11728
    %v12165 = vunpack.c.l.b16 %v11729
    %v12166 = vunpack.c.l.b16 %v11730
    %v12167 = vunpack.c.h.b16 %v11730
    %v12168 = vunpack.c.l.b16 %v11731
    %v12169 = vunpack.c.l.b16 %v11732
    %v12170 = vunpack.c.h.b16 %v11732
    %v12171 = vunpack.c.l.b16 %v11733
    %v12172 = vunpack.c.l.b16 %v11734
    %v12173 = vunpack.c.h.b16 %v11734
    %v12174 = vunpack.c.l.b16 %v11735
    %v12175 = vunpack.c.l.b16 %v11736
    %v12176 = vunpack.c.h.b16 %v11736
    %v12177 = vunpack.c.l.b16 %v11737
    %v12178 = vunpack.c.l.b16 %v11738
    %v12179 = vunpack.c.h.b16 %v11738
    %v12180 = vunpack.c.l.b16 %v11739
    %v12181 = vunpack.c.l.b16 %v11740
    %v12182 = vunpack.c.h.b16 %v11740
    %v12183 = vunpack.c.l.b16 %v11741
    %v12184 = vunpack.c.l.b16 %v11742
    %v12185 = vunpack.c.h.b16 %v11742
    %v12186 = vunpack.c.l.b16 %v11743
    %v12187 = vunpack.c.l.b16 %v11744
    %v12188 = vunpack.c.h.b16 %v11744
    %v12189 = vunpack.c.l.b16 %v11745
    %v12190 = vunpack.c.l.b16 %v11746
    %v12191 = vunpack.c.h.b16 %v11746
    %v12192 = vunpack.c.l.b16 %v11747
    %v12193 = vunpack.c.l.b16 %v11748
    %v12194 = vunpack.c.h.b16 %v11748
    %v12195 = vunpack.c.l.b16 %v11749
    %v12196 = vunpack.c.l.b16 %v11750
    %v12197 = vunpack.c.h.b16 %v11750
    %v12198 = vunpack.c.l.b16 %v11751
    %v12199 = vunpack.c.l.b16 %v11752
    %v12200 = vunpack.c.h.b16 %v11752
    %v12201 = vunpack.c.l.b16 %v11753
    %v12202 = vunpack.c.l.b16 %v11754
    %v12203 = vunpack.c.h.b16 %v11754
    %v12204 = vunpack.c.l.b16 %v11755
    %v12205 = vunpack.c.l.b16 %v11756
    %v12206 = vunpack.c.h.b16 %v11756
    %v12207 = vunpack.c.l.b16 %v11757
    %v12208 = vunpack.c.l.b16 %v11758
    %v12209 = vunpack.c.h.b16 %v11758
    %v12210 = vunpack.c.l.b16 %v11759
    %v12211 = vunpack.c.l.b16 %v11760
    %v12212 = vunpack.c.h.b16 %v11760
    %v12213 = vunpack.c.l.b16 %v11761
    %v12214 = vunpack.c.l.b16 %v11762
    %v12215 = vunpack.c.h.b16 %v11762
    %v12216 = vunpack.c.l.b16 %v11763
    %v12217 = vunpack.c.l.b16 %v11764
    %v12218 = vunpack.c.h.b16 %v11764
    %v12219 = vunpack.c.l.b16 %v11765
    %v12220 = vunpack.c.l.b16 %v11766
    %v12221 = vunpack.c.h.b16 %v11766
    %v12222 = vunpack.c.l.b16 %v11767
    %v12223 = vunpack.c.l.b16 %v11768
    %v12224 = vunpack.c.h.b16 %v11768
    %v12225 = vunpack.c.l.b16 %v11769
    %v12226 = vunpack.c.l.b16 %v11770
    %v12227 = vunpack.c.h.b16 %v11770
    %v12228 = vunpack.c.l.b16 %v11771
    %v12229 = vunpack.c.l.b16 %v11772
    %v12230 = vunpack.c.h.b16 %v11772
    %v12231 = vunpack.c.l.b16 %v11773
    %v12232 = vunpack.c.l.b16 %v11774
    %v12233 = vunpack.c.h.b16 %v11774
    %v12234 = vunpack.c.l.b16 %v11775
    %v12235 = vunpack.c.l.b16 %v11776
    %v12236 = vunpack.c.h.b16 %v11776
    %v12237 = vunpack.c.l.b16 %v11777
    %v12238 = vunpack.c.l.b16 %v11778
    %v12239 = vunpack.c.h.b16 %v11778
    %v12240 = vunpack.c.l.b16 %v11779
    %v12241 = vunpack.c.l.b16 %v11780
    %v12242 = vunpack.c.h.b16 %v11780
    %v12243 = vunpack.c.l.b16 %v11781
    %v12244 = vunpack.c.l.b16 %v11782
    %v12245 = vunpack.c.h.b16 %v11782
    %v12246 = vunpack.c.l.b16 %v11783
    %v12247 = vunpack.c.l.b16 %v11784
    %v12248 = vunpack.c.h.b16 %v11784
    %v12249 = vunpack.c.l.b16 %v11785
    %v12250 = vunpack.c.l.b16 %v11786
    %v12251 = vunpack.c.h.b16 %v11786
    %v12252 = vunpack.c.l.b16 %v11787
    %v12253 = vunpack.c.l.b16 %v11788
    %v12254 = vunpack.c.h.b16 %v11788
    %v12255 = vunpack.c.l.b16 %v11789
    %v12256 = vunpack.c.l.b16 %v11790
    %v12257 = vunpack.c.h.b16 %v11790
    %v12258 = vunpack.c.l.b16 %v11791
    %v12259 = vunpack.c.l.b16 %v11792
    %v12260 = vunpack.c.h.b16 %v11792
    %v12261 = vunpack.c.l.b16 %v11793
    %v12262 = vunpack.c.l.b16 %v11794
    %v12263 = vunpack.c.h.b16 %v11794
    %v12264 = vunpack.c.l.b16 %v11795
    %v12265 = vunpack.c.l.b16 %v11796
    %v12266 = vunpack.c.h.b16 %v11796
    %v12267 = vunpack.c.l.b16 %v11797
    %v12268 = vunpack.c.l.b16 %v11798
    %v12269 = vunpack.c.h.b16 %v11798
    %v12270 = vunpack.c.l.b16 %v11799
    %v12271 = vunpack.c.l.b16 %v11800
    %v12272 = vunpack.c.h.b16 %v11800
    %v12273 = vunpack.c.l.b16 %v11801
    %v12274 = vunpack.c.l.b16 %v11802
    %v12275 = vunpack.c.h.b16 %v11802
    %v12276 = vunpack.c.l.b16 %v11803
    %v12277 = vunpack.c.l.b16 %v11804
    %v12278 = vunpack.c.h.b16 %v11804
    %v12279 = vunpack.c.l.b16 %v11805
    %v12280 = vunpack.c.l.b16 %v11806
    %v12281 = vunpack.c.h.b16 %v11806
    %v12282 = vunpack.c.l.b16 %v11807
    %v12283 = vunpack.c.l.b16 %v11808
    %v12284 = vunpack.c.h.b16 %v11808
    %v12285 = vunpack.c.l.b16 %v11809
    %v12286 = vunpack.c.l.b16 %v11810
    %v12287 = vunpack.c.h.b16 %v11810
    %v12288 = vunpack.c.l.b16 %v11811
    %v12289 = vunpack.c.l.b16 %v11812
    %v12290 = vunpack.c.h.b16 %v11812
    %v12291 = vunpack.c.l.b16 %v11813
    %v12292 = vunpack.c.l.b16 %v11814
    %v12293 = vunpack.c.h.b16 %v11814
    %v12294 = vunpack.c.l.b16 %v11815
    %v12295 = vunpack.c.l.b16 %v11816
    %v12296 = vunpack.c.h.b16 %v11816
    %v12297 = vunpack.c.l.b16 %v11817
    %v12298 = vunpack.c.l.b16 %v11818
    %v12299 = vunpack.c.h.b16 %v11818
    %v12300 = vunpack.c.l.b16 %v11819
    %v12301 = vunpack.c.l.b16 %v11820
    %v12302 = vunpack.c.h.b16 %v11820
    %v12303 = vunpack.c.l.b16 %v11821
    %v12304 = vunpack.c.l.b16 %v11822
    %v12305 = vunpack.c.h.b16 %v11822
    %v12306 = vunpack.c.l.b16 %v11823
    %v12307 = vunpack.c.l.b16 %v11824
    %v12308 = vunpack.c.h.b16 %v11824
    %v12309 = vunpack.c.l.b16 %v11825
    %v12310 = vunpack.c.l.b16 %v11826
    %v12311 = vunpack.c.h.b16 %v11826
    %v12312 = vunpack.c.l.b16 %v11827
    %v12313 = vunpack.c.l.b16 %v11828
    %v12314 = vunpack.c.h.b16 %v11828
    %v12315 = vunpack.c.l.b16 %v11829
    %v12316 = vunpack.c.l.b16 %v11830
    %v12317 = vunpack.c.h.b16 %v11830
    %v12318 = vunpack.c.l.b16 %v11831
    %v12319 = vunpack.c.l.b16 %v11832
    %v12320 = vunpack.c.h.b16 %v11832
    %v12321 = vunpack.c.l.b16 %v11833
    %v12322 = vunpack.c.l.b16 %v11834
    %v12323 = vunpack.c.h.b16 %v11834
    %v12324 = vunpack.c.l.b16 %v11835
    %v12325 = vunpack.c.l.b16 %v11836
    %v12326 = vunpack.c.h.b16 %v11836
    %v12327 = vunpack.c.l.b16 %v11837
    %v12328 = vunpack.c.l.b16 %v11838
    %v12329 = vunpack.c.h.b16 %v11838
    %v12330 = vunpack.c.l.b16 %v11839
    %v12331 = vunpack.c.l.b16 %v11840
    %v12332 = vunpack.c.h.b16 %v11840
    %v12333 = vunpack.c.l.b16 %v11841
    %v12334 = vunpack.c.l.b16 %v11842
    %v12335 = vunpack.c.h.b16 %v11842
    %v12336 = vunpack.c.l.b16 %v11843
    %v12337 = vunpack.c.l.b16 %v11844
    %v12338 = vunpack.c.h.b16 %v11844
    %v12339 = vunpack.c.l.b16 %v11845
    %v12340 = vunpack.c.l.b16 %v11846
    %v12341 = vunpack.c.h.b16 %v11846
    %v12342 = vunpack.c.l.b16 %v11847
    %v12343 = vunpack.c.l.b16 %v11848
    %v12344 = vunpack.c.h.b16 %v11848
    %v12345 = vunpack.c.l.b16 %v11849
    %v12346 = vunpack.c.l.b16 %v11850
    %v12347 = vunpack.c.h.b16 %v11850
    %v12348 = vunpack.c.l.b16 %v11851
    %v12349 = vunpack.c.l.b16 %v11852
    %v12350 = vunpack.c.h.b16 %v11852
    %v12351 = vunpack.c.l.b16 %v11853
    %v12352 = vpack.c.b16 %v12061, %v12058
    %v12353 = vpack.c.b16 %v12062, %v12059
    %v12354 = vpack.c.b16 %v12063, %v12060
    %v12355 = vpack.c.b16 %v12067, %v12064
    %v12356 = vpack.c.b16 %v12068, %v12065
    %v12357 = vpack.c.b16 %v12069, %v12066
    %v12358 = vpack.c.b16 %v12073, %v12070
    %v12359 = vpack.c.b16 %v12074, %v12071
    %v12360 = vpack.c.b16 %v12075, %v12072
    %v12361 = vpack.c.b16 %v12079, %v12076
    %v12362 = vpack.c.b16 %v12080, %v12077
    %v12363 = vpack.c.b16 %v12081, %v12078
    %v12364 = vpack.c.b16 %v12085, %v12082
    %v12365 = vpack.c.b16 %v12086, %v12083
    %v12366 = vpack.c.b16 %v12087, %v12084
    %v12367 = vpack.c.b16 %v12091, %v12088
    %v12368 = vpack.c.b16 %v12092, %v12089
    %v12369 = vpack.c.b16 %v12093, %v12090
    %v12370 = vpack.c.b16 %v12097, %v12094
    %v12371 = vpack.c.b16 %v12098, %v12095
    %v12372 = vpack.c.b16 %v12099, %v12096
    %v12373 = vpack.c.b16 %v12103, %v12100
    %v12374 = vpack.c.b16 %v12104, %v12101
    %v12375 = vpack.c.b16 %v12105, %v12102
    %v12376 = vpack.c.b16 %v12109, %v12106
    %v12377 = vpack.c.b16 %v12110, %v12107
    %v12378 = vpack.c.b16 %v12111, %v12108
    %v12379 = vpack.c.b16 %v12115, %v12112
    %v12380 = vpack.c.b16 %v12116, %v12113
    %v12381 = vpack.c.b16 %v12117, %v12114
    %v12382 = vpack.c.b16 %v12121, %v12118
    %v12383 = vpack.c.b16 %v12122, %v12119
    %v12384 = vpack.c.b16 %v12123, %v12120
    %v12385 = vpack.c.b16 %v12127, %v12124
    %v12386 = vpack.c.b16 %v12128, %v12125
    %v12387 = vpack.c.b16 %v12129, %v12126
    %v12388 = vpack.c.b16 %v12133, %v12130
    %v12389 = vpack.c.b16 %v12134, %v12131
    %v12390 = vpack.c.b16 %v12135, %v12132
    %v12391 = vpack.c.b16 %v12139, %v12136
    %v12392 = vpack.c.b16 %v12140, %v12137
    %v12393 = vpack.c.b16 %v12141, %v12138
    %v12394 = vpack.c.b16 %v12145, %v12142
    %v12395 = vpack.c.b16 %v12146, %v12143
    %v12396 = vpack.c.b16 %v12147, %v12144
    %v12397 = vpack.c.b16 %v12151, %v12148
    %v12398 = vpack.c.b16 %v12152, %v12149
    %v12399 = vpack.c.b16 %v12153, %v12150
    %v12400 = vpack.c.b16 %v12157, %v12154
    %v12401 = vpack.c.b16 %v12158, %v12155
    %v12402 = vpack.c.b16 %v12159, %v12156
    %v12403 = vpack.c.b16 %v12163, %v12160
    %v12404 = vpack.c.b16 %v12164, %v12161
    %v12405 = vpack.c.b16 %v12165, %v12162
    %v12406 = vpack.c.b16 %v12169, %v12166
    %v12407 = vpack.c.b16 %v12170, %v12167
    %v12408 = vpack.c.b16 %v12171, %v12168
    %v12409 = vpack.c.b16 %v12175, %v12172
    %v12410 = vpack.c.b16 %v12176, %v12173
    %v12411 = vpack.c.b16 %v12177, %v12174
    %v12412 = vpack.c.b16 %v12181, %v12178
    %v12413 = vpack.c.b16 %v12182, %v12179
    %v12414 = vpack.c.b16 %v12183, %v12180
    %v12415 = vpack.c.b16 %v12187, %v12184
    %v12416 = vpack.c.b16 %v12188, %v12185
    %v12417 = vpack.c.b16 %v12189, %v12186
    %v12418 = vpack.c.b16 %v12193, %v12190
    %v12419 = vpack.c.b16 %v12194, %v12191
    %v12420 = vpack.c.b16 %v12195, %v12192
    %v12421 = vpack.c.b16 %v12199, %v12196
    %v12422 = vpack.c.b16 %v12200, %v12197
    %v12423 = vpack.c.b16 %v12201, %v12198
    %v12424 = vpack.c.b16 %v12205, %v12202
    %v12425 = vpack.c.b16 %v12206, %v12203
    %v12426 = vpack.c.b16 %v12207, %v12204
    %v12427 = vpack.c.b16 %v12211, %v12208
    %v12428 = vpack.c.b16 %v12212, %v12209
    %v12429 = vpack.c.b16 %v12213, %v12210
    %v12430 = vpack.c.b16 %v12217, %v12214
    %v12431 = vpack.c.b16 %v12218, %v12215
    %v12432 = vpack.c.b16 %v12219, %v12216
    %v12433 = vpack.c.b16 %v12223, %v12220
    %v12434 = vpack.c.b16 %v12224, %v12221
    %v12435 = vpack.c.b16 %v12225, %v12222
    %v12436 = vpack.c.b16 %v12229, %v12226
    %v12437 = vpack.c.b16 %v12230, %v12227
    %v12438 = vpack.c.b16 %v12231, %v12228
    %v12439 = vpack.c.b16 %v12235, %v12232
    %v12440 = vpack.c.b16 %v12236, %v12233
    %v12441 = vpack.c.b16 %v12237, %v12234
    %v12442 = vpack.c.b16 %v12241, %v12238
    %v12443 = vpack.c.b16 %v12242, %v12239
    %v12444 = vpack.c.b16 %v12243, %v12240
    %v12445 = vpack.c.b16 %v12247, %v12244
    %v12446 = vpack.c.b16 %v12248, %v12245
    %v12447 = vpack.c.b16 %v12249, %v12246
    %v12448 = vpack.c.b16 %v12253, %v12250
    %v12449 = vpack.c.b16 %v12254, %v12251
    %v12450 = vpack.c.b16 %v12255, %v12252
    %v12451 = vpack.c.b16 %v12259, %v12256
    %v12452 = vpack.c.b16 %v12260, %v12257
    %v12453 = vpack.c.b16 %v12261, %v12258
    %v12454 = vpack.c.b16 %v12265, %v12262
    %v12455 = vpack.c.b16 %v12266, %v12263
    %v12456 = vpack.c.b16 %v12267, %v12264
    %v12457 = vpack.c.b16 %v12271, %v12268
    %v12458 = vpack.c.b16 %v12272, %v12269
    %v12459 = vpack.c.b16 %v12273, %v12270
    %v12460 = vpack.c.b16 %v12277, %v12274
    %v12461 = vpack.c.b16 %v12278, %v12275
    %v12462 = vpack.c.b16 %v12279, %v12276
    %v12463 = vpack.c.b16 %v12283, %v12280
    %v12464 = vpack.c.b16 %v12284, %v12281
    %v12465 = vpack.c.b16 %v12285, %v12282
    %v12466 = vpack.c.b16 %v12289, %v12286
    %v12467 = vpack.c.b16 %v12290, %v12287
    %v12468 = vpack.c.b16 %v12291, %v12288
    %v12469 = vpack.c.b16 %v12295, %v12292
    %v12470 = vpack.c.b16 %v12296, %v12293
    %v12471 = vpack.c.b16 %v12297, %v12294
    %v12472 = vpack.c.b16 %v12301, %v12298
    %v12473 = vpack.c.b16 %v12302, %v12299
    %v12474 = vpack.c.b16 %v12303, %v12300
    %v12475 = vpack.c.b16 %v12307, %v12304
    %v12476 = vpack.c.b16 %v12308, %v12305
    %v12477 = vpack.c.b16 %v12309, %v12306
    %v12478 = vpack.c.b16 %v12313, %v12310
    %v12479 = vpack.c.b16 %v12314, %v12311
    %v12480 = vpack.c.b16 %v12315, %v12312
    %v12481 = vpack.c.b16 %v12319, %v12316
    %v12482 = vpack.c.b16 %v12320, %v12317
    %v12483 = vpack.c.b16 %v12321, %v12318
    %v12484 = vpack.c.b16 %v12325, %v12322
    %v12485 = vpack.c.b16 %v12326, %v12323
    %v12486 = vpack.c.b16 %v12327, %v12324
    %v12487 = vpack.c.b16 %v12331, %v12328
    %v12488 = vpack.c.b16 %v12332, %v12329
    %v12489 = vpack.c.b16 %v12333, %v12330
    %v12490 = vpack.c.b16 %v12337, %v12334
    %v12491 = vpack.c.b16 %v12338, %v12335
    %v12492 = vpack.c.b16 %v12339, %v12336
    %v12493 = vpack.c.b16 %v12343, %v12340
    %v12494 = vpack.c.b16 %v12344, %v12341
    %v12495 = vpack.c.b16 %v12345, %v12342
    %v12496 = vpack.c.b16 %v12349, %v12346
    %v12497 = vpack.c.b16 %v12350, %v12347
    %v12498 = vpack.c.b16 %v12351, %v12348
    %v12647 = vsel %vm4036, %v11657, 0
    %12649 = vmatpush.bf16.msra.mxu0 %v12373
    %12650 = vmatpush.bf16.msra.mxu0 %v12370
    %12651 = vmatpush.bf16.msra.mxu0 %v12367
    %12652 = vmatpush.bf16.msra.mxu0 %v12364
    %12653 = vmatpush.bf16.msra.mxu0 %v12361
    %12654 = vmatpush.bf16.msra.mxu0 %v12358
    %12655 = vmatpush.bf16.msra.mxu0 %v12355
    %12656 = vmatpush.bf16.msra.mxu0 %v12352
    %12657 = vmatmul.bf16.gmra.mxu0 %v11651
    %v12658 = vpop.f32.mrf.mxu0
    %v12659 = vadd.f32 %v11856, %v12658
    %v12660 = vpop.f32.mrf.mxu0
    %12661 = vdwg.mxu0
    %12662 = vmatpush.bf16.msra.mxu0 %v12397
    %12663 = vmatpush.bf16.msra.mxu0 %v12394
    %12664 = vmatpush.bf16.msra.mxu0 %v12391
    %12665 = vmatpush.bf16.msra.mxu0 %v12388
    %12666 = vmatpush.bf16.msra.mxu0 %v12385
    %12667 = vmatpush.bf16.msra.mxu0 %v12382
    %12668 = vmatpush.bf16.msra.mxu0 %v12379
    %12669 = vmatpush.bf16.msra.mxu0 %v12376
    %12670 = vmatmul.bf16.gmra.mxu0 %v11652
    %v12671 = vpop.f32.mrf.mxu0
    %v12672 = vadd.f32 %v12659, %v12671
    %v12673 = vpop.f32.mrf.mxu0
    %12674 = vdwg.mxu0
    %12675 = vmatpush.bf16.msra.mxu0 %v12421
    %12676 = vmatpush.bf16.msra.mxu0 %v12418
    %12677 = vmatpush.bf16.msra.mxu0 %v12415
    %12678 = vmatpush.bf16.msra.mxu0 %v12412
    %12679 = vmatpush.bf16.msra.mxu0 %v12409
    %12680 = vmatpush.bf16.msra.mxu0 %v12406
    %12681 = vmatpush.bf16.msra.mxu0 %v12403
    %12682 = vmatpush.bf16.msra.mxu0 %v12400
    %12683 = vmatmul.bf16.gmra.mxu0 %v11653
    %v12684 = vpop.f32.mrf.mxu0
    %v12685 = vadd.f32 %v12672, %v12684
    %v12686 = vpop.f32.mrf.mxu0
    %12687 = vdwg.mxu0
    %12688 = vmatpush.bf16.msra.mxu0 %v12445
    %12689 = vmatpush.bf16.msra.mxu0 %v12442
    %12690 = vmatpush.bf16.msra.mxu0 %v12439
    %12691 = vmatpush.bf16.msra.mxu0 %v12436
    %12692 = vmatpush.bf16.msra.mxu0 %v12433
    %12693 = vmatpush.bf16.msra.mxu0 %v12430
    %12694 = vmatpush.bf16.msra.mxu0 %v12427
    %12695 = vmatpush.bf16.msra.mxu0 %v12424
    %12696 = vmatmul.bf16.gmra.mxu0 %v11654
    %v12697 = vpop.f32.mrf.mxu0
    %v12698 = vadd.f32 %v12685, %v12697
    %v12699 = vpop.f32.mrf.mxu0
    %12700 = vdwg.mxu0
    %12701 = vmatpush.bf16.msra.mxu0 %v12469
    %12702 = vmatpush.bf16.msra.mxu0 %v12466
    %12703 = vmatpush.bf16.msra.mxu0 %v12463
    %12704 = vmatpush.bf16.msra.mxu0 %v12460
    %12705 = vmatpush.bf16.msra.mxu0 %v12457
    %12706 = vmatpush.bf16.msra.mxu0 %v12454
    %12707 = vmatpush.bf16.msra.mxu0 %v12451
    %12708 = vmatpush.bf16.msra.mxu0 %v12448
    %12709 = vmatmul.bf16.gmra.mxu0 %v11655
    %v12710 = vpop.f32.mrf.mxu0
    %v12711 = vadd.f32 %v12698, %v12710
    %v12712 = vpop.f32.mrf.mxu0
    %12713 = vdwg.mxu0
    %12714 = vmatpush.bf16.msra.mxu0 %v12493
    %12715 = vmatpush.bf16.msra.mxu0 %v12490
    %12716 = vmatpush.bf16.msra.mxu0 %v12487
    %12717 = vmatpush.bf16.msra.mxu0 %v12484
    %12718 = vmatpush.bf16.msra.mxu0 %v12481
    %12719 = vmatpush.bf16.msra.mxu0 %v12478
    %12720 = vmatpush.bf16.msra.mxu0 %v12475
    %12721 = vmatpush.bf16.msra.mxu0 %v12472
    %12722 = vmatmul.bf16.gmra.mxu0 %v11656
    %v12723 = vpop.f32.mrf.mxu0
    %v12724 = vadd.f32 %v12711, %v12723
    %v12725 = vpop.f32.mrf.mxu0
    %12726 = vdwg.mxu0
    %12727 = vmatpush.bf16.msra.mxu0 0
    %12728 = vmatpush.bf16.msra.mxu0 0
    %12729 = vmatpush.bf16.msra.mxu0 0
    %12730 = vmatpush.bf16.msra.mxu0 0
    %12731 = vmatpush.bf16.msra.mxu0 0
    %12732 = vmatpush.bf16.msra.mxu0 0
    %12733 = vmatpush.bf16.msra.mxu0 0
    %12734 = vmatpush.bf16.msra.mxu0 %v12496
    %12735 = vmatmul.bf16.gmra.mxu0 %v12647
    %v12736 = vpop.f32.mrf.mxu0
    %v12737 = vadd.f32 %v12724, %v12736
    %v12738 = vpop.f32.mrf.mxu0
    %12739 = vdwg.mxu0
    %12740 = vmatpush.bf16.msra.mxu0 %v12374
    %12741 = vmatpush.bf16.msra.mxu0 %v12371
    %12742 = vmatpush.bf16.msra.mxu0 %v12368
    %12743 = vmatpush.bf16.msra.mxu0 %v12365
    %12744 = vmatpush.bf16.msra.mxu0 %v12362
    %12745 = vmatpush.bf16.msra.mxu0 %v12359
    %12746 = vmatpush.bf16.msra.mxu0 %v12356
    %12747 = vmatpush.bf16.msra.mxu0 %v12353
    %12748 = vmatmul.bf16.gmra.mxu0 %v11651
    %v12749 = vpop.f32.mrf.mxu0
    %v12750 = vadd.f32 %v11857, %v12749
    %v12751 = vpop.f32.mrf.mxu0
    %12752 = vdwg.mxu0
    %12753 = vmatpush.bf16.msra.mxu0 %v12398
    %12754 = vmatpush.bf16.msra.mxu0 %v12395
    %12755 = vmatpush.bf16.msra.mxu0 %v12392
    %12756 = vmatpush.bf16.msra.mxu0 %v12389
    %12757 = vmatpush.bf16.msra.mxu0 %v12386
    %12758 = vmatpush.bf16.msra.mxu0 %v12383
    %12759 = vmatpush.bf16.msra.mxu0 %v12380
    %12760 = vmatpush.bf16.msra.mxu0 %v12377
    %12761 = vmatmul.bf16.gmra.mxu0 %v11652
    %v12762 = vpop.f32.mrf.mxu0
    %v12763 = vadd.f32 %v12750, %v12762
    %v12764 = vpop.f32.mrf.mxu0
    %12765 = vdwg.mxu0
    %12766 = vmatpush.bf16.msra.mxu0 %v12422
    %12767 = vmatpush.bf16.msra.mxu0 %v12419
    %12768 = vmatpush.bf16.msra.mxu0 %v12416
    %12769 = vmatpush.bf16.msra.mxu0 %v12413
    %12770 = vmatpush.bf16.msra.mxu0 %v12410
    %12771 = vmatpush.bf16.msra.mxu0 %v12407
    %12772 = vmatpush.bf16.msra.mxu0 %v12404
    %12773 = vmatpush.bf16.msra.mxu0 %v12401
    %12774 = vmatmul.bf16.gmra.mxu0 %v11653
    %v12775 = vpop.f32.mrf.mxu0
    %v12776 = vadd.f32 %v12763, %v12775
    %v12777 = vpop.f32.mrf.mxu0
    %12778 = vdwg.mxu0
    %12779 = vmatpush.bf16.msra.mxu0 %v12446
    %12780 = vmatpush.bf16.msra.mxu0 %v12443
    %12781 = vmatpush.bf16.msra.mxu0 %v12440
    %12782 = vmatpush.bf16.msra.mxu0 %v12437
    %12783 = vmatpush.bf16.msra.mxu0 %v12434
    %12784 = vmatpush.bf16.msra.mxu0 %v12431
    %12785 = vmatpush.bf16.msra.mxu0 %v12428
    %12786 = vmatpush.bf16.msra.mxu0 %v12425
    %12787 = vmatmul.bf16.gmra.mxu0 %v11654
    %v12788 = vpop.f32.mrf.mxu0
    %v12789 = vadd.f32 %v12776, %v12788
    %v12790 = vpop.f32.mrf.mxu0
    %12791 = vdwg.mxu0
    %12792 = vmatpush.bf16.msra.mxu0 %v12470
    %12793 = vmatpush.bf16.msra.mxu0 %v12467
    %12794 = vmatpush.bf16.msra.mxu0 %v12464
    %12795 = vmatpush.bf16.msra.mxu0 %v12461
    %12796 = vmatpush.bf16.msra.mxu0 %v12458
    %12797 = vmatpush.bf16.msra.mxu0 %v12455
    %12798 = vmatpush.bf16.msra.mxu0 %v12452
    %12799 = vmatpush.bf16.msra.mxu0 %v12449
    %12800 = vmatmul.bf16.gmra.mxu0 %v11655
    %v12801 = vpop.f32.mrf.mxu0
    %v12802 = vadd.f32 %v12789, %v12801
    %v12803 = vpop.f32.mrf.mxu0
    %12804 = vdwg.mxu0
    %12805 = vmatpush.bf16.msra.mxu0 %v12494
    %12806 = vmatpush.bf16.msra.mxu0 %v12491
    %12807 = vmatpush.bf16.msra.mxu0 %v12488
    %12808 = vmatpush.bf16.msra.mxu0 %v12485
    %12809 = vmatpush.bf16.msra.mxu0 %v12482
    %12810 = vmatpush.bf16.msra.mxu0 %v12479
    %12811 = vmatpush.bf16.msra.mxu0 %v12476
    %12812 = vmatpush.bf16.msra.mxu0 %v12473
    %12813 = vmatmul.bf16.gmra.mxu0 %v11656
    %v12814 = vpop.f32.mrf.mxu0
    %v12815 = vadd.f32 %v12802, %v12814
    %v12816 = vpop.f32.mrf.mxu0
    %12817 = vdwg.mxu0
    %12818 = vmatpush.bf16.msra.mxu0 0
    %12819 = vmatpush.bf16.msra.mxu0 0
    %12820 = vmatpush.bf16.msra.mxu0 0
    %12821 = vmatpush.bf16.msra.mxu0 0
    %12822 = vmatpush.bf16.msra.mxu0 0
    %12823 = vmatpush.bf16.msra.mxu0 0
    %12824 = vmatpush.bf16.msra.mxu0 0
    %12825 = vmatpush.bf16.msra.mxu0 %v12497
    %12826 = vmatmul.bf16.gmra.mxu0 %v12647
    %v12827 = vpop.f32.mrf.mxu0
    %v12828 = vadd.f32 %v12815, %v12827
    %v12829 = vpop.f32.mrf.mxu0
    %12830 = vdwg.mxu0
    %12831 = vmatpush.bf16.msra.mxu0 %v12375
    %12832 = vmatpush.bf16.msra.mxu0 %v12372
    %12833 = vmatpush.bf16.msra.mxu0 %v12369
    %12834 = vmatpush.bf16.msra.mxu0 %v12366
    %12835 = vmatpush.bf16.msra.mxu0 %v12363
    %12836 = vmatpush.bf16.msra.mxu0 %v12360
    %12837 = vmatpush.bf16.msra.mxu0 %v12357
    %12838 = vmatpush.bf16.msra.mxu0 %v12354
    %12839 = vmatmul.bf16.gmra.mxu0 %v11651
    %v12840 = vpop.f32.mrf.mxu0
    %v12841 = vadd.f32 %v11858, %v12840
    %v12842 = vpop.f32.mrf.mxu0
    %12843 = vdwg.mxu0
    %12844 = vmatpush.bf16.msra.mxu0 %v12399
    %12845 = vmatpush.bf16.msra.mxu0 %v12396
    %12846 = vmatpush.bf16.msra.mxu0 %v12393
    %12847 = vmatpush.bf16.msra.mxu0 %v12390
    %12848 = vmatpush.bf16.msra.mxu0 %v12387
    %12849 = vmatpush.bf16.msra.mxu0 %v12384
    %12850 = vmatpush.bf16.msra.mxu0 %v12381
    %12851 = vmatpush.bf16.msra.mxu0 %v12378
    %12852 = vmatmul.bf16.gmra.mxu0 %v11652
    %v12853 = vpop.f32.mrf.mxu0
    %v12854 = vadd.f32 %v12841, %v12853
    %v12855 = vpop.f32.mrf.mxu0
    %12856 = vdwg.mxu0
    %12857 = vmatpush.bf16.msra.mxu0 %v12423
    %12858 = vmatpush.bf16.msra.mxu0 %v12420
    %12859 = vmatpush.bf16.msra.mxu0 %v12417
    %12860 = vmatpush.bf16.msra.mxu0 %v12414
    %12861 = vmatpush.bf16.msra.mxu0 %v12411
    %12862 = vmatpush.bf16.msra.mxu0 %v12408
    %12863 = vmatpush.bf16.msra.mxu0 %v12405
    %12864 = vmatpush.bf16.msra.mxu0 %v12402
    %12865 = vmatmul.bf16.gmra.mxu0 %v11653
    %v12866 = vpop.f32.mrf.mxu0
    %v12867 = vadd.f32 %v12854, %v12866
    %v12868 = vpop.f32.mrf.mxu0
    %12869 = vdwg.mxu0
    %12870 = vmatpush.bf16.msra.mxu0 %v12447
    %12871 = vmatpush.bf16.msra.mxu0 %v12444
    %12872 = vmatpush.bf16.msra.mxu0 %v12441
    %12873 = vmatpush.bf16.msra.mxu0 %v12438
    %12874 = vmatpush.bf16.msra.mxu0 %v12435
    %12875 = vmatpush.bf16.msra.mxu0 %v12432
    %12876 = vmatpush.bf16.msra.mxu0 %v12429
    %12877 = vmatpush.bf16.msra.mxu0 %v12426
    %12878 = vmatmul.bf16.gmra.mxu0 %v11654
    %v12879 = vpop.f32.mrf.mxu0
    %v12880 = vadd.f32 %v12867, %v12879
    %v12881 = vpop.f32.mrf.mxu0
    %12882 = vdwg.mxu0
    %12883 = vmatpush.bf16.msra.mxu0 %v12471
    %12884 = vmatpush.bf16.msra.mxu0 %v12468
    %12885 = vmatpush.bf16.msra.mxu0 %v12465
    %12886 = vmatpush.bf16.msra.mxu0 %v12462
    %12887 = vmatpush.bf16.msra.mxu0 %v12459
    %12888 = vmatpush.bf16.msra.mxu0 %v12456
    %12889 = vmatpush.bf16.msra.mxu0 %v12453
    %12890 = vmatpush.bf16.msra.mxu0 %v12450
    %12891 = vmatmul.bf16.gmra.mxu0 %v11655
    %v12892 = vpop.f32.mrf.mxu0
    %v12893 = vadd.f32 %v12880, %v12892
    %v12894 = vpop.f32.mrf.mxu0
    %12895 = vdwg.mxu0
    %12896 = vmatpush.bf16.msra.mxu0 %v12495
    %12897 = vmatpush.bf16.msra.mxu0 %v12492
    %12898 = vmatpush.bf16.msra.mxu0 %v12489
    %12899 = vmatpush.bf16.msra.mxu0 %v12486
    %12900 = vmatpush.bf16.msra.mxu0 %v12483
    %12901 = vmatpush.bf16.msra.mxu0 %v12480
    %12902 = vmatpush.bf16.msra.mxu0 %v12477
    %12903 = vmatpush.bf16.msra.mxu0 %v12474
    %12904 = vmatmul.bf16.gmra.mxu0 %v11656
    %v12905 = vpop.f32.mrf.mxu0
    %v12906 = vadd.f32 %v12893, %v12905
    %v12907 = vpop.f32.mrf.mxu0
    %12908 = vdwg.mxu0
    %12909 = vmatpush.bf16.msra.mxu0 0
    %12910 = vmatpush.bf16.msra.mxu0 0
    %12911 = vmatpush.bf16.msra.mxu0 0
    %12912 = vmatpush.bf16.msra.mxu0 0
    %12913 = vmatpush.bf16.msra.mxu0 0
    %12914 = vmatpush.bf16.msra.mxu0 0
    %12915 = vmatpush.bf16.msra.mxu0 0
    %12916 = vmatpush.bf16.msra.mxu0 %v12498
    %12917 = vmatmul.bf16.gmra.mxu0 %v12647
    %v12918 = vpop.f32.mrf.mxu0
    %v12919 = vadd.f32 %v12906, %v12918
    %v12920 = vpop.f32.mrf.mxu0
    %12921 = vdwg.mxu0
    %v12922 = vmax.f32 %v12737, 0.0
    %v12923 = vmax.f32 %v12828, 0.0
    %v12924 = vmax.f32 %v12919, 0.0
    %v12925 = vpack.c.bf16 %v12922, %v12922
    %v12926 = vpack.c.bf16 %v12923, %v12923
    %v12927 = vpack.c.bf16 %v12924, %v12924
    %v12928 = vld [vmem:[%s11] sm:$0xf]
    %v12929 = vld [vmem:[%s11 + $0x4] sm:$0xf]
    %v12930 = vld [vmem:[%s11 + $0x8] sm:$0xf]
    %v12931 = vld [vmem:[%s11 + $0xc] sm:$0xf]
    %v12932 = vld [vmem:[%s11 + $0x10] sm:$0xf]
    %v12933 = vld [vmem:[%s11 + $0x14] sm:$0xf]
    %v12934 = vld [vmem:[%s11 + $0x18] sm:$0xf]
    %v12935 = vld [vmem:[%s11 + $0x1c] sm:$0xf]
    %v12936 = vld [vmem:[%s11 + $0x20] sm:$0xf]
    %v12937 = vld [vmem:[%s11 + $0x24] sm:$0xf]
    %v12938 = vld [vmem:[%s11 + $0x28] sm:$0xf]
    %v12939 = vld [vmem:[%s11 + $0x2c] sm:$0xf]
    %v12940 = vld [vmem:[%s11 + $0x30] sm:$0xf]
    %v12941 = vld [vmem:[%s11 + $0x34] sm:$0xf]
    %v12942 = vld [vmem:[%s11 + $0x38] sm:$0xf]
    %v12943 = vld [vmem:[%s11 + $0x3c] sm:$0xf]
    %v12944 = vld [vmem:[%s11 + $0x40] sm:$0xf]
    %v12945 = vld [vmem:[%s11 + $0x44] sm:$0xf]
    %v12946 = vld [vmem:[%s11 + $0x48] sm:$0xf]
    %v12947 = vld [vmem:[%s11 + $0x4c] sm:$0xf]
    %v12948 = vld [vmem:[%s11 + $0x50] sm:$0xf]
    %v12949 = vld [vmem:[%s11 + $0x54] sm:$0xf]
    %v12950 = vld [vmem:[%s11 + $0x58] sm:$0xf]
    %v12951 = vld [vmem:[%s11 + $0x5c] sm:$0xf]
    %v12952 = vld [vmem:[%s11 + $0x60] sm:$0xf]
    %v12953 = vld [vmem:[%s11 + $0x64] sm:$0xf]
    %v12954 = vld [vmem:[%s11 + $0x68] sm:$0xf]
    %v12955 = vld [vmem:[%s11 + $0x6c] sm:$0xf]
    %v12956 = vld [vmem:[%s11 + $0x70] sm:$0xf]
    %v12957 = vld [vmem:[%s11 + $0x74] sm:$0xf]
    %v12958 = vld [vmem:[%s11 + $0x78] sm:$0xf]
    %v12959 = vld [vmem:[%s11 + $0x7c] sm:$0xf]
    %v12960 = vld [vmem:[%s11 + $0x80] sm:$0xf]
    %v12961 = vld [vmem:[%s11 + $0x84] sm:$0xf]
    %v12962 = vld [vmem:[%s11 + $0x88] sm:$0xf]
    %v12963 = vld [vmem:[%s11 + $0x8c] sm:$0xf]
    %v12964 = vld [vmem:[%s12] sm:$0x1]
    %v12966 = vperm.slane %v12964, 0
    %v13004 = vunpack.c.l.b16 %v12928
    %v13005 = vunpack.c.l.b16 %v12929
    %v13006 = vunpack.c.l.b16 %v12930
    %v13007 = vunpack.c.l.b16 %v12931
    %v13008 = vunpack.c.l.b16 %v12932
    %v13009 = vunpack.c.l.b16 %v12933
    %v13010 = vunpack.c.l.b16 %v12934
    %v13011 = vunpack.c.l.b16 %v12935
    %v13012 = vunpack.c.l.b16 %v12936
    %v13013 = vunpack.c.l.b16 %v12937
    %v13014 = vunpack.c.l.b16 %v12938
    %v13015 = vunpack.c.l.b16 %v12939
    %v13016 = vunpack.c.l.b16 %v12940
    %v13017 = vunpack.c.l.b16 %v12941
    %v13018 = vunpack.c.l.b16 %v12942
    %v13019 = vunpack.c.l.b16 %v12943
    %v13020 = vunpack.c.l.b16 %v12944
    %v13021 = vunpack.c.l.b16 %v12945
    %v13022 = vunpack.c.l.b16 %v12946
    %v13023 = vunpack.c.l.b16 %v12947
    %v13024 = vunpack.c.l.b16 %v12948
    %v13025 = vunpack.c.l.b16 %v12949
    %v13026 = vunpack.c.l.b16 %v12950
    %v13027 = vunpack.c.l.b16 %v12951
    %v13028 = vunpack.c.l.b16 %v12952
    %v13029 = vunpack.c.l.b16 %v12953
    %v13030 = vunpack.c.l.b16 %v12954
    %v13031 = vunpack.c.l.b16 %v12955
    %v13032 = vunpack.c.l.b16 %v12956
    %v13033 = vunpack.c.l.b16 %v12957
    %v13034 = vunpack.c.l.b16 %v12958
    %v13035 = vunpack.c.l.b16 %v12959
    %v13036 = vunpack.c.l.b16 %v12960
    %v13037 = vunpack.c.l.b16 %v12961
    %v13038 = vunpack.c.l.b16 %v12962
    %v13039 = vunpack.c.l.b16 %v12963
    %v13040 = vpack.c.b16 %v13005, %v13004
    %v13041 = vpack.c.b16 %v13007, %v13006
    %v13042 = vpack.c.b16 %v13009, %v13008
    %v13043 = vpack.c.b16 %v13011, %v13010
    %v13044 = vpack.c.b16 %v13013, %v13012
    %v13045 = vpack.c.b16 %v13015, %v13014
    %v13046 = vpack.c.b16 %v13017, %v13016
    %v13047 = vpack.c.b16 %v13019, %v13018
    %v13048 = vpack.c.b16 %v13021, %v13020
    %v13049 = vpack.c.b16 %v13023, %v13022
    %v13050 = vpack.c.b16 %v13025, %v13024
    %v13051 = vpack.c.b16 %v13027, %v13026
    %v13052 = vpack.c.b16 %v13029, %v13028
    %v13053 = vpack.c.b16 %v13031, %v13030
    %v13054 = vpack.c.b16 %v13033, %v13032
    %v13055 = vpack.c.b16 %v13035, %v13034
    %v13056 = vpack.c.b16 %v13037, %v13036
    %v13057 = vpack.c.b16 %v13039, %v13038
    %v13077 = vsel %vm9577, %v12927, 0
    %13079 = vmatpush.bf16.msra.mxu0 %v13047
    %13080 = vmatpush.bf16.msra.mxu0 %v13046
    %13081 = vmatpush.bf16.msra.mxu0 %v13045
    %13082 = vmatpush.bf16.msra.mxu0 %v13044
    %13083 = vmatpush.bf16.msra.mxu0 %v13043
    %13084 = vmatpush.bf16.msra.mxu0 %v13042
    %13085 = vmatpush.bf16.msra.mxu0 %v13041
    %13086 = vmatpush.bf16.msra.mxu0 %v13040
    %13087 = vmatmul.bf16.gmra.mxu0 %v12925
    %v13088 = vpop.f32.mrf.mxu0
    %v13089 = vadd.f32 %v12966, %v13088
    %v13090 = vpop.f32.mrf.mxu0
    %13091 = vdwg.mxu0
    %13092 = vmatpush.bf16.msra.mxu0 %v13055
    %13093 = vmatpush.bf16.msra.mxu0 %v13054
    %13094 = vmatpush.bf16.msra.mxu0 %v13053
    %13095 = vmatpush.bf16.msra.mxu0 %v13052
    %13096 = vmatpush.bf16.msra.mxu0 %v13051
    %13097 = vmatpush.bf16.msra.mxu0 %v13050
    %13098 = vmatpush.bf16.msra.mxu0 %v13049
    %13099 = vmatpush.bf16.msra.mxu0 %v13048
    %13100 = vmatmul.bf16.gmra.mxu0 %v12926
    %v13101 = vpop.f32.mrf.mxu0
    %v13102 = vadd.f32 %v13089, %v13101
    %v13103 = vpop.f32.mrf.mxu0
    %13104 = vdwg.mxu0
    %13105 = vmatpush.bf16.msra.mxu0 0
    %13106 = vmatpush.bf16.msra.mxu0 0
    %13107 = vmatpush.bf16.msra.mxu0 0
    %13108 = vmatpush.bf16.msra.mxu0 0
    %13109 = vmatpush.bf16.msra.mxu0 0
    %13110 = vmatpush.bf16.msra.mxu0 0
    %13111 = vmatpush.bf16.msra.mxu0 %v13057
    %13112 = vmatpush.bf16.msra.mxu0 %v13056
    %13113 = vmatmul.bf16.gmra.mxu0 %v13077
    %v13114 = vpop.f32.mrf.mxu0
    %v13115 = vadd.f32 %v13102, %v13114
    %v13116 = vpop.f32.mrf.mxu0
    %13117 = vdwg.mxu0
    %v13118 = vmax.f32 %v13115, 0.0
    %v13119 = vpack.c.bf16 %v13118, %v13118
    %v13120 = vld [vmem:[%s13] sm:$0xf]
    %v13121 = vld [vmem:[%s13 + $0x4] sm:$0xf]
    %v13122 = vld [vmem:[%s13 + $0x8] sm:$0xf]
    %v13123 = vld [vmem:[%s13 + $0xc] sm:$0xf]
    %v13124 = vld [vmem:[%s13 + $0x10] sm:$0xf]
    %v13125 = vld [vmem:[%s13 + $0x14] sm:$0xf]
    %v13126 = vld [vmem:[%s13 + $0x18] sm:$0xf]
    %v13127 = vld [vmem:[%s13 + $0x1c] sm:$0xf]
    %v13128 = vld [vmem:[%s13 + $0x20] sm:$0xf]
    %v13129 = vld [vmem:[%s13 + $0x24] sm:$0xf]
    %v13130 = vld [vmem:[%s13 + $0x28] sm:$0xf]
    %v13131 = vld [vmem:[%s13 + $0x2c] sm:$0xf]
    %v13132 = vld [vmem:[%s13 + $0x30] sm:$0xf]
    %v13133 = vld [vmem:[%s13 + $0x34] sm:$0xf]
    %v13134 = vld [vmem:[%s13 + $0x38] sm:$0xf]
    %v13135 = vld [vmem:[%s13 + $0x3c] sm:$0xf]
    %v13136 = vld [vmem:[%s14] sm:$0x1]
    %v13138 = vperm.slane %v13136, 0
    %v13156 = vunpack.c.l.b16 %v13120
    %v13157 = vunpack.c.l.b16 %v13121
    %v13158 = vunpack.c.l.b16 %v13122
    %v13159 = vunpack.c.l.b16 %v13123
    %v13160 = vunpack.c.l.b16 %v13124
    %v13161 = vunpack.c.l.b16 %v13125
    %v13162 = vunpack.c.l.b16 %v13126
    %v13163 = vunpack.c.l.b16 %v13127
    %v13164 = vunpack.c.l.b16 %v13128
    %v13165 = vunpack.c.l.b16 %v13129
    %v13166 = vunpack.c.l.b16 %v13130
    %v13167 = vunpack.c.l.b16 %v13131
    %v13168 = vunpack.c.l.b16 %v13132
    %v13169 = vunpack.c.l.b16 %v13133
    %v13170 = vunpack.c.l.b16 %v13134
    %v13171 = vunpack.c.l.b16 %v13135
    %v13172 = vpack.c.b16 %v13157, %v13156
    %v13173 = vpack.c.b16 %v13159, %v13158
    %v13174 = vpack.c.b16 %v13161, %v13160
    %v13175 = vpack.c.b16 %v13163, %v13162
    %v13176 = vpack.c.b16 %v13165, %v13164
    %v13177 = vpack.c.b16 %v13167, %v13166
    %v13178 = vpack.c.b16 %v13169, %v13168
    %v13179 = vpack.c.b16 %v13171, %v13170
    %13188 = vmatpush.bf16.msra.mxu0 %v13179
    %13189 = vmatpush.bf16.msra.mxu0 %v13178
    %13190 = vmatpush.bf16.msra.mxu0 %v13177
    %13191 = vmatpush.bf16.msra.mxu0 %v13176
    %13192 = vmatpush.bf16.msra.mxu0 %v13175
    %13193 = vmatpush.bf16.msra.mxu0 %v13174
    %13194 = vmatpush.bf16.msra.mxu0 %v13173
    %13195 = vmatpush.bf16.msra.mxu0 %v13172
    %13196 = vmatmul.bf16.gmra.mxu0 %v13119
    %v13197 = vpop.f32.mrf.mxu0
    %v13198 = vadd.f32 %v13138, %v13197
    %v13199 = vpop.f32.mrf.mxu0
    %13200 = vdwg.mxu0
    %v13201 = vmul.f32 %v13198, 1.442695
    %v13202 = vpow.pop %v13201
    %v13203 = vld [vmem:[%s15] sm:$0x3]
    %13205 = vrot.lane.b32.xlu0 %v13203, 4
    %v13206 = vpop.permute.xlu0 %13205
    %v13208 = vmul.f32 %v13202, %v13206
    %13210 = vrot.lane.b32.xlu0 %v13208, 124
    %v13211 = vpop.permute.xlu0 %13210
    %v13213 = vadd.f32 %v13198, %v13211
    %vm13214 = vcmask 25600
    %13215 = vst.msk [vmem:[#allocation2] sm:$0x3] %vm13214, %v13213
    %v13216 = vmul.f32 %v13202, %v13202
    %v13217 = vmul.f32 %v13198, %v13198
    %13219 = vrot.lane.b32.xlu0 %v13217, 4
    %v13220 = vpop.permute.xlu0 %13219
    %v13222 = vadd.f32 %v13216, %v13220
    %v13223 = vsub.f32 %v13222, %v13198
    %v13224 = vsub.f32 %v13223, 0.5
    %13226 = vrot.lane.b32.xlu0 %v13224, 124
    %v13227 = vpop.permute.xlu0 %13226
    %v13229 = vsel %vm13214, %v13227, 0.0
    %13230 = vadd.xlane.f32.xlu0 %v13229
    %v13231 = vpop.xlane.xlu0 %13230
    %v13232 = vrot.slane %v13231, 4
    %v13233 = vadd.f32 %v13231, %v13232
    %v13234 = vrot.slane %v13233, 2
    %v13235 = vadd.f32 %v13233, %v13234
    %v13236 = vrot.slane %v13235, 1
    %v13237 = vadd.f32 %v13235, %v13236
    %s13238 = vtos %v13237
    %v13239 = vstv %s13238
    %vm13240 = vcmask 0
    %13241 = vst.msk [vmem:[#allocation4] sm:$0x1] %vm13240, %v13239
    // Predicated region
    $region66: #{tpu_custom_call.1} parent=1 // pred_check
      _
    $region67: #{tpu_custom_call.1} parent=1 // pred_check_branch
      %13243 = sbr.rel (0) target = $region69
    $region68: #{tpu_custom_call.1} parent=1 // pred_region
      %13245 = vsyncadd [#allocation3], 0
      %s13247 = sshll.u32 [#allocation2], 4
      %s13248 = int_to_ptr.vmem [resolvable:$true] %s13247
      %s13249 = sshll.u32 %s16, 4
      %s13250 = int_to_ptr.hbm [resolvable:$true] %s13249
      %13252 = dma.vmem_to_hbm [thread:$0]  %s13248, 32, %s13250, [#allocation3]
    $region69: #{tpu_custom_call.1} parent=1 // pred_fallthru
      _
    // Predicated region
    $region70: #{tpu_custom_call.1} parent=1 // pred_check
      _
    $region71: #{tpu_custom_call.1} parent=1 // pred_check_branch
      %13254 = sbr.rel (0) target = $region73
    $region72: #{tpu_custom_call.1} parent=1 // pred_region
      %13256 = vsyncadd [#allocation5], 0
      %s13258 = sshll.u32 [#allocation4], 4
      %s13259 = int_to_ptr.vmem [resolvable:$true] %s13258
      %s13260 = sshll.u32 %s17, 4
      %s13261 = int_to_ptr.hbm [resolvable:$true] %s13260
      %13263 = dma.vmem_to_hbm [thread:$0]  %s13259, 16, %s13261, [#allocation5]
    $region73: #{tpu_custom_call.1} parent=1 // pred_fallthru
      _
    // Predicated region
    $region74: #{tpu_custom_call.1} parent=1 // pred_check
      _
    $region75: #{tpu_custom_call.1} parent=1 // pred_check_branch
      %13265 = sbr.rel (0) target = $region77
    $region76: #{tpu_custom_call.1} parent=1 // pred_region
      %13267 = dma.done [#allocation3], 32
    $region77: #{tpu_custom_call.1} parent=1 // pred_fallthru
      _
    // Predicated region
    $region78: #{tpu_custom_call.1} parent=1 // pred_check
      _
    $region79: #{tpu_custom_call.1} parent=1 // pred_check_branch
      %13269 = sbr.rel (0) target = $region81
    $region80: #{tpu_custom_call.1} parent=1 // pred_region
      %13271 = dma.done [#allocation5], 16
    $region81: #{tpu_custom_call.1} parent=1 // pred_fallthru
      _
    %13272 = vsyncpa [#allocation3], 1
    %13273 = vsyncpa [#allocation5], 1

</llo_original>
